<compile_context>
chip_gen: v6e
topology: v6e:2x2x1
jax: 0.10.0
libtpu: 0.0.40
codegen_flags: <defaults>
</compile_context>

<pallas_src>
import jax
import jax.numpy as jnp
from jax import lax
from jax.experimental import pallas as pl
from jax.experimental.pallas import tpu as pltpu

LANE = 128      # channel axis is padded to a multiple of this (lane dim)
SUBLANE = 8     # W axis is padded to a multiple of this (sublane dim)


def _round_up(x, m):
    return (x + m - 1) // m * m


def _pick_tile_rows(n_rows, bytes_per_row, budget):
    """Largest divisor of n_rows whose row-tile stays within `budget` bytes."""
    # TODO(synk): for prime/awkward Hout this collapses TH; a cdiv grid with a
    # masked last tile would keep TH large regardless of Hout's factorization.
    best = 1
    for cand in range(1, n_rows + 1):
        if n_rows % cand == 0 and cand * bytes_per_row <= budget:
            best = cand
    return best


def _vmem_limit(block_bytes):
    """Explicit scoped-VMEM limit with headroom, capped below v7x's 64 MiB."""
    return int(min(48 * 1024 * 1024, max(16 * 1024 * 1024, 2 * block_bytes)))


# ----------------------------------------------------------------------------
# Row-tiled KxK stride-1 convolution (no bias) with
#   - manual double-buffered halo DMA from HBM (bf16),
#   - optional fused "relu(x*scale + shift)" input prologue (bn1+ReLU),
#   - optional in-kernel row-halo handling (input stored without spatial pad),
#   - per-batch BN statistics accumulated across row tiles.
# ----------------------------------------------------------------------------
def _make_conv_kernel(*, K, pad, TH, n_htiles, Hout, Wout, Wout_c, Wp,
                      rows_padded, apply_input_act, out_col_off, out_w):
    rows_in = TH + K - 1
    need_mask = apply_input_act or (not rows_padded)

    def body(x_hbm, w_ref, sc_ref, sh_ref, out_ref, sum_ref, sq_ref, xbuf, sem):
        n = pl.program_id(0)
        h = pl.program_id(1)
        slot = h % 2

        def dma_descs(row_tile, slot_idx):
            """(cond, copy) descriptors for the halo tile of `row_tile`."""
            if rows_padded:
                row0 = row_tile * TH
                if not isinstance(row_tile, int):
                    row0 = pl.multiple_of(row0, TH)
                return [(None, pltpu.make_async_copy(
                    x_hbm.at[n, pl.ds(row0, rows_in)],
                    xbuf.at[slot_idx], sem.at[slot_idx]))]
            # Source holds only the Hout valid rows; the missing halo rows stay
            # stale in xbuf and are zeroed by the validity mask below.
            if n_htiles == 1:
                return [(None, pltpu.make_async_copy(
                    x_hbm.at[n],
                    xbuf.at[slot_idx, pl.ds(pad, Hout)],
                    sem.at[slot_idx]))]
            first = pltpu.make_async_copy(
                x_hbm.at[n, pl.ds(0, rows_in - pad)],
                xbuf.at[slot_idx, pl.ds(pad, rows_in - pad)],
                sem.at[slot_idx])
            last = pltpu.make_async_copy(
                x_hbm.at[n, pl.ds((n_htiles - 1) * TH - pad, rows_in - pad)],
                xbuf.at[slot_idx, pl.ds(0, rows_in - pad)],
                sem.at[slot_idx])
            if isinstance(row_tile, int):
                if row_tile == 0:
                    return [(None, first)]
                if row_tile == n_htiles - 1:
                    return [(None, last)]
                return [(None, pltpu.make_async_copy(
                    x_hbm.at[n, pl.ds(row_tile * TH - pad, rows_in)],
                    xbuf.at[slot_idx], sem.at[slot_idx]))]
            mid_row0 = jnp.maximum(row_tile * TH - pad, 0)
            mid = pltpu.make_async_copy(
                x_hbm.at[n, pl.ds(mid_row0, rows_in)],
                xbuf.at[slot_idx], sem.at[slot_idx])
            return [(row_tile == 0, first),
                    (row_tile == n_htiles - 1, last),
                    (jnp.logical_and(row_tile > 0, row_tile < n_htiles - 1), mid)]

        def issue(row_tile, slot_idx, do_start):
            for cond, copy in dma_descs(row_tile, slot_idx):
                if cond is None:
                    copy.start() if do_start else copy.wait()
                else:
                    @pl.when(cond)
                    def _(copy=copy):
                        copy.start() if do_start else copy.wait()

        # Prime the pipeline at the first row-tile of every batch element so the
        # chain stays valid when the batch axis is sharded across TensorCores.
        @pl.when(h == 0)
        def _():
            issue(0, 0, True)

        # Prefetch the next row-tile while this one is computed.
        @pl.when(h + 1 < n_htiles)
        def _():
            issue(h + 1, 1 - slot, True)

        # Wait for the current tile's DMA.
        issue(h, slot, False)

        xv = xbuf[slot]                                # (rows_in, Wp, Cin_p) bf16
        if need_mask:
            v = xv.astype(jnp.float32)
            if apply_input_act:                        # fused bn1-affine + ReLU
                sc = sc_ref[...].reshape(1, 1, -1)
                sh = sh_ref[...].reshape(1, 1, -1)
                v = jnp.maximum(v * sc + sh, 0.0)
            # Zero everything outside the valid data window: keeps the conv's
            # zero padding exact after the affine, and synthesizes the halo
            # rows that a rows_padded=False DMA never fetched.
            ri = h * TH + lax.broadcasted_iota(jnp.int32, (rows_in, Wp, 1), 0)
            ci = lax.broadcasted_iota(jnp.int32, (rows_in, Wp, 1), 1)
            valid = ((ri >= pad) & (ri < pad + Hout)
                     & (ci >= pad) & (ci < pad + Wout))
            xv = jnp.where(valid, v, 0.0).astype(jnp.bfloat16)

        cout = out_ref.shape[-1]
        acc = jnp.zeros((TH * Wout_c, cout), jnp.float32)
        for kh in range(K):     # K matmuls with contraction depth K*Cin_p
            if K > 1:
                patch = jnp.concatenate(
                    [xv[kh:kh + TH, kw:kw + Wout_c, :] for kw in range(K)],
                    axis=-1)
            else:
                patch = xv[0:TH, 0:Wout_c, :]
            acc = acc + jnp.dot(patch.reshape(TH * Wout_c, -1), w_ref[kh],
                                preferred_element_type=jnp.float32)

        res = acc.reshape(TH, Wout_c, cout).astype(out_ref.dtype)
        if out_col_off == 0 and out_w == Wout_c:
            out_ref[0] = res
        else:
            # Write directly in the padded-column layout the next conv consumes.
            out_ref[0, :, out_col_off:out_col_off + Wout_c, :] = res
            if out_col_off > 0:
                out_ref[0, :, 0:out_col_off, :] = jnp.zeros(
                    (TH, out_col_off, cout), out_ref.dtype)
            if out_col_off + Wout_c < out_w:
                out_ref[0, :, out_col_off + Wout_c:out_w, :] = jnp.zeros(
                    (TH, out_w - out_col_off - Wout_c, cout), out_ref.dtype)

        # Per-batch BN statistics, accumulated across row tiles in the resident
        # output block (single small writeback per batch element).
        if Wout_c != Wout:
            col = lax.broadcasted_iota(jnp.int32, (TH * Wout_c, 1), 0) % Wout_c
            stat = jnp.where(col < Wout, acc, 0.0)
        else:
            stat = acc

        @pl.when(h == 0)
        def _():
            sum_ref[...] = jnp.zeros_like(sum_ref)
            sq_ref[...] = jnp.zeros_like(sq_ref)

        sum_ref[...] += jnp.sum(stat, axis=0).reshape(1, 1, 1, cout)
        sq_ref[...] += jnp.sum(stat * stat, axis=0).reshape(1, 1, 1, cout)

    if apply_input_act:
        return body

    def body_no_act(x_hbm, w_ref, out_ref, sum_ref, sq_ref, xbuf, sem):
        return body(x_hbm, w_ref, None, None, out_ref, sum_ref, sq_ref, xbuf, sem)

    return body_no_act


def conv2d_tiled(x_store, w_fused, *, K, pad, Hout, Wout, Wout_c,
                 rows_padded=True, in_scale=None, in_shift=None,
                 out_col_off=0, out_w=None, out_dtype=jnp.float32):
    """Row-tiled stride-1 conv (no bias), channels-last, lane-dense, bf16 MXU.

    x_store : bf16, (N, Hout + K - 1, Wp, Cin_p) if rows_padded else
              (N, Hout, Wp, Cin_p); channel axis padded to 128, W to 8.
    w_fused : bf16 (K, K*Cin_p, Cout_p) — kw taps folded into the contraction.
    in_scale/in_shift : optional (Cin_p,) per-channel affine; the kernel then
              applies relu(x*scale + shift) to the valid input window before
              convolving (fused BN+ReLU prologue).
    out_col_off/out_w : write the result at this column offset inside an
              out_w-wide output (lets conv1 emit conv2's padded layout).
    Returns (y (N,Hout,out_w,Cout_p), sum (N,1,1,Cout_p), sumsq (N,1,1,Cout_p)).
    """
    N, H_st, Wp, Cin_p = x_store.shape
    KCin, Cout_p = w_fused.shape[1], w_fused.shape[2]
    assert w_fused.shape[0] == K and KCin == K * Cin_p
    assert Wp >= Wout_c + K - 1
    if rows_padded:
        assert H_st == Hout + K - 1
    else:
        assert H_st == Hout
    out_w = Wout_c if out_w is None else out_w
    apply_act = in_scale is not None
    itemsize_out = jnp.dtype(out_dtype).itemsize

    # Row-tile size against a multi-MiB per-row VMEM budget (was 64 KiB).
    bytes_per_row = (2 * Wp * Cin_p             # bf16 halo buffer row
                     + 2 * Wout_c * KCin        # bf16 fused-patch row
                     + 4 * Wout_c * Cout_p      # f32 accumulator row
                     + 4 * Wp * Cin_p           # f32 activated copy row
                     + itemsize_out * out_w * Cout_p)
    th = _pick_tile_rows(Hout, bytes_per_row, 8 * 1024 * 1024)
    n_htiles = Hout // th
    rows_in = th + K - 1

    kernel = _make_conv_kernel(K=K, pad=pad, TH=th, n_htiles=n_htiles,
                               Hout=Hout, Wout=Wout, Wout_c=Wout_c, Wp=Wp,
                               rows_padded=rows_padded,
                               apply_input_act=apply_act,
                               out_col_off=out_col_off, out_w=out_w)

    in_specs = [
        pl.BlockSpec(memory_space=pl.ANY),                     # x: stays in HBM
        pl.BlockSpec((K, KCin, Cout_p), lambda n, h: (0, 0, 0)),
    ]
    args = [x_store, w_fused]
    if apply_act:
        in_specs += [pl.BlockSpec((1, Cin_p), lambda n, h: (0, 0))] * 2
        args += [in_scale.reshape(1, Cin_p).astype(jnp.float32),
                 in_shift.reshape(1, Cin_p).astype(jnp.float32)]

    out_shape = (
        jax.ShapeDtypeStruct((N, Hout, out_w, Cout_p), out_dtype),
        jax.ShapeDtypeStruct((N, 1, 1, Cout_p), jnp.float32),
        jax.ShapeDtypeStruct((N, 1, 1, Cout_p), jnp.float32),
    )
    out_specs = (
        pl.BlockSpec((1, th, out_w, Cout_p), lambda n, h: (n, h, 0, 0)),
        pl.BlockSpec((1, 1, 1, Cout_p), lambda n, h: (n, 0, 0, 0)),
        pl.BlockSpec((1, 1, 1, Cout_p), lambda n, h: (n, 0, 0, 0)),
    )
    scratch = [
        pltpu.VMEM((2, rows_in, Wp, Cin_p), jnp.bfloat16),  # bf16 halo buffers
        pltpu.SemaphoreType.DMA((2,)),
    ]

    block_bytes = (2 * K * KCin * Cout_p * 2            # bf16 weights (x2 buffers)
                   + 2 * th * out_w * Cout_p * itemsize_out
                   + 4 * 2 * Cout_p * 4 * 2             # BN stat blocks
                   + 2 * rows_in * Wp * Cin_p * 2       # manual halo buffers
                   + rows_in * Wp * Cin_p * (4 + 2)     # activation temporaries
                   + th * Wout_c * KCin * 2             # fused patch temp
                   + th * Wout_c * Cout_p * 4           # f32 accumulator
                   + 2 * 2 * Cin_p * 4)                 # scale/shift blocks
    return pl.pallas_call(
        kernel,
        out_shape=out_shape,
        grid_spec=pltpu.PrefetchScalarGridSpec(
            num_scalar_prefetch=0,
            grid=(N, n_htiles),
            in_specs=in_specs,
            out_specs=out_specs,
            scratch_shapes=scratch,
        ),
        compiler_params=pltpu.CompilerParams(
            # Batch axis parallel (megacore); the row-tile axis must stay
            # sequential per batch element (manual DMA chain + stat accumulator).
            dimension_semantics=("parallel", "arbitrary"),
            vmem_limit_bytes=_vmem_limit(block_bytes),
        ),
    )(*args)


# ----------------------------------------------------------------------------
# Fused bn2-affine + residual add + ReLU (pure HBM-roofline elementwise pass).
# ----------------------------------------------------------------------------
def _bn_add_relu_kernel(y_ref, r_ref, scale_ref, shift_ref, out_ref):
    y = y_ref[...] * scale_ref[...] + shift_ref[...]
    out_ref[...] = jnp.maximum(y + r_ref[...], 0.0)


def bn_add_relu(y, r, scale, shift):
    """out = relu(y*scale + shift + r); channels-last, lane-dense."""
    N, H, Wc, C = y.shape
    th = _pick_tile_rows(H, Wc * C * 4, 4 * 1024 * 1024)
    img = pl.BlockSpec((1, th, Wc, C), lambda n, h: (n, h, 0, 0))
    chn = pl.BlockSpec((1, 1, 1, C), lambda n, h: (0, 0, 0, 0))
    block_bytes = 4 * (3 * 2 * th * Wc * C + 2 * 2 * C)
    return pl.pallas_call(
        _bn_add_relu_kernel,
        out_shape=jax.ShapeDtypeStruct((N, H, Wc, C), jnp.float32),
        grid_spec=pltpu.PrefetchScalarGridSpec(
            num_scalar_prefetch=0,
            grid=(N, H // th),
            in_specs=[img, img, chn, chn],
            out_specs=img,
        ),
        compiler_params=pltpu.CompilerParams(
            dimension_semantics=("parallel", "parallel"),
            vmem_limit_bytes=_vmem_limit(block_bytes),
        ),
    )(y, r,
      scale.reshape(1, 1, 1, C).astype(jnp.float32),
      shift.reshape(1, 1, 1, C).astype(jnp.float32))


# ----------------------------------------------------------------------------
# Parameter init (deterministic, synthetic), BN glue, and the forward pass.
# ----------------------------------------------------------------------------
def init_residual_params(key, input_channels, num_channels, use_1conv=False):
    ks = jax.random.split(key, 8)
    p = {
        "conv1_w": 0.1 * jax.random.normal(ks[0], (num_channels, input_channels, 3, 3), jnp.float32),
        "conv1_b": 0.1 * jax.random.normal(ks[1], (num_channels,), jnp.float32),
        "conv2_w": 0.1 * jax.random.normal(ks[2], (num_channels, num_channels, 3, 3), jnp.float32),
        "conv2_b": 0.1 * jax.random.normal(ks[3], (num_channels,), jnp.float32),
        "bn1_gamma": 1.0 + 0.1 * jax.random.normal(ks[4], (num_channels,), jnp.float32),
        "bn1_beta": 0.1 * jax.random.normal(ks[5], (num_channels,), jnp.float32),
        "bn2_gamma": 1.0 + 0.1 * jax.random.normal(ks[6], (num_channels,), jnp.float32),
        "bn2_beta": 0.1 * jax.random.normal(ks[7], (num_channels,), jnp.float32),
    }
    if use_1conv:
        k3w, k3b = jax.random.split(ks[0])
        p["conv3_w"] = 0.1 * jax.random.normal(k3w, (num_channels, input_channels, 1, 1), jnp.float32)
        p["conv3_b"] = 0.1 * jax.random.normal(k3b, (num_channels,), jnp.float32)
    return p


def _bn_scale_shift(part_sum, part_sq, count, gamma, beta, eps=1e-5):
    c = gamma.shape[0]
    s = jnp.sum(part_sum, axis=(0, 1, 2))[:c]
    q = jnp.sum(part_sq, axis=(0, 1, 2))[:c]
    mean = s / count
    var = q / count - mean * mean              # biased variance (train mode)
    inv = gamma / jnp.sqrt(var + eps)
    return inv, beta - mean * inv


def _pad_vec(v, n):
    return jnp.pad(v.astype(jnp.float32), (0, n - v.shape[0]))


def _prep_weight(w_oihw, cin_p, cout_p):
    """OIHW -> bf16 (K, K*cin_p, cout_p) with the kw taps folded into depth."""
    kh, kw = w_oihw.shape[2], w_oihw.shape[3]
    wt = jnp.transpose(w_oihw, (2, 3, 1, 0))                 # -> (Kh, Kw, I, O)
    wt = jnp.pad(wt, ((0, 0), (0, 0),
                      (0, cin_p - wt.shape[2]), (0, cout_p - wt.shape[3])))
    return wt.reshape(kh, kw * cin_p, cout_p).astype(jnp.bfloat16)


def residual_forward(params, x_nchw, use_1conv=False, strides=1):
    """Pallas implementation of Residual.forward. x_nchw: (N, Cin, H, W) f32."""
    if strides != 1:
        # TODO(synk): strides>1 not implemented in the Pallas conv kernel (module default strides=1).
        raise NotImplementedError("Pallas Residual kernel supports strides=1 only.")

    x = jnp.transpose(x_nchw, (0, 2, 3, 1)).astype(jnp.float32)    # NCHW -> NHWC
    N, H, W, Cin = x.shape
    Cmid = params["conv1_w"].shape[0]
    Hout, Wout = H, W
    Wout_c = _round_up(Wout, SUBLANE)
    Cin_p = _round_up(Cin, LANE)
    Cp = _round_up(Cmid, LANE)
    count = N * Hout * Wout

    K, pad = 3, 1
    Wp = _round_up(Wout_c + K - 1, SUBLANE)    # stored width of conv-padded data

    # conv1 (bias dropped: a per-channel constant cancels under train-mode BN).
    # Its output is written straight in the (Wp-wide, col-offset=pad) layout
    # that conv2 consumes, so no XLA pad round trip of the mid tensor.
    x1 = jnp.pad(x, ((0, 0), (pad, pad), (pad, Wp - W - pad), (0, Cin_p - Cin)))
    x1 = x1.astype(jnp.bfloat16)
    w1 = _prep_weight(params["conv1_w"], Cin_p, Cp)
    y1, s1, q1 = conv2d_tiled(x1, w1, K=K, pad=pad,
                              Hout=Hout, Wout=Wout, Wout_c=Wout_c,
                              rows_padded=True, out_col_off=pad, out_w=Wp,
                              out_dtype=jnp.bfloat16)
    sc1, sh1 = _bn_scale_shift(s1, q1, count,
                               params["bn1_gamma"], params["bn1_beta"])

    # conv2 with bn1-affine + ReLU fused into its input prologue; reads y1
    # straight from HBM (bf16) with in-kernel row-halo handling.
    w2 = _prep_weight(params["conv2_w"], Cp, Cp)
    y2, s2, q2 = conv2d_tiled(y1, w2, K=K, pad=pad,
                              Hout=Hout, Wout=Wout, Wout_c=Wout_c,
                              rows_padded=False,
                              in_scale=_pad_vec(sc1, Cp),
                              in_shift=_pad_vec(sh1, Cp),
                              out_dtype=jnp.float32)
    sc2, sh2 = _bn_scale_shift(s2, q2, count,
                               params["bn2_gamma"], params["bn2_beta"])

    # shortcut branch
    if use_1conv:
        x3 = jnp.pad(x, ((0, 0), (0, 0), (0, Wout_c - W), (0, Cin_p - Cin)))
        x3 = x3.astype(jnp.bfloat16)
        w3 = _prep_weight(params["conv3_w"], Cin_p, Cp)
        r, _, _ = conv2d_tiled(x3, w3, K=1, pad=0,
                               Hout=Hout, Wout=Wout, Wout_c=Wout_c,
                               rows_padded=True, out_dtype=jnp.float32)
        shift_fin = sh2 + params["conv3_b"]    # shortcut bias folded into shift
    else:
        assert Cin == Cmid, "identity shortcut requires matching channel counts"
        r = jnp.pad(x, ((0, 0), (0, 0), (0, Wout_c - W), (0, Cp - Cin)))
        shift_fin = sh2

    # bn2-affine + residual add + ReLU, single fused elementwise kernel
    out = bn_add_relu(y2, r, _pad_vec(sc2, Cp), _pad_vec(shift_fin, Cp))
    out = out[:, :, :Wout, :Cmid]
    return jnp.transpose(out, (0, 3, 1, 2))                        # NHWC -> NCHW


# ----------------------------------------------------------------------------
# Pure-JAX reference (mirrors PyTorch forward in train mode) for verification.
# ----------------------------------------------------------------------------
def reference_forward(params, x, use_1conv=False):
    def conv(x, w, b, pad):
        y = lax.conv_general_dilated(
            x, w, window_strides=(1, 1), padding=((pad, pad), (pad, pad)),
            dimension_numbers=("NCHW", "OIHW", "NCHW"),
            precision=lax.Precision.HIGHEST)
        return y + b.reshape(1, -1, 1, 1)

    def bn(y, gamma, beta, eps=1e-5):
        mean = y.mean(axis=(0, 2, 3), keepdims=True)
        var = y.var(axis=(0, 2, 3), keepdims=True)   # biased
        yh = (y - mean) / jnp.sqrt(var + eps)
        return yh * gamma.reshape(1, -1, 1, 1) + beta.reshape(1, -1, 1, 1)

    y = jax.nn.relu(bn(conv(x, params["conv1_w"], params["conv1_b"], 1),
                       params["bn1_gamma"], params["bn1_beta"]))
    y = bn(conv(y, params["conv2_w"], params["conv2_b"], 1),
           params["bn2_gamma"], params["bn2_beta"])
    sc = conv(x, params["conv3_w"], params["conv3_b"], 0) if use_1conv else x
    return jax.nn.relu(y + sc)


if __name__ == "__main__":
    key = jax.random.PRNGKey(0)
    kx, kp1, kp2 = jax.random.split(key, 3)

    N, Cin, H, W = 2, 4, 16, 16
    x = jax.random.normal(kx, (N, Cin, H, W), jnp.float32)

    fwd = jax.jit(residual_forward, static_argnames=("use_1conv", "strides"))

    # config 1: module defaults (identity shortcut, strides=1)
    p1 = init_residual_params(kp1, Cin, 4, use_1conv=False)
    out1 = jax.block_until_ready(fwd(p1, x, use_1conv=False))
    assert out1.shape == (N, 4, H, W), out1.shape
    ref1 = jax.block_until_ready(reference_forward(p1, x, use_1conv=False))
    err1 = float(jnp.max(jnp.abs(out1 - ref1)))

    # config 2: 1x1-conv shortcut with a channel change
    p2 = init_residual_params(kp2, Cin, 8, use_1conv=True)
    out2 = jax.block_until_ready(fwd(p2, x, use_1conv=True))
    assert out2.shape == (N, 8, H, W), out2.shape
    ref2 = jax.block_until_ready(reference_forward(p2, x, use_1conv=True))
    err2 = float(jnp.max(jnp.abs(out2 - ref2)))

    # bf16 MXU operands + bf16 activation storage -> tolerance loosened vs f32.
    if err1 > 1e-1 or err2 > 1e-1:
        raise AssertionError(f"Pallas output mismatch: err1={err1} err2={err2}")
    print("KERNEL_OK")
</pallas_src>

<mosaic_0001>
module attributes {stable_mosaic.version = 11 : i64} {
  func.func @body_no_act(%arg0: i32, %arg1: i32, %arg2: memref<2x18x24x128xbf16, #tpu.memory_space<any>>, %arg3: memref<3x384x128xbf16, #tpu.memory_space<vmem>>, %arg4: memref<1x16x24x128xbf16, #tpu.memory_space<vmem>>, %arg5: memref<1x1x1x128xf32, #tpu.memory_space<vmem>>, %arg6: memref<1x1x1x128xf32, #tpu.memory_space<vmem>>, %arg7: memref<2x18x24x128xbf16, #tpu.memory_space<vmem>>, %arg8: memref<2x!tpu.dma_semaphore, #tpu.memory_space<semaphore_mem>>) attributes {dimension_semantics = [#tpu.dimension_semantics<parallel>, #tpu.dimension_semantics<arbitrary>], iteration_bounds = array<i64: 2, 1>, scalar_prefetch = 0 : i64, scratch_operands = 2 : i64, tpu.core_type = #tpu.core_type<tc>, window_params = [{}, {pipeline_mode = #tpu.pipeline_mode<synchronous>, transform_indices = @transform_1, window_bounds = array<i64: 3, 384, 128>}, {transform_indices = @transform_2, window_bounds = array<i64: 1, 16, 24, 128>}, {transform_indices = @transform_3, window_bounds = array<i64: 1, 1, 1, 128>}, {transform_indices = @transform_4, window_bounds = array<i64: 1, 1, 1, 128>}]} {
    %c2_i32 = arith.constant 2 : i32
    %c0_i32 = arith.constant 0 : i32
    %0 = arith.cmpi eq, %c2_i32, %c0_i32 : i32
    %c1_i32 = arith.constant 1 : i32
    %1 = arith.select %0, %c1_i32, %c2_i32 : i32
    %2 = arith.remsi %arg1, %1 : i32
    %c0_i32_0 = arith.constant 0 : i32
    %3 = arith.cmpi ne, %2, %c0_i32_0 : i32
    %c0_i32_1 = arith.constant 0 : i32
    %4 = arith.cmpi slt, %2, %c0_i32_1 : i32
    %c0_i32_2 = arith.constant 0 : i32
    %5 = arith.cmpi slt, %1, %c0_i32_2 : i32
    %6 = arith.xori %4, %5 : i1
    %7 = arith.andi %6, %3 : i1
    %8 = arith.addi %2, %1 : i32
    %9 = arith.select %7, %8, %2 : i32
    %c0_i32_3 = arith.constant 0 : i32
    %10 = arith.cmpi eq, %arg1, %c0_i32_3 : i32
    %11 = arith.extui %10 : i1 to i32
    %c0_i32_4 = arith.constant 0 : i32
    %12 = arith.cmpi ne, %11, %c0_i32_4 : i32
    scf.if %12 {
      %c0_i32_58 = arith.constant 0 : i32
      %c0_i32_59 = arith.constant 0 : i32
      %c0_i32_60 = arith.constant 0 : i32
      %c0_i32_61 = arith.constant 0 : i32
      %c0_i32_62 = arith.constant 0 : i32
      %83 = tpu.memref_slice %arg2[%arg0, %c0_i32_60, %c0_i32_61, %c0_i32_62] : memref<2x18x24x128xbf16, #tpu.memory_space<any>> -> memref<1x18x24x128xbf16, #tpu.memory_space<any>>
      %84 = tpu.memref_squeeze %83 : memref<1x18x24x128xbf16, #tpu.memory_space<any>> -> memref<18x24x128xbf16, #tpu.memory_space<any>>
      %c0_i32_63 = arith.constant 0 : i32
      %c0_i32_64 = arith.constant 0 : i32
      %c0_i32_65 = arith.constant 0 : i32
      %85 = tpu.memref_slice %arg7[%c0_i32_58, %c0_i32_63, %c0_i32_64, %c0_i32_65] : memref<2x18x24x128xbf16, #tpu.memory_space<vmem>> -> memref<1x18x24x128xbf16, #tpu.memory_space<vmem>>
      %86 = tpu.memref_squeeze %85 : memref<1x18x24x128xbf16, #tpu.memory_space<vmem>> -> memref<18x24x128xbf16, #tpu.memory_space<vmem>>
      %87 = tpu.memref_slice %arg8[%c0_i32_59] : memref<2x!tpu.dma_semaphore, #tpu.memory_space<semaphore_mem>> -> memref<1x!tpu.dma_semaphore, #tpu.memory_space<semaphore_mem>>
      %88 = tpu.memref_squeeze %87 : memref<1x!tpu.dma_semaphore, #tpu.memory_space<semaphore_mem>> -> memref<!tpu.dma_semaphore, #tpu.memory_space<semaphore_mem>>
      tpu.enqueue_dma source(%84 : memref<18x24x128xbf16, #tpu.memory_space<any>>) target(%86 : memref<18x24x128xbf16, #tpu.memory_space<vmem>>) target_semaphore(%88 : memref<!tpu.dma_semaphore, #tpu.memory_space<semaphore_mem>>)
    } else {
    }
    %c1_i32_5 = arith.constant 1 : i32
    %13 = arith.addi %arg1, %c1_i32_5 : i32
    %c1_i32_6 = arith.constant 1 : i32
    %14 = arith.cmpi slt, %13, %c1_i32_6 : i32
    %15 = arith.extui %14 : i1 to i32
    %c0_i32_7 = arith.constant 0 : i32
    %16 = arith.cmpi ne, %15, %c0_i32_7 : i32
    scf.if %16 {
      %c1_i32_58 = arith.constant 1 : i32
      %83 = arith.addi %arg1, %c1_i32_58 : i32
      %c1_i32_59 = arith.constant 1 : i32
      %84 = arith.subi %c1_i32_59, %9 : i32
      %c16_i32_60 = arith.constant 16 : i32
      %85 = arith.muli %83, %c16_i32_60 : i32
      %86 = tpu.assume_multiple %85, 16 : i32
      %c0_i32_61 = arith.constant 0 : i32
      %c0_i32_62 = arith.constant 0 : i32
      %87 = tpu.memref_slice %arg2[%arg0, %86, %c0_i32_61, %c0_i32_62] : memref<2x18x24x128xbf16, #tpu.memory_space<any>> -> memref<1x18x24x128xbf16, #tpu.memory_space<any>>
      %88 = tpu.memref_squeeze %87 : memref<1x18x24x128xbf16, #tpu.memory_space<any>> -> memref<18x24x128xbf16, #tpu.memory_space<any>>
      %c0_i32_63 = arith.constant 0 : i32
      %c0_i32_64 = arith.constant 0 : i32
      %c0_i32_65 = arith.constant 0 : i32
      %89 = tpu.memref_slice %arg7[%84, %c0_i32_63, %c0_i32_64, %c0_i32_65] : memref<2x18x24x128xbf16, #tpu.memory_space<vmem>> -> memref<1x18x24x128xbf16, #tpu.memory_space<vmem>>
      %90 = tpu.memref_squeeze %89 : memref<1x18x24x128xbf16, #tpu.memory_space<vmem>> -> memref<18x24x128xbf16, #tpu.memory_space<vmem>>
      %91 = tpu.memref_slice %arg8[%84] : memref<2x!tpu.dma_semaphore, #tpu.memory_space<semaphore_mem>> -> memref<1x!tpu.dma_semaphore, #tpu.memory_space<semaphore_mem>>
      %92 = tpu.memref_squeeze %91 : memref<1x!tpu.dma_semaphore, #tpu.memory_space<semaphore_mem>> -> memref<!tpu.dma_semaphore, #tpu.memory_space<semaphore_mem>>
      tpu.enqueue_dma source(%88 : memref<18x24x128xbf16, #tpu.memory_space<any>>) target(%90 : memref<18x24x128xbf16, #tpu.memory_space<vmem>>) target_semaphore(%92 : memref<!tpu.dma_semaphore, #tpu.memory_space<semaphore_mem>>)
    } else {
    }
    %c16_i32 = arith.constant 16 : i32
    %17 = arith.muli %arg1, %c16_i32 : i32
    %18 = tpu.assume_multiple %17, 16 : i32
    %c0_i32_8 = arith.constant 0 : i32
    %c0_i32_9 = arith.constant 0 : i32
    %19 = tpu.memref_slice %arg2[%arg0, %18, %c0_i32_8, %c0_i32_9] : memref<2x18x24x128xbf16, #tpu.memory_space<any>> -> memref<1x18x24x128xbf16, #tpu.memory_space<any>>
    %20 = tpu.memref_squeeze %19 : memref<1x18x24x128xbf16, #tpu.memory_space<any>> -> memref<18x24x128xbf16, #tpu.memory_space<any>>
    %c0_i32_10 = arith.constant 0 : i32
    %c0_i32_11 = arith.constant 0 : i32
    %c0_i32_12 = arith.constant 0 : i32
    %21 = tpu.memref_slice %arg7[%9, %c0_i32_10, %c0_i32_11, %c0_i32_12] : memref<2x18x24x128xbf16, #tpu.memory_space<vmem>> -> memref<1x18x24x128xbf16, #tpu.memory_space<vmem>>
    %22 = tpu.memref_squeeze %21 : memref<1x18x24x128xbf16, #tpu.memory_space<vmem>> -> memref<18x24x128xbf16, #tpu.memory_space<vmem>>
    %23 = tpu.memref_slice %arg8[%9] : memref<2x!tpu.dma_semaphore, #tpu.memory_space<semaphore_mem>> -> memref<1x!tpu.dma_semaphore, #tpu.memory_space<semaphore_mem>>
    %24 = tpu.memref_squeeze %23 : memref<1x!tpu.dma_semaphore, #tpu.memory_space<semaphore_mem>> -> memref<!tpu.dma_semaphore, #tpu.memory_space<semaphore_mem>>
    tpu.wait_dma2 semaphore(%24 : memref<!tpu.dma_semaphore, #tpu.memory_space<semaphore_mem>>) src(%20 : memref<18x24x128xbf16, #tpu.memory_space<any>>) dst(%22 : memref<18x24x128xbf16, #tpu.memory_space<vmem>>)
    %25 = arith.index_cast %9 : i32 to index
    %c0 = arith.constant 0 : index
    %c0_13 = arith.constant 0 : index
    %c0_14 = arith.constant 0 : index
    %26 = vector.load %arg7[%25, %c0, %c0_13, %c0_14] : memref<2x18x24x128xbf16, #tpu.memory_space<vmem>>, vector<1x18x24x128xbf16>
    %27 = vector.shape_cast %26 : vector<1x18x24x128xbf16> to vector<18x24x128xbf16>
    %cst = arith.constant 0.000000e+00 : f32
    %28 = vector.broadcast %cst : f32 to vector<256x128xf32>
    %29 = vector.extract_strided_slice %27 {offsets = [0, 0, 0], sizes = [16, 16, 128], strides = [1, 1, 1]} : vector<18x24x128xbf16> to vector<16x16x128xbf16>
    %30 = vector.extract_strided_slice %27 {offsets = [0, 1, 0], sizes = [16, 16, 128], strides = [1, 1, 1]} : vector<18x24x128xbf16> to vector<16x16x128xbf16>
    %31 = vector.extract_strided_slice %27 {offsets = [0, 2, 0], sizes = [16, 16, 128], strides = [1, 1, 1]} : vector<18x24x128xbf16> to vector<16x16x128xbf16>
    %32 = tpu.concatenate %29, %30, %31 in 2 : vector<16x16x128xbf16>, vector<16x16x128xbf16>, vector<16x16x128xbf16> -> vector<16x16x384xbf16>
    %33 = vector.shape_cast %32 : vector<16x16x384xbf16> to vector<256x384xbf16>
    %c0_15 = arith.constant 0 : index
    %c0_16 = arith.constant 0 : index
    %c0_17 = arith.constant 0 : index
    %34 = vector.load %arg3[%c0_15, %c0_16, %c0_17] : memref<3x384x128xbf16, #tpu.memory_space<vmem>>, vector<1x384x128xbf16>
    %35 = vector.shape_cast %34 : vector<1x384x128xbf16> to vector<384x128xbf16>
    %cst_18 = arith.constant dense<0.000000e+00> : vector<256x128xf32>
    %36 = tpu.matmul %33, %35, %cst_18 {dimension_numbers = #tpu.dot_dimension_numbers<[1], [0], [0], [1], [0, 0, 1, 1], [], []>} : vector<256x384xbf16>, vector<384x128xbf16>, vector<256x128xf32> -> vector<256x128xf32>
    %37 = arith.addf %28, %36 : vector<256x128xf32>
    %38 = vector.extract_strided_slice %27 {offsets = [1, 0, 0], sizes = [16, 16, 128], strides = [1, 1, 1]} : vector<18x24x128xbf16> to vector<16x16x128xbf16>
    %39 = vector.extract_strided_slice %27 {offsets = [1, 1, 0], sizes = [16, 16, 128], strides = [1, 1, 1]} : vector<18x24x128xbf16> to vector<16x16x128xbf16>
    %40 = vector.extract_strided_slice %27 {offsets = [1, 2, 0], sizes = [16, 16, 128], strides = [1, 1, 1]} : vector<18x24x128xbf16> to vector<16x16x128xbf16>
    %41 = tpu.concatenate %38, %39, %40 in 2 : vector<16x16x128xbf16>, vector<16x16x128xbf16>, vector<16x16x128xbf16> -> vector<16x16x384xbf16>
    %42 = vector.shape_cast %41 : vector<16x16x384xbf16> to vector<256x384xbf16>
    %c1 = arith.constant 1 : index
    %c0_19 = arith.constant 0 : index
    %c0_20 = arith.constant 0 : index
    %43 = vector.load %arg3[%c1, %c0_19, %c0_20] : memref<3x384x128xbf16, #tpu.memory_space<vmem>>, vector<1x384x128xbf16>
    %44 = vector.shape_cast %43 : vector<1x384x128xbf16> to vector<384x128xbf16>
    %cst_21 = arith.constant dense<0.000000e+00> : vector<256x128xf32>
    %45 = tpu.matmul %42, %44, %cst_21 {dimension_numbers = #tpu.dot_dimension_numbers<[1], [0], [0], [1], [0, 0, 1, 1], [], []>} : vector<256x384xbf16>, vector<384x128xbf16>, vector<256x128xf32> -> vector<256x128xf32>
    %46 = arith.addf %37, %45 : vector<256x128xf32>
    %47 = vector.extract_strided_slice %27 {offsets = [2, 0, 0], sizes = [16, 16, 128], strides = [1, 1, 1]} : vector<18x24x128xbf16> to vector<16x16x128xbf16>
    %48 = vector.extract_strided_slice %27 {offsets = [2, 1, 0], sizes = [16, 16, 128], strides = [1, 1, 1]} : vector<18x24x128xbf16> to vector<16x16x128xbf16>
    %49 = vector.extract_strided_slice %27 {offsets = [2, 2, 0], sizes = [16, 16, 128], strides = [1, 1, 1]} : vector<18x24x128xbf16> to vector<16x16x128xbf16>
    %50 = tpu.concatenate %47, %48, %49 in 2 : vector<16x16x128xbf16>, vector<16x16x128xbf16>, vector<16x16x128xbf16> -> vector<16x16x384xbf16>
    %51 = vector.shape_cast %50 : vector<16x16x384xbf16> to vector<256x384xbf16>
    %c2 = arith.constant 2 : index
    %c0_22 = arith.constant 0 : index
    %c0_23 = arith.constant 0 : index
    %52 = vector.load %arg3[%c2, %c0_22, %c0_23] : memref<3x384x128xbf16, #tpu.memory_space<vmem>>, vector<1x384x128xbf16>
    %53 = vector.shape_cast %52 : vector<1x384x128xbf16> to vector<384x128xbf16>
    %cst_24 = arith.constant dense<0.000000e+00> : vector<256x128xf32>
    %54 = tpu.matmul %51, %53, %cst_24 {dimension_numbers = #tpu.dot_dimension_numbers<[1], [0], [0], [1], [0, 0, 1, 1], [], []>} : vector<256x384xbf16>, vector<384x128xbf16>, vector<256x128xf32> -> vector<256x128xf32>
    %55 = arith.addf %46, %54 : vector<256x128xf32>
    %56 = vector.shape_cast %55 : vector<256x128xf32> to vector<16x16x128xf32>
    %57 = arith.truncf %56 : vector<16x16x128xf32> to vector<16x16x128xbf16>
    %c0_25 = arith.constant 0 : index
    %c0_26 = arith.constant 0 : index
    %c1_27 = arith.constant 1 : index
    %c0_28 = arith.constant 0 : index
    %58 = vector.load %arg4[%c0_25, %c0_26, %c1_27, %c0_28] : memref<1x16x24x128xbf16, #tpu.memory_space<vmem>>, vector<1x16x16x128xbf16>
    %59 = vector.shape_cast %58 : vector<1x16x16x128xbf16> to vector<16x16x128xbf16>
    %60 = vector.shape_cast %57 : vector<16x16x128xbf16> to vector<1x16x16x128xbf16>
    tpu.vector_store %arg4[%c0_25, %c0_26, %c1_27, %c0_28], %60 {strides = array<i32>} : memref<1x16x24x128xbf16, #tpu.memory_space<vmem>>, vector<1x16x16x128xbf16>,
    %cst_29 = arith.constant 0.000000e+00 : bf16
    %61 = vector.broadcast %cst_29 : bf16 to vector<16x1x128xbf16>
    %c0_30 = arith.constant 0 : index
    %c0_31 = arith.constant 0 : index
    %c0_32 = arith.constant 0 : index
    %c0_33 = arith.constant 0 : index
    %62 = vector.load %arg4[%c0_30, %c0_31, %c0_32, %c0_33] : memref<1x16x24x128xbf16, #tpu.memory_space<vmem>>, vector<1x16x1x128xbf16>
    %63 = vector.shape_cast %62 : vector<1x16x1x128xbf16> to vector<16x1x128xbf16>
    %64 = vector.shape_cast %61 : vector<16x1x128xbf16> to vector<1x16x1x128xbf16>
    tpu.vector_store %arg4[%c0_30, %c0_31, %c0_32, %c0_33], %64 {strides = array<i32>} : memref<1x16x24x128xbf16, #tpu.memory_space<vmem>>, vector<1x16x1x128xbf16>,
    %cst_34 = arith.constant 0.000000e+00 : bf16
    %65 = vector.broadcast %cst_34 : bf16 to vector<16x7x128xbf16>
    %c0_35 = arith.constant 0 : index
    %c0_36 = arith.constant 0 : index
    %c17 = arith.constant 17 : index
    %c0_37 = arith.constant 0 : index
    %66 = vector.load %arg4[%c0_35, %c0_36, %c17, %c0_37] : memref<1x16x24x128xbf16, #tpu.memory_space<vmem>>, vector<1x16x7x128xbf16>
    %67 = vector.shape_cast %66 : vector<1x16x7x128xbf16> to vector<16x7x128xbf16>
    %68 = vector.shape_cast %65 : vector<16x7x128xbf16> to vector<1x16x7x128xbf16>
    tpu.vector_store %arg4[%c0_35, %c0_36, %c17, %c0_37], %68 {strides = array<i32>} : memref<1x16x24x128xbf16, #tpu.memory_space<vmem>>, vector<1x16x7x128xbf16>,
    %c0_i32_38 = arith.constant 0 : i32
    %69 = arith.cmpi eq, %arg1, %c0_i32_38 : i32
    %70 = arith.extui %69 : i1 to i32
    %c0_i32_39 = arith.constant 0 : i32
    %71 = arith.cmpi ne, %70, %c0_i32_39 : i32
    scf.if %71 {
      %cst_58 = arith.constant 0.000000e+00 : f32
      %83 = vector.broadcast %cst_58 : f32 to vector<1x1x1x128xf32>
      %c0_59 = arith.constant 0 : index
      %c0_60 = arith.constant 0 : index
      %c0_61 = arith.constant 0 : index
      %c0_62 = arith.constant 0 : index
      %84 = vector.load %arg5[%c0_59, %c0_60, %c0_61, %c0_62] : memref<1x1x1x128xf32, #tpu.memory_space<vmem>>, vector<1x1x1x128xf32>
      tpu.vector_store %arg5[%c0_59, %c0_60, %c0_61, %c0_62], %83 {strides = array<i32>} : memref<1x1x1x128xf32, #tpu.memory_space<vmem>>, vector<1x1x1x128xf32>,
      %cst_63 = arith.constant 0.000000e+00 : f32
      %85 = vector.broadcast %cst_63 : f32 to vector<1x1x1x128xf32>
      %c0_64 = arith.constant 0 : index
      %c0_65 = arith.constant 0 : index
      %c0_66 = arith.constant 0 : index
      %c0_67 = arith.constant 0 : index
      %86 = vector.load %arg6[%c0_64, %c0_65, %c0_66, %c0_67] : memref<1x1x1x128xf32, #tpu.memory_space<vmem>>, vector<1x1x1x128xf32>
      tpu.vector_store %arg6[%c0_64, %c0_65, %c0_66, %c0_67], %85 {strides = array<i32>} : memref<1x1x1x128xf32, #tpu.memory_space<vmem>>, vector<1x1x1x128xf32>,
    } else {
    }
    %c0_40 = arith.constant 0 : index
    %c0_41 = arith.constant 0 : index
    %c0_42 = arith.constant 0 : index
    %c0_43 = arith.constant 0 : index
    %72 = vector.load %arg5[%c0_40, %c0_41, %c0_42, %c0_43] : memref<1x1x1x128xf32, #tpu.memory_space<vmem>>, vector<1x1x1x128xf32>
    %cst_44 = arith.constant dense<0.000000e+00> : vector<128xf32>
    %73 = vector.multi_reduction <add>, %55, %cst_44 [0] : vector<256x128xf32> to vector<128xf32>
    %74 = vector.shape_cast %73 : vector<128xf32> to vector<1x1x1x128xf32>
    %75 = arith.addf %72, %74 : vector<1x1x1x128xf32>
    %c0_45 = arith.constant 0 : index
    %c0_46 = arith.constant 0 : index
    %c0_47 = arith.constant 0 : index
    %c0_48 = arith.constant 0 : index
    %76 = vector.load %arg5[%c0_45, %c0_46, %c0_47, %c0_48] : memref<1x1x1x128xf32, #tpu.memory_space<vmem>>, vector<1x1x1x128xf32>
    tpu.vector_store %arg5[%c0_45, %c0_46, %c0_47, %c0_48], %75 {strides = array<i32>} : memref<1x1x1x128xf32, #tpu.memory_space<vmem>>, vector<1x1x1x128xf32>,
    %c0_49 = arith.constant 0 : index
    %c0_50 = arith.constant 0 : index
    %c0_51 = arith.constant 0 : index
    %c0_52 = arith.constant 0 : index
    %77 = vector.load %arg6[%c0_49, %c0_50, %c0_51, %c0_52] : memref<1x1x1x128xf32, #tpu.memory_space<vmem>>, vector<1x1x1x128xf32>
    %78 = arith.mulf %55, %55 : vector<256x128xf32>
    %cst_53 = arith.constant dense<0.000000e+00> : vector<128xf32>
    %79 = vector.multi_reduction <add>, %78, %cst_53 [0] : vector<256x128xf32> to vector<128xf32>
    %80 = vector.shape_cast %79 : vector<128xf32> to vector<1x1x1x128xf32>
    %81 = arith.addf %77, %80 : vector<1x1x1x128xf32>
    %c0_54 = arith.constant 0 : index
    %c0_55 = arith.constant 0 : index
    %c0_56 = arith.constant 0 : index
    %c0_57 = arith.constant 0 : index
    %82 = vector.load %arg6[%c0_54, %c0_55, %c0_56, %c0_57] : memref<1x1x1x128xf32, #tpu.memory_space<vmem>>, vector<1x1x1x128xf32>
    tpu.vector_store %arg6[%c0_54, %c0_55, %c0_56, %c0_57], %81 {strides = array<i32>} : memref<1x1x1x128xf32, #tpu.memory_space<vmem>>, vector<1x1x1x128xf32>,
    return
  }
  func.func @transform_1(%arg0: i32, %arg1: i32) -> (i32, i32, i32) {
    %c0_i32 = arith.constant 0 : i32
    %c0_i32_0 = arith.constant 0 : i32
    %c0_i32_1 = arith.constant 0 : i32
    %c0_i32_2 = arith.constant 0 : i32
    return %c0_i32, %c0_i32_0, %c0_i32_1 : i32, i32, i32
  }
  func.func @transform_2(%arg0: i32, %arg1: i32) -> (i32, i32, i32, i32) {
    %c0_i32 = arith.constant 0 : i32
    %c0_i32_0 = arith.constant 0 : i32
    %c0_i32_1 = arith.constant 0 : i32
    return %arg0, %arg1, %c0_i32, %c0_i32_0 : i32, i32, i32, i32
  }
  func.func @transform_3(%arg0: i32, %arg1: i32) -> (i32, i32, i32, i32) {
    %c0_i32 = arith.constant 0 : i32
    %c0_i32_0 = arith.constant 0 : i32
    %c0_i32_1 = arith.constant 0 : i32
    %c0_i32_2 = arith.constant 0 : i32
    return %arg0, %c0_i32, %c0_i32_0, %c0_i32_1 : i32, i32, i32, i32
  }
  func.func @transform_4(%arg0: i32, %arg1: i32) -> (i32, i32, i32, i32) {
    %c0_i32 = arith.constant 0 : i32
    %c0_i32_0 = arith.constant 0 : i32
    %c0_i32_1 = arith.constant 0 : i32
    %c0_i32_2 = arith.constant 0 : i32
    return %arg0, %c0_i32, %c0_i32_0, %c0_i32_1 : i32, i32, i32, i32
  }
}

module attributes {stable_mosaic.version = 11 : i64} {
  func.func @body(%arg0: i32, %arg1: i32, %arg2: memref<2x16x24x128xbf16, #tpu.memory_space<any>>, %arg3: memref<3x384x128xbf16, #tpu.memory_space<vmem>>, %arg4: memref<1x128xf32, #tpu.memory_space<vmem>>, %arg5: memref<1x128xf32, #tpu.memory_space<vmem>>, %arg6: memref<1x16x16x128xf32, #tpu.memory_space<vmem>>, %arg7: memref<1x1x1x128xf32, #tpu.memory_space<vmem>>, %arg8: memref<1x1x1x128xf32, #tpu.memory_space<vmem>>, %arg9: memref<2x18x24x128xbf16, #tpu.memory_space<vmem>>, %arg10: memref<2x!tpu.dma_semaphore, #tpu.memory_space<semaphore_mem>>) attributes {dimension_semantics = [#tpu.dimension_semantics<parallel>, #tpu.dimension_semantics<arbitrary>], iteration_bounds = array<i64: 2, 1>, scalar_prefetch = 0 : i64, scratch_operands = 2 : i64, tpu.core_type = #tpu.core_type<tc>, window_params = [{}, {pipeline_mode = #tpu.pipeline_mode<synchronous>, transform_indices = @transform_1, window_bounds = array<i64: 3, 384, 128>}, {pipeline_mode = #tpu.pipeline_mode<synchronous>, transform_indices = @transform_2, window_bounds = array<i64: 1, 128>}, {pipeline_mode = #tpu.pipeline_mode<synchronous>, transform_indices = @transform_3, window_bounds = array<i64: 1, 128>}, {transform_indices = @transform_4, window_bounds = array<i64: 1, 16, 16, 128>}, {transform_indices = @transform_5, window_bounds = array<i64: 1, 1, 1, 128>}, {transform_indices = @transform_6, window_bounds = array<i64: 1, 1, 1, 128>}]} {
    %c2_i32 = arith.constant 2 : i32
    %c0_i32 = arith.constant 0 : i32
    %0 = arith.cmpi eq, %c2_i32, %c0_i32 : i32
    %c1_i32 = arith.constant 1 : i32
    %1 = arith.select %0, %c1_i32, %c2_i32 : i32
    %2 = arith.remsi %arg1, %1 : i32
    %c0_i32_0 = arith.constant 0 : i32
    %3 = arith.cmpi ne, %2, %c0_i32_0 : i32
    %c0_i32_1 = arith.constant 0 : i32
    %4 = arith.cmpi slt, %2, %c0_i32_1 : i32
    %c0_i32_2 = arith.constant 0 : i32
    %5 = arith.cmpi slt, %1, %c0_i32_2 : i32
    %6 = arith.xori %4, %5 : i1
    %7 = arith.andi %6, %3 : i1
    %8 = arith.addi %2, %1 : i32
    %9 = arith.select %7, %8, %2 : i32
    %c0_i32_3 = arith.constant 0 : i32
    %10 = arith.cmpi eq, %arg1, %c0_i32_3 : i32
    %11 = arith.extui %10 : i1 to i32
    %c0_i32_4 = arith.constant 0 : i32
    %12 = arith.cmpi ne, %11, %c0_i32_4 : i32
    scf.if %12 {
      %c0_i32_59 = arith.constant 0 : i32
      %c0_i32_60 = arith.constant 0 : i32
      %c0_i32_61 = arith.constant 0 : i32
      %c0_i32_62 = arith.constant 0 : i32
      %c0_i32_63 = arith.constant 0 : i32
      %104 = tpu.memref_slice %arg2[%arg0, %c0_i32_61, %c0_i32_62, %c0_i32_63] : memref<2x16x24x128xbf16, #tpu.memory_space<any>> -> memref<1x16x24x128xbf16, #tpu.memory_space<any>>
      %105 = tpu.memref_squeeze %104 : memref<1x16x24x128xbf16, #tpu.memory_space<any>> -> memref<16x24x128xbf16, #tpu.memory_space<any>>
      %c1_i32_64 = arith.constant 1 : i32
      %c0_i32_65 = arith.constant 0 : i32
      %c0_i32_66 = arith.constant 0 : i32
      %106 = tpu.memref_slice %arg9[%c0_i32_59, %c1_i32_64, %c0_i32_65, %c0_i32_66] : memref<2x18x24x128xbf16, #tpu.memory_space<vmem>> -> memref<1x16x24x128xbf16, #tpu.memory_space<vmem>>
      %107 = tpu.memref_squeeze %106 : memref<1x16x24x128xbf16, #tpu.memory_space<vmem>> -> memref<16x24x128xbf16, #tpu.memory_space<vmem>>
      %108 = tpu.memref_slice %arg10[%c0_i32_60] : memref<2x!tpu.dma_semaphore, #tpu.memory_space<semaphore_mem>> -> memref<1x!tpu.dma_semaphore, #tpu.memory_space<semaphore_mem>>
      %109 = tpu.memref_squeeze %108 : memref<1x!tpu.dma_semaphore, #tpu.memory_space<semaphore_mem>> -> memref<!tpu.dma_semaphore, #tpu.memory_space<semaphore_mem>>
      tpu.enqueue_dma source(%105 : memref<16x24x128xbf16, #tpu.memory_space<any>>) target(%107 : memref<16x24x128xbf16, #tpu.memory_space<vmem>>) target_semaphore(%109 : memref<!tpu.dma_semaphore, #tpu.memory_space<semaphore_mem>>)
    } else {
    }
    %c1_i32_5 = arith.constant 1 : i32
    %13 = arith.addi %arg1, %c1_i32_5 : i32
    %c1_i32_6 = arith.constant 1 : i32
    %14 = arith.cmpi slt, %13, %c1_i32_6 : i32
    %15 = arith.extui %14 : i1 to i32
    %c0_i32_7 = arith.constant 0 : i32
    %16 = arith.cmpi ne, %15, %c0_i32_7 : i32
    scf.if %16 {
      %c1_i32_59 = arith.constant 1 : i32
      %104 = arith.subi %c1_i32_59, %9 : i32
      %c0_i32_60 = arith.constant 0 : i32
      %c0_i32_61 = arith.constant 0 : i32
      %c0_i32_62 = arith.constant 0 : i32
      %105 = tpu.memref_slice %arg2[%arg0, %c0_i32_60, %c0_i32_61, %c0_i32_62] : memref<2x16x24x128xbf16, #tpu.memory_space<any>> -> memref<1x16x24x128xbf16, #tpu.memory_space<any>>
      %106 = tpu.memref_squeeze %105 : memref<1x16x24x128xbf16, #tpu.memory_space<any>> -> memref<16x24x128xbf16, #tpu.memory_space<any>>
      %c1_i32_63 = arith.constant 1 : i32
      %c0_i32_64 = arith.constant 0 : i32
      %c0_i32_65 = arith.constant 0 : i32
      %107 = tpu.memref_slice %arg9[%104, %c1_i32_63, %c0_i32_64, %c0_i32_65] : memref<2x18x24x128xbf16, #tpu.memory_space<vmem>> -> memref<1x16x24x128xbf16, #tpu.memory_space<vmem>>
      %108 = tpu.memref_squeeze %107 : memref<1x16x24x128xbf16, #tpu.memory_space<vmem>> -> memref<16x24x128xbf16, #tpu.memory_space<vmem>>
      %109 = tpu.memref_slice %arg10[%104] : memref<2x!tpu.dma_semaphore, #tpu.memory_space<semaphore_mem>> -> memref<1x!tpu.dma_semaphore, #tpu.memory_space<semaphore_mem>>
      %110 = tpu.memref_squeeze %109 : memref<1x!tpu.dma_semaphore, #tpu.memory_space<semaphore_mem>> -> memref<!tpu.dma_semaphore, #tpu.memory_space<semaphore_mem>>
      tpu.enqueue_dma source(%106 : memref<16x24x128xbf16, #tpu.memory_space<any>>) target(%108 : memref<16x24x128xbf16, #tpu.memory_space<vmem>>) target_semaphore(%110 : memref<!tpu.dma_semaphore, #tpu.memory_space<semaphore_mem>>)
    } else {
    }
    %c0_i32_8 = arith.constant 0 : i32
    %c0_i32_9 = arith.constant 0 : i32
    %c0_i32_10 = arith.constant 0 : i32
    %17 = tpu.memref_slice %arg2[%arg0, %c0_i32_8, %c0_i32_9, %c0_i32_10] : memref<2x16x24x128xbf16, #tpu.memory_space<any>> -> memref<1x16x24x128xbf16, #tpu.memory_space<any>>
    %18 = tpu.memref_squeeze %17 : memref<1x16x24x128xbf16, #tpu.memory_space<any>> -> memref<16x24x128xbf16, #tpu.memory_space<any>>
    %c1_i32_11 = arith.constant 1 : i32
    %c0_i32_12 = arith.constant 0 : i32
    %c0_i32_13 = arith.constant 0 : i32
    %19 = tpu.memref_slice %arg9[%9, %c1_i32_11, %c0_i32_12, %c0_i32_13] : memref<2x18x24x128xbf16, #tpu.memory_space<vmem>> -> memref<1x16x24x128xbf16, #tpu.memory_space<vmem>>
    %20 = tpu.memref_squeeze %19 : memref<1x16x24x128xbf16, #tpu.memory_space<vmem>> -> memref<16x24x128xbf16, #tpu.memory_space<vmem>>
    %21 = tpu.memref_slice %arg10[%9] : memref<2x!tpu.dma_semaphore, #tpu.memory_space<semaphore_mem>> -> memref<1x!tpu.dma_semaphore, #tpu.memory_space<semaphore_mem>>
    %22 = tpu.memref_squeeze %21 : memref<1x!tpu.dma_semaphore, #tpu.memory_space<semaphore_mem>> -> memref<!tpu.dma_semaphore, #tpu.memory_space<semaphore_mem>>
    tpu.wait_dma2 semaphore(%22 : memref<!tpu.dma_semaphore, #tpu.memory_space<semaphore_mem>>) src(%18 : memref<16x24x128xbf16, #tpu.memory_space<any>>) dst(%20 : memref<16x24x128xbf16, #tpu.memory_space<vmem>>)
    %23 = arith.index_cast %9 : i32 to index
    %c0 = arith.constant 0 : index
    %c0_14 = arith.constant 0 : index
    %c0_15 = arith.constant 0 : index
    %24 = vector.load %arg9[%23, %c0, %c0_14, %c0_15] : memref<2x18x24x128xbf16, #tpu.memory_space<vmem>>, vector<1x18x24x128xbf16>
    %25 = vector.shape_cast %24 : vector<1x18x24x128xbf16> to vector<18x24x128xbf16>
    %26 = arith.extf %25 : vector<18x24x128xbf16> to vector<18x24x128xf32>
    %c0_16 = arith.constant 0 : index
    %c0_17 = arith.constant 0 : index
    %27 = vector.load %arg4[%c0_16, %c0_17] : memref<1x128xf32, #tpu.memory_space<vmem>>, vector<1x128xf32>
    %28 = vector.shape_cast %27 : vector<1x128xf32> to vector<1x1x128xf32>
    %c0_18 = arith.constant 0 : index
    %c0_19 = arith.constant 0 : index
    %29 = vector.load %arg5[%c0_18, %c0_19] : memref<1x128xf32, #tpu.memory_space<vmem>>, vector<1x128xf32>
    %30 = vector.shape_cast %29 : vector<1x128xf32> to vector<1x1x128xf32>
    %31 = vector.broadcast %28 : vector<1x1x128xf32> to vector<18x24x128xf32>
    %32 = arith.mulf %26, %31 : vector<18x24x128xf32>
    %33 = vector.broadcast %30 : vector<1x1x128xf32> to vector<18x24x128xf32>
    %34 = arith.addf %32, %33 : vector<18x24x128xf32>
    %cst = arith.constant 0.000000e+00 : f32
    %35 = vector.broadcast %cst : f32 to vector<18x24x128xf32>
    %36 = arith.maximumf %34, %35 : vector<18x24x128xf32>
    %c16_i32 = arith.constant 16 : i32
    %37 = arith.muli %arg1, %c16_i32 : i32
    %38 = tpu.iota {dimensions = array<i32: 0>} : vector<18x24x1xi32>
    %39 = vector.broadcast %37 : i32 to vector<18x24x1xi32>
    %40 = arith.addi %39, %38 : vector<18x24x1xi32>
    %41 = tpu.iota {dimensions = array<i32: 1>} : vector<18x24x1xi32>
    %c1_i32_20 = arith.constant 1 : i32
    %42 = vector.broadcast %c1_i32_20 : i32 to vector<18x24x1xi32>
    %43 = arith.cmpi sge, %40, %42 : vector<18x24x1xi32>
    %c17_i32 = arith.constant 17 : i32
    %44 = vector.broadcast %c17_i32 : i32 to vector<18x24x1xi32>
    %45 = arith.cmpi slt, %40, %44 : vector<18x24x1xi32>
    %46 = arith.andi %43, %45 : vector<18x24x1xi1>
    %c1_i32_21 = arith.constant 1 : i32
    %47 = vector.broadcast %c1_i32_21 : i32 to vector<18x24x1xi32>
    %48 = arith.cmpi sge, %41, %47 : vector<18x24x1xi32>
    %49 = arith.andi %46, %48 : vector<18x24x1xi1>
    %c17_i32_22 = arith.constant 17 : i32
    %50 = vector.broadcast %c17_i32_22 : i32 to vector<18x24x1xi32>
    %51 = arith.cmpi slt, %41, %50 : vector<18x24x1xi32>
    %52 = arith.andi %49, %51 : vector<18x24x1xi1>
    %cst_23 = arith.constant 0.000000e+00 : f32
    %53 = vector.shape_cast %52 : vector<18x24x1xi1> to vector<18x24x1xi1>
    %54 = vector.broadcast %53 : vector<18x24x1xi1> to vector<18x24x128xi1>
    %55 = vector.broadcast %cst_23 : f32 to vector<18x24x128xf32>
    %56 = arith.select %54, %36, %55 : vector<18x24x128xi1>, vector<18x24x128xf32>
    %57 = arith.truncf %56 : vector<18x24x128xf32> to vector<18x24x128xbf16>
    %cst_24 = arith.constant 0.000000e+00 : f32
    %58 = vector.broadcast %cst_24 : f32 to vector<256x128xf32>
    %59 = vector.extract_strided_slice %57 {offsets = [0, 0, 0], sizes = [16, 16, 128], strides = [1, 1, 1]} : vector<18x24x128xbf16> to vector<16x16x128xbf16>
    %60 = vector.extract_strided_slice %57 {offsets = [0, 1, 0], sizes = [16, 16, 128], strides = [1, 1, 1]} : vector<18x24x128xbf16> to vector<16x16x128xbf16>
    %61 = vector.extract_strided_slice %57 {offsets = [0, 2, 0], sizes = [16, 16, 128], strides = [1, 1, 1]} : vector<18x24x128xbf16> to vector<16x16x128xbf16>
    %62 = tpu.concatenate %59, %60, %61 in 2 : vector<16x16x128xbf16>, vector<16x16x128xbf16>, vector<16x16x128xbf16> -> vector<16x16x384xbf16>
    %63 = vector.shape_cast %62 : vector<16x16x384xbf16> to vector<256x384xbf16>
    %c0_25 = arith.constant 0 : index
    %c0_26 = arith.constant 0 : index
    %c0_27 = arith.constant 0 : index
    %64 = vector.load %arg3[%c0_25, %c0_26, %c0_27] : memref<3x384x128xbf16, #tpu.memory_space<vmem>>, vector<1x384x128xbf16>
    %65 = vector.shape_cast %64 : vector<1x384x128xbf16> to vector<384x128xbf16>
    %cst_28 = arith.constant dense<0.000000e+00> : vector<256x128xf32>
    %66 = tpu.matmul %63, %65, %cst_28 {dimension_numbers = #tpu.dot_dimension_numbers<[1], [0], [0], [1], [0, 0, 1, 1], [], []>} : vector<256x384xbf16>, vector<384x128xbf16>, vector<256x128xf32> -> vector<256x128xf32>
    %67 = arith.addf %58, %66 : vector<256x128xf32>
    %68 = vector.extract_strided_slice %57 {offsets = [1, 0, 0], sizes = [16, 16, 128], strides = [1, 1, 1]} : vector<18x24x128xbf16> to vector<16x16x128xbf16>
    %69 = vector.extract_strided_slice %57 {offsets = [1, 1, 0], sizes = [16, 16, 128], strides = [1, 1, 1]} : vector<18x24x128xbf16> to vector<16x16x128xbf16>
    %70 = vector.extract_strided_slice %57 {offsets = [1, 2, 0], sizes = [16, 16, 128], strides = [1, 1, 1]} : vector<18x24x128xbf16> to vector<16x16x128xbf16>
    %71 = tpu.concatenate %68, %69, %70 in 2 : vector<16x16x128xbf16>, vector<16x16x128xbf16>, vector<16x16x128xbf16> -> vector<16x16x384xbf16>
    %72 = vector.shape_cast %71 : vector<16x16x384xbf16> to vector<256x384xbf16>
    %c1 = arith.constant 1 : index
    %c0_29 = arith.constant 0 : index
    %c0_30 = arith.constant 0 : index
    %73 = vector.load %arg3[%c1, %c0_29, %c0_30] : memref<3x384x128xbf16, #tpu.memory_space<vmem>>, vector<1x384x128xbf16>
    %74 = vector.shape_cast %73 : vector<1x384x128xbf16> to vector<384x128xbf16>
    %cst_31 = arith.constant dense<0.000000e+00> : vector<256x128xf32>
    %75 = tpu.matmul %72, %74, %cst_31 {dimension_numbers = #tpu.dot_dimension_numbers<[1], [0], [0], [1], [0, 0, 1, 1], [], []>} : vector<256x384xbf16>, vector<384x128xbf16>, vector<256x128xf32> -> vector<256x128xf32>
    %76 = arith.addf %67, %75 : vector<256x128xf32>
    %77 = vector.extract_strided_slice %57 {offsets = [2, 0, 0], sizes = [16, 16, 128], strides = [1, 1, 1]} : vector<18x24x128xbf16> to vector<16x16x128xbf16>
    %78 = vector.extract_strided_slice %57 {offsets = [2, 1, 0], sizes = [16, 16, 128], strides = [1, 1, 1]} : vector<18x24x128xbf16> to vector<16x16x128xbf16>
    %79 = vector.extract_strided_slice %57 {offsets = [2, 2, 0], sizes = [16, 16, 128], strides = [1, 1, 1]} : vector<18x24x128xbf16> to vector<16x16x128xbf16>
    %80 = tpu.concatenate %77, %78, %79 in 2 : vector<16x16x128xbf16>, vector<16x16x128xbf16>, vector<16x16x128xbf16> -> vector<16x16x384xbf16>
    %81 = vector.shape_cast %80 : vector<16x16x384xbf16> to vector<256x384xbf16>
    %c2 = arith.constant 2 : index
    %c0_32 = arith.constant 0 : index
    %c0_33 = arith.constant 0 : index
    %82 = vector.load %arg3[%c2, %c0_32, %c0_33] : memref<3x384x128xbf16, #tpu.memory_space<vmem>>, vector<1x384x128xbf16>
    %83 = vector.shape_cast %82 : vector<1x384x128xbf16> to vector<384x128xbf16>
    %cst_34 = arith.constant dense<0.000000e+00> : vector<256x128xf32>
    %84 = tpu.matmul %81, %83, %cst_34 {dimension_numbers = #tpu.dot_dimension_numbers<[1], [0], [0], [1], [0, 0, 1, 1], [], []>} : vector<256x384xbf16>, vector<384x128xbf16>, vector<256x128xf32> -> vector<256x128xf32>
    %85 = arith.addf %76, %84 : vector<256x128xf32>
    %86 = vector.shape_cast %85 : vector<256x128xf32> to vector<16x16x128xf32>
    %c0_35 = arith.constant 0 : index
    %c0_36 = arith.constant 0 : index
    %c0_37 = arith.constant 0 : index
    %c0_38 = arith.constant 0 : index
    %87 = vector.load %arg6[%c0_35, %c0_36, %c0_37, %c0_38] : memref<1x16x16x128xf32, #tpu.memory_space<vmem>>, vector<1x16x16x128xf32>
    %88 = vector.shape_cast %87 : vector<1x16x16x128xf32> to vector<16x16x128xf32>
    %89 = vector.shape_cast %86 : vector<16x16x128xf32> to vector<1x16x16x128xf32>
    tpu.vector_store %arg6[%c0_35, %c0_36, %c0_37, %c0_38], %89 {strides = array<i32>} : memref<1x16x16x128xf32, #tpu.memory_space<vmem>>, vector<1x16x16x128xf32>,
    %c0_i32_39 = arith.constant 0 : i32
    %90 = arith.cmpi eq, %arg1, %c0_i32_39 : i32
    %91 = arith.extui %90 : i1 to i32
    %c0_i32_40 = arith.constant 0 : i32
    %92 = arith.cmpi ne, %91, %c0_i32_40 : i32
    scf.if %92 {
      %cst_59 = arith.constant 0.000000e+00 : f32
      %104 = vector.broadcast %cst_59 : f32 to vector<1x1x1x128xf32>
      %c0_60 = arith.constant 0 : index
      %c0_61 = arith.constant 0 : index
      %c0_62 = arith.constant 0 : index
      %c0_63 = arith.constant 0 : index
      %105 = vector.load %arg7[%c0_60, %c0_61, %c0_62, %c0_63] : memref<1x1x1x128xf32, #tpu.memory_space<vmem>>, vector<1x1x1x128xf32>
      tpu.vector_store %arg7[%c0_60, %c0_61, %c0_62, %c0_63], %104 {strides = array<i32>} : memref<1x1x1x128xf32, #tpu.memory_space<vmem>>, vector<1x1x1x128xf32>,
      %cst_64 = arith.constant 0.000000e+00 : f32
      %106 = vector.broadcast %cst_64 : f32 to vector<1x1x1x128xf32>
      %c0_65 = arith.constant 0 : index
      %c0_66 = arith.constant 0 : index
      %c0_67 = arith.constant 0 : index
      %c0_68 = arith.constant 0 : index
      %107 = vector.load %arg8[%c0_65, %c0_66, %c0_67, %c0_68] : memref<1x1x1x128xf32, #tpu.memory_space<vmem>>, vector<1x1x1x128xf32>
      tpu.vector_store %arg8[%c0_65, %c0_66, %c0_67, %c0_68], %106 {strides = array<i32>} : memref<1x1x1x128xf32, #tpu.memory_space<vmem>>, vector<1x1x1x128xf32>,
    } else {
    }
    %c0_41 = arith.constant 0 : index
    %c0_42 = arith.constant 0 : index
    %c0_43 = arith.constant 0 : index
    %c0_44 = arith.constant 0 : index
    %93 = vector.load %arg7[%c0_41, %c0_42, %c0_43, %c0_44] : memref<1x1x1x128xf32, #tpu.memory_space<vmem>>, vector<1x1x1x128xf32>
    %cst_45 = arith.constant dense<0.000000e+00> : vector<128xf32>
    %94 = vector.multi_reduction <add>, %85, %cst_45 [0] : vector<256x128xf32> to vector<128xf32>
    %95 = vector.shape_cast %94 : vector<128xf32> to vector<1x1x1x128xf32>
    %96 = arith.addf %93, %95 : vector<1x1x1x128xf32>
    %c0_46 = arith.constant 0 : index
    %c0_47 = arith.constant 0 : index
    %c0_48 = arith.constant 0 : index
    %c0_49 = arith.constant 0 : index
    %97 = vector.load %arg7[%c0_46, %c0_47, %c0_48, %c0_49] : memref<1x1x1x128xf32, #tpu.memory_space<vmem>>, vector<1x1x1x128xf32>
    tpu.vector_store %arg7[%c0_46, %c0_47, %c0_48, %c0_49], %96 {strides = array<i32>} : memref<1x1x1x128xf32, #tpu.memory_space<vmem>>, vector<1x1x1x128xf32>,
    %c0_50 = arith.constant 0 : index
    %c0_51 = arith.constant 0 : index
    %c0_52 = arith.constant 0 : index
    %c0_53 = arith.constant 0 : index
    %98 = vector.load %arg8[%c0_50, %c0_51, %c0_52, %c0_53] : memref<1x1x1x128xf32, #tpu.memory_space<vmem>>, vector<1x1x1x128xf32>
    %99 = arith.mulf %85, %85 : vector<256x128xf32>
    %cst_54 = arith.constant dense<0.000000e+00> : vector<128xf32>
    %100 = vector.multi_reduction <add>, %99, %cst_54 [0] : vector<256x128xf32> to vector<128xf32>
    %101 = vector.shape_cast %100 : vector<128xf32> to vector<1x1x1x128xf32>
    %102 = arith.addf %98, %101 : vector<1x1x1x128xf32>
    %c0_55 = arith.constant 0 : index
    %c0_56 = arith.constant 0 : index
    %c0_57 = arith.constant 0 : index
    %c0_58 = arith.constant 0 : index
    %103 = vector.load %arg8[%c0_55, %c0_56, %c0_57, %c0_58] : memref<1x1x1x128xf32, #tpu.memory_space<vmem>>, vector<1x1x1x128xf32>
    tpu.vector_store %arg8[%c0_55, %c0_56, %c0_57, %c0_58], %102 {strides = array<i32>} : memref<1x1x1x128xf32, #tpu.memory_space<vmem>>, vector<1x1x1x128xf32>,
    return
  }
  func.func @transform_1(%arg0: i32, %arg1: i32) -> (i32, i32, i32) {
    %c0_i32 = arith.constant 0 : i32
    %c0_i32_0 = arith.constant 0 : i32
    %c0_i32_1 = arith.constant 0 : i32
    %c0_i32_2 = arith.constant 0 : i32
    return %c0_i32, %c0_i32_0, %c0_i32_1 : i32, i32, i32
  }
  func.func @transform_2(%arg0: i32, %arg1: i32) -> (i32, i32) {
    %c0_i32 = arith.constant 0 : i32
    %c0_i32_0 = arith.constant 0 : i32
    %c0_i32_1 = arith.constant 0 : i32
    return %c0_i32, %c0_i32_0 : i32, i32
  }
  func.func @transform_3(%arg0: i32, %arg1: i32) -> (i32, i32) {
    %c0_i32 = arith.constant 0 : i32
    %c0_i32_0 = arith.constant 0 : i32
    %c0_i32_1 = arith.constant 0 : i32
    return %c0_i32, %c0_i32_0 : i32, i32
  }
  func.func @transform_4(%arg0: i32, %arg1: i32) -> (i32, i32, i32, i32) {
    %c0_i32 = arith.constant 0 : i32
    %c0_i32_0 = arith.constant 0 : i32
    %c0_i32_1 = arith.constant 0 : i32
    return %arg0, %arg1, %c0_i32, %c0_i32_0 : i32, i32, i32, i32
  }
  func.func @transform_5(%arg0: i32, %arg1: i32) -> (i32, i32, i32, i32) {
    %c0_i32 = arith.constant 0 : i32
    %c0_i32_0 = arith.constant 0 : i32
    %c0_i32_1 = arith.constant 0 : i32
    %c0_i32_2 = arith.constant 0 : i32
    return %arg0, %c0_i32, %c0_i32_0, %c0_i32_1 : i32, i32, i32, i32
  }
  func.func @transform_6(%arg0: i32, %arg1: i32) -> (i32, i32, i32, i32) {
    %c0_i32 = arith.constant 0 : i32
    %c0_i32_0 = arith.constant 0 : i32
    %c0_i32_1 = arith.constant 0 : i32
    %c0_i32_2 = arith.constant 0 : i32
    return %arg0, %c0_i32, %c0_i32_0, %c0_i32_1 : i32, i32, i32, i32
  }
}

module attributes {stable_mosaic.version = 11 : i64} {
  func.func @_bn_add_relu_kernel(%arg0: i32, %arg1: i32, %arg2: memref<1x16x16x128xf32, #tpu.memory_space<vmem>>, %arg3: memref<1x16x16x128xf32, #tpu.memory_space<vmem>>, %arg4: memref<1x1x1x128xf32, #tpu.memory_space<vmem>>, %arg5: memref<1x1x1x128xf32, #tpu.memory_space<vmem>>, %arg6: memref<1x16x16x128xf32, #tpu.memory_space<vmem>>) attributes {dimension_semantics = [#tpu.dimension_semantics<parallel>, #tpu.dimension_semantics<parallel>], iteration_bounds = array<i64: 2, 1>, scalar_prefetch = 0 : i64, scratch_operands = 0 : i64, tpu.core_type = #tpu.core_type<tc>, window_params = [{transform_indices = @transform_0, window_bounds = array<i64: 1, 16, 16, 128>}, {transform_indices = @transform_1, window_bounds = array<i64: 1, 16, 16, 128>}, {pipeline_mode = #tpu.pipeline_mode<synchronous>, transform_indices = @transform_2, window_bounds = array<i64: 1, 1, 1, 128>}, {pipeline_mode = #tpu.pipeline_mode<synchronous>, transform_indices = @transform_3, window_bounds = array<i64: 1, 1, 1, 128>}, {transform_indices = @transform_4, window_bounds = array<i64: 1, 16, 16, 128>}]} {
    %c0 = arith.constant 0 : index
    %c0_0 = arith.constant 0 : index
    %c0_1 = arith.constant 0 : index
    %c0_2 = arith.constant 0 : index
    %0 = vector.load %arg2[%c0, %c0_0, %c0_1, %c0_2] : memref<1x16x16x128xf32, #tpu.memory_space<vmem>>, vector<1x16x16x128xf32>
    %c0_3 = arith.constant 0 : index
    %c0_4 = arith.constant 0 : index
    %c0_5 = arith.constant 0 : index
    %c0_6 = arith.constant 0 : index
    %1 = vector.load %arg4[%c0_3, %c0_4, %c0_5, %c0_6] : memref<1x1x1x128xf32, #tpu.memory_space<vmem>>, vector<1x1x1x128xf32>
    %2 = vector.broadcast %1 : vector<1x1x1x128xf32> to vector<1x16x16x128xf32>
    %3 = arith.mulf %0, %2 : vector<1x16x16x128xf32>
    %c0_7 = arith.constant 0 : index
    %c0_8 = arith.constant 0 : index
    %c0_9 = arith.constant 0 : index
    %c0_10 = arith.constant 0 : index
    %4 = vector.load %arg5[%c0_7, %c0_8, %c0_9, %c0_10] : memref<1x1x1x128xf32, #tpu.memory_space<vmem>>, vector<1x1x1x128xf32>
    %5 = vector.broadcast %4 : vector<1x1x1x128xf32> to vector<1x16x16x128xf32>
    %6 = arith.addf %3, %5 : vector<1x16x16x128xf32>
    %c0_11 = arith.constant 0 : index
    %c0_12 = arith.constant 0 : index
    %c0_13 = arith.constant 0 : index
    %c0_14 = arith.constant 0 : index
    %7 = vector.load %arg3[%c0_11, %c0_12, %c0_13, %c0_14] : memref<1x16x16x128xf32, #tpu.memory_space<vmem>>, vector<1x16x16x128xf32>
    %8 = arith.addf %6, %7 : vector<1x16x16x128xf32>
    %cst = arith.constant 0.000000e+00 : f32
    %9 = vector.broadcast %cst : f32 to vector<1x16x16x128xf32>
    %10 = arith.maximumf %8, %9 : vector<1x16x16x128xf32>
    %c0_15 = arith.constant 0 : index
    %c0_16 = arith.constant 0 : index
    %c0_17 = arith.constant 0 : index
    %c0_18 = arith.constant 0 : index
    %11 = vector.load %arg6[%c0_15, %c0_16, %c0_17, %c0_18] : memref<1x16x16x128xf32, #tpu.memory_space<vmem>>, vector<1x16x16x128xf32>
    tpu.vector_store %arg6[%c0_15, %c0_16, %c0_17, %c0_18], %10 {strides = array<i32>} : memref<1x16x16x128xf32, #tpu.memory_space<vmem>>, vector<1x16x16x128xf32>,
    return
  }
  func.func @transform_0(%arg0: i32, %arg1: i32) -> (i32, i32, i32, i32) {
    %c0_i32 = arith.constant 0 : i32
    %c0_i32_0 = arith.constant 0 : i32
    %c0_i32_1 = arith.constant 0 : i32
    return %arg0, %arg1, %c0_i32, %c0_i32_0 : i32, i32, i32, i32
  }
  func.func @transform_1(%arg0: i32, %arg1: i32) -> (i32, i32, i32, i32) {
    %c0_i32 = arith.constant 0 : i32
    %c0_i32_0 = arith.constant 0 : i32
    %c0_i32_1 = arith.constant 0 : i32
    return %arg0, %arg1, %c0_i32, %c0_i32_0 : i32, i32, i32, i32
  }
  func.func @transform_2(%arg0: i32, %arg1: i32) -> (i32, i32, i32, i32) {
    %c0_i32 = arith.constant 0 : i32
    %c0_i32_0 = arith.constant 0 : i32
    %c0_i32_1 = arith.constant 0 : i32
    %c0_i32_2 = arith.constant 0 : i32
    %c0_i32_3 = arith.constant 0 : i32
    return %c0_i32, %c0_i32_0, %c0_i32_1, %c0_i32_2 : i32, i32, i32, i32
  }
  func.func @transform_3(%arg0: i32, %arg1: i32) -> (i32, i32, i32, i32) {
    %c0_i32 = arith.constant 0 : i32
    %c0_i32_0 = arith.constant 0 : i32
    %c0_i32_1 = arith.constant 0 : i32
    %c0_i32_2 = arith.constant 0 : i32
    %c0_i32_3 = arith.constant 0 : i32
    return %c0_i32, %c0_i32_0, %c0_i32_1, %c0_i32_2 : i32, i32, i32, i32
  }
  func.func @transform_4(%arg0: i32, %arg1: i32) -> (i32, i32, i32, i32) {
    %c0_i32 = arith.constant 0 : i32
    %c0_i32_0 = arith.constant 0 : i32
    %c0_i32_1 = arith.constant 0 : i32
    return %arg0, %arg1, %c0_i32, %c0_i32_0 : i32, i32, i32, i32
  }
}

</mosaic_0001>

<llo_original>
// kernel: residual_forward.5
$region0: #{residual_forward.5}
  #allocation0 [shape = 'u32[]', space=smem, size = 0x4, offset = 0x4, fixed_abs, tag = 'smem constant byte address 0x4 - core index']
  #allocation1 [shape = 'u32[144,128]{1,0:T(1,128)}', space=vmem, size = 0x12000, scoped, tag = 'internal scratch']
  %s0 = inlined_call_operand.vmem [shape: f32[2,16,16,128], index: 0, kind: input, shape index: {}]
  %s1 = inlined_call_operand.vmem [shape: f32[2,16,16,128], index: 1, kind: input, shape index: {}]
  %s2 = inlined_call_operand.vmem [shape: f32[1,1,1,128], index: 2, kind: input, shape index: {}]
  %s3 = inlined_call_operand.vmem [shape: f32[1,1,1,128], index: 3, kind: input, shape index: {}]
  %s4 = inlined_call_operand.vmem [shape: f32[2,16,16,128], index: 4, kind: output, shape index: {}]
  %s5 = sld [smem:[#allocation0]]
  $region49: #{residual_forward.5} parent=0
    _
  %s7 = ssub.s32 1, %s5
  %s8 = scalar_select 0, %s7, %s5
  loop: start=0, step=1, limit=4
  $region2: #{residual_forward.5} parent=0 // loop_pre_header
    _
  $region3: #{residual_forward.5} parent=0 // loop_header
    %s10 = sphi 0, %s14
    %p11 = scmp.ge.s32.totalorder %s10, 4
    %s17 = sphi 0, %s29
    %s18 = sphi 0, %s25
    %s19 = sphi 0, %s17
    %s20 = sphi 0, %s18
    %s21 = sphi 0, %s19
    %s22 = sphi 0, %s20
    %s34 = sphi 0, %s36
    %s37 = sphi 0, %s34
    %s38 = sphi 0, %s37
    %s54 = sphi 0, %s38
    %s62 = sphi 0, %s64
    %s65 = sphi 0, %s62
    %s66 = sphi 0, %s65
    %s82 = sphi 0, %s66
    %s86 = sphi 0, %s86
    %s88 = sphi 0, %s86
    %s89 = sphi 0, %s88
    %s103 = sphi 0, %s89
    %s107 = sphi 0, %s107
    %s109 = sphi 0, %s107
    %s110 = sphi 0, %s109
    %s124 = sphi 0, %s110
    %s132 = sphi 0, %s134
    %s135 = sphi 0, %s132
    %s136 = sphi 0, %s135
    %s152 = sphi 0, %s136
  $region4: #{residual_forward.5} parent=0 // loop_header_branch
    %13 = sbr.rel (%p11) target = $region8
  $region5: #{residual_forward.5} parent=0 // loop_body
    %s15 = ssub.s32 %s10, 1
    %s16 = ssub.s32 %s10, 2
    %s23 = sadd.s32 1, %s18
    %p24 = scmp.ge.s32.totalorder %s23, 1
    %s25 = scalar_select %p24, 0, %s23
    %s26 = sadd.s32 1, %s17
    %s27 = scalar_select %p24, %s26, %s17
    %p28 = scmp.ge.s32.totalorder %s27, 2
    %s29 = scalar_select %p28, 0, %s27
    %s30 = ssub.s32 %s17, %s29
    %s31 = ssub.s32 %s18, %s25
    %s32 = sor.u32 %s30, %s31
    %p33 = scmp.eq.s32.totalorder %s32, 0
    %s35 = sadd.s32 %s34, 1
    %s36 = scalar_select %p33, %s34, %s35
    %p39 = pneg %p33
    %p40 = scmp.eq.s32.totalorder %s10, 1
    %p41 = por %p39, %p40
    %p42 = scmp.ne.s32.totalorder %s34, %s37
    %p43 = scmp.eq.s32.totalorder %s10, 0
    %p44 = por %p42, %p43
    %p45 = scmp.ne.s32.totalorder %s34, %s37
    %p46 = scmp.eq.s32.totalorder %s15, 1
    %p47 = por %p45, %p46
    %p48 = scmp.ne.s32.totalorder %s37, %s38
    %p49 = scmp.eq.s32.totalorder %s15, 0
    %p50 = por %p48, %p49
    %p51 = scmp.ne.s32.totalorder %s37, %s38
    %p52 = scmp.eq.s32.totalorder %s16, 1
    %p53 = por %p51, %p52
    %p55 = scmp.ne.s32.totalorder %s38, %s54
    %p56 = scmp.eq.s32.totalorder %s16, 0
    %p57 = por %p55, %p56
    %s58 = ssub.s32 %s17, %s29
    %s59 = ssub.s32 %s18, %s25
    %s60 = sor.u32 %s58, %s59
    %p61 = scmp.eq.s32.totalorder %s60, 0
    %s63 = sadd.s32 %s62, 1
    %s64 = scalar_select %p61, %s62, %s63
    %p67 = pneg %p61
    %p68 = scmp.eq.s32.totalorder %s10, 1
    %p69 = por %p67, %p68
    %p70 = scmp.ne.s32.totalorder %s62, %s65
    %p71 = scmp.eq.s32.totalorder %s10, 0
    %p72 = por %p70, %p71
    %p73 = scmp.ne.s32.totalorder %s62, %s65
    %p74 = scmp.eq.s32.totalorder %s15, 1
    %p75 = por %p73, %p74
    %p76 = scmp.ne.s32.totalorder %s65, %s66
    %p77 = scmp.eq.s32.totalorder %s15, 0
    %p78 = por %p76, %p77
    %p79 = scmp.ne.s32.totalorder %s65, %s66
    %p80 = scmp.eq.s32.totalorder %s16, 1
    %p81 = por %p79, %p80
    %p83 = scmp.ne.s32.totalorder %s66, %s82
    %p84 = scmp.eq.s32.totalorder %s16, 0
    %p85 = por %p83, %p84
    %s87 = sadd.s32 %s86, 1
    %p90 = scmp.eq.s32.totalorder %s10, 1
    %p91 = scmp.ne.s32.totalorder %s86, %s88
    %p92 = scmp.eq.s32.totalorder %s10, 0
    %p93 = por %p91, %p92
    %p94 = scmp.ne.s32.totalorder %s86, %s88
    %p95 = scmp.eq.s32.totalorder %s15, 1
    %p96 = por %p94, %p95
    %p97 = scmp.ne.s32.totalorder %s88, %s89
    %p98 = scmp.eq.s32.totalorder %s15, 0
    %p99 = por %p97, %p98
    %p100 = scmp.ne.s32.totalorder %s88, %s89
    %p101 = scmp.eq.s32.totalorder %s16, 1
    %p102 = por %p100, %p101
    %p104 = scmp.ne.s32.totalorder %s89, %s103
    %p105 = scmp.eq.s32.totalorder %s16, 0
    %p106 = por %p104, %p105
    %s108 = sadd.s32 %s107, 1
    %p111 = scmp.eq.s32.totalorder %s10, 1
    %p112 = scmp.ne.s32.totalorder %s107, %s109
    %p113 = scmp.eq.s32.totalorder %s10, 0
    %p114 = por %p112, %p113
    %p115 = scmp.ne.s32.totalorder %s107, %s109
    %p116 = scmp.eq.s32.totalorder %s15, 1
    %p117 = por %p115, %p116
    %p118 = scmp.ne.s32.totalorder %s109, %s110
    %p119 = scmp.eq.s32.totalorder %s15, 0
    %p120 = por %p118, %p119
    %p121 = scmp.ne.s32.totalorder %s109, %s110
    %p122 = scmp.eq.s32.totalorder %s16, 1
    %p123 = por %p121, %p122
    %p125 = scmp.ne.s32.totalorder %s110, %s124
    %p126 = scmp.eq.s32.totalorder %s16, 0
    %p127 = por %p125, %p126
    %s128 = ssub.s32 %s17, %s29
    %s129 = ssub.s32 %s18, %s25
    %s130 = sor.u32 %s128, %s129
    %p131 = scmp.eq.s32.totalorder %s130, 0
    %s133 = sadd.s32 %s132, 1
    %s134 = scalar_select %p131, %s132, %s133
    %p137 = pneg %p131
    %p138 = scmp.eq.s32.totalorder %s10, 1
    %p139 = por %p137, %p138
    %p140 = scmp.ne.s32.totalorder %s132, %s135
    %p141 = scmp.eq.s32.totalorder %s10, 0
    %p142 = por %p140, %p141
    %p143 = scmp.ne.s32.totalorder %s132, %s135
    %p144 = scmp.eq.s32.totalorder %s15, 1
    %p145 = por %p143, %p144
    %p146 = scmp.ne.s32.totalorder %s135, %s136
    %p147 = scmp.eq.s32.totalorder %s15, 0
    %p148 = por %p146, %p147
    %p149 = scmp.ne.s32.totalorder %s135, %s136
    %p150 = scmp.eq.s32.totalorder %s16, 1
    %p151 = por %p149, %p150
    %p153 = scmp.ne.s32.totalorder %s136, %s152
    %p154 = scmp.eq.s32.totalorder %s16, 0
    %p155 = por %p153, %p154
    %p156 = scmp.le.s32.totalorder 1, %s10
    %p157 = scmp.lt.s32.totalorder %s10, 3
    %p158 = pnand %p156, %p157
    %p159 = pneg %p158
    // Predicated region
    $region9: #{residual_forward.5} parent=5 // pred_check
      _
    $region10: #{residual_forward.5} parent=5 // pred_check_branch
      %161 = sbr.rel (%p158) target = $region12
    $region11: #{residual_forward.5} parent=5 // pred_region
      %s162 = ssub.s32 %s10, 1
      // Predicated region
      $region13: #{residual_forward.5} parent=11 // pred_check
        %p163 = pneg %p99
      $region14: #{residual_forward.5} parent=11 // pred_check_branch
        %165 = sbr.rel (%p163) target = $region16
      $region15: #{residual_forward.5} parent=11 // pred_region
        _
      $region16: #{residual_forward.5} parent=11 // pred_fallthru
        _
      // Predicated region
      $region17: #{residual_forward.5} parent=11 // pred_check
        %p166 = pneg %p120
      $region18: #{residual_forward.5} parent=11 // pred_check_branch
        %168 = sbr.rel (%p166) target = $region20
      $region19: #{residual_forward.5} parent=11 // pred_region
        _
      $region20: #{residual_forward.5} parent=11 // pred_fallthru
        _
    $region12: #{residual_forward.5} parent=5 // pred_fallthru
      _
    %p169 = scmp.lt.s32.totalorder %s10, 2
    // Predicated region
    $region21: #{residual_forward.5} parent=5 // pred_check
      %p170 = pneg %p169
    $region22: #{residual_forward.5} parent=5 // pred_check_branch
      %172 = sbr.rel (%p170) target = $region24
    $region23: #{residual_forward.5} parent=5 // pred_region
      // Predicated region
      $region25: #{residual_forward.5} parent=23 // pred_check
        %p173 = pneg %p44
      $region26: #{residual_forward.5} parent=23 // pred_check_branch
        %175 = sbr.rel (%p173) target = $region28
      $region27: #{residual_forward.5} parent=23 // pred_region
        %s176 = smul.u32 16, %s18
        %p177 = scmp.lt.s32.totalorder %s17, 1
        %s178 = scalar_select %p177, %s17, 1
        %p179 = scmp.lt.s32.totalorder %s176, 15
        %s180 = scalar_select %p179, %s176, 15
        %s181 = smul.addr %s180, 2
        %s182 = smul.addr %s178, 32
        %s183 = sadd.s32 %s181, %s182
        %s184 = smul.addr %s183, 8
        %s185 = scalar_lea.vmem %s0, %s184
        %s186 = smul.u32 16, %s18
      $region28: #{residual_forward.5} parent=23 // pred_fallthru
        _
      // Predicated region
      $region29: #{residual_forward.5} parent=23 // pred_check
        %p187 = pneg %p72
      $region30: #{residual_forward.5} parent=23 // pred_check_branch
        %189 = sbr.rel (%p187) target = $region32
      $region31: #{residual_forward.5} parent=23 // pred_region
        %s190 = smul.u32 16, %s18
        %p191 = scmp.lt.s32.totalorder %s17, 1
        %s192 = scalar_select %p191, %s17, 1
        %p193 = scmp.lt.s32.totalorder %s190, 15
        %s194 = scalar_select %p193, %s190, 15
        %s195 = smul.addr %s194, 2
        %s196 = smul.addr %s192, 32
        %s197 = sadd.s32 %s195, %s196
        %s198 = smul.addr %s197, 8
        %s199 = scalar_lea.vmem %s1, %s198
        %s200 = smul.u32 16, %s18
      $region32: #{residual_forward.5} parent=23 // pred_fallthru
        _
    $region24: #{residual_forward.5} parent=5 // pred_fallthru
      _
    %p201 = scmp.le.s32.totalorder 1, %s10
    %p202 = scmp.lt.s32.totalorder %s10, 3
    %p203 = pnand %p201, %p202
    %p204 = pneg %p203
    // Predicated region
    $region33: #{residual_forward.5} parent=5 // pred_check
      _
    $region34: #{residual_forward.5} parent=5 // pred_check_branch
      %206 = sbr.rel (%p203) target = $region36
    $region35: #{residual_forward.5} parent=5 // pred_region
      %s207 = ssub.s32 %s10, 1
      %s208 = smul.u32 16, %s20
      %p209 = scmp.lt.s32.totalorder %s19, 1
      %s210 = scalar_select %p209, %s19, 1
      %p211 = scmp.lt.s32.totalorder %s208, 15
      %s212 = scalar_select %p211, %s208, 15
      %s213 = smul.addr %s212, 2
      %s214 = smul.addr %s210, 32
      %s215 = sadd.s32 %s213, %s214
      %s216 = smul.addr %s215, 8
      %s217 = scalar_lea.vmem %s0, %s216
      %p218 = pneg %p50
      %p219 = pneg %p47
      %s220 = smul.u32 16, %s20
      %p221 = scmp.lt.s32.totalorder %s19, 1
      %s222 = scalar_select %p221, %s19, 1
      %p223 = scmp.lt.s32.totalorder %s220, 15
      %s224 = scalar_select %p223, %s220, 15
      %s225 = smul.addr %s224, 2
      %s226 = smul.addr %s222, 32
      %s227 = sadd.s32 %s225, %s226
      %s228 = smul.addr %s227, 8
      %s229 = scalar_lea.vmem %s1, %s228
      %p230 = pneg %p78
      %p231 = pneg %p75
      %p232 = pneg %p99
      %p233 = pneg %p96
      %p234 = pneg %p120
      %p235 = pneg %p117
      %p236 = pneg %p148
      %p237 = pneg %p145
      %s238 = smul.u32 16, %s20
      %p239 = scmp.lt.s32.totalorder %s19, 1
      %s240 = scalar_select %p239, %s19, 1
      %p241 = scmp.lt.s32.totalorder %s238, 15
      %s242 = scalar_select %p241, %s238, 15
      %s243 = smul.addr %s242, 2
      %s244 = smul.addr %s240, 32
      %s245 = sadd.s32 %s243, %s244
      %s246 = smul.addr %s245, 8
      %s247 = scalar_lea.vmem %s4, %s246
      %s248 = smul.u32 16, %s20
      %p249 = scmp.lt.s32.totalorder %s19, 1
      %s250 = scalar_select %p249, %s19, 1
      %p251 = scmp.lt.s32.totalorder %s248, 15
      %s252 = scalar_select %p251, %s248, 15
      %s253 = smul.addr %s252, 2
      %s254 = smul.addr %s250, 32
      %s255 = sadd.s32 %s253, %s254
      %s256 = smul.addr %s255, 8
      %s257 = scalar_lea.vmem %s0, %s256
      %s258 = smul.u32 16, %s20
      %s259 = smul.u32 16, %s20
      %p260 = scmp.lt.s32.totalorder %s19, 1
      %s261 = scalar_select %p260, %s19, 1
      %p262 = scmp.lt.s32.totalorder %s259, 15
      %s263 = scalar_select %p262, %s259, 15
      %s264 = smul.addr %s263, 2
      %s265 = smul.addr %s261, 32
      %s266 = sadd.s32 %s264, %s265
      %s267 = smul.addr %s266, 8
      %s268 = scalar_lea.vmem %s1, %s267
      %s269 = smul.u32 16, %s20
      %s270 = smul.u32 16, %s20
      %p271 = scmp.lt.s32.totalorder %s19, 1
      %s272 = scalar_select %p271, %s19, 1
      %p273 = scmp.lt.s32.totalorder %s270, 15
      %s274 = scalar_select %p273, %s270, 15
      %s275 = smul.addr %s274, 2
      %s276 = smul.addr %s272, 32
      %s277 = sadd.s32 %s275, %s276
      %s278 = smul.addr %s277, 8
      %s279 = scalar_lea.vmem %s4, %s278
      %s280 = smul.u32 16, %s20
      %v281 = vld [vmem:[%s257] sm:$0xff]
      %v282 = vld [vmem:[%s257 + $0x8] sm:$0xff]
      %v283 = vld [vmem:[%s257 + $0x10] sm:$0xff]
      %v284 = vld [vmem:[%s257 + $0x18] sm:$0xff]
      %v285 = vld [vmem:[%s257 + $0x20] sm:$0xff]
      %v286 = vld [vmem:[%s257 + $0x28] sm:$0xff]
      %v287 = vld [vmem:[%s257 + $0x30] sm:$0xff]
      %v288 = vld [vmem:[%s257 + $0x38] sm:$0xff]
      %v289 = vld [vmem:[%s257 + $0x40] sm:$0xff]
      %v290 = vld [vmem:[%s257 + $0x48] sm:$0xff]
      %v291 = vld [vmem:[%s257 + $0x50] sm:$0xff]
      %v292 = vld [vmem:[%s257 + $0x58] sm:$0xff]
      %v293 = vld [vmem:[%s257 + $0x60] sm:$0xff]
      %v294 = vld [vmem:[%s257 + $0x68] sm:$0xff]
      %v295 = vld [vmem:[%s257 + $0x70] sm:$0xff]
      %v296 = vld [vmem:[%s257 + $0x78] sm:$0xff]
      %v297 = vld [vmem:[%s257 + $0x80] sm:$0xff]
      %v298 = vld [vmem:[%s257 + $0x88] sm:$0xff]
      %v299 = vld [vmem:[%s257 + $0x90] sm:$0xff]
      %v300 = vld [vmem:[%s257 + $0x98] sm:$0xff]
      %v301 = vld [vmem:[%s257 + $0xa0] sm:$0xff]
      %v302 = vld [vmem:[%s257 + $0xa8] sm:$0xff]
      %v303 = vld [vmem:[%s257 + $0xb0] sm:$0xff]
      %v304 = vld [vmem:[%s257 + $0xb8] sm:$0xff]
      %v305 = vld [vmem:[%s257 + $0xc0] sm:$0xff]
      %v306 = vld [vmem:[%s257 + $0xc8] sm:$0xff]
      %v307 = vld [vmem:[%s257 + $0xd0] sm:$0xff]
      %v308 = vld [vmem:[%s257 + $0xd8] sm:$0xff]
      %v309 = vld [vmem:[%s257 + $0xe0] sm:$0xff]
      %v310 = vld [vmem:[%s257 + $0xe8] sm:$0xff]
      %v311 = vld [vmem:[%s257 + $0xf0] sm:$0xff]
      %v312 = vld [vmem:[%s257 + $0xf8] sm:$0xff]
      %v313 = vld [vmem:[%s2] sm:$0x1]
      %v315 = vlaneseq
      %v316 = vshrl.u32 %v315, 7
      %v317 = vsub.s32 0, %v316
      %v318 = vrot.slane %v313, %v317
      %v320 = vmul.f32 %v281, %v318
      %v321 = vmul.f32 %v282, %v318
      %v322 = vmul.f32 %v283, %v318
      %v323 = vmul.f32 %v284, %v318
      %v324 = vmul.f32 %v285, %v318
      %v325 = vmul.f32 %v286, %v318
      %v326 = vmul.f32 %v287, %v318
      %v327 = vmul.f32 %v288, %v318
      %v328 = vmul.f32 %v289, %v318
      %v329 = vmul.f32 %v290, %v318
      %v330 = vmul.f32 %v291, %v318
      %v331 = vmul.f32 %v292, %v318
      %v332 = vmul.f32 %v293, %v318
      %v333 = vmul.f32 %v294, %v318
      %v334 = vmul.f32 %v295, %v318
      %v335 = vmul.f32 %v296, %v318
      %v336 = vmul.f32 %v297, %v318
      %v337 = vmul.f32 %v298, %v318
      %v338 = vmul.f32 %v299, %v318
      %v339 = vmul.f32 %v300, %v318
      %v340 = vmul.f32 %v301, %v318
      %v341 = vmul.f32 %v302, %v318
      %v342 = vmul.f32 %v303, %v318
      %v343 = vmul.f32 %v304, %v318
      %v344 = vmul.f32 %v305, %v318
      %v345 = vmul.f32 %v306, %v318
      %v346 = vmul.f32 %v307, %v318
      %v347 = vmul.f32 %v308, %v318
      %v348 = vmul.f32 %v309, %v318
      %v349 = vmul.f32 %v310, %v318
      %v350 = vmul.f32 %v311, %v318
      %v351 = vmul.f32 %v312, %v318
      %v352 = vld [vmem:[%s3] sm:$0x1]
      %v354 = vlaneseq
      %v355 = vshrl.u32 %v354, 7
      %v356 = vsub.s32 0, %v355
      %v357 = vrot.slane %v352, %v356
      %v359 = vadd.f32 %v320, %v357
      %v360 = vadd.f32 %v321, %v357
      %v361 = vadd.f32 %v322, %v357
      %v362 = vadd.f32 %v323, %v357
      %v363 = vadd.f32 %v324, %v357
      %v364 = vadd.f32 %v325, %v357
      %v365 = vadd.f32 %v326, %v357
      %v366 = vadd.f32 %v327, %v357
      %v367 = vadd.f32 %v328, %v357
      %v368 = vadd.f32 %v329, %v357
      %v369 = vadd.f32 %v330, %v357
      %v370 = vadd.f32 %v331, %v357
      %v371 = vadd.f32 %v332, %v357
      %v372 = vadd.f32 %v333, %v357
      %v373 = vadd.f32 %v334, %v357
      %v374 = vadd.f32 %v335, %v357
      %v375 = vadd.f32 %v336, %v357
      %v376 = vadd.f32 %v337, %v357
      %v377 = vadd.f32 %v338, %v357
      %v378 = vadd.f32 %v339, %v357
      %v379 = vadd.f32 %v340, %v357
      %v380 = vadd.f32 %v341, %v357
      %v381 = vadd.f32 %v342, %v357
      %v382 = vadd.f32 %v343, %v357
      %v383 = vadd.f32 %v344, %v357
      %v384 = vadd.f32 %v345, %v357
      %v385 = vadd.f32 %v346, %v357
      %v386 = vadd.f32 %v347, %v357
      %v387 = vadd.f32 %v348, %v357
      %v388 = vadd.f32 %v349, %v357
      %v389 = vadd.f32 %v350, %v357
      %v390 = vadd.f32 %v351, %v357
      %v391 = vld [vmem:[%s268] sm:$0xff]
      %v392 = vld [vmem:[%s268 + $0x8] sm:$0xff]
      %v393 = vld [vmem:[%s268 + $0x10] sm:$0xff]
      %v394 = vld [vmem:[%s268 + $0x18] sm:$0xff]
      %v395 = vld [vmem:[%s268 + $0x20] sm:$0xff]
      %v396 = vld [vmem:[%s268 + $0x28] sm:$0xff]
      %v397 = vld [vmem:[%s268 + $0x30] sm:$0xff]
      %v398 = vld [vmem:[%s268 + $0x38] sm:$0xff]
      %v399 = vld [vmem:[%s268 + $0x40] sm:$0xff]
      %v400 = vld [vmem:[%s268 + $0x48] sm:$0xff]
      %v401 = vld [vmem:[%s268 + $0x50] sm:$0xff]
      %v402 = vld [vmem:[%s268 + $0x58] sm:$0xff]
      %v403 = vld [vmem:[%s268 + $0x60] sm:$0xff]
      %v404 = vld [vmem:[%s268 + $0x68] sm:$0xff]
      %v405 = vld [vmem:[%s268 + $0x70] sm:$0xff]
      %v406 = vld [vmem:[%s268 + $0x78] sm:$0xff]
      %v407 = vld [vmem:[%s268 + $0x80] sm:$0xff]
      %v408 = vld [vmem:[%s268 + $0x88] sm:$0xff]
      %v409 = vld [vmem:[%s268 + $0x90] sm:$0xff]
      %v410 = vld [vmem:[%s268 + $0x98] sm:$0xff]
      %v411 = vld [vmem:[%s268 + $0xa0] sm:$0xff]
      %v412 = vld [vmem:[%s268 + $0xa8] sm:$0xff]
      %v413 = vld [vmem:[%s268 + $0xb0] sm:$0xff]
      %v414 = vld [vmem:[%s268 + $0xb8] sm:$0xff]
      %v415 = vld [vmem:[%s268 + $0xc0] sm:$0xff]
      %v416 = vld [vmem:[%s268 + $0xc8] sm:$0xff]
      %v417 = vld [vmem:[%s268 + $0xd0] sm:$0xff]
      %v418 = vld [vmem:[%s268 + $0xd8] sm:$0xff]
      %v419 = vld [vmem:[%s268 + $0xe0] sm:$0xff]
      %v420 = vld [vmem:[%s268 + $0xe8] sm:$0xff]
      %v421 = vld [vmem:[%s268 + $0xf0] sm:$0xff]
      %v422 = vld [vmem:[%s268 + $0xf8] sm:$0xff]
      %v423 = vadd.f32 %v359, %v391
      %v424 = vadd.f32 %v360, %v392
      %v425 = vadd.f32 %v361, %v393
      %v426 = vadd.f32 %v362, %v394
      %v427 = vadd.f32 %v363, %v395
      %v428 = vadd.f32 %v364, %v396
      %v429 = vadd.f32 %v365, %v397
      %v430 = vadd.f32 %v366, %v398
      %v431 = vadd.f32 %v367, %v399
      %v432 = vadd.f32 %v368, %v400
      %v433 = vadd.f32 %v369, %v401
      %v434 = vadd.f32 %v370, %v402
      %v435 = vadd.f32 %v371, %v403
      %v436 = vadd.f32 %v372, %v404
      %v437 = vadd.f32 %v373, %v405
      %v438 = vadd.f32 %v374, %v406
      %v439 = vadd.f32 %v375, %v407
      %v440 = vadd.f32 %v376, %v408
      %v441 = vadd.f32 %v377, %v409
      %v442 = vadd.f32 %v378, %v410
      %v443 = vadd.f32 %v379, %v411
      %v444 = vadd.f32 %v380, %v412
      %v445 = vadd.f32 %v381, %v413
      %v446 = vadd.f32 %v382, %v414
      %v447 = vadd.f32 %v383, %v415
      %v448 = vadd.f32 %v384, %v416
      %v449 = vadd.f32 %v385, %v417
      %v450 = vadd.f32 %v386, %v418
      %v451 = vadd.f32 %v387, %v419
      %v452 = vadd.f32 %v388, %v420
      %v453 = vadd.f32 %v389, %v421
      %v454 = vadd.f32 %v390, %v422
      %v455 = vmax.f32 %v423, 0.0
      %v456 = vmax.f32 %v424, 0.0
      %v457 = vmax.f32 %v425, 0.0
      %v458 = vmax.f32 %v426, 0.0
      %v459 = vmax.f32 %v427, 0.0
      %v460 = vmax.f32 %v428, 0.0
      %v461 = vmax.f32 %v429, 0.0
      %v462 = vmax.f32 %v430, 0.0
      %v463 = vmax.f32 %v431, 0.0
      %v464 = vmax.f32 %v432, 0.0
      %v465 = vmax.f32 %v433, 0.0
      %v466 = vmax.f32 %v434, 0.0
      %v467 = vmax.f32 %v435, 0.0
      %v468 = vmax.f32 %v436, 0.0
      %v469 = vmax.f32 %v437, 0.0
      %v470 = vmax.f32 %v438, 0.0
      %v471 = vmax.f32 %v439, 0.0
      %v472 = vmax.f32 %v440, 0.0
      %v473 = vmax.f32 %v441, 0.0
      %v474 = vmax.f32 %v442, 0.0
      %v475 = vmax.f32 %v443, 0.0
      %v476 = vmax.f32 %v444, 0.0
      %v477 = vmax.f32 %v445, 0.0
      %v478 = vmax.f32 %v446, 0.0
      %v479 = vmax.f32 %v447, 0.0
      %v480 = vmax.f32 %v448, 0.0
      %v481 = vmax.f32 %v449, 0.0
      %v482 = vmax.f32 %v450, 0.0
      %v483 = vmax.f32 %v451, 0.0
      %v484 = vmax.f32 %v452, 0.0
      %v485 = vmax.f32 %v453, 0.0
      %v486 = vmax.f32 %v454, 0.0
      %487 = vst [vmem:[%s279] sm:$0xff] %v455
      %488 = vst [vmem:[%s279 + $0x8] sm:$0xff] %v456
      %489 = vst [vmem:[%s279 + $0x10] sm:$0xff] %v457
      %490 = vst [vmem:[%s279 + $0x18] sm:$0xff] %v458
      %491 = vst [vmem:[%s279 + $0x20] sm:$0xff] %v459
      %492 = vst [vmem:[%s279 + $0x28] sm:$0xff] %v460
      %493 = vst [vmem:[%s279 + $0x30] sm:$0xff] %v461
      %494 = vst [vmem:[%s279 + $0x38] sm:$0xff] %v462
      %495 = vst [vmem:[%s279 + $0x40] sm:$0xff] %v463
      %496 = vst [vmem:[%s279 + $0x48] sm:$0xff] %v464
      %497 = vst [vmem:[%s279 + $0x50] sm:$0xff] %v465
      %498 = vst [vmem:[%s279 + $0x58] sm:$0xff] %v466
      %499 = vst [vmem:[%s279 + $0x60] sm:$0xff] %v467
      %500 = vst [vmem:[%s279 + $0x68] sm:$0xff] %v468
      %501 = vst [vmem:[%s279 + $0x70] sm:$0xff] %v469
      %502 = vst [vmem:[%s279 + $0x78] sm:$0xff] %v470
      %503 = vst [vmem:[%s279 + $0x80] sm:$0xff] %v471
      %504 = vst [vmem:[%s279 + $0x88] sm:$0xff] %v472
      %505 = vst [vmem:[%s279 + $0x90] sm:$0xff] %v473
      %506 = vst [vmem:[%s279 + $0x98] sm:$0xff] %v474
      %507 = vst [vmem:[%s279 + $0xa0] sm:$0xff] %v475
      %508 = vst [vmem:[%s279 + $0xa8] sm:$0xff] %v476
      %509 = vst [vmem:[%s279 + $0xb0] sm:$0xff] %v477
      %510 = vst [vmem:[%s279 + $0xb8] sm:$0xff] %v478
      %511 = vst [vmem:[%s279 + $0xc0] sm:$0xff] %v479
      %512 = vst [vmem:[%s279 + $0xc8] sm:$0xff] %v480
      %513 = vst [vmem:[%s279 + $0xd0] sm:$0xff] %v481
      %514 = vst [vmem:[%s279 + $0xd8] sm:$0xff] %v482
      %515 = vst [vmem:[%s279 + $0xe0] sm:$0xff] %v483
      %516 = vst [vmem:[%s279 + $0xe8] sm:$0xff] %v484
      %517 = vst [vmem:[%s279 + $0xf0] sm:$0xff] %v485
      %518 = vst [vmem:[%s279 + $0xf8] sm:$0xff] %v486
      %s519 = smul.u32 16, %s20
      %p520 = scmp.lt.s32.totalorder %s19, 1
      %s521 = scalar_select %p520, %s19, 1
      %p522 = scmp.lt.s32.totalorder %s519, 15
      %s523 = scalar_select %p522, %s519, 15
      %s524 = smul.addr %s523, 2
      %s525 = smul.addr %s521, 32
      %s526 = sadd.s32 %s524, %s525
      %s527 = smul.addr %s526, 8
      %s528 = scalar_lea.vmem %s4, %s527
      // Predicated region
      $region37: #{residual_forward.5} parent=35 // pred_check
        %p529 = pneg %p145
      $region38: #{residual_forward.5} parent=35 // pred_check_branch
        %531 = sbr.rel (%p529) target = $region40
      $region39: #{residual_forward.5} parent=35 // pred_region
        %s532 = smul.u32 16, %s20
      $region40: #{residual_forward.5} parent=35 // pred_fallthru
        _
    $region36: #{residual_forward.5} parent=5 // pred_fallthru
      _
    %p533 = scmp.le.s32.totalorder 2, %s10
    // Predicated region
    $region41: #{residual_forward.5} parent=5 // pred_check
      %p534 = pneg %p533
    $region42: #{residual_forward.5} parent=5 // pred_check_branch
      %536 = sbr.rel (%p534) target = $region44
    $region43: #{residual_forward.5} parent=5 // pred_region
      %s537 = ssub.s32 %s10, 2
      // Predicated region
      $region45: #{residual_forward.5} parent=43 // pred_check
        %p538 = pneg %p151
      $region46: #{residual_forward.5} parent=43 // pred_check_branch
        %540 = sbr.rel (%p538) target = $region48
      $region47: #{residual_forward.5} parent=43 // pred_region
        %s541 = smul.u32 16, %s22
        %p542 = scmp.lt.s32.totalorder %s21, 1
        %s543 = scalar_select %p542, %s21, 1
        %p544 = scmp.lt.s32.totalorder %s541, 15
        %s545 = scalar_select %p544, %s541, 15
        %s546 = smul.addr %s545, 2
        %s547 = smul.addr %s543, 32
        %s548 = sadd.s32 %s546, %s547
        %s549 = smul.addr %s548, 8
        %s550 = scalar_lea.vmem %s4, %s549
      $region48: #{residual_forward.5} parent=43 // pred_fallthru
        _
    $region44: #{residual_forward.5} parent=5 // pred_fallthru
      _
  $region6: #{residual_forward.5} parent=0 // loop_footer
    %s14 = sadd.s32 1, %s10
  $region7: #{residual_forward.5} parent=0 // loop_footer_branch
    %9 = sbr.rel target = $region3
  $region8: #{residual_forward.5} parent=0 // loop_exit
    _

// kernel: residual_forward.4
$region0: #{residual_forward.4}
  #allocation0 [shape = 'u32[]', space=smem, size = 0x4, offset = 0x4, fixed_abs, tag = 'smem constant byte address 0x4 - core index']
  #allocation1 [shape = 'u32[144,128]{1,0:T(1,128)}', space=vmem, size = 0x12000, scoped, tag = 'internal scratch']
  #allocation2 [shape = 'bf16[2,18,24,128]{3,2,1,0:T(8,128)(2,1)}', space=vmem, size = 0x36000, scoped, tag = 'scratch operand']
  #allocation3 [shape = 's32[2]{0}', space=sflag, size = 0x8, scoped, tag = 'scratch operand']
  #allocation4 [shape = 's32[]', space=sflag, size = 0x4, offset = 0, fixed_abs, tag = 'sflag constant byte address 0x0 - dummy sync flag']
  #allocation5 [shape = 's32[]', space=sflag, size = 0x4, offset = 0, fixed_abs, tag = 'sflag constant byte address 0x0 - dummy sync flag']
  %s0 = inlined_call_operand.vmem [shape: bf16[2,16,24,128], index: 0, kind: input, shape index: {}]
  %s1 = inlined_call_operand.vmem [shape: bf16[3,384,128], index: 1, kind: input, shape index: {}]
  %s2 = inlined_call_operand.vmem [shape: f32[1,128], index: 2, kind: input, shape index: {}]
  %s3 = inlined_call_operand.vmem [shape: f32[1,128], index: 3, kind: input, shape index: {}]
  %s4 = inlined_call_operand.vmem [shape: f32[2,16,16,128], index: 4, kind: output, shape index: {0}]
  %s5 = inlined_call_operand.vmem [shape: f32[2,1,1,128], index: 5, kind: output, shape index: {1}]
  %s6 = inlined_call_operand.vmem [shape: f32[2,1,1,128], index: 6, kind: output, shape index: {2}]
  %7 = xla_tuple %s4, %s5, %s6
  %s8 = sld [smem:[#allocation0]]
  $region141: #{residual_forward.4} parent=0
    _
  %s10 = ssub.s32 1, %s8
  %s11 = scalar_select 0, %s10, %s8
  loop: start=0, step=1, limit=4
  $region2: #{residual_forward.4} parent=0 // loop_pre_header
    _
  $region3: #{residual_forward.4} parent=0 // loop_header
    %s13 = sphi 0, %s17
    %p14 = scmp.ge.s32.totalorder %s13, 4
    %s20 = sphi 0, %s32
    %s21 = sphi 0, %s28
    %s22 = sphi 0, %s20
    %s23 = sphi 0, %s21
    %s24 = sphi 0, %s22
    %s25 = sphi 0, %s23
    %s33 = sphi 0, %s33
    %s35 = sphi 0, %s33
    %s36 = sphi 0, %s35
    %s50 = sphi 0, %s36
    %s54 = sphi 0, %s54
    %s56 = sphi 0, %s54
    %s57 = sphi 0, %s56
    %s71 = sphi 0, %s57
    %s75 = sphi 0, %s75
    %s77 = sphi 0, %s75
    %s78 = sphi 0, %s77
    %s92 = sphi 0, %s78
    %s100 = sphi 0, %s102
    %s103 = sphi 0, %s100
    %s104 = sphi 0, %s103
    %s120 = sphi 0, %s104
    %s126 = sphi 0, %s128
    %s129 = sphi 0, %s126
    %s130 = sphi 0, %s129
    %s146 = sphi 0, %s130
    %s152 = sphi 0, %s154
    %s155 = sphi 0, %s152
    %s156 = sphi 0, %s155
    %s172 = sphi 0, %s156
  $region4: #{residual_forward.4} parent=0 // loop_header_branch
    %16 = sbr.rel (%p14) target = $region8
  $region5: #{residual_forward.4} parent=0 // loop_body
    %s18 = ssub.s32 %s13, 1
    %s19 = ssub.s32 %s13, 2
    %s26 = sadd.s32 1, %s21
    %p27 = scmp.ge.s32.totalorder %s26, 1
    %s28 = scalar_select %p27, 0, %s26
    %s29 = sadd.s32 1, %s20
    %s30 = scalar_select %p27, %s29, %s20
    %p31 = scmp.ge.s32.totalorder %s30, 2
    %s32 = scalar_select %p31, 0, %s30
    %s34 = sadd.s32 %s33, 1
    %p37 = scmp.eq.s32.totalorder %s13, 1
    %p38 = scmp.ne.s32.totalorder %s33, %s35
    %p39 = scmp.eq.s32.totalorder %s13, 0
    %p40 = por %p38, %p39
    %p41 = scmp.ne.s32.totalorder %s33, %s35
    %p42 = scmp.eq.s32.totalorder %s18, 1
    %p43 = por %p41, %p42
    %p44 = scmp.ne.s32.totalorder %s35, %s36
    %p45 = scmp.eq.s32.totalorder %s18, 0
    %p46 = por %p44, %p45
    %p47 = scmp.ne.s32.totalorder %s35, %s36
    %p48 = scmp.eq.s32.totalorder %s19, 1
    %p49 = por %p47, %p48
    %p51 = scmp.ne.s32.totalorder %s36, %s50
    %p52 = scmp.eq.s32.totalorder %s19, 0
    %p53 = por %p51, %p52
    %s55 = sadd.s32 %s54, 1
    %p58 = scmp.eq.s32.totalorder %s13, 1
    %p59 = scmp.ne.s32.totalorder %s54, %s56
    %p60 = scmp.eq.s32.totalorder %s13, 0
    %p61 = por %p59, %p60
    %p62 = scmp.ne.s32.totalorder %s54, %s56
    %p63 = scmp.eq.s32.totalorder %s18, 1
    %p64 = por %p62, %p63
    %p65 = scmp.ne.s32.totalorder %s56, %s57
    %p66 = scmp.eq.s32.totalorder %s18, 0
    %p67 = por %p65, %p66
    %p68 = scmp.ne.s32.totalorder %s56, %s57
    %p69 = scmp.eq.s32.totalorder %s19, 1
    %p70 = por %p68, %p69
    %p72 = scmp.ne.s32.totalorder %s57, %s71
    %p73 = scmp.eq.s32.totalorder %s19, 0
    %p74 = por %p72, %p73
    %s76 = sadd.s32 %s75, 1
    %p79 = scmp.eq.s32.totalorder %s13, 1
    %p80 = scmp.ne.s32.totalorder %s75, %s77
    %p81 = scmp.eq.s32.totalorder %s13, 0
    %p82 = por %p80, %p81
    %p83 = scmp.ne.s32.totalorder %s75, %s77
    %p84 = scmp.eq.s32.totalorder %s18, 1
    %p85 = por %p83, %p84
    %p86 = scmp.ne.s32.totalorder %s77, %s78
    %p87 = scmp.eq.s32.totalorder %s18, 0
    %p88 = por %p86, %p87
    %p89 = scmp.ne.s32.totalorder %s77, %s78
    %p90 = scmp.eq.s32.totalorder %s19, 1
    %p91 = por %p89, %p90
    %p93 = scmp.ne.s32.totalorder %s78, %s92
    %p94 = scmp.eq.s32.totalorder %s19, 0
    %p95 = por %p93, %p94
    %s96 = ssub.s32 %s20, %s32
    %s97 = ssub.s32 %s21, %s28
    %s98 = sor.u32 %s96, %s97
    %p99 = scmp.eq.s32.totalorder %s98, 0
    %s101 = sadd.s32 %s100, 1
    %s102 = scalar_select %p99, %s100, %s101
    %p105 = pneg %p99
    %p106 = scmp.eq.s32.totalorder %s13, 1
    %p107 = por %p105, %p106
    %p108 = scmp.ne.s32.totalorder %s100, %s103
    %p109 = scmp.eq.s32.totalorder %s13, 0
    %p110 = por %p108, %p109
    %p111 = scmp.ne.s32.totalorder %s100, %s103
    %p112 = scmp.eq.s32.totalorder %s18, 1
    %p113 = por %p111, %p112
    %p114 = scmp.ne.s32.totalorder %s103, %s104
    %p115 = scmp.eq.s32.totalorder %s18, 0
    %p116 = por %p114, %p115
    %p117 = scmp.ne.s32.totalorder %s103, %s104
    %p118 = scmp.eq.s32.totalorder %s19, 1
    %p119 = por %p117, %p118
    %p121 = scmp.ne.s32.totalorder %s104, %s120
    %p122 = scmp.eq.s32.totalorder %s19, 0
    %p123 = por %p121, %p122
    %s124 = ssub.s32 %s20, %s32
    %p125 = scmp.eq.s32.totalorder %s124, 0
    %s127 = sadd.s32 %s126, 1
    %s128 = scalar_select %p125, %s126, %s127
    %p131 = pneg %p125
    %p132 = scmp.eq.s32.totalorder %s13, 1
    %p133 = por %p131, %p132
    %p134 = scmp.ne.s32.totalorder %s126, %s129
    %p135 = scmp.eq.s32.totalorder %s13, 0
    %p136 = por %p134, %p135
    %p137 = scmp.ne.s32.totalorder %s126, %s129
    %p138 = scmp.eq.s32.totalorder %s18, 1
    %p139 = por %p137, %p138
    %p140 = scmp.ne.s32.totalorder %s129, %s130
    %p141 = scmp.eq.s32.totalorder %s18, 0
    %p142 = por %p140, %p141
    %p143 = scmp.ne.s32.totalorder %s129, %s130
    %p144 = scmp.eq.s32.totalorder %s19, 1
    %p145 = por %p143, %p144
    %p147 = scmp.ne.s32.totalorder %s130, %s146
    %p148 = scmp.eq.s32.totalorder %s19, 0
    %p149 = por %p147, %p148
    %s150 = ssub.s32 %s20, %s32
    %p151 = scmp.eq.s32.totalorder %s150, 0
    %s153 = sadd.s32 %s152, 1
    %s154 = scalar_select %p151, %s152, %s153
    %p157 = pneg %p151
    %p158 = scmp.eq.s32.totalorder %s13, 1
    %p159 = por %p157, %p158
    %p160 = scmp.ne.s32.totalorder %s152, %s155
    %p161 = scmp.eq.s32.totalorder %s13, 0
    %p162 = por %p160, %p161
    %p163 = scmp.ne.s32.totalorder %s152, %s155
    %p164 = scmp.eq.s32.totalorder %s18, 1
    %p165 = por %p163, %p164
    %p166 = scmp.ne.s32.totalorder %s155, %s156
    %p167 = scmp.eq.s32.totalorder %s18, 0
    %p168 = por %p166, %p167
    %p169 = scmp.ne.s32.totalorder %s155, %s156
    %p170 = scmp.eq.s32.totalorder %s19, 1
    %p171 = por %p169, %p170
    %p173 = scmp.ne.s32.totalorder %s156, %s172
    %p174 = scmp.eq.s32.totalorder %s19, 0
    %p175 = por %p173, %p174
    %p176 = scmp.le.s32.totalorder 1, %s13
    %p177 = scmp.lt.s32.totalorder %s13, 3
    %p178 = pnand %p176, %p177
    %p179 = pneg %p178
    // Predicated region
    $region9: #{residual_forward.4} parent=5 // pred_check
      _
    $region10: #{residual_forward.4} parent=5 // pred_check_branch
      %181 = sbr.rel (%p178) target = $region12
    $region11: #{residual_forward.4} parent=5 // pred_region
      %s182 = ssub.s32 %s13, 1
      // Predicated region
      $region13: #{residual_forward.4} parent=11 // pred_check
        %p183 = pneg %p46
      $region14: #{residual_forward.4} parent=11 // pred_check_branch
        %185 = sbr.rel (%p183) target = $region16
      $region15: #{residual_forward.4} parent=11 // pred_region
        _
      $region16: #{residual_forward.4} parent=11 // pred_fallthru
        _
      // Predicated region
      $region17: #{residual_forward.4} parent=11 // pred_check
        %p186 = pneg %p67
      $region18: #{residual_forward.4} parent=11 // pred_check_branch
        %188 = sbr.rel (%p186) target = $region20
      $region19: #{residual_forward.4} parent=11 // pred_region
        _
      $region20: #{residual_forward.4} parent=11 // pred_fallthru
        _
      // Predicated region
      $region21: #{residual_forward.4} parent=11 // pred_check
        %p189 = pneg %p88
      $region22: #{residual_forward.4} parent=11 // pred_check_branch
        %191 = sbr.rel (%p189) target = $region24
      $region23: #{residual_forward.4} parent=11 // pred_region
        _
      $region24: #{residual_forward.4} parent=11 // pred_fallthru
        _
    $region12: #{residual_forward.4} parent=5 // pred_fallthru
      _
    %p192 = scmp.lt.s32.totalorder %s13, 2
    // Predicated region
    $region25: #{residual_forward.4} parent=5 // pred_check
      %p193 = pneg %p192
    $region26: #{residual_forward.4} parent=5 // pred_check_branch
      %195 = sbr.rel (%p193) target = $region28
    $region27: #{residual_forward.4} parent=5 // pred_region
      _
    $region28: #{residual_forward.4} parent=5 // pred_fallthru
      _
    %p196 = scmp.le.s32.totalorder 1, %s13
    %p197 = scmp.lt.s32.totalorder %s13, 3
    %p198 = pnand %p196, %p197
    %p199 = pneg %p198
    // Predicated region
    $region29: #{residual_forward.4} parent=5 // pred_check
      _
    $region30: #{residual_forward.4} parent=5 // pred_check_branch
      %201 = sbr.rel (%p198) target = $region32
    $region31: #{residual_forward.4} parent=5 // pred_region
      %s202 = ssub.s32 %s13, 1
      %p203 = pneg %p46
      %p204 = pneg %p43
      %p205 = pneg %p67
      %p206 = pneg %p64
      %p207 = pneg %p88
      %p208 = pneg %p85
      %p209 = pneg %p116
      %p210 = pneg %p113
      %s211 = smul.u32 16, %s23
      %p212 = scmp.lt.s32.totalorder %s22, 1
      %s213 = scalar_select %p212, %s22, 1
      %p214 = scmp.lt.s32.totalorder %s211, 15
      %s215 = scalar_select %p214, %s211, 15
      %s216 = smul.addr %s215, 2
      %s217 = smul.addr %s213, 32
      %s218 = sadd.s32 %s216, %s217
      %s219 = smul.addr %s218, 8
      %s220 = scalar_lea.vmem %s4, %s219
      %p221 = pneg %p142
      %p222 = pneg %p139
      %p223 = scmp.lt.s32.totalorder %s22, 1
      %s224 = scalar_select %p223, %s22, 1
      %s225 = scalar_lea.vmem %s5, %s224
      %p226 = pneg %p168
      %p227 = pneg %p165
      %p228 = scmp.lt.s32.totalorder %s22, 1
      %s229 = scalar_select %p228, %s22, 1
      %s230 = scalar_lea.vmem %s6, %s229
      %s231 = smul.u32 16, %s23
      %p232 = scmp.lt.s32.totalorder %s22, 1
      %s233 = scalar_select %p232, %s22, 1
      %p234 = scmp.lt.s32.totalorder %s231, 15
      %s235 = scalar_select %p234, %s231, 15
      %s236 = smul.addr %s235, 2
      %s237 = smul.addr %s233, 32
      %s238 = sadd.s32 %s236, %s237
      %s239 = smul.addr %s238, 8
      %s240 = scalar_lea.vmem %s4, %s239
      %s241 = smul.u32 16, %s23
      %p242 = scmp.lt.s32.totalorder %s22, 1
      %s243 = scalar_select %p242, %s22, 1
      %s244 = scalar_lea.vmem %s5, %s243
      %p245 = scmp.lt.s32.totalorder %s22, 1
      %s246 = scalar_select %p245, %s22, 1
      %s247 = scalar_lea.vmem %s6, %s246
      %p249 = scmp.lt.s32.totalorder %s23, 0
      %s250 = ssub.s32 0, %s23
      %s251 = scalar_select %p249, %s250, %s23
      %s252 = sand.u32 %s251, 1
      %s253 = ssub.s32 0, %s252
      %s254 = scalar_select %p249, %s253, %s252
      %p255 = scmp.ne.s32.totalorder %s254, 0
      %p256 = scmp.lt.s32.totalorder %s254, 0
      %p257 = pnand %p256, %p255
      %p258 = pneg %p257
      %s259 = sadd.s32 %s254, 2
      %s260 = scalar_select %p258, %s259, %s254
      %p261 = scmp.eq.s32.totalorder %s23, 0
      // Predicated region
      $region33: #{residual_forward.4} parent=31 // pred_check
        %p262 = pneg %p261
      $region34: #{residual_forward.4} parent=31 // pred_check_branch
        %264 = sbr.rel (%p262) target = $region36
      $region35: #{residual_forward.4} parent=31 // pred_region
        %s265 = smul.u32 %s22, 48
        %s266 = smul.addr %s265, 4
        %s267 = scalar_lea.vmem %s0, %s266
        %s268 = scalar_lea.vmem [#allocation2], 12
        %p270 = scmp.lt.u32.totalorder 192, 8
        %p271 = pneg %p270
        // Predicated region
        $region37: #{residual_forward.4} parent=35 // pred_check
          _
        $region38: #{residual_forward.4} parent=35 // pred_check_branch
          %273 = sbr.rel (%p270) target = $region40
        $region39: #{residual_forward.4} parent=35 // pred_region
          %s289 = sand.u32 192, 7
          %p290 = scmp.eq.s32.totalorder %s289, 0
          // Predicated region
          $region52: #{residual_forward.4} parent=39 // pred_check
            %p291 = pneg %p290
          $region53: #{residual_forward.4} parent=39 // pred_check_branch
            %293 = sbr.rel (%p291) target = $region55
          $region54: #{residual_forward.4} parent=39 // pred_region
            loop: start=0, step=1, limit=1
            $region56: #{residual_forward.4} parent=54 // loop_pre_header
              _
            $region57: #{residual_forward.4} parent=54 // loop_header
              %s295 = sphi 0, %s299
              %p296 = scmp.ge.s32.totalorder %s295, 1
              %s300 = sphi %s267, %s267
              %s301 = sphi %s268, %s268
            $region58: #{residual_forward.4} parent=54 // loop_header_branch
              %298 = sbr.rel (%p296) target = $region62
            $region59: #{residual_forward.4} parent=54 // loop_body
              %v302 = vld [vmem:[%s300] sm:$0xff]
              %303 = vst [vmem:[%s301] sm:$0xff] %v302
              %v304 = vld [vmem:[%s300 + $0x8] sm:$0xff]
              %305 = vst [vmem:[%s301 + $0x8] sm:$0xff] %v304
              %v306 = vld [vmem:[%s300 + $0x10] sm:$0xff]
              %307 = vst [vmem:[%s301 + $0x10] sm:$0xff] %v306
              %v308 = vld [vmem:[%s300 + $0x18] sm:$0xff]
              %309 = vst [vmem:[%s301 + $0x18] sm:$0xff] %v308
              %v310 = vld [vmem:[%s300 + $0x20] sm:$0xff]
              %311 = vst [vmem:[%s301 + $0x20] sm:$0xff] %v310
              %v312 = vld [vmem:[%s300 + $0x28] sm:$0xff]
              %313 = vst [vmem:[%s301 + $0x28] sm:$0xff] %v312
              %v314 = vld [vmem:[%s300 + $0x30] sm:$0xff]
              %315 = vst [vmem:[%s301 + $0x30] sm:$0xff] %v314
              %v316 = vld [vmem:[%s300 + $0x38] sm:$0xff]
              %317 = vst [vmem:[%s301 + $0x38] sm:$0xff] %v316
              %v318 = vld [vmem:[%s300 + $0x40] sm:$0xff]
              %319 = vst [vmem:[%s301 + $0x40] sm:$0xff] %v318
              %v320 = vld [vmem:[%s300 + $0x48] sm:$0xff]
              %321 = vst [vmem:[%s301 + $0x48] sm:$0xff] %v320
              %v322 = vld [vmem:[%s300 + $0x50] sm:$0xff]
              %323 = vst [vmem:[%s301 + $0x50] sm:$0xff] %v322
              %v324 = vld [vmem:[%s300 + $0x58] sm:$0xff]
              %325 = vst [vmem:[%s301 + $0x58] sm:$0xff] %v324
              %v326 = vld [vmem:[%s300 + $0x60] sm:$0xff]
              %327 = vst [vmem:[%s301 + $0x60] sm:$0xff] %v326
              %v328 = vld [vmem:[%s300 + $0x68] sm:$0xff]
              %329 = vst [vmem:[%s301 + $0x68] sm:$0xff] %v328
              %v330 = vld [vmem:[%s300 + $0x70] sm:$0xff]
              %331 = vst [vmem:[%s301 + $0x70] sm:$0xff] %v330
              %v332 = vld [vmem:[%s300 + $0x78] sm:$0xff]
              %333 = vst [vmem:[%s301 + $0x78] sm:$0xff] %v332
              %v334 = vld [vmem:[%s300 + $0x80] sm:$0xff]
              %335 = vst [vmem:[%s301 + $0x80] sm:$0xff] %v334
              %v336 = vld [vmem:[%s300 + $0x88] sm:$0xff]
              %337 = vst [vmem:[%s301 + $0x88] sm:$0xff] %v336
              %v338 = vld [vmem:[%s300 + $0x90] sm:$0xff]
              %339 = vst [vmem:[%s301 + $0x90] sm:$0xff] %v338
              %v340 = vld [vmem:[%s300 + $0x98] sm:$0xff]
              %341 = vst [vmem:[%s301 + $0x98] sm:$0xff] %v340
              %v342 = vld [vmem:[%s300 + $0xa0] sm:$0xff]
              %343 = vst [vmem:[%s301 + $0xa0] sm:$0xff] %v342
              %v344 = vld [vmem:[%s300 + $0xa8] sm:$0xff]
              %345 = vst [vmem:[%s301 + $0xa8] sm:$0xff] %v344
              %v346 = vld [vmem:[%s300 + $0xb0] sm:$0xff]
              %347 = vst [vmem:[%s301 + $0xb0] sm:$0xff] %v346
              %v348 = vld [vmem:[%s300 + $0xb8] sm:$0xff]
              %349 = vst [vmem:[%s301 + $0xb8] sm:$0xff] %v348
            $region60: #{residual_forward.4} parent=54 // loop_footer
              %s299 = sadd.s32 1, %s295
            $region61: #{residual_forward.4} parent=54 // loop_footer_branch
              %294 = sbr.rel target = $region57
            $region62: #{residual_forward.4} parent=54 // loop_exit
              _
          $region55: #{residual_forward.4} parent=39 // pred_fallthru
            _
          %p350 = pneg %p290
          // Predicated region
          $region63: #{residual_forward.4} parent=39 // pred_check
            _
          $region64: #{residual_forward.4} parent=39 // pred_check_branch
            %352 = sbr.rel (%p290) target = $region66
          $region65: #{residual_forward.4} parent=39 // pred_region
            %s353 = sand.u32 192, 7
          $region66: #{residual_forward.4} parent=39 // pred_fallthru
            _
        $region40: #{residual_forward.4} parent=35 // pred_fallthru
          _
        // Predicated region
        $region41: #{residual_forward.4} parent=35 // pred_check
          %p274 = pneg %p270
        $region42: #{residual_forward.4} parent=35 // pred_check_branch
          %276 = sbr.rel (%p274) target = $region44
        $region43: #{residual_forward.4} parent=35 // pred_region
          %s277 = sshll.u32 1, 192
          %s278 = ssub.s32 %s277, 1
          loop: start=0, step=1, limit=1
          $region45: #{residual_forward.4} parent=43 // loop_pre_header
            _
          $region46: #{residual_forward.4} parent=43 // loop_header
            %s280 = sphi 0, %s284
            %p281 = scmp.ge.s32.totalorder %s280, 1
            %s285 = sphi %s267, %s267
            %s286 = sphi %s268, %s268
          $region47: #{residual_forward.4} parent=43 // loop_header_branch
            %283 = sbr.rel (%p281) target = $region51
          $region48: #{residual_forward.4} parent=43 // loop_body
            %v287 = vld [vmem:[%s285] sm:%s278]
            %288 = vst [vmem:[%s286] sm:%s278] %v287
          $region49: #{residual_forward.4} parent=43 // loop_footer
            %s284 = sadd.s32 1, %s280
          $region50: #{residual_forward.4} parent=43 // loop_footer_branch
            %279 = sbr.rel target = $region46
          $region51: #{residual_forward.4} parent=43 // loop_exit
            _
        $region44: #{residual_forward.4} parent=35 // pred_fallthru
          _
        // Predicated region
        $region67: #{residual_forward.4} parent=35 // pred_check
          _
        $region68: #{residual_forward.4} parent=35 // pred_check_branch
          %356 = sbr.rel (0) target = $region70
        $region69: #{residual_forward.4} parent=35 // pred_region
          %357 = vsyncadd [#allocation3], 3072
        $region70: #{residual_forward.4} parent=35 // pred_fallthru
          _
      $region36: #{residual_forward.4} parent=31 // pred_fallthru
        _
      %s358 = sadd.s32 %s23, 1
      %p359 = scmp.lt.s32.totalorder %s358, 1
      // Predicated region
      $region71: #{residual_forward.4} parent=31 // pred_check
        %p360 = pneg %p359
      $region72: #{residual_forward.4} parent=31 // pred_check_branch
        %362 = sbr.rel (%p360) target = $region74
      $region73: #{residual_forward.4} parent=31 // pred_region
        %s363 = ssub.s32 1, %s260
        %s364 = smul.u32 %s22, 48
        %s365 = smul.addr %s364, 4
        %s366 = scalar_lea.vmem %s0, %s365
        %s367 = smul.u32 %s363, 54
        %s368 = sadd.s32 3, %s367
        %s369 = smul.addr %s368, 4
        %s370 = scalar_lea.vmem [#allocation2], %s369
        %s371 = scalar_lea.sflag [#allocation3], %s363
        %p373 = scmp.lt.u32.totalorder 192, 8
        %p374 = pneg %p373
        // Predicated region
        $region75: #{residual_forward.4} parent=73 // pred_check
          _
        $region76: #{residual_forward.4} parent=73 // pred_check_branch
          %376 = sbr.rel (%p373) target = $region78
        $region77: #{residual_forward.4} parent=73 // pred_region
          %s392 = sand.u32 192, 7
          %p393 = scmp.eq.s32.totalorder %s392, 0
          // Predicated region
          $region90: #{residual_forward.4} parent=77 // pred_check
            %p394 = pneg %p393
          $region91: #{residual_forward.4} parent=77 // pred_check_branch
            %396 = sbr.rel (%p394) target = $region93
          $region92: #{residual_forward.4} parent=77 // pred_region
            loop: start=0, step=1, limit=1
            $region94: #{residual_forward.4} parent=92 // loop_pre_header
              _
            $region95: #{residual_forward.4} parent=92 // loop_header
              %s398 = sphi 0, %s402
              %p399 = scmp.ge.s32.totalorder %s398, 1
              %s403 = sphi %s366, %s366
              %s404 = sphi %s370, %s370
            $region96: #{residual_forward.4} parent=92 // loop_header_branch
              %401 = sbr.rel (%p399) target = $region100
            $region97: #{residual_forward.4} parent=92 // loop_body
              %v405 = vld [vmem:[%s403] sm:$0xff]
              %406 = vst [vmem:[%s404] sm:$0xff] %v405
              %v407 = vld [vmem:[%s403 + $0x8] sm:$0xff]
              %408 = vst [vmem:[%s404 + $0x8] sm:$0xff] %v407
              %v409 = vld [vmem:[%s403 + $0x10] sm:$0xff]
              %410 = vst [vmem:[%s404 + $0x10] sm:$0xff] %v409
              %v411 = vld [vmem:[%s403 + $0x18] sm:$0xff]
              %412 = vst [vmem:[%s404 + $0x18] sm:$0xff] %v411
              %v413 = vld [vmem:[%s403 + $0x20] sm:$0xff]
              %414 = vst [vmem:[%s404 + $0x20] sm:$0xff] %v413
              %v415 = vld [vmem:[%s403 + $0x28] sm:$0xff]
              %416 = vst [vmem:[%s404 + $0x28] sm:$0xff] %v415
              %v417 = vld [vmem:[%s403 + $0x30] sm:$0xff]
              %418 = vst [vmem:[%s404 + $0x30] sm:$0xff] %v417
              %v419 = vld [vmem:[%s403 + $0x38] sm:$0xff]
              %420 = vst [vmem:[%s404 + $0x38] sm:$0xff] %v419
              %v421 = vld [vmem:[%s403 + $0x40] sm:$0xff]
              %422 = vst [vmem:[%s404 + $0x40] sm:$0xff] %v421
              %v423 = vld [vmem:[%s403 + $0x48] sm:$0xff]
              %424 = vst [vmem:[%s404 + $0x48] sm:$0xff] %v423
              %v425 = vld [vmem:[%s403 + $0x50] sm:$0xff]
              %426 = vst [vmem:[%s404 + $0x50] sm:$0xff] %v425
              %v427 = vld [vmem:[%s403 + $0x58] sm:$0xff]
              %428 = vst [vmem:[%s404 + $0x58] sm:$0xff] %v427
              %v429 = vld [vmem:[%s403 + $0x60] sm:$0xff]
              %430 = vst [vmem:[%s404 + $0x60] sm:$0xff] %v429
              %v431 = vld [vmem:[%s403 + $0x68] sm:$0xff]
              %432 = vst [vmem:[%s404 + $0x68] sm:$0xff] %v431
              %v433 = vld [vmem:[%s403 + $0x70] sm:$0xff]
              %434 = vst [vmem:[%s404 + $0x70] sm:$0xff] %v433
              %v435 = vld [vmem:[%s403 + $0x78] sm:$0xff]
              %436 = vst [vmem:[%s404 + $0x78] sm:$0xff] %v435
              %v437 = vld [vmem:[%s403 + $0x80] sm:$0xff]
              %438 = vst [vmem:[%s404 + $0x80] sm:$0xff] %v437
              %v439 = vld [vmem:[%s403 + $0x88] sm:$0xff]
              %440 = vst [vmem:[%s404 + $0x88] sm:$0xff] %v439
              %v441 = vld [vmem:[%s403 + $0x90] sm:$0xff]
              %442 = vst [vmem:[%s404 + $0x90] sm:$0xff] %v441
              %v443 = vld [vmem:[%s403 + $0x98] sm:$0xff]
              %444 = vst [vmem:[%s404 + $0x98] sm:$0xff] %v443
              %v445 = vld [vmem:[%s403 + $0xa0] sm:$0xff]
              %446 = vst [vmem:[%s404 + $0xa0] sm:$0xff] %v445
              %v447 = vld [vmem:[%s403 + $0xa8] sm:$0xff]
              %448 = vst [vmem:[%s404 + $0xa8] sm:$0xff] %v447
              %v449 = vld [vmem:[%s403 + $0xb0] sm:$0xff]
              %450 = vst [vmem:[%s404 + $0xb0] sm:$0xff] %v449
              %v451 = vld [vmem:[%s403 + $0xb8] sm:$0xff]
              %452 = vst [vmem:[%s404 + $0xb8] sm:$0xff] %v451
            $region98: #{residual_forward.4} parent=92 // loop_footer
              %s402 = sadd.s32 1, %s398
            $region99: #{residual_forward.4} parent=92 // loop_footer_branch
              %397 = sbr.rel target = $region95
            $region100: #{residual_forward.4} parent=92 // loop_exit
              _
          $region93: #{residual_forward.4} parent=77 // pred_fallthru
            _
          %p453 = pneg %p393
          // Predicated region
          $region101: #{residual_forward.4} parent=77 // pred_check
            _
          $region102: #{residual_forward.4} parent=77 // pred_check_branch
            %455 = sbr.rel (%p393) target = $region104
          $region103: #{residual_forward.4} parent=77 // pred_region
            %s456 = sand.u32 192, 7
          $region104: #{residual_forward.4} parent=77 // pred_fallthru
            _
        $region78: #{residual_forward.4} parent=73 // pred_fallthru
          _
        // Predicated region
        $region79: #{residual_forward.4} parent=73 // pred_check
          %p377 = pneg %p373
        $region80: #{residual_forward.4} parent=73 // pred_check_branch
          %379 = sbr.rel (%p377) target = $region82
        $region81: #{residual_forward.4} parent=73 // pred_region
          %s380 = sshll.u32 1, 192
          %s381 = ssub.s32 %s380, 1
          loop: start=0, step=1, limit=1
          $region83: #{residual_forward.4} parent=81 // loop_pre_header
            _
          $region84: #{residual_forward.4} parent=81 // loop_header
            %s383 = sphi 0, %s387
            %p384 = scmp.ge.s32.totalorder %s383, 1
            %s388 = sphi %s366, %s366
            %s389 = sphi %s370, %s370
          $region85: #{residual_forward.4} parent=81 // loop_header_branch
            %386 = sbr.rel (%p384) target = $region89
          $region86: #{residual_forward.4} parent=81 // loop_body
            %v390 = vld [vmem:[%s388] sm:%s381]
            %391 = vst [vmem:[%s389] sm:%s381] %v390
          $region87: #{residual_forward.4} parent=81 // loop_footer
            %s387 = sadd.s32 1, %s383
          $region88: #{residual_forward.4} parent=81 // loop_footer_branch
            %382 = sbr.rel target = $region84
          $region89: #{residual_forward.4} parent=81 // loop_exit
            _
        $region82: #{residual_forward.4} parent=73 // pred_fallthru
          _
        // Predicated region
        $region105: #{residual_forward.4} parent=73 // pred_check
          _
        $region106: #{residual_forward.4} parent=73 // pred_check_branch
          %459 = sbr.rel (0) target = $region108
        $region107: #{residual_forward.4} parent=73 // pred_region
          %460 = vsyncadd %s371, 3072
        $region108: #{residual_forward.4} parent=73 // pred_fallthru
          _
      $region74: #{residual_forward.4} parent=31 // pred_fallthru
        _
      %s461 = scalar_lea.sflag [#allocation3], %s260
      %s462 = smul.u32 4, 16
      %s463 = smul.u32 %s462, 3
      %s464 = smul.u32 %s463, 1
      %s465 = sshll.u32 %s464, 4
      %466 = dma.done %s461, %s465
      %s467 = smul.u32 %s260, 54
      %s468 = smul.addr %s467, 4
      %s469 = scalar_lea.vmem [#allocation2], %s468
      %v470 = vld [vmem:[%s469] sm:$0xf]
      %v471 = vld [vmem:[%s469 + $0x4] sm:$0xf]
      %v472 = vld [vmem:[%s469 + $0x8] sm:$0xf]
      %v473 = vld [vmem:[%s469 + $0xc] sm:$0xf]
      %v474 = vld [vmem:[%s469 + $0x10] sm:$0xf]
      %v475 = vld [vmem:[%s469 + $0x14] sm:$0xf]
      %v476 = vld [vmem:[%s469 + $0x18] sm:$0xf]
      %v477 = vld [vmem:[%s469 + $0x1c] sm:$0xf]
      %v478 = vld [vmem:[%s469 + $0x20] sm:$0xf]
      %v479 = vld [vmem:[%s469 + $0x24] sm:$0xf]
      %v480 = vld [vmem:[%s469 + $0x28] sm:$0xf]
      %v481 = vld [vmem:[%s469 + $0x2c] sm:$0xf]
      %v482 = vld [vmem:[%s469 + $0x30] sm:$0xf]
      %v483 = vld [vmem:[%s469 + $0x34] sm:$0xf]
      %v484 = vld [vmem:[%s469 + $0x38] sm:$0xf]
      %v485 = vld [vmem:[%s469 + $0x3c] sm:$0xf]
      %v486 = vld [vmem:[%s469 + $0x40] sm:$0xf]
      %v487 = vld [vmem:[%s469 + $0x44] sm:$0xf]
      %v488 = vld [vmem:[%s469 + $0x48] sm:$0xf]
      %v489 = vld [vmem:[%s469 + $0x4c] sm:$0xf]
      %v490 = vld [vmem:[%s469 + $0x50] sm:$0xf]
      %v491 = vld [vmem:[%s469 + $0x54] sm:$0xf]
      %v492 = vld [vmem:[%s469 + $0x58] sm:$0xf]
      %v493 = vld [vmem:[%s469 + $0x5c] sm:$0xf]
      %v494 = vld [vmem:[%s469 + $0x60] sm:$0xf]
      %v495 = vld [vmem:[%s469 + $0x64] sm:$0xf]
      %v496 = vld [vmem:[%s469 + $0x68] sm:$0xf]
      %v497 = vld [vmem:[%s469 + $0x6c] sm:$0xf]
      %v498 = vld [vmem:[%s469 + $0x70] sm:$0xf]
      %v499 = vld [vmem:[%s469 + $0x74] sm:$0xf]
      %v500 = vld [vmem:[%s469 + $0x78] sm:$0xf]
      %v501 = vld [vmem:[%s469 + $0x7c] sm:$0xf]
      %v502 = vld [vmem:[%s469 + $0x80] sm:$0xf]
      %v503 = vld [vmem:[%s469 + $0x84] sm:$0xf]
      %v504 = vld [vmem:[%s469 + $0x88] sm:$0xf]
      %v505 = vld [vmem:[%s469 + $0x8c] sm:$0xf]
      %v506 = vld [vmem:[%s469 + $0x90] sm:$0xf]
      %v507 = vld [vmem:[%s469 + $0x94] sm:$0xf]
      %v508 = vld [vmem:[%s469 + $0x98] sm:$0xf]
      %v509 = vld [vmem:[%s469 + $0x9c] sm:$0xf]
      %v510 = vld [vmem:[%s469 + $0xa0] sm:$0xf]
      %v511 = vld [vmem:[%s469 + $0xa4] sm:$0xf]
      %v512 = vld [vmem:[%s469 + $0xa8] sm:$0xf]
      %v513 = vld [vmem:[%s469 + $0xac] sm:$0xf]
      %v514 = vld [vmem:[%s469 + $0xb0] sm:$0xf]
      %v515 = vld [vmem:[%s469 + $0xb4] sm:$0xf]
      %v516 = vld [vmem:[%s469 + $0xb8] sm:$0xf]
      %v517 = vld [vmem:[%s469 + $0xbc] sm:$0xf]
      %v518 = vld [vmem:[%s469 + $0xc0] sm:$0xf]
      %v519 = vld [vmem:[%s469 + $0xc4] sm:$0xf]
      %v520 = vld [vmem:[%s469 + $0xc8] sm:$0xf]
      %v521 = vld [vmem:[%s469 + $0xcc] sm:$0xf]
      %v522 = vld [vmem:[%s469 + $0xd0] sm:$0xf]
      %v523 = vld [vmem:[%s469 + $0xd4] sm:$0xf]
      %v524 = vunpack.c.l.bf16 %v470
      %v525 = vunpack.c.l.bf16 %v471
      %v526 = vunpack.c.l.bf16 %v472
      %v527 = vunpack.c.l.bf16 %v473
      %v528 = vunpack.c.l.bf16 %v474
      %v529 = vunpack.c.l.bf16 %v475
      %v530 = vunpack.c.l.bf16 %v476
      %v531 = vunpack.c.l.bf16 %v477
      %v532 = vunpack.c.l.bf16 %v478
      %v533 = vunpack.c.l.bf16 %v479
      %v534 = vunpack.c.l.bf16 %v480
      %v535 = vunpack.c.l.bf16 %v481
      %v536 = vunpack.c.l.bf16 %v482
      %v537 = vunpack.c.l.bf16 %v483
      %v538 = vunpack.c.l.bf16 %v484
      %v539 = vunpack.c.l.bf16 %v485
      %v540 = vunpack.c.l.bf16 %v486
      %v541 = vunpack.c.l.bf16 %v487
      %v542 = vunpack.c.l.bf16 %v488
      %v543 = vunpack.c.l.bf16 %v489
      %v544 = vunpack.c.l.bf16 %v490
      %v545 = vunpack.c.l.bf16 %v491
      %v546 = vunpack.c.l.bf16 %v492
      %v547 = vunpack.c.l.bf16 %v493
      %v548 = vunpack.c.l.bf16 %v494
      %v549 = vunpack.c.l.bf16 %v495
      %v550 = vunpack.c.l.bf16 %v496
      %v551 = vunpack.c.l.bf16 %v497
      %v552 = vunpack.c.l.bf16 %v498
      %v553 = vunpack.c.l.bf16 %v499
      %v554 = vunpack.c.l.bf16 %v500
      %v555 = vunpack.c.l.bf16 %v501
      %v556 = vunpack.c.l.bf16 %v502
      %v557 = vunpack.c.l.bf16 %v503
      %v558 = vunpack.c.l.bf16 %v504
      %v559 = vunpack.c.l.bf16 %v505
      %v560 = vunpack.c.l.bf16 %v506
      %v561 = vunpack.c.l.bf16 %v507
      %v562 = vunpack.c.l.bf16 %v508
      %v563 = vunpack.c.l.bf16 %v509
      %v564 = vunpack.c.l.bf16 %v510
      %v565 = vunpack.c.l.bf16 %v511
      %v566 = vunpack.c.l.bf16 %v512
      %v567 = vunpack.c.l.bf16 %v513
      %v568 = vunpack.c.l.bf16 %v514
      %v569 = vunpack.c.l.bf16 %v515
      %v570 = vunpack.c.l.bf16 %v516
      %v571 = vunpack.c.l.bf16 %v517
      %v572 = vunpack.c.l.bf16 %v518
      %v573 = vunpack.c.l.bf16 %v519
      %v574 = vunpack.c.l.bf16 %v520
      %v575 = vunpack.c.l.bf16 %v521
      %v576 = vunpack.c.l.bf16 %v522
      %v577 = vunpack.c.l.bf16 %v523
      %v578 = vld [vmem:[%s2] sm:$0x1]
      %v579 = vld [vmem:[%s3] sm:$0x1]
      %v581 = vlaneseq
      %v582 = vshrl.u32 %v581, 7
      %v583 = vsub.s32 0, %v582
      %v584 = vrot.slane %v578, %v583
      %v586 = vmul.f32 %v524, %v584
      %v587 = vmul.f32 %v525, %v584
      %v588 = vmul.f32 %v526, %v584
      %v589 = vmul.f32 %v527, %v584
      %v590 = vmul.f32 %v528, %v584
      %v591 = vmul.f32 %v529, %v584
      %v592 = vmul.f32 %v530, %v584
      %v593 = vmul.f32 %v531, %v584
      %v594 = vmul.f32 %v532, %v584
      %v595 = vmul.f32 %v533, %v584
      %v596 = vmul.f32 %v534, %v584
      %v597 = vmul.f32 %v535, %v584
      %v598 = vmul.f32 %v536, %v584
      %v599 = vmul.f32 %v537, %v584
      %v600 = vmul.f32 %v538, %v584
      %v601 = vmul.f32 %v539, %v584
      %v602 = vmul.f32 %v540, %v584
      %v603 = vmul.f32 %v541, %v584
      %v604 = vmul.f32 %v542, %v584
      %v605 = vmul.f32 %v543, %v584
      %v606 = vmul.f32 %v544, %v584
      %v607 = vmul.f32 %v545, %v584
      %v608 = vmul.f32 %v546, %v584
      %v609 = vmul.f32 %v547, %v584
      %v610 = vmul.f32 %v548, %v584
      %v611 = vmul.f32 %v549, %v584
      %v612 = vmul.f32 %v550, %v584
      %v613 = vmul.f32 %v551, %v584
      %v614 = vmul.f32 %v552, %v584
      %v615 = vmul.f32 %v553, %v584
      %v616 = vmul.f32 %v554, %v584
      %v617 = vmul.f32 %v555, %v584
      %v618 = vmul.f32 %v556, %v584
      %v619 = vmul.f32 %v557, %v584
      %v620 = vmul.f32 %v558, %v584
      %v621 = vmul.f32 %v559, %v584
      %v622 = vmul.f32 %v560, %v584
      %v623 = vmul.f32 %v561, %v584
      %v624 = vmul.f32 %v562, %v584
      %v625 = vmul.f32 %v563, %v584
      %v626 = vmul.f32 %v564, %v584
      %v627 = vmul.f32 %v565, %v584
      %v628 = vmul.f32 %v566, %v584
      %v629 = vmul.f32 %v567, %v584
      %v630 = vmul.f32 %v568, %v584
      %v631 = vmul.f32 %v569, %v584
      %v632 = vmul.f32 %v570, %v584
      %v633 = vmul.f32 %v571, %v584
      %v634 = vmul.f32 %v572, %v584
      %v635 = vmul.f32 %v573, %v584
      %v636 = vmul.f32 %v574, %v584
      %v637 = vmul.f32 %v575, %v584
      %v638 = vmul.f32 %v576, %v584
      %v639 = vmul.f32 %v577, %v584
      %v641 = vlaneseq
      %v642 = vshrl.u32 %v641, 7
      %v643 = vsub.s32 0, %v642
      %v644 = vrot.slane %v579, %v643
      %v646 = vadd.f32 %v586, %v644
      %v647 = vadd.f32 %v587, %v644
      %v648 = vadd.f32 %v588, %v644
      %v649 = vadd.f32 %v589, %v644
      %v650 = vadd.f32 %v590, %v644
      %v651 = vadd.f32 %v591, %v644
      %v652 = vadd.f32 %v592, %v644
      %v653 = vadd.f32 %v593, %v644
      %v654 = vadd.f32 %v594, %v644
      %v655 = vadd.f32 %v595, %v644
      %v656 = vadd.f32 %v596, %v644
      %v657 = vadd.f32 %v597, %v644
      %v658 = vadd.f32 %v598, %v644
      %v659 = vadd.f32 %v599, %v644
      %v660 = vadd.f32 %v600, %v644
      %v661 = vadd.f32 %v601, %v644
      %v662 = vadd.f32 %v602, %v644
      %v663 = vadd.f32 %v603, %v644
      %v664 = vadd.f32 %v604, %v644
      %v665 = vadd.f32 %v605, %v644
      %v666 = vadd.f32 %v606, %v644
      %v667 = vadd.f32 %v607, %v644
      %v668 = vadd.f32 %v608, %v644
      %v669 = vadd.f32 %v609, %v644
      %v670 = vadd.f32 %v610, %v644
      %v671 = vadd.f32 %v611, %v644
      %v672 = vadd.f32 %v612, %v644
      %v673 = vadd.f32 %v613, %v644
      %v674 = vadd.f32 %v614, %v644
      %v675 = vadd.f32 %v615, %v644
      %v676 = vadd.f32 %v616, %v644
      %v677 = vadd.f32 %v617, %v644
      %v678 = vadd.f32 %v618, %v644
      %v679 = vadd.f32 %v619, %v644
      %v680 = vadd.f32 %v620, %v644
      %v681 = vadd.f32 %v621, %v644
      %v682 = vadd.f32 %v622, %v644
      %v683 = vadd.f32 %v623, %v644
      %v684 = vadd.f32 %v624, %v644
      %v685 = vadd.f32 %v625, %v644
      %v686 = vadd.f32 %v626, %v644
      %v687 = vadd.f32 %v627, %v644
      %v688 = vadd.f32 %v628, %v644
      %v689 = vadd.f32 %v629, %v644
      %v690 = vadd.f32 %v630, %v644
      %v691 = vadd.f32 %v631, %v644
      %v692 = vadd.f32 %v632, %v644
      %v693 = vadd.f32 %v633, %v644
      %v694 = vadd.f32 %v634, %v644
      %v695 = vadd.f32 %v635, %v644
      %v696 = vadd.f32 %v636, %v644
      %v697 = vadd.f32 %v637, %v644
      %v698 = vadd.f32 %v638, %v644
      %v699 = vadd.f32 %v639, %v644
      %v700 = vmax.f32 %v646, 0.0
      %v701 = vmax.f32 %v647, 0.0
      %v702 = vmax.f32 %v648, 0.0
      %v703 = vmax.f32 %v649, 0.0
      %v704 = vmax.f32 %v650, 0.0
      %v705 = vmax.f32 %v651, 0.0
      %v706 = vmax.f32 %v652, 0.0
      %v707 = vmax.f32 %v653, 0.0
      %v708 = vmax.f32 %v654, 0.0
      %v709 = vmax.f32 %v655, 0.0
      %v710 = vmax.f32 %v656, 0.0
      %v711 = vmax.f32 %v657, 0.0
      %v712 = vmax.f32 %v658, 0.0
      %v713 = vmax.f32 %v659, 0.0
      %v714 = vmax.f32 %v660, 0.0
      %v715 = vmax.f32 %v661, 0.0
      %v716 = vmax.f32 %v662, 0.0
      %v717 = vmax.f32 %v663, 0.0
      %v718 = vmax.f32 %v664, 0.0
      %v719 = vmax.f32 %v665, 0.0
      %v720 = vmax.f32 %v666, 0.0
      %v721 = vmax.f32 %v667, 0.0
      %v722 = vmax.f32 %v668, 0.0
      %v723 = vmax.f32 %v669, 0.0
      %v724 = vmax.f32 %v670, 0.0
      %v725 = vmax.f32 %v671, 0.0
      %v726 = vmax.f32 %v672, 0.0
      %v727 = vmax.f32 %v673, 0.0
      %v728 = vmax.f32 %v674, 0.0
      %v729 = vmax.f32 %v675, 0.0
      %v730 = vmax.f32 %v676, 0.0
      %v731 = vmax.f32 %v677, 0.0
      %v732 = vmax.f32 %v678, 0.0
      %v733 = vmax.f32 %v679, 0.0
      %v734 = vmax.f32 %v680, 0.0
      %v735 = vmax.f32 %v681, 0.0
      %v736 = vmax.f32 %v682, 0.0
      %v737 = vmax.f32 %v683, 0.0
      %v738 = vmax.f32 %v684, 0.0
      %v739 = vmax.f32 %v685, 0.0
      %v740 = vmax.f32 %v686, 0.0
      %v741 = vmax.f32 %v687, 0.0
      %v742 = vmax.f32 %v688, 0.0
      %v743 = vmax.f32 %v689, 0.0
      %v744 = vmax.f32 %v690, 0.0
      %v745 = vmax.f32 %v691, 0.0
      %v746 = vmax.f32 %v692, 0.0
      %v747 = vmax.f32 %v693, 0.0
      %v748 = vmax.f32 %v694, 0.0
      %v749 = vmax.f32 %v695, 0.0
      %v750 = vmax.f32 %v696, 0.0
      %v751 = vmax.f32 %v697, 0.0
      %v752 = vmax.f32 %v698, 0.0
      %v753 = vmax.f32 %v699, 0.0
      %s754 = smul.u32 %s23, 16
      %v755 = vstv %s754
      %v756 = vadd.s32 %v755, 1
      %v757 = vadd.s32 %v755, 2
      %v758 = vadd.s32 %v755, 3
      %v759 = vadd.s32 %v755, 4
      %v760 = vadd.s32 %v755, 5
      %v761 = vadd.s32 %v755, 6
      %v762 = vadd.s32 %v755, 7
      %v763 = vadd.s32 %v755, 8
      %v764 = vadd.s32 %v755, 9
      %v765 = vadd.s32 %v755, 10
      %v766 = vadd.s32 %v755, 11
      %v767 = vadd.s32 %v755, 12
      %v768 = vadd.s32 %v755, 13
      %v769 = vadd.s32 %v755, 14
      %v770 = vadd.s32 %v755, 15
      %v771 = vadd.s32 %v755, 16
      %v772 = vadd.s32 %v755, 17
      %v773 = vlaneseq
      %v774 = vshrl.u32 %v773, 7
      %v775 = vadd.s32 %v774, 8
      %v776 = vadd.s32 %v774, 16
      %vm777 = vcmp.ge.s32.totalorder %v755, 1
      %vm778 = vcmp.ge.s32.totalorder %v756, 1
      %vm779 = vcmp.ge.s32.totalorder %v757, 1
      %vm780 = vcmp.ge.s32.totalorder %v758, 1
      %vm781 = vcmp.ge.s32.totalorder %v759, 1
      %vm782 = vcmp.ge.s32.totalorder %v760, 1
      %vm783 = vcmp.ge.s32.totalorder %v761, 1
      %vm784 = vcmp.ge.s32.totalorder %v762, 1
      %vm785 = vcmp.ge.s32.totalorder %v763, 1
      %vm786 = vcmp.ge.s32.totalorder %v764, 1
      %vm787 = vcmp.ge.s32.totalorder %v765, 1
      %vm788 = vcmp.ge.s32.totalorder %v766, 1
      %vm789 = vcmp.ge.s32.totalorder %v767, 1
      %vm790 = vcmp.ge.s32.totalorder %v768, 1
      %vm791 = vcmp.ge.s32.totalorder %v769, 1
      %vm792 = vcmp.ge.s32.totalorder %v770, 1
      %vm793 = vcmp.ge.s32.totalorder %v771, 1
      %vm794 = vcmp.ge.s32.totalorder %v772, 1
      %vm795 = vcmp.lt.s32.totalorder %v755, 17
      %vm796 = vcmp.lt.s32.totalorder %v756, 17
      %vm797 = vcmp.lt.s32.totalorder %v757, 17
      %vm798 = vcmp.lt.s32.totalorder %v758, 17
      %vm799 = vcmp.lt.s32.totalorder %v759, 17
      %vm800 = vcmp.lt.s32.totalorder %v760, 17
      %vm801 = vcmp.lt.s32.totalorder %v761, 17
      %vm802 = vcmp.lt.s32.totalorder %v762, 17
      %vm803 = vcmp.lt.s32.totalorder %v763, 17
      %vm804 = vcmp.lt.s32.totalorder %v764, 17
      %vm805 = vcmp.lt.s32.totalorder %v765, 17
      %vm806 = vcmp.lt.s32.totalorder %v766, 17
      %vm807 = vcmp.lt.s32.totalorder %v767, 17
      %vm808 = vcmp.lt.s32.totalorder %v768, 17
      %vm809 = vcmp.lt.s32.totalorder %v769, 17
      %vm810 = vcmp.lt.s32.totalorder %v770, 17
      %vm811 = vcmp.lt.s32.totalorder %v771, 17
      %vm812 = vcmp.lt.s32.totalorder %v772, 17
      %vm813 = vmand %vm777, %vm795
      %vm814 = vmand %vm778, %vm796
      %vm815 = vmand %vm779, %vm797
      %vm816 = vmand %vm780, %vm798
      %vm817 = vmand %vm781, %vm799
      %vm818 = vmand %vm782, %vm800
      %vm819 = vmand %vm783, %vm801
      %vm820 = vmand %vm784, %vm802
      %vm821 = vmand %vm785, %vm803
      %vm822 = vmand %vm786, %vm804
      %vm823 = vmand %vm787, %vm805
      %vm824 = vmand %vm788, %vm806
      %vm825 = vmand %vm789, %vm807
      %vm826 = vmand %vm790, %vm808
      %vm827 = vmand %vm791, %vm809
      %vm828 = vmand %vm792, %vm810
      %vm829 = vmand %vm793, %vm811
      %vm830 = vmand %vm794, %vm812
      %vm831 = vcmp.ge.s32.totalorder %v774, 1
      %vm832 = vcmp.ge.s32.totalorder %v775, 1
      %vm833 = vcmp.ge.s32.totalorder %v776, 1
      %vm834 = vmand %vm813, %vm831
      %vm835 = vmand %vm813, %vm832
      %vm836 = vmand %vm813, %vm833
      %vm837 = vmand %vm814, %vm831
      %vm838 = vmand %vm814, %vm832
      %vm839 = vmand %vm814, %vm833
      %vm840 = vmand %vm815, %vm831
      %vm841 = vmand %vm815, %vm832
      %vm842 = vmand %vm815, %vm833
      %vm843 = vmand %vm816, %vm831
      %vm844 = vmand %vm816, %vm832
      %vm845 = vmand %vm816, %vm833
      %vm846 = vmand %vm817, %vm831
      %vm847 = vmand %vm817, %vm832
      %vm848 = vmand %vm817, %vm833
      %vm849 = vmand %vm818, %vm831
      %vm850 = vmand %vm818, %vm832
      %vm851 = vmand %vm818, %vm833
      %vm852 = vmand %vm819, %vm831
      %vm853 = vmand %vm819, %vm832
      %vm854 = vmand %vm819, %vm833
      %vm855 = vmand %vm820, %vm831
      %vm856 = vmand %vm820, %vm832
      %vm857 = vmand %vm820, %vm833
      %vm858 = vmand %vm821, %vm831
      %vm859 = vmand %vm821, %vm832
      %vm860 = vmand %vm821, %vm833
      %vm861 = vmand %vm822, %vm831
      %vm862 = vmand %vm822, %vm832
      %vm863 = vmand %vm822, %vm833
      %vm864 = vmand %vm823, %vm831
      %vm865 = vmand %vm823, %vm832
      %vm866 = vmand %vm823, %vm833
      %vm867 = vmand %vm824, %vm831
      %vm868 = vmand %vm824, %vm832
      %vm869 = vmand %vm824, %vm833
      %vm870 = vmand %vm825, %vm831
      %vm871 = vmand %vm825, %vm832
      %vm872 = vmand %vm825, %vm833
      %vm873 = vmand %vm826, %vm831
      %vm874 = vmand %vm826, %vm832
      %vm875 = vmand %vm826, %vm833
      %vm876 = vmand %vm827, %vm831
      %vm877 = vmand %vm827, %vm832
      %vm878 = vmand %vm827, %vm833
      %vm879 = vmand %vm828, %vm831
      %vm880 = vmand %vm828, %vm832
      %vm881 = vmand %vm828, %vm833
      %vm882 = vmand %vm829, %vm831
      %vm883 = vmand %vm829, %vm832
      %vm884 = vmand %vm829, %vm833
      %vm885 = vmand %vm830, %vm831
      %vm886 = vmand %vm830, %vm832
      %vm887 = vmand %vm830, %vm833
      %vm888 = vcmp.lt.s32.totalorder %v774, 17
      %vm889 = vcmp.lt.s32.totalorder %v775, 17
      %vm890 = vcmp.lt.s32.totalorder %v776, 17
      %vm891 = vmand %vm834, %vm888
      %vm892 = vmand %vm835, %vm889
      %vm893 = vmand %vm836, %vm890
      %vm894 = vmand %vm837, %vm888
      %vm895 = vmand %vm838, %vm889
      %vm896 = vmand %vm839, %vm890
      %vm897 = vmand %vm840, %vm888
      %vm898 = vmand %vm841, %vm889
      %vm899 = vmand %vm842, %vm890
      %vm900 = vmand %vm843, %vm888
      %vm901 = vmand %vm844, %vm889
      %vm902 = vmand %vm845, %vm890
      %vm903 = vmand %vm846, %vm888
      %vm904 = vmand %vm847, %vm889
      %vm905 = vmand %vm848, %vm890
      %vm906 = vmand %vm849, %vm888
      %vm907 = vmand %vm850, %vm889
      %vm908 = vmand %vm851, %vm890
      %vm909 = vmand %vm852, %vm888
      %vm910 = vmand %vm853, %vm889
      %vm911 = vmand %vm854, %vm890
      %vm912 = vmand %vm855, %vm888
      %vm913 = vmand %vm856, %vm889
      %vm914 = vmand %vm857, %vm890
      %vm915 = vmand %vm858, %vm888
      %vm916 = vmand %vm859, %vm889
      %vm917 = vmand %vm860, %vm890
      %vm918 = vmand %vm861, %vm888
      %vm919 = vmand %vm862, %vm889
      %vm920 = vmand %vm863, %vm890
      %vm921 = vmand %vm864, %vm888
      %vm922 = vmand %vm865, %vm889
      %vm923 = vmand %vm866, %vm890
      %vm924 = vmand %vm867, %vm888
      %vm925 = vmand %vm868, %vm889
      %vm926 = vmand %vm869, %vm890
      %vm927 = vmand %vm870, %vm888
      %vm928 = vmand %vm871, %vm889
      %vm929 = vmand %vm872, %vm890
      %vm930 = vmand %vm873, %vm888
      %vm931 = vmand %vm874, %vm889
      %vm932 = vmand %vm875, %vm890
      %vm933 = vmand %vm876, %vm888
      %vm934 = vmand %vm877, %vm889
      %vm935 = vmand %vm878, %vm890
      %vm936 = vmand %vm879, %vm888
      %vm937 = vmand %vm880, %vm889
      %vm938 = vmand %vm881, %vm890
      %vm939 = vmand %vm882, %vm888
      %vm940 = vmand %vm883, %vm889
      %vm941 = vmand %vm884, %vm890
      %vm942 = vmand %vm885, %vm888
      %vm943 = vmand %vm886, %vm889
      %vm944 = vmand %vm887, %vm890
      %v945 = vsel %vm891, 1, 0
      %v946 = vsel %vm892, 1, 0
      %v947 = vsel %vm893, 1, 0
      %v948 = vsel %vm894, 1, 0
      %v949 = vsel %vm895, 1, 0
      %v950 = vsel %vm896, 1, 0
      %v951 = vsel %vm897, 1, 0
      %v952 = vsel %vm898, 1, 0
      %v953 = vsel %vm899, 1, 0
      %v954 = vsel %vm900, 1, 0
      %v955 = vsel %vm901, 1, 0
      %v956 = vsel %vm902, 1, 0
      %v957 = vsel %vm903, 1, 0
      %v958 = vsel %vm904, 1, 0
      %v959 = vsel %vm905, 1, 0
      %v960 = vsel %vm906, 1, 0
      %v961 = vsel %vm907, 1, 0
      %v962 = vsel %vm908, 1, 0
      %v963 = vsel %vm909, 1, 0
      %v964 = vsel %vm910, 1, 0
      %v965 = vsel %vm911, 1, 0
      %v966 = vsel %vm912, 1, 0
      %v967 = vsel %vm913, 1, 0
      %v968 = vsel %vm914, 1, 0
      %v969 = vsel %vm915, 1, 0
      %v970 = vsel %vm916, 1, 0
      %v971 = vsel %vm917, 1, 0
      %v972 = vsel %vm918, 1, 0
      %v973 = vsel %vm919, 1, 0
      %v974 = vsel %vm920, 1, 0
      %v975 = vsel %vm921, 1, 0
      %v976 = vsel %vm922, 1, 0
      %v977 = vsel %vm923, 1, 0
      %v978 = vsel %vm924, 1, 0
      %v979 = vsel %vm925, 1, 0
      %v980 = vsel %vm926, 1, 0
      %v981 = vsel %vm927, 1, 0
      %v982 = vsel %vm928, 1, 0
      %v983 = vsel %vm929, 1, 0
      %v984 = vsel %vm930, 1, 0
      %v985 = vsel %vm931, 1, 0
      %v986 = vsel %vm932, 1, 0
      %v987 = vsel %vm933, 1, 0
      %v988 = vsel %vm934, 1, 0
      %v989 = vsel %vm935, 1, 0
      %v990 = vsel %vm936, 1, 0
      %v991 = vsel %vm937, 1, 0
      %v992 = vsel %vm938, 1, 0
      %v993 = vsel %vm939, 1, 0
      %v994 = vsel %vm940, 1, 0
      %v995 = vsel %vm941, 1, 0
      %v996 = vsel %vm942, 1, 0
      %v997 = vsel %vm943, 1, 0
      %v998 = vsel %vm944, 1, 0
      %vm999 = vcmp.eq.s32.totalorder %v945, 1
      %vm1000 = vcmp.eq.s32.totalorder %v946, 1
      %vm1001 = vcmp.eq.s32.totalorder %v947, 1
      %vm1002 = vcmp.eq.s32.totalorder %v948, 1
      %vm1003 = vcmp.eq.s32.totalorder %v949, 1
      %vm1004 = vcmp.eq.s32.totalorder %v950, 1
      %vm1005 = vcmp.eq.s32.totalorder %v951, 1
      %vm1006 = vcmp.eq.s32.totalorder %v952, 1
      %vm1007 = vcmp.eq.s32.totalorder %v953, 1
      %vm1008 = vcmp.eq.s32.totalorder %v954, 1
      %vm1009 = vcmp.eq.s32.totalorder %v955, 1
      %vm1010 = vcmp.eq.s32.totalorder %v956, 1
      %vm1011 = vcmp.eq.s32.totalorder %v957, 1
      %vm1012 = vcmp.eq.s32.totalorder %v958, 1
      %vm1013 = vcmp.eq.s32.totalorder %v959, 1
      %vm1014 = vcmp.eq.s32.totalorder %v960, 1
      %vm1015 = vcmp.eq.s32.totalorder %v961, 1
      %vm1016 = vcmp.eq.s32.totalorder %v962, 1
      %vm1017 = vcmp.eq.s32.totalorder %v963, 1
      %vm1018 = vcmp.eq.s32.totalorder %v964, 1
      %vm1019 = vcmp.eq.s32.totalorder %v965, 1
      %vm1020 = vcmp.eq.s32.totalorder %v966, 1
      %vm1021 = vcmp.eq.s32.totalorder %v967, 1
      %vm1022 = vcmp.eq.s32.totalorder %v968, 1
      %vm1023 = vcmp.eq.s32.totalorder %v969, 1
      %vm1024 = vcmp.eq.s32.totalorder %v970, 1
      %vm1025 = vcmp.eq.s32.totalorder %v971, 1
      %vm1026 = vcmp.eq.s32.totalorder %v972, 1
      %vm1027 = vcmp.eq.s32.totalorder %v973, 1
      %vm1028 = vcmp.eq.s32.totalorder %v974, 1
      %vm1029 = vcmp.eq.s32.totalorder %v975, 1
      %vm1030 = vcmp.eq.s32.totalorder %v976, 1
      %vm1031 = vcmp.eq.s32.totalorder %v977, 1
      %vm1032 = vcmp.eq.s32.totalorder %v978, 1
      %vm1033 = vcmp.eq.s32.totalorder %v979, 1
      %vm1034 = vcmp.eq.s32.totalorder %v980, 1
      %vm1035 = vcmp.eq.s32.totalorder %v981, 1
      %vm1036 = vcmp.eq.s32.totalorder %v982, 1
      %vm1037 = vcmp.eq.s32.totalorder %v983, 1
      %vm1038 = vcmp.eq.s32.totalorder %v984, 1
      %vm1039 = vcmp.eq.s32.totalorder %v985, 1
      %vm1040 = vcmp.eq.s32.totalorder %v986, 1
      %vm1041 = vcmp.eq.s32.totalorder %v987, 1
      %vm1042 = vcmp.eq.s32.totalorder %v988, 1
      %vm1043 = vcmp.eq.s32.totalorder %v989, 1
      %vm1044 = vcmp.eq.s32.totalorder %v990, 1
      %vm1045 = vcmp.eq.s32.totalorder %v991, 1
      %vm1046 = vcmp.eq.s32.totalorder %v992, 1
      %vm1047 = vcmp.eq.s32.totalorder %v993, 1
      %vm1048 = vcmp.eq.s32.totalorder %v994, 1
      %vm1049 = vcmp.eq.s32.totalorder %v995, 1
      %vm1050 = vcmp.eq.s32.totalorder %v996, 1
      %vm1051 = vcmp.eq.s32.totalorder %v997, 1
      %vm1052 = vcmp.eq.s32.totalorder %v998, 1
      %v1053 = vsel %vm999, %v700, 0.0
      %v1054 = vsel %vm1000, %v701, 0.0
      %v1055 = vsel %vm1001, %v702, 0.0
      %v1056 = vsel %vm1002, %v703, 0.0
      %v1057 = vsel %vm1003, %v704, 0.0
      %v1058 = vsel %vm1004, %v705, 0.0
      %v1059 = vsel %vm1005, %v706, 0.0
      %v1060 = vsel %vm1006, %v707, 0.0
      %v1061 = vsel %vm1007, %v708, 0.0
      %v1062 = vsel %vm1008, %v709, 0.0
      %v1063 = vsel %vm1009, %v710, 0.0
      %v1064 = vsel %vm1010, %v711, 0.0
      %v1065 = vsel %vm1011, %v712, 0.0
      %v1066 = vsel %vm1012, %v713, 0.0
      %v1067 = vsel %vm1013, %v714, 0.0
      %v1068 = vsel %vm1014, %v715, 0.0
      %v1069 = vsel %vm1015, %v716, 0.0
      %v1070 = vsel %vm1016, %v717, 0.0
      %v1071 = vsel %vm1017, %v718, 0.0
      %v1072 = vsel %vm1018, %v719, 0.0
      %v1073 = vsel %vm1019, %v720, 0.0
      %v1074 = vsel %vm1020, %v721, 0.0
      %v1075 = vsel %vm1021, %v722, 0.0
      %v1076 = vsel %vm1022, %v723, 0.0
      %v1077 = vsel %vm1023, %v724, 0.0
      %v1078 = vsel %vm1024, %v725, 0.0
      %v1079 = vsel %vm1025, %v726, 0.0
      %v1080 = vsel %vm1026, %v727, 0.0
      %v1081 = vsel %vm1027, %v728, 0.0
      %v1082 = vsel %vm1028, %v729, 0.0
      %v1083 = vsel %vm1029, %v730, 0.0
      %v1084 = vsel %vm1030, %v731, 0.0
      %v1085 = vsel %vm1031, %v732, 0.0
      %v1086 = vsel %vm1032, %v733, 0.0
      %v1087 = vsel %vm1033, %v734, 0.0
      %v1088 = vsel %vm1034, %v735, 0.0
      %v1089 = vsel %vm1035, %v736, 0.0
      %v1090 = vsel %vm1036, %v737, 0.0
      %v1091 = vsel %vm1037, %v738, 0.0
      %v1092 = vsel %vm1038, %v739, 0.0
      %v1093 = vsel %vm1039, %v740, 0.0
      %v1094 = vsel %vm1040, %v741, 0.0
      %v1095 = vsel %vm1041, %v742, 0.0
      %v1096 = vsel %vm1042, %v743, 0.0
      %v1097 = vsel %vm1043, %v744, 0.0
      %v1098 = vsel %vm1044, %v745, 0.0
      %v1099 = vsel %vm1045, %v746, 0.0
      %v1100 = vsel %vm1046, %v747, 0.0
      %v1101 = vsel %vm1047, %v748, 0.0
      %v1102 = vsel %vm1048, %v749, 0.0
      %v1103 = vsel %vm1049, %v750, 0.0
      %v1104 = vsel %vm1050, %v751, 0.0
      %v1105 = vsel %vm1051, %v752, 0.0
      %v1106 = vsel %vm1052, %v753, 0.0
      %v1107 = vpack.c.bf16 %v1054, %v1053
      %v1108 = vpack.c.bf16 %v1055, %v1055
      %v1109 = vpack.c.bf16 %v1057, %v1056
      %v1110 = vpack.c.bf16 %v1058, %v1058
      %v1111 = vpack.c.bf16 %v1060, %v1059
      %v1112 = vpack.c.bf16 %v1061, %v1061
      %v1113 = vpack.c.bf16 %v1063, %v1062
      %v1114 = vpack.c.bf16 %v1064, %v1064
      %v1115 = vpack.c.bf16 %v1066, %v1065
      %v1116 = vpack.c.bf16 %v1067, %v1067
      %v1117 = vpack.c.bf16 %v1069, %v1068
      %v1118 = vpack.c.bf16 %v1070, %v1070
      %v1119 = vpack.c.bf16 %v1072, %v1071
      %v1120 = vpack.c.bf16 %v1073, %v1073
      %v1121 = vpack.c.bf16 %v1075, %v1074
      %v1122 = vpack.c.bf16 %v1076, %v1076
      %v1123 = vpack.c.bf16 %v1078, %v1077
      %v1124 = vpack.c.bf16 %v1079, %v1079
      %v1125 = vpack.c.bf16 %v1081, %v1080
      %v1126 = vpack.c.bf16 %v1082, %v1082
      %v1127 = vpack.c.bf16 %v1084, %v1083
      %v1128 = vpack.c.bf16 %v1085, %v1085
      %v1129 = vpack.c.bf16 %v1087, %v1086
      %v1130 = vpack.c.bf16 %v1088, %v1088
      %v1131 = vpack.c.bf16 %v1090, %v1089
      %v1132 = vpack.c.bf16 %v1091, %v1091
      %v1133 = vpack.c.bf16 %v1093, %v1092
      %v1134 = vpack.c.bf16 %v1094, %v1094
      %v1135 = vpack.c.bf16 %v1096, %v1095
      %v1136 = vpack.c.bf16 %v1097, %v1097
      %v1137 = vpack.c.bf16 %v1099, %v1098
      %v1138 = vpack.c.bf16 %v1100, %v1100
      %v1139 = vpack.c.bf16 %v1102, %v1101
      %v1140 = vpack.c.bf16 %v1103, %v1103
      %v1141 = vpack.c.bf16 %v1105, %v1104
      %v1142 = vpack.c.bf16 %v1106, %v1106
      %vm1143 = vsmask.f32 7424
      %v1145 = vshrl.u32 %v1107, 16
      %v1147 = vshll.u32 %v1107, 16
      %v1149 = vrot.slane %v1147, 1
      %v1150 = vor.u32 %v1145, %v1149
      %v1152 = vshll.u32 %v1108, 16
      %v1154 = vrot.slane %v1152, 1
      %v1155 = vsel %vm1143, %v1150, %v1154
      %v1157 = vshrl.u32 %v1109, 16
      %v1159 = vshll.u32 %v1109, 16
      %v1161 = vrot.slane %v1159, 1
      %v1162 = vor.u32 %v1157, %v1161
      %v1164 = vshll.u32 %v1110, 16
      %v1166 = vrot.slane %v1164, 1
      %v1167 = vsel %vm1143, %v1162, %v1166
      %v1169 = vshrl.u32 %v1111, 16
      %v1171 = vshll.u32 %v1111, 16
      %v1173 = vrot.slane %v1171, 1
      %v1174 = vor.u32 %v1169, %v1173
      %v1176 = vshll.u32 %v1112, 16
      %v1178 = vrot.slane %v1176, 1
      %v1179 = vsel %vm1143, %v1174, %v1178
      %v1181 = vshrl.u32 %v1113, 16
      %v1183 = vshll.u32 %v1113, 16
      %v1185 = vrot.slane %v1183, 1
      %v1186 = vor.u32 %v1181, %v1185
      %v1188 = vshll.u32 %v1114, 16
      %v1190 = vrot.slane %v1188, 1
      %v1191 = vsel %vm1143, %v1186, %v1190
      %v1193 = vshrl.u32 %v1115, 16
      %v1195 = vshll.u32 %v1115, 16
      %v1197 = vrot.slane %v1195, 1
      %v1198 = vor.u32 %v1193, %v1197
      %v1200 = vshll.u32 %v1116, 16
      %v1202 = vrot.slane %v1200, 1
      %v1203 = vsel %vm1143, %v1198, %v1202
      %v1205 = vshrl.u32 %v1117, 16
      %v1207 = vshll.u32 %v1117, 16
      %v1209 = vrot.slane %v1207, 1
      %v1210 = vor.u32 %v1205, %v1209
      %v1212 = vshll.u32 %v1118, 16
      %v1214 = vrot.slane %v1212, 1
      %v1215 = vsel %vm1143, %v1210, %v1214
      %v1217 = vshrl.u32 %v1119, 16
      %v1219 = vshll.u32 %v1119, 16
      %v1221 = vrot.slane %v1219, 1
      %v1222 = vor.u32 %v1217, %v1221
      %v1224 = vshll.u32 %v1120, 16
      %v1226 = vrot.slane %v1224, 1
      %v1227 = vsel %vm1143, %v1222, %v1226
      %v1229 = vshrl.u32 %v1121, 16
      %v1231 = vshll.u32 %v1121, 16
      %v1233 = vrot.slane %v1231, 1
      %v1234 = vor.u32 %v1229, %v1233
      %v1236 = vshll.u32 %v1122, 16
      %v1238 = vrot.slane %v1236, 1
      %v1239 = vsel %vm1143, %v1234, %v1238
      %v1241 = vshrl.u32 %v1123, 16
      %v1243 = vshll.u32 %v1123, 16
      %v1245 = vrot.slane %v1243, 1
      %v1246 = vor.u32 %v1241, %v1245
      %v1248 = vshll.u32 %v1124, 16
      %v1250 = vrot.slane %v1248, 1
      %v1251 = vsel %vm1143, %v1246, %v1250
      %v1253 = vshrl.u32 %v1125, 16
      %v1255 = vshll.u32 %v1125, 16
      %v1257 = vrot.slane %v1255, 1
      %v1258 = vor.u32 %v1253, %v1257
      %v1260 = vshll.u32 %v1126, 16
      %v1262 = vrot.slane %v1260, 1
      %v1263 = vsel %vm1143, %v1258, %v1262
      %v1265 = vshrl.u32 %v1127, 16
      %v1267 = vshll.u32 %v1127, 16
      %v1269 = vrot.slane %v1267, 1
      %v1270 = vor.u32 %v1265, %v1269
      %v1272 = vshll.u32 %v1128, 16
      %v1274 = vrot.slane %v1272, 1
      %v1275 = vsel %vm1143, %v1270, %v1274
      %v1277 = vshrl.u32 %v1129, 16
      %v1279 = vshll.u32 %v1129, 16
      %v1281 = vrot.slane %v1279, 1
      %v1282 = vor.u32 %v1277, %v1281
      %v1284 = vshll.u32 %v1130, 16
      %v1286 = vrot.slane %v1284, 1
      %v1287 = vsel %vm1143, %v1282, %v1286
      %v1289 = vshrl.u32 %v1131, 16
      %v1291 = vshll.u32 %v1131, 16
      %v1293 = vrot.slane %v1291, 1
      %v1294 = vor.u32 %v1289, %v1293
      %v1296 = vshll.u32 %v1132, 16
      %v1298 = vrot.slane %v1296, 1
      %v1299 = vsel %vm1143, %v1294, %v1298
      %v1301 = vshrl.u32 %v1133, 16
      %v1303 = vshll.u32 %v1133, 16
      %v1305 = vrot.slane %v1303, 1
      %v1306 = vor.u32 %v1301, %v1305
      %v1308 = vshll.u32 %v1134, 16
      %v1310 = vrot.slane %v1308, 1
      %v1311 = vsel %vm1143, %v1306, %v1310
      %v1313 = vshrl.u32 %v1135, 16
      %v1315 = vshll.u32 %v1135, 16
      %v1317 = vrot.slane %v1315, 1
      %v1318 = vor.u32 %v1313, %v1317
      %v1320 = vshll.u32 %v1136, 16
      %v1322 = vrot.slane %v1320, 1
      %v1323 = vsel %vm1143, %v1318, %v1322
      %v1325 = vshrl.u32 %v1137, 16
      %v1327 = vshll.u32 %v1137, 16
      %v1329 = vrot.slane %v1327, 1
      %v1330 = vor.u32 %v1325, %v1329
      %v1332 = vshll.u32 %v1138, 16
      %v1334 = vrot.slane %v1332, 1
      %v1335 = vsel %vm1143, %v1330, %v1334
      %vm1384 = vcmask 1046528
      %v1385 = vrot.slane %v1107, 1
      %v1386 = vrot.slane %v1108, 1
      %v1387 = vsel %vm1384, %v1385, %v1386
      %v1388 = vrot.slane %v1109, 1
      %v1389 = vrot.slane %v1110, 1
      %v1390 = vsel %vm1384, %v1388, %v1389
      %v1391 = vrot.slane %v1111, 1
      %v1392 = vrot.slane %v1112, 1
      %v1393 = vsel %vm1384, %v1391, %v1392
      %v1394 = vrot.slane %v1113, 1
      %v1395 = vrot.slane %v1114, 1
      %v1396 = vsel %vm1384, %v1394, %v1395
      %v1397 = vrot.slane %v1115, 1
      %v1398 = vrot.slane %v1116, 1
      %v1399 = vsel %vm1384, %v1397, %v1398
      %v1400 = vrot.slane %v1117, 1
      %v1401 = vrot.slane %v1118, 1
      %v1402 = vsel %vm1384, %v1400, %v1401
      %v1403 = vrot.slane %v1119, 1
      %v1404 = vrot.slane %v1120, 1
      %v1405 = vsel %vm1384, %v1403, %v1404
      %v1406 = vrot.slane %v1121, 1
      %v1407 = vrot.slane %v1122, 1
      %v1408 = vsel %vm1384, %v1406, %v1407
      %v1409 = vrot.slane %v1123, 1
      %v1410 = vrot.slane %v1124, 1
      %v1411 = vsel %vm1384, %v1409, %v1410
      %v1412 = vrot.slane %v1125, 1
      %v1413 = vrot.slane %v1126, 1
      %v1414 = vsel %vm1384, %v1412, %v1413
      %v1415 = vrot.slane %v1127, 1
      %v1416 = vrot.slane %v1128, 1
      %v1417 = vsel %vm1384, %v1415, %v1416
      %v1418 = vrot.slane %v1129, 1
      %v1419 = vrot.slane %v1130, 1
      %v1420 = vsel %vm1384, %v1418, %v1419
      %v1421 = vrot.slane %v1131, 1
      %v1422 = vrot.slane %v1132, 1
      %v1423 = vsel %vm1384, %v1421, %v1422
      %v1424 = vrot.slane %v1133, 1
      %v1425 = vrot.slane %v1134, 1
      %v1426 = vsel %vm1384, %v1424, %v1425
      %v1427 = vrot.slane %v1135, 1
      %v1428 = vrot.slane %v1136, 1
      %v1429 = vsel %vm1384, %v1427, %v1428
      %v1430 = vrot.slane %v1137, 1
      %v1431 = vrot.slane %v1138, 1
      %v1432 = vsel %vm1384, %v1430, %v1431
      %v1449 = vld [vmem:[%s1] sm:$0xf]
      %v1450 = vld [vmem:[%s1 + $0x4] sm:$0xf]
      %v1451 = vld [vmem:[%s1 + $0x8] sm:$0xf]
      %v1452 = vld [vmem:[%s1 + $0xc] sm:$0xf]
      %v1453 = vld [vmem:[%s1 + $0x10] sm:$0xf]
      %v1454 = vld [vmem:[%s1 + $0x14] sm:$0xf]
      %v1455 = vld [vmem:[%s1 + $0x18] sm:$0xf]
      %v1456 = vld [vmem:[%s1 + $0x1c] sm:$0xf]
      %v1457 = vld [vmem:[%s1 + $0x20] sm:$0xf]
      %v1458 = vld [vmem:[%s1 + $0x24] sm:$0xf]
      %v1459 = vld [vmem:[%s1 + $0x28] sm:$0xf]
      %v1460 = vld [vmem:[%s1 + $0x2c] sm:$0xf]
      %v1461 = vld [vmem:[%s1 + $0x30] sm:$0xf]
      %v1462 = vld [vmem:[%s1 + $0x34] sm:$0xf]
      %v1463 = vld [vmem:[%s1 + $0x38] sm:$0xf]
      %v1464 = vld [vmem:[%s1 + $0x3c] sm:$0xf]
      %v1465 = vld [vmem:[%s1 + $0x40] sm:$0xf]
      %v1466 = vld [vmem:[%s1 + $0x44] sm:$0xf]
      %v1467 = vld [vmem:[%s1 + $0x48] sm:$0xf]
      %v1468 = vld [vmem:[%s1 + $0x4c] sm:$0xf]
      %v1469 = vld [vmem:[%s1 + $0x50] sm:$0xf]
      %v1470 = vld [vmem:[%s1 + $0x54] sm:$0xf]
      %v1471 = vld [vmem:[%s1 + $0x58] sm:$0xf]
      %v1472 = vld [vmem:[%s1 + $0x5c] sm:$0xf]
      %v1473 = vld [vmem:[%s1 + $0x60] sm:$0xf]
      %v1474 = vld [vmem:[%s1 + $0x64] sm:$0xf]
      %v1475 = vld [vmem:[%s1 + $0x68] sm:$0xf]
      %v1476 = vld [vmem:[%s1 + $0x6c] sm:$0xf]
      %v1477 = vld [vmem:[%s1 + $0x70] sm:$0xf]
      %v1478 = vld [vmem:[%s1 + $0x74] sm:$0xf]
      %v1479 = vld [vmem:[%s1 + $0x78] sm:$0xf]
      %v1480 = vld [vmem:[%s1 + $0x7c] sm:$0xf]
      %v1481 = vld [vmem:[%s1 + $0x80] sm:$0xf]
      %v1482 = vld [vmem:[%s1 + $0x84] sm:$0xf]
      %v1483 = vld [vmem:[%s1 + $0x88] sm:$0xf]
      %v1484 = vld [vmem:[%s1 + $0x8c] sm:$0xf]
      %v1485 = vld [vmem:[%s1 + $0x90] sm:$0xf]
      %v1486 = vld [vmem:[%s1 + $0x94] sm:$0xf]
      %v1487 = vld [vmem:[%s1 + $0x98] sm:$0xf]
      %v1488 = vld [vmem:[%s1 + $0x9c] sm:$0xf]
      %v1489 = vld [vmem:[%s1 + $0xa0] sm:$0xf]
      %v1490 = vld [vmem:[%s1 + $0xa4] sm:$0xf]
      %v1491 = vld [vmem:[%s1 + $0xa8] sm:$0xf]
      %v1492 = vld [vmem:[%s1 + $0xac] sm:$0xf]
      %v1493 = vld [vmem:[%s1 + $0xb0] sm:$0xf]
      %v1494 = vld [vmem:[%s1 + $0xb4] sm:$0xf]
      %v1495 = vld [vmem:[%s1 + $0xb8] sm:$0xf]
      %v1496 = vld [vmem:[%s1 + $0xbc] sm:$0xf]
      %v1498 = vshrl.u32 %v1139, 16
      %v1500 = vshll.u32 %v1139, 16
      %v1502 = vrot.slane %v1500, 1
      %v1503 = vor.u32 %v1498, %v1502
      %v1505 = vshll.u32 %v1140, 16
      %v1507 = vrot.slane %v1505, 1
      %v1508 = vsel %vm1143, %v1503, %v1507
      %v1512 = vrot.slane %v1139, 1
      %v1513 = vrot.slane %v1140, 1
      %v1514 = vsel %vm1384, %v1512, %v1513
      %s1516 = scalar_lea.vmem %s1, 192
      %v1517 = vld [vmem:[%s1516] sm:$0xf]
      %v1518 = vld [vmem:[%s1516 + $0x4] sm:$0xf]
      %v1519 = vld [vmem:[%s1516 + $0x8] sm:$0xf]
      %v1520 = vld [vmem:[%s1516 + $0xc] sm:$0xf]
      %v1521 = vld [vmem:[%s1516 + $0x10] sm:$0xf]
      %v1522 = vld [vmem:[%s1516 + $0x14] sm:$0xf]
      %v1523 = vld [vmem:[%s1516 + $0x18] sm:$0xf]
      %v1524 = vld [vmem:[%s1516 + $0x1c] sm:$0xf]
      %v1525 = vld [vmem:[%s1516 + $0x20] sm:$0xf]
      %v1526 = vld [vmem:[%s1516 + $0x24] sm:$0xf]
      %v1527 = vld [vmem:[%s1516 + $0x28] sm:$0xf]
      %v1528 = vld [vmem:[%s1516 + $0x2c] sm:$0xf]
      %v1529 = vld [vmem:[%s1516 + $0x30] sm:$0xf]
      %v1530 = vld [vmem:[%s1516 + $0x34] sm:$0xf]
      %v1531 = vld [vmem:[%s1516 + $0x38] sm:$0xf]
      %v1532 = vld [vmem:[%s1516 + $0x3c] sm:$0xf]
      %v1533 = vld [vmem:[%s1516 + $0x40] sm:$0xf]
      %v1534 = vld [vmem:[%s1516 + $0x44] sm:$0xf]
      %v1535 = vld [vmem:[%s1516 + $0x48] sm:$0xf]
      %v1536 = vld [vmem:[%s1516 + $0x4c] sm:$0xf]
      %v1537 = vld [vmem:[%s1516 + $0x50] sm:$0xf]
      %v1538 = vld [vmem:[%s1516 + $0x54] sm:$0xf]
      %v1539 = vld [vmem:[%s1516 + $0x58] sm:$0xf]
      %v1540 = vld [vmem:[%s1516 + $0x5c] sm:$0xf]
      %v1541 = vld [vmem:[%s1516 + $0x60] sm:$0xf]
      %v1542 = vld [vmem:[%s1516 + $0x64] sm:$0xf]
      %v1543 = vld [vmem:[%s1516 + $0x68] sm:$0xf]
      %v1544 = vld [vmem:[%s1516 + $0x6c] sm:$0xf]
      %v1545 = vld [vmem:[%s1516 + $0x70] sm:$0xf]
      %v1546 = vld [vmem:[%s1516 + $0x74] sm:$0xf]
      %v1547 = vld [vmem:[%s1516 + $0x78] sm:$0xf]
      %v1548 = vld [vmem:[%s1516 + $0x7c] sm:$0xf]
      %v1549 = vld [vmem:[%s1516 + $0x80] sm:$0xf]
      %v1550 = vld [vmem:[%s1516 + $0x84] sm:$0xf]
      %v1551 = vld [vmem:[%s1516 + $0x88] sm:$0xf]
      %v1552 = vld [vmem:[%s1516 + $0x8c] sm:$0xf]
      %v1553 = vld [vmem:[%s1516 + $0x90] sm:$0xf]
      %v1554 = vld [vmem:[%s1516 + $0x94] sm:$0xf]
      %v1555 = vld [vmem:[%s1516 + $0x98] sm:$0xf]
      %v1556 = vld [vmem:[%s1516 + $0x9c] sm:$0xf]
      %v1557 = vld [vmem:[%s1516 + $0xa0] sm:$0xf]
      %v1558 = vld [vmem:[%s1516 + $0xa4] sm:$0xf]
      %v1559 = vld [vmem:[%s1516 + $0xa8] sm:$0xf]
      %v1560 = vld [vmem:[%s1516 + $0xac] sm:$0xf]
      %v1561 = vld [vmem:[%s1516 + $0xb0] sm:$0xf]
      %v1562 = vld [vmem:[%s1516 + $0xb4] sm:$0xf]
      %v1563 = vld [vmem:[%s1516 + $0xb8] sm:$0xf]
      %v1564 = vld [vmem:[%s1516 + $0xbc] sm:$0xf]
      %v1613 = vunpack.c.l.b16 %v1517
      %v1614 = vunpack.c.l.b16 %v1518
      %v1615 = vunpack.c.l.b16 %v1519
      %v1616 = vunpack.c.l.b16 %v1520
      %v1617 = vunpack.c.l.b16 %v1521
      %v1618 = vunpack.c.l.b16 %v1522
      %v1619 = vunpack.c.l.b16 %v1523
      %v1620 = vunpack.c.l.b16 %v1524
      %v1621 = vunpack.c.l.b16 %v1525
      %v1622 = vunpack.c.l.b16 %v1526
      %v1623 = vunpack.c.l.b16 %v1527
      %v1624 = vunpack.c.l.b16 %v1528
      %v1625 = vunpack.c.l.b16 %v1529
      %v1626 = vunpack.c.l.b16 %v1530
      %v1627 = vunpack.c.l.b16 %v1531
      %v1628 = vunpack.c.l.b16 %v1532
      %v1629 = vunpack.c.l.b16 %v1533
      %v1630 = vunpack.c.l.b16 %v1534
      %v1631 = vunpack.c.l.b16 %v1535
      %v1632 = vunpack.c.l.b16 %v1536
      %v1633 = vunpack.c.l.b16 %v1537
      %v1634 = vunpack.c.l.b16 %v1538
      %v1635 = vunpack.c.l.b16 %v1539
      %v1636 = vunpack.c.l.b16 %v1540
      %v1637 = vunpack.c.l.b16 %v1541
      %v1638 = vunpack.c.l.b16 %v1542
      %v1639 = vunpack.c.l.b16 %v1543
      %v1640 = vunpack.c.l.b16 %v1544
      %v1641 = vunpack.c.l.b16 %v1545
      %v1642 = vunpack.c.l.b16 %v1546
      %v1643 = vunpack.c.l.b16 %v1547
      %v1644 = vunpack.c.l.b16 %v1548
      %v1645 = vunpack.c.l.b16 %v1549
      %v1646 = vunpack.c.l.b16 %v1550
      %v1647 = vunpack.c.l.b16 %v1551
      %v1648 = vunpack.c.l.b16 %v1552
      %v1649 = vunpack.c.l.b16 %v1553
      %v1650 = vunpack.c.l.b16 %v1554
      %v1651 = vunpack.c.l.b16 %v1555
      %v1652 = vunpack.c.l.b16 %v1556
      %v1653 = vunpack.c.l.b16 %v1557
      %v1654 = vunpack.c.l.b16 %v1558
      %v1655 = vunpack.c.l.b16 %v1559
      %v1656 = vunpack.c.l.b16 %v1560
      %v1657 = vunpack.c.l.b16 %v1561
      %v1658 = vunpack.c.l.b16 %v1562
      %v1659 = vunpack.c.l.b16 %v1563
      %v1660 = vunpack.c.l.b16 %v1564
      %v1661 = vpack.c.b16 %v1614, %v1613
      %v1662 = vpack.c.b16 %v1616, %v1615
      %v1663 = vpack.c.b16 %v1618, %v1617
      %v1664 = vpack.c.b16 %v1620, %v1619
      %v1665 = vpack.c.b16 %v1622, %v1621
      %v1666 = vpack.c.b16 %v1624, %v1623
      %v1667 = vpack.c.b16 %v1626, %v1625
      %v1668 = vpack.c.b16 %v1628, %v1627
      %v1669 = vpack.c.b16 %v1630, %v1629
      %v1670 = vpack.c.b16 %v1632, %v1631
      %v1671 = vpack.c.b16 %v1634, %v1633
      %v1672 = vpack.c.b16 %v1636, %v1635
      %v1673 = vpack.c.b16 %v1638, %v1637
      %v1674 = vpack.c.b16 %v1640, %v1639
      %v1675 = vpack.c.b16 %v1642, %v1641
      %v1676 = vpack.c.b16 %v1644, %v1643
      %v1677 = vpack.c.b16 %v1646, %v1645
      %v1678 = vpack.c.b16 %v1648, %v1647
      %v1679 = vpack.c.b16 %v1650, %v1649
      %v1680 = vpack.c.b16 %v1652, %v1651
      %v1681 = vpack.c.b16 %v1654, %v1653
      %v1682 = vpack.c.b16 %v1656, %v1655
      %v1683 = vpack.c.b16 %v1658, %v1657
      %v1684 = vpack.c.b16 %v1660, %v1659
      %1709 = vmatprep.subr.bf16.mxu0 0
      %1710 = vmatpush1.bf16.msra.mxu0 %v1668
      %1711 = vmatprep.subr.bf16.mxu0 0
      %1712 = vmatpush1.bf16.msra.mxu0 %v1667
      %1713 = vmatprep.subr.bf16.mxu0 0
      %1714 = vmatpush1.bf16.msra.mxu0 %v1666
      %1715 = vmatprep.subr.bf16.mxu0 0
      %1716 = vmatpush1.bf16.msra.mxu0 %v1665
      %1717 = vmatprep.subr.bf16.mxu0 0
      %1718 = vmatpush1.bf16.msra.mxu0 %v1664
      %1719 = vmatprep.subr.bf16.mxu0 0
      %1720 = vmatpush1.bf16.msra.mxu0 %v1663
      %1721 = vmatprep.subr.bf16.mxu0 0
      %1722 = vmatpush1.bf16.msra.mxu0 %v1662
      %1723 = vmatprep.subr.bf16.mxu0 0
      %1724 = vmatpush1.bf16.msra.mxu0 %v1661
      %1725 = vmatprep.subr.bf16.mxu0 0
      %1726 = vmatpush2.bf16.msra.mxu0 %v1676
      %1727 = vmatprep.subr.bf16.mxu0 0
      %1728 = vmatpush2.bf16.msra.mxu0 %v1675
      %1729 = vmatprep.subr.bf16.mxu0 0
      %1730 = vmatpush2.bf16.msra.mxu0 %v1674
      %1731 = vmatprep.subr.bf16.mxu0 0
      %1732 = vmatpush2.bf16.msra.mxu0 %v1673
      %1733 = vmatprep.subr.bf16.mxu0 0
      %1734 = vmatpush2.bf16.msra.mxu0 %v1672
      %1735 = vmatprep.subr.bf16.mxu0 0
      %1736 = vmatpush2.bf16.msra.mxu0 %v1671
      %1737 = vmatprep.subr.bf16.mxu0 0
      %1738 = vmatpush2.bf16.msra.mxu0 %v1670
      %1739 = vmatprep.subr.bf16.mxu0 0
      %1740 = vmatpush2.bf16.msra.mxu0 %v1669
      %1741 = vmatprep.mubr.bf16.mxu0 %v1167
      %1742 = vmatmul.mubr.bf16.gmra.mxu0 %v1109
      %v1743 = vpop.f32.mrf.mxu0
      %v1744 = vadd.f32 0.0, %v1743
      %v1745 = vpop.f32.mrf.mxu0
      %v1746 = vpop.f32.mrf.mxu0
      %v1747 = vadd.f32 0.0, %v1746
      %v1748 = vpop.f32.mrf.mxu0
      %1749 = vmatprep.mubr.bf16.mxu0 %v1179
      %1750 = vmatmul.mubr.bf16.gmra.mxu0 %v1111
      %v1751 = vpop.f32.mrf.mxu0
      %v1752 = vadd.f32 0.0, %v1751
      %v1753 = vpop.f32.mrf.mxu0
      %v1754 = vpop.f32.mrf.mxu0
      %v1755 = vadd.f32 0.0, %v1754
      %v1756 = vpop.f32.mrf.mxu0
      %1757 = vmatprep.mubr.bf16.mxu0 %v1191
      %1758 = vmatmul.mubr.bf16.gmra.mxu0 %v1113
      %v1759 = vpop.f32.mrf.mxu0
      %v1760 = vadd.f32 0.0, %v1759
      %v1761 = vpop.f32.mrf.mxu0
      %v1762 = vpop.f32.mrf.mxu0
      %v1763 = vadd.f32 0.0, %v1762
      %v1764 = vpop.f32.mrf.mxu0
      %1765 = vmatprep.mubr.bf16.mxu0 %v1203
      %1766 = vmatmul.mubr.bf16.gmra.mxu0 %v1115
      %v1767 = vpop.f32.mrf.mxu0
      %v1768 = vadd.f32 0.0, %v1767
      %v1769 = vpop.f32.mrf.mxu0
      %v1770 = vpop.f32.mrf.mxu0
      %v1771 = vadd.f32 0.0, %v1770
      %v1772 = vpop.f32.mrf.mxu0
      %1773 = vmatprep.mubr.bf16.mxu0 %v1215
      %1774 = vmatmul.mubr.bf16.gmra.mxu0 %v1117
      %v1775 = vpop.f32.mrf.mxu0
      %v1776 = vadd.f32 0.0, %v1775
      %v1777 = vpop.f32.mrf.mxu0
      %v1778 = vpop.f32.mrf.mxu0
      %v1779 = vadd.f32 0.0, %v1778
      %v1780 = vpop.f32.mrf.mxu0
      %1781 = vmatprep.mubr.bf16.mxu0 %v1227
      %1782 = vmatmul.mubr.bf16.gmra.mxu0 %v1119
      %v1783 = vpop.f32.mrf.mxu0
      %v1784 = vadd.f32 0.0, %v1783
      %v1785 = vpop.f32.mrf.mxu0
      %v1786 = vpop.f32.mrf.mxu0
      %v1787 = vadd.f32 0.0, %v1786
      %v1788 = vpop.f32.mrf.mxu0
      %1789 = vmatprep.mubr.bf16.mxu0 %v1239
      %1790 = vmatmul.mubr.bf16.gmra.mxu0 %v1121
      %v1791 = vpop.f32.mrf.mxu0
      %v1792 = vadd.f32 0.0, %v1791
      %v1793 = vpop.f32.mrf.mxu0
      %v1794 = vpop.f32.mrf.mxu0
      %v1795 = vadd.f32 0.0, %v1794
      %v1796 = vpop.f32.mrf.mxu0
      %1797 = vmatprep.mubr.bf16.mxu0 %v1251
      %1798 = vmatmul.mubr.bf16.gmra.mxu0 %v1123
      %v1799 = vpop.f32.mrf.mxu0
      %v1800 = vadd.f32 0.0, %v1799
      %v1801 = vpop.f32.mrf.mxu0
      %v1802 = vpop.f32.mrf.mxu0
      %v1803 = vadd.f32 0.0, %v1802
      %v1804 = vpop.f32.mrf.mxu0
      %1805 = vmatprep.mubr.bf16.mxu0 %v1263
      %1806 = vmatmul.mubr.bf16.gmra.mxu0 %v1125
      %v1807 = vpop.f32.mrf.mxu0
      %v1808 = vadd.f32 0.0, %v1807
      %v1809 = vpop.f32.mrf.mxu0
      %v1810 = vpop.f32.mrf.mxu0
      %v1811 = vadd.f32 0.0, %v1810
      %v1812 = vpop.f32.mrf.mxu0
      %1813 = vmatprep.mubr.bf16.mxu0 %v1275
      %1814 = vmatmul.mubr.bf16.gmra.mxu0 %v1127
      %v1815 = vpop.f32.mrf.mxu0
      %v1816 = vadd.f32 0.0, %v1815
      %v1817 = vpop.f32.mrf.mxu0
      %v1818 = vpop.f32.mrf.mxu0
      %v1819 = vadd.f32 0.0, %v1818
      %v1820 = vpop.f32.mrf.mxu0
      %1821 = vmatprep.mubr.bf16.mxu0 %v1287
      %1822 = vmatmul.mubr.bf16.gmra.mxu0 %v1129
      %v1823 = vpop.f32.mrf.mxu0
      %v1824 = vadd.f32 0.0, %v1823
      %v1825 = vpop.f32.mrf.mxu0
      %v1826 = vpop.f32.mrf.mxu0
      %v1827 = vadd.f32 0.0, %v1826
      %v1828 = vpop.f32.mrf.mxu0
      %1829 = vmatprep.mubr.bf16.mxu0 %v1299
      %1830 = vmatmul.mubr.bf16.gmra.mxu0 %v1131
      %v1831 = vpop.f32.mrf.mxu0
      %v1832 = vadd.f32 0.0, %v1831
      %v1833 = vpop.f32.mrf.mxu0
      %v1834 = vpop.f32.mrf.mxu0
      %v1835 = vadd.f32 0.0, %v1834
      %v1836 = vpop.f32.mrf.mxu0
      %1837 = vmatprep.mubr.bf16.mxu0 %v1311
      %1838 = vmatmul.mubr.bf16.gmra.mxu0 %v1133
      %v1839 = vpop.f32.mrf.mxu0
      %v1840 = vadd.f32 0.0, %v1839
      %v1841 = vpop.f32.mrf.mxu0
      %v1842 = vpop.f32.mrf.mxu0
      %v1843 = vadd.f32 0.0, %v1842
      %v1844 = vpop.f32.mrf.mxu0
      %1845 = vmatprep.mubr.bf16.mxu0 %v1323
      %1846 = vmatmul.mubr.bf16.gmra.mxu0 %v1135
      %v1847 = vpop.f32.mrf.mxu0
      %v1848 = vadd.f32 0.0, %v1847
      %v1849 = vpop.f32.mrf.mxu0
      %v1850 = vpop.f32.mrf.mxu0
      %v1851 = vadd.f32 0.0, %v1850
      %v1852 = vpop.f32.mrf.mxu0
      %1853 = vmatprep.mubr.bf16.mxu0 %v1335
      %1854 = vmatmul.mubr.bf16.gmra.mxu0 %v1137
      %v1855 = vpop.f32.mrf.mxu0
      %v1856 = vadd.f32 0.0, %v1855
      %v1857 = vpop.f32.mrf.mxu0
      %v1858 = vpop.f32.mrf.mxu0
      %v1859 = vadd.f32 0.0, %v1858
      %v1860 = vpop.f32.mrf.mxu0
      %1861 = vmatprep.mubr.bf16.mxu0 %v1508
      %1862 = vmatmul.mubr.bf16.gmra.mxu0 %v1139
      %v1863 = vpop.f32.mrf.mxu0
      %v1864 = vadd.f32 0.0, %v1863
      %v1865 = vpop.f32.mrf.mxu0
      %v1866 = vpop.f32.mrf.mxu0
      %v1867 = vadd.f32 0.0, %v1866
      %v1868 = vpop.f32.mrf.mxu0
      %1869 = vdwg.mxu0
      %1870 = vmatprep.subr.bf16.mxu0 0
      %1871 = vmatpush1.bf16.msra.mxu0 %v1684
      %1872 = vmatprep.subr.bf16.mxu0 0
      %1873 = vmatpush1.bf16.msra.mxu0 %v1683
      %1874 = vmatprep.subr.bf16.mxu0 0
      %1875 = vmatpush1.bf16.msra.mxu0 %v1682
      %1876 = vmatprep.subr.bf16.mxu0 0
      %1877 = vmatpush1.bf16.msra.mxu0 %v1681
      %1878 = vmatprep.subr.bf16.mxu0 0
      %1879 = vmatpush1.bf16.msra.mxu0 %v1680
      %1880 = vmatprep.subr.bf16.mxu0 0
      %1881 = vmatpush1.bf16.msra.mxu0 %v1679
      %1882 = vmatprep.subr.bf16.mxu0 0
      %1883 = vmatpush1.bf16.msra.mxu0 %v1678
      %1884 = vmatprep.subr.bf16.mxu0 0
      %1885 = vmatpush1.bf16.msra.mxu0 %v1677
      %1886 = vmatprep.subr.bf16.mxu0 0
      %1887 = vmatpush2.bf16.msra.mxu0 0
      %1888 = vmatprep.subr.bf16.mxu0 0
      %1889 = vmatpush2.bf16.msra.mxu0 0
      %1890 = vmatprep.subr.bf16.mxu0 0
      %1891 = vmatpush2.bf16.msra.mxu0 0
      %1892 = vmatprep.subr.bf16.mxu0 0
      %1893 = vmatpush2.bf16.msra.mxu0 0
      %1894 = vmatprep.subr.bf16.mxu0 0
      %1895 = vmatpush2.bf16.msra.mxu0 0
      %1896 = vmatprep.subr.bf16.mxu0 0
      %1897 = vmatpush2.bf16.msra.mxu0 0
      %1898 = vmatprep.subr.bf16.mxu0 0
      %1899 = vmatpush2.bf16.msra.mxu0 0
      %1900 = vmatprep.subr.bf16.mxu0 0
      %1901 = vmatpush2.bf16.msra.mxu0 0
      %1902 = vmatprep.mubr.bf16.mxu0 0
      %1903 = vmatmul.mubr.bf16.gmra.mxu0 %v1390
      %v1904 = vpop.f32.mrf.mxu0
      %v1905 = vadd.f32 %v1744, %v1904
      %v1906 = vpop.f32.mrf.mxu0
      %v1907 = vpop.f32.mrf.mxu0
      %v1908 = vadd.f32 %v1747, %v1907
      %v1909 = vpop.f32.mrf.mxu0
      %1910 = vmatprep.mubr.bf16.mxu0 0
      %1911 = vmatmul.mubr.bf16.gmra.mxu0 %v1393
      %v1912 = vpop.f32.mrf.mxu0
      %v1913 = vadd.f32 %v1752, %v1912
      %v1914 = vpop.f32.mrf.mxu0
      %v1915 = vpop.f32.mrf.mxu0
      %v1916 = vadd.f32 %v1755, %v1915
      %v1917 = vpop.f32.mrf.mxu0
      %1918 = vmatprep.mubr.bf16.mxu0 0
      %1919 = vmatmul.mubr.bf16.gmra.mxu0 %v1396
      %v1920 = vpop.f32.mrf.mxu0
      %v1921 = vadd.f32 %v1760, %v1920
      %v1922 = vpop.f32.mrf.mxu0
      %v1923 = vpop.f32.mrf.mxu0
      %v1924 = vadd.f32 %v1763, %v1923
      %v1925 = vpop.f32.mrf.mxu0
      %1926 = vmatprep.mubr.bf16.mxu0 0
      %1927 = vmatmul.mubr.bf16.gmra.mxu0 %v1399
      %v1928 = vpop.f32.mrf.mxu0
      %v1929 = vadd.f32 %v1768, %v1928
      %v1930 = vpop.f32.mrf.mxu0
      %v1931 = vpop.f32.mrf.mxu0
      %v1932 = vadd.f32 %v1771, %v1931
      %v1933 = vpop.f32.mrf.mxu0
      %1934 = vmatprep.mubr.bf16.mxu0 0
      %1935 = vmatmul.mubr.bf16.gmra.mxu0 %v1402
      %v1936 = vpop.f32.mrf.mxu0
      %v1937 = vadd.f32 %v1776, %v1936
      %v1938 = vpop.f32.mrf.mxu0
      %v1939 = vpop.f32.mrf.mxu0
      %v1940 = vadd.f32 %v1779, %v1939
      %v1941 = vpop.f32.mrf.mxu0
      %1942 = vmatprep.mubr.bf16.mxu0 0
      %1943 = vmatmul.mubr.bf16.gmra.mxu0 %v1405
      %v1944 = vpop.f32.mrf.mxu0
      %v1945 = vadd.f32 %v1784, %v1944
      %v1946 = vpop.f32.mrf.mxu0
      %v1947 = vpop.f32.mrf.mxu0
      %v1948 = vadd.f32 %v1787, %v1947
      %v1949 = vpop.f32.mrf.mxu0
      %1950 = vmatprep.mubr.bf16.mxu0 0
      %1951 = vmatmul.mubr.bf16.gmra.mxu0 %v1408
      %v1952 = vpop.f32.mrf.mxu0
      %v1953 = vadd.f32 %v1792, %v1952
      %v1954 = vpop.f32.mrf.mxu0
      %v1955 = vpop.f32.mrf.mxu0
      %v1956 = vadd.f32 %v1795, %v1955
      %v1957 = vpop.f32.mrf.mxu0
      %1958 = vmatprep.mubr.bf16.mxu0 0
      %1959 = vmatmul.mubr.bf16.gmra.mxu0 %v1411
      %v1960 = vpop.f32.mrf.mxu0
      %v1961 = vadd.f32 %v1800, %v1960
      %v1962 = vpop.f32.mrf.mxu0
      %v1963 = vpop.f32.mrf.mxu0
      %v1964 = vadd.f32 %v1803, %v1963
      %v1965 = vpop.f32.mrf.mxu0
      %1966 = vmatprep.mubr.bf16.mxu0 0
      %1967 = vmatmul.mubr.bf16.gmra.mxu0 %v1414
      %v1968 = vpop.f32.mrf.mxu0
      %v1969 = vadd.f32 %v1808, %v1968
      %v1970 = vpop.f32.mrf.mxu0
      %v1971 = vpop.f32.mrf.mxu0
      %v1972 = vadd.f32 %v1811, %v1971
      %v1973 = vpop.f32.mrf.mxu0
      %1974 = vmatprep.mubr.bf16.mxu0 0
      %1975 = vmatmul.mubr.bf16.gmra.mxu0 %v1417
      %v1976 = vpop.f32.mrf.mxu0
      %v1977 = vadd.f32 %v1816, %v1976
      %v1978 = vpop.f32.mrf.mxu0
      %v1979 = vpop.f32.mrf.mxu0
      %v1980 = vadd.f32 %v1819, %v1979
      %v1981 = vpop.f32.mrf.mxu0
      %1982 = vmatprep.mubr.bf16.mxu0 0
      %1983 = vmatmul.mubr.bf16.gmra.mxu0 %v1420
      %v1984 = vpop.f32.mrf.mxu0
      %v1985 = vadd.f32 %v1824, %v1984
      %v1986 = vpop.f32.mrf.mxu0
      %v1987 = vpop.f32.mrf.mxu0
      %v1988 = vadd.f32 %v1827, %v1987
      %v1989 = vpop.f32.mrf.mxu0
      %1990 = vmatprep.mubr.bf16.mxu0 0
      %1991 = vmatmul.mubr.bf16.gmra.mxu0 %v1423
      %v1992 = vpop.f32.mrf.mxu0
      %v1993 = vadd.f32 %v1832, %v1992
      %v1994 = vpop.f32.mrf.mxu0
      %v1995 = vpop.f32.mrf.mxu0
      %v1996 = vadd.f32 %v1835, %v1995
      %v1997 = vpop.f32.mrf.mxu0
      %1998 = vmatprep.mubr.bf16.mxu0 0
      %1999 = vmatmul.mubr.bf16.gmra.mxu0 %v1426
      %v2000 = vpop.f32.mrf.mxu0
      %v2001 = vadd.f32 %v1840, %v2000
      %v2002 = vpop.f32.mrf.mxu0
      %v2003 = vpop.f32.mrf.mxu0
      %v2004 = vadd.f32 %v1843, %v2003
      %v2005 = vpop.f32.mrf.mxu0
      %2006 = vmatprep.mubr.bf16.mxu0 0
      %2007 = vmatmul.mubr.bf16.gmra.mxu0 %v1429
      %v2008 = vpop.f32.mrf.mxu0
      %v2009 = vadd.f32 %v1848, %v2008
      %v2010 = vpop.f32.mrf.mxu0
      %v2011 = vpop.f32.mrf.mxu0
      %v2012 = vadd.f32 %v1851, %v2011
      %v2013 = vpop.f32.mrf.mxu0
      %2014 = vmatprep.mubr.bf16.mxu0 0
      %2015 = vmatmul.mubr.bf16.gmra.mxu0 %v1432
      %v2016 = vpop.f32.mrf.mxu0
      %v2017 = vadd.f32 %v1856, %v2016
      %v2018 = vpop.f32.mrf.mxu0
      %v2019 = vpop.f32.mrf.mxu0
      %v2020 = vadd.f32 %v1859, %v2019
      %v2021 = vpop.f32.mrf.mxu0
      %2022 = vmatprep.mubr.bf16.mxu0 0
      %2023 = vmatmul.mubr.bf16.gmra.mxu0 %v1514
      %v2024 = vpop.f32.mrf.mxu0
      %v2025 = vadd.f32 %v1864, %v2024
      %v2026 = vpop.f32.mrf.mxu0
      %v2027 = vpop.f32.mrf.mxu0
      %v2028 = vadd.f32 %v1867, %v2027
      %v2029 = vpop.f32.mrf.mxu0
      %2030 = vdwg.mxu0
      %v2079 = vunpack.c.l.b16 %v1449
      %v2080 = vunpack.c.l.b16 %v1450
      %v2081 = vunpack.c.l.b16 %v1451
      %v2082 = vunpack.c.l.b16 %v1452
      %v2083 = vunpack.c.l.b16 %v1453
      %v2084 = vunpack.c.l.b16 %v1454
      %v2085 = vunpack.c.l.b16 %v1455
      %v2086 = vunpack.c.l.b16 %v1456
      %v2087 = vunpack.c.l.b16 %v1457
      %v2088 = vunpack.c.l.b16 %v1458
      %v2089 = vunpack.c.l.b16 %v1459
      %v2090 = vunpack.c.l.b16 %v1460
      %v2091 = vunpack.c.l.b16 %v1461
      %v2092 = vunpack.c.l.b16 %v1462
      %v2093 = vunpack.c.l.b16 %v1463
      %v2094 = vunpack.c.l.b16 %v1464
      %v2095 = vunpack.c.l.b16 %v1465
      %v2096 = vunpack.c.l.b16 %v1466
      %v2097 = vunpack.c.l.b16 %v1467
      %v2098 = vunpack.c.l.b16 %v1468
      %v2099 = vunpack.c.l.b16 %v1469
      %v2100 = vunpack.c.l.b16 %v1470
      %v2101 = vunpack.c.l.b16 %v1471
      %v2102 = vunpack.c.l.b16 %v1472
      %v2103 = vunpack.c.l.b16 %v1473
      %v2104 = vunpack.c.l.b16 %v1474
      %v2105 = vunpack.c.l.b16 %v1475
      %v2106 = vunpack.c.l.b16 %v1476
      %v2107 = vunpack.c.l.b16 %v1477
      %v2108 = vunpack.c.l.b16 %v1478
      %v2109 = vunpack.c.l.b16 %v1479
      %v2110 = vunpack.c.l.b16 %v1480
      %v2111 = vunpack.c.l.b16 %v1481
      %v2112 = vunpack.c.l.b16 %v1482
      %v2113 = vunpack.c.l.b16 %v1483
      %v2114 = vunpack.c.l.b16 %v1484
      %v2115 = vunpack.c.l.b16 %v1485
      %v2116 = vunpack.c.l.b16 %v1486
      %v2117 = vunpack.c.l.b16 %v1487
      %v2118 = vunpack.c.l.b16 %v1488
      %v2119 = vunpack.c.l.b16 %v1489
      %v2120 = vunpack.c.l.b16 %v1490
      %v2121 = vunpack.c.l.b16 %v1491
      %v2122 = vunpack.c.l.b16 %v1492
      %v2123 = vunpack.c.l.b16 %v1493
      %v2124 = vunpack.c.l.b16 %v1494
      %v2125 = vunpack.c.l.b16 %v1495
      %v2126 = vunpack.c.l.b16 %v1496
      %v2127 = vpack.c.b16 %v2080, %v2079
      %v2128 = vpack.c.b16 %v2082, %v2081
      %v2129 = vpack.c.b16 %v2084, %v2083
      %v2130 = vpack.c.b16 %v2086, %v2085
      %v2131 = vpack.c.b16 %v2088, %v2087
      %v2132 = vpack.c.b16 %v2090, %v2089
      %v2133 = vpack.c.b16 %v2092, %v2091
      %v2134 = vpack.c.b16 %v2094, %v2093
      %v2135 = vpack.c.b16 %v2096, %v2095
      %v2136 = vpack.c.b16 %v2098, %v2097
      %v2137 = vpack.c.b16 %v2100, %v2099
      %v2138 = vpack.c.b16 %v2102, %v2101
      %v2139 = vpack.c.b16 %v2104, %v2103
      %v2140 = vpack.c.b16 %v2106, %v2105
      %v2141 = vpack.c.b16 %v2108, %v2107
      %v2142 = vpack.c.b16 %v2110, %v2109
      %v2143 = vpack.c.b16 %v2112, %v2111
      %v2144 = vpack.c.b16 %v2114, %v2113
      %v2145 = vpack.c.b16 %v2116, %v2115
      %v2146 = vpack.c.b16 %v2118, %v2117
      %v2147 = vpack.c.b16 %v2120, %v2119
      %v2148 = vpack.c.b16 %v2122, %v2121
      %v2149 = vpack.c.b16 %v2124, %v2123
      %v2150 = vpack.c.b16 %v2126, %v2125
      %2175 = vmatprep.subr.bf16.mxu0 0
      %2176 = vmatpush1.bf16.msra.mxu0 %v2134
      %2177 = vmatprep.subr.bf16.mxu0 0
      %2178 = vmatpush1.bf16.msra.mxu0 %v2133
      %2179 = vmatprep.subr.bf16.mxu0 0
      %2180 = vmatpush1.bf16.msra.mxu0 %v2132
      %2181 = vmatprep.subr.bf16.mxu0 0
      %2182 = vmatpush1.bf16.msra.mxu0 %v2131
      %2183 = vmatprep.subr.bf16.mxu0 0
      %2184 = vmatpush1.bf16.msra.mxu0 %v2130
      %2185 = vmatprep.subr.bf16.mxu0 0
      %2186 = vmatpush1.bf16.msra.mxu0 %v2129
      %2187 = vmatprep.subr.bf16.mxu0 0
      %2188 = vmatpush1.bf16.msra.mxu0 %v2128
      %2189 = vmatprep.subr.bf16.mxu0 0
      %2190 = vmatpush1.bf16.msra.mxu0 %v2127
      %2191 = vmatprep.subr.bf16.mxu0 0
      %2192 = vmatpush2.bf16.msra.mxu0 %v2142
      %2193 = vmatprep.subr.bf16.mxu0 0
      %2194 = vmatpush2.bf16.msra.mxu0 %v2141
      %2195 = vmatprep.subr.bf16.mxu0 0
      %2196 = vmatpush2.bf16.msra.mxu0 %v2140
      %2197 = vmatprep.subr.bf16.mxu0 0
      %2198 = vmatpush2.bf16.msra.mxu0 %v2139
      %2199 = vmatprep.subr.bf16.mxu0 0
      %2200 = vmatpush2.bf16.msra.mxu0 %v2138
      %2201 = vmatprep.subr.bf16.mxu0 0
      %2202 = vmatpush2.bf16.msra.mxu0 %v2137
      %2203 = vmatprep.subr.bf16.mxu0 0
      %2204 = vmatpush2.bf16.msra.mxu0 %v2136
      %2205 = vmatprep.subr.bf16.mxu0 0
      %2206 = vmatpush2.bf16.msra.mxu0 %v2135
      %2207 = vmatprep.mubr.bf16.mxu0 %v1155
      %2208 = vmatmul.mubr.bf16.gmra.mxu0 %v1107
      %v2209 = vpop.f32.mrf.mxu0
      %v2210 = vadd.f32 %v1905, %v2209
      %v2211 = vpop.f32.mrf.mxu0
      %v2212 = vpop.f32.mrf.mxu0
      %v2213 = vadd.f32 %v1908, %v2212
      %v2214 = vpop.f32.mrf.mxu0
      %2215 = vmatprep.mubr.bf16.mxu0 %v1167
      %2216 = vmatmul.mubr.bf16.gmra.mxu0 %v1109
      %v2217 = vpop.f32.mrf.mxu0
      %v2218 = vadd.f32 %v1913, %v2217
      %v2219 = vpop.f32.mrf.mxu0
      %v2220 = vpop.f32.mrf.mxu0
      %v2221 = vadd.f32 %v1916, %v2220
      %v2222 = vpop.f32.mrf.mxu0
      %2223 = vmatprep.mubr.bf16.mxu0 %v1179
      %2224 = vmatmul.mubr.bf16.gmra.mxu0 %v1111
      %v2225 = vpop.f32.mrf.mxu0
      %v2226 = vadd.f32 %v1921, %v2225
      %v2227 = vpop.f32.mrf.mxu0
      %v2228 = vpop.f32.mrf.mxu0
      %v2229 = vadd.f32 %v1924, %v2228
      %v2230 = vpop.f32.mrf.mxu0
      %2231 = vmatprep.mubr.bf16.mxu0 %v1191
      %2232 = vmatmul.mubr.bf16.gmra.mxu0 %v1113
      %v2233 = vpop.f32.mrf.mxu0
      %v2234 = vadd.f32 %v1929, %v2233
      %v2235 = vpop.f32.mrf.mxu0
      %v2236 = vpop.f32.mrf.mxu0
      %v2237 = vadd.f32 %v1932, %v2236
      %v2238 = vpop.f32.mrf.mxu0
      %2239 = vmatprep.mubr.bf16.mxu0 %v1203
      %2240 = vmatmul.mubr.bf16.gmra.mxu0 %v1115
      %v2241 = vpop.f32.mrf.mxu0
      %v2242 = vadd.f32 %v1937, %v2241
      %v2243 = vpop.f32.mrf.mxu0
      %v2244 = vpop.f32.mrf.mxu0
      %v2245 = vadd.f32 %v1940, %v2244
      %v2246 = vpop.f32.mrf.mxu0
      %2247 = vmatprep.mubr.bf16.mxu0 %v1215
      %2248 = vmatmul.mubr.bf16.gmra.mxu0 %v1117
      %v2249 = vpop.f32.mrf.mxu0
      %v2250 = vadd.f32 %v1945, %v2249
      %v2251 = vpop.f32.mrf.mxu0
      %v2252 = vpop.f32.mrf.mxu0
      %v2253 = vadd.f32 %v1948, %v2252
      %v2254 = vpop.f32.mrf.mxu0
      %2255 = vmatprep.mubr.bf16.mxu0 %v1227
      %2256 = vmatmul.mubr.bf16.gmra.mxu0 %v1119
      %v2257 = vpop.f32.mrf.mxu0
      %v2258 = vadd.f32 %v1953, %v2257
      %v2259 = vpop.f32.mrf.mxu0
      %v2260 = vpop.f32.mrf.mxu0
      %v2261 = vadd.f32 %v1956, %v2260
      %v2262 = vpop.f32.mrf.mxu0
      %2263 = vmatprep.mubr.bf16.mxu0 %v1239
      %2264 = vmatmul.mubr.bf16.gmra.mxu0 %v1121
      %v2265 = vpop.f32.mrf.mxu0
      %v2266 = vadd.f32 %v1961, %v2265
      %v2267 = vpop.f32.mrf.mxu0
      %v2268 = vpop.f32.mrf.mxu0
      %v2269 = vadd.f32 %v1964, %v2268
      %v2270 = vpop.f32.mrf.mxu0
      %2271 = vmatprep.mubr.bf16.mxu0 %v1251
      %2272 = vmatmul.mubr.bf16.gmra.mxu0 %v1123
      %v2273 = vpop.f32.mrf.mxu0
      %v2274 = vadd.f32 %v1969, %v2273
      %v2275 = vpop.f32.mrf.mxu0
      %v2276 = vpop.f32.mrf.mxu0
      %v2277 = vadd.f32 %v1972, %v2276
      %v2278 = vpop.f32.mrf.mxu0
      %2279 = vmatprep.mubr.bf16.mxu0 %v1263
      %2280 = vmatmul.mubr.bf16.gmra.mxu0 %v1125
      %v2281 = vpop.f32.mrf.mxu0
      %v2282 = vadd.f32 %v1977, %v2281
      %v2283 = vpop.f32.mrf.mxu0
      %v2284 = vpop.f32.mrf.mxu0
      %v2285 = vadd.f32 %v1980, %v2284
      %v2286 = vpop.f32.mrf.mxu0
      %2287 = vmatprep.mubr.bf16.mxu0 %v1275
      %2288 = vmatmul.mubr.bf16.gmra.mxu0 %v1127
      %v2289 = vpop.f32.mrf.mxu0
      %v2290 = vadd.f32 %v1985, %v2289
      %v2291 = vpop.f32.mrf.mxu0
      %v2292 = vpop.f32.mrf.mxu0
      %v2293 = vadd.f32 %v1988, %v2292
      %v2294 = vpop.f32.mrf.mxu0
      %2295 = vmatprep.mubr.bf16.mxu0 %v1287
      %2296 = vmatmul.mubr.bf16.gmra.mxu0 %v1129
      %v2297 = vpop.f32.mrf.mxu0
      %v2298 = vadd.f32 %v1993, %v2297
      %v2299 = vpop.f32.mrf.mxu0
      %v2300 = vpop.f32.mrf.mxu0
      %v2301 = vadd.f32 %v1996, %v2300
      %v2302 = vpop.f32.mrf.mxu0
      %2303 = vmatprep.mubr.bf16.mxu0 %v1299
      %2304 = vmatmul.mubr.bf16.gmra.mxu0 %v1131
      %v2305 = vpop.f32.mrf.mxu0
      %v2306 = vadd.f32 %v2001, %v2305
      %v2307 = vpop.f32.mrf.mxu0
      %v2308 = vpop.f32.mrf.mxu0
      %v2309 = vadd.f32 %v2004, %v2308
      %v2310 = vpop.f32.mrf.mxu0
      %2311 = vmatprep.mubr.bf16.mxu0 %v1311
      %2312 = vmatmul.mubr.bf16.gmra.mxu0 %v1133
      %v2313 = vpop.f32.mrf.mxu0
      %v2314 = vadd.f32 %v2009, %v2313
      %v2315 = vpop.f32.mrf.mxu0
      %v2316 = vpop.f32.mrf.mxu0
      %v2317 = vadd.f32 %v2012, %v2316
      %v2318 = vpop.f32.mrf.mxu0
      %2319 = vmatprep.mubr.bf16.mxu0 %v1323
      %2320 = vmatmul.mubr.bf16.gmra.mxu0 %v1135
      %v2321 = vpop.f32.mrf.mxu0
      %v2322 = vadd.f32 %v2017, %v2321
      %v2323 = vpop.f32.mrf.mxu0
      %v2324 = vpop.f32.mrf.mxu0
      %v2325 = vadd.f32 %v2020, %v2324
      %v2326 = vpop.f32.mrf.mxu0
      %2327 = vmatprep.mubr.bf16.mxu0 %v1335
      %2328 = vmatmul.mubr.bf16.gmra.mxu0 %v1137
      %v2329 = vpop.f32.mrf.mxu0
      %v2330 = vadd.f32 %v2025, %v2329
      %v2331 = vpop.f32.mrf.mxu0
      %v2332 = vpop.f32.mrf.mxu0
      %v2333 = vadd.f32 %v2028, %v2332
      %v2334 = vpop.f32.mrf.mxu0
      %2335 = vdwg.mxu0
      %2336 = vmatprep.subr.bf16.mxu0 0
      %2337 = vmatpush1.bf16.msra.mxu0 %v2150
      %2338 = vmatprep.subr.bf16.mxu0 0
      %2339 = vmatpush1.bf16.msra.mxu0 %v2149
      %2340 = vmatprep.subr.bf16.mxu0 0
      %2341 = vmatpush1.bf16.msra.mxu0 %v2148
      %2342 = vmatprep.subr.bf16.mxu0 0
      %2343 = vmatpush1.bf16.msra.mxu0 %v2147
      %2344 = vmatprep.subr.bf16.mxu0 0
      %2345 = vmatpush1.bf16.msra.mxu0 %v2146
      %2346 = vmatprep.subr.bf16.mxu0 0
      %2347 = vmatpush1.bf16.msra.mxu0 %v2145
      %2348 = vmatprep.subr.bf16.mxu0 0
      %2349 = vmatpush1.bf16.msra.mxu0 %v2144
      %2350 = vmatprep.subr.bf16.mxu0 0
      %2351 = vmatpush1.bf16.msra.mxu0 %v2143
      %2352 = vmatprep.subr.bf16.mxu0 0
      %2353 = vmatpush2.bf16.msra.mxu0 0
      %2354 = vmatprep.subr.bf16.mxu0 0
      %2355 = vmatpush2.bf16.msra.mxu0 0
      %2356 = vmatprep.subr.bf16.mxu0 0
      %2357 = vmatpush2.bf16.msra.mxu0 0
      %2358 = vmatprep.subr.bf16.mxu0 0
      %2359 = vmatpush2.bf16.msra.mxu0 0
      %2360 = vmatprep.subr.bf16.mxu0 0
      %2361 = vmatpush2.bf16.msra.mxu0 0
      %2362 = vmatprep.subr.bf16.mxu0 0
      %2363 = vmatpush2.bf16.msra.mxu0 0
      %2364 = vmatprep.subr.bf16.mxu0 0
      %2365 = vmatpush2.bf16.msra.mxu0 0
      %2366 = vmatprep.subr.bf16.mxu0 0
      %2367 = vmatpush2.bf16.msra.mxu0 0
      %2368 = vmatprep.mubr.bf16.mxu0 0
      %2369 = vmatmul.mubr.bf16.gmra.mxu0 %v1387
      %v2370 = vpop.f32.mrf.mxu0
      %v2371 = vadd.f32 %v2210, %v2370
      %v2372 = vpop.f32.mrf.mxu0
      %v2373 = vpop.f32.mrf.mxu0
      %v2374 = vadd.f32 %v2213, %v2373
      %v2375 = vpop.f32.mrf.mxu0
      %2376 = vmatprep.mubr.bf16.mxu0 0
      %2377 = vmatmul.mubr.bf16.gmra.mxu0 %v1390
      %v2378 = vpop.f32.mrf.mxu0
      %v2379 = vadd.f32 %v2218, %v2378
      %v2380 = vpop.f32.mrf.mxu0
      %v2381 = vpop.f32.mrf.mxu0
      %v2382 = vadd.f32 %v2221, %v2381
      %v2383 = vpop.f32.mrf.mxu0
      %2384 = vmatprep.mubr.bf16.mxu0 0
      %2385 = vmatmul.mubr.bf16.gmra.mxu0 %v1393
      %v2386 = vpop.f32.mrf.mxu0
      %v2387 = vadd.f32 %v2226, %v2386
      %v2388 = vpop.f32.mrf.mxu0
      %v2389 = vpop.f32.mrf.mxu0
      %v2390 = vadd.f32 %v2229, %v2389
      %v2391 = vpop.f32.mrf.mxu0
      %2392 = vmatprep.mubr.bf16.mxu0 0
      %2393 = vmatmul.mubr.bf16.gmra.mxu0 %v1396
      %v2394 = vpop.f32.mrf.mxu0
      %v2395 = vadd.f32 %v2234, %v2394
      %v2396 = vpop.f32.mrf.mxu0
      %v2397 = vpop.f32.mrf.mxu0
      %v2398 = vadd.f32 %v2237, %v2397
      %v2399 = vpop.f32.mrf.mxu0
      %2400 = vmatprep.mubr.bf16.mxu0 0
      %2401 = vmatmul.mubr.bf16.gmra.mxu0 %v1399
      %v2402 = vpop.f32.mrf.mxu0
      %v2403 = vadd.f32 %v2242, %v2402
      %v2404 = vpop.f32.mrf.mxu0
      %v2405 = vpop.f32.mrf.mxu0
      %v2406 = vadd.f32 %v2245, %v2405
      %v2407 = vpop.f32.mrf.mxu0
      %2408 = vmatprep.mubr.bf16.mxu0 0
      %2409 = vmatmul.mubr.bf16.gmra.mxu0 %v1402
      %v2410 = vpop.f32.mrf.mxu0
      %v2411 = vadd.f32 %v2250, %v2410
      %v2412 = vpop.f32.mrf.mxu0
      %v2413 = vpop.f32.mrf.mxu0
      %v2414 = vadd.f32 %v2253, %v2413
      %v2415 = vpop.f32.mrf.mxu0
      %2416 = vmatprep.mubr.bf16.mxu0 0
      %2417 = vmatmul.mubr.bf16.gmra.mxu0 %v1405
      %v2418 = vpop.f32.mrf.mxu0
      %v2419 = vadd.f32 %v2258, %v2418
      %v2420 = vpop.f32.mrf.mxu0
      %v2421 = vpop.f32.mrf.mxu0
      %v2422 = vadd.f32 %v2261, %v2421
      %v2423 = vpop.f32.mrf.mxu0
      %2424 = vmatprep.mubr.bf16.mxu0 0
      %2425 = vmatmul.mubr.bf16.gmra.mxu0 %v1408
      %v2426 = vpop.f32.mrf.mxu0
      %v2427 = vadd.f32 %v2266, %v2426
      %v2428 = vpop.f32.mrf.mxu0
      %v2429 = vpop.f32.mrf.mxu0
      %v2430 = vadd.f32 %v2269, %v2429
      %v2431 = vpop.f32.mrf.mxu0
      %2432 = vmatprep.mubr.bf16.mxu0 0
      %2433 = vmatmul.mubr.bf16.gmra.mxu0 %v1411
      %v2434 = vpop.f32.mrf.mxu0
      %v2435 = vadd.f32 %v2274, %v2434
      %v2436 = vpop.f32.mrf.mxu0
      %v2437 = vpop.f32.mrf.mxu0
      %v2438 = vadd.f32 %v2277, %v2437
      %v2439 = vpop.f32.mrf.mxu0
      %2440 = vmatprep.mubr.bf16.mxu0 0
      %2441 = vmatmul.mubr.bf16.gmra.mxu0 %v1414
      %v2442 = vpop.f32.mrf.mxu0
      %v2443 = vadd.f32 %v2282, %v2442
      %v2444 = vpop.f32.mrf.mxu0
      %v2445 = vpop.f32.mrf.mxu0
      %v2446 = vadd.f32 %v2285, %v2445
      %v2447 = vpop.f32.mrf.mxu0
      %2448 = vmatprep.mubr.bf16.mxu0 0
      %2449 = vmatmul.mubr.bf16.gmra.mxu0 %v1417
      %v2450 = vpop.f32.mrf.mxu0
      %v2451 = vadd.f32 %v2290, %v2450
      %v2452 = vpop.f32.mrf.mxu0
      %v2453 = vpop.f32.mrf.mxu0
      %v2454 = vadd.f32 %v2293, %v2453
      %v2455 = vpop.f32.mrf.mxu0
      %2456 = vmatprep.mubr.bf16.mxu0 0
      %2457 = vmatmul.mubr.bf16.gmra.mxu0 %v1420
      %v2458 = vpop.f32.mrf.mxu0
      %v2459 = vadd.f32 %v2298, %v2458
      %v2460 = vpop.f32.mrf.mxu0
      %v2461 = vpop.f32.mrf.mxu0
      %v2462 = vadd.f32 %v2301, %v2461
      %v2463 = vpop.f32.mrf.mxu0
      %2464 = vmatprep.mubr.bf16.mxu0 0
      %2465 = vmatmul.mubr.bf16.gmra.mxu0 %v1423
      %v2466 = vpop.f32.mrf.mxu0
      %v2467 = vadd.f32 %v2306, %v2466
      %v2468 = vpop.f32.mrf.mxu0
      %v2469 = vpop.f32.mrf.mxu0
      %v2470 = vadd.f32 %v2309, %v2469
      %v2471 = vpop.f32.mrf.mxu0
      %2472 = vmatprep.mubr.bf16.mxu0 0
      %2473 = vmatmul.mubr.bf16.gmra.mxu0 %v1426
      %v2474 = vpop.f32.mrf.mxu0
      %v2475 = vadd.f32 %v2314, %v2474
      %v2476 = vpop.f32.mrf.mxu0
      %v2477 = vpop.f32.mrf.mxu0
      %v2478 = vadd.f32 %v2317, %v2477
      %v2479 = vpop.f32.mrf.mxu0
      %2480 = vmatprep.mubr.bf16.mxu0 0
      %2481 = vmatmul.mubr.bf16.gmra.mxu0 %v1429
      %v2482 = vpop.f32.mrf.mxu0
      %v2483 = vadd.f32 %v2322, %v2482
      %v2484 = vpop.f32.mrf.mxu0
      %v2485 = vpop.f32.mrf.mxu0
      %v2486 = vadd.f32 %v2325, %v2485
      %v2487 = vpop.f32.mrf.mxu0
      %2488 = vmatprep.mubr.bf16.mxu0 0
      %2489 = vmatmul.mubr.bf16.gmra.mxu0 %v1432
      %v2490 = vpop.f32.mrf.mxu0
      %v2491 = vadd.f32 %v2330, %v2490
      %v2492 = vpop.f32.mrf.mxu0
      %v2493 = vpop.f32.mrf.mxu0
      %v2494 = vadd.f32 %v2333, %v2493
      %v2495 = vpop.f32.mrf.mxu0
      %2496 = vdwg.mxu0
      %v2498 = vshrl.u32 %v1141, 16
      %v2500 = vshll.u32 %v1141, 16
      %v2502 = vrot.slane %v2500, 1
      %v2503 = vor.u32 %v2498, %v2502
      %v2505 = vshll.u32 %v1142, 16
      %v2507 = vrot.slane %v2505, 1
      %v2508 = vsel %vm1143, %v2503, %v2507
      %v2512 = vrot.slane %v1141, 1
      %v2513 = vrot.slane %v1142, 1
      %v2514 = vsel %vm1384, %v2512, %v2513
      %s2516 = scalar_lea.vmem %s1, 384
      %v2517 = vld [vmem:[%s2516] sm:$0xf]
      %v2518 = vld [vmem:[%s2516 + $0x4] sm:$0xf]
      %v2519 = vld [vmem:[%s2516 + $0x8] sm:$0xf]
      %v2520 = vld [vmem:[%s2516 + $0xc] sm:$0xf]
      %v2521 = vld [vmem:[%s2516 + $0x10] sm:$0xf]
      %v2522 = vld [vmem:[%s2516 + $0x14] sm:$0xf]
      %v2523 = vld [vmem:[%s2516 + $0x18] sm:$0xf]
      %v2524 = vld [vmem:[%s2516 + $0x1c] sm:$0xf]
      %v2525 = vld [vmem:[%s2516 + $0x20] sm:$0xf]
      %v2526 = vld [vmem:[%s2516 + $0x24] sm:$0xf]
      %v2527 = vld [vmem:[%s2516 + $0x28] sm:$0xf]
      %v2528 = vld [vmem:[%s2516 + $0x2c] sm:$0xf]
      %v2529 = vld [vmem:[%s2516 + $0x30] sm:$0xf]
      %v2530 = vld [vmem:[%s2516 + $0x34] sm:$0xf]
      %v2531 = vld [vmem:[%s2516 + $0x38] sm:$0xf]
      %v2532 = vld [vmem:[%s2516 + $0x3c] sm:$0xf]
      %v2533 = vld [vmem:[%s2516 + $0x40] sm:$0xf]
      %v2534 = vld [vmem:[%s2516 + $0x44] sm:$0xf]
      %v2535 = vld [vmem:[%s2516 + $0x48] sm:$0xf]
      %v2536 = vld [vmem:[%s2516 + $0x4c] sm:$0xf]
      %v2537 = vld [vmem:[%s2516 + $0x50] sm:$0xf]
      %v2538 = vld [vmem:[%s2516 + $0x54] sm:$0xf]
      %v2539 = vld [vmem:[%s2516 + $0x58] sm:$0xf]
      %v2540 = vld [vmem:[%s2516 + $0x5c] sm:$0xf]
      %v2541 = vld [vmem:[%s2516 + $0x60] sm:$0xf]
      %v2542 = vld [vmem:[%s2516 + $0x64] sm:$0xf]
      %v2543 = vld [vmem:[%s2516 + $0x68] sm:$0xf]
      %v2544 = vld [vmem:[%s2516 + $0x6c] sm:$0xf]
      %v2545 = vld [vmem:[%s2516 + $0x70] sm:$0xf]
      %v2546 = vld [vmem:[%s2516 + $0x74] sm:$0xf]
      %v2547 = vld [vmem:[%s2516 + $0x78] sm:$0xf]
      %v2548 = vld [vmem:[%s2516 + $0x7c] sm:$0xf]
      %v2549 = vld [vmem:[%s2516 + $0x80] sm:$0xf]
      %v2550 = vld [vmem:[%s2516 + $0x84] sm:$0xf]
      %v2551 = vld [vmem:[%s2516 + $0x88] sm:$0xf]
      %v2552 = vld [vmem:[%s2516 + $0x8c] sm:$0xf]
      %v2553 = vld [vmem:[%s2516 + $0x90] sm:$0xf]
      %v2554 = vld [vmem:[%s2516 + $0x94] sm:$0xf]
      %v2555 = vld [vmem:[%s2516 + $0x98] sm:$0xf]
      %v2556 = vld [vmem:[%s2516 + $0x9c] sm:$0xf]
      %v2557 = vld [vmem:[%s2516 + $0xa0] sm:$0xf]
      %v2558 = vld [vmem:[%s2516 + $0xa4] sm:$0xf]
      %v2559 = vld [vmem:[%s2516 + $0xa8] sm:$0xf]
      %v2560 = vld [vmem:[%s2516 + $0xac] sm:$0xf]
      %v2561 = vld [vmem:[%s2516 + $0xb0] sm:$0xf]
      %v2562 = vld [vmem:[%s2516 + $0xb4] sm:$0xf]
      %v2563 = vld [vmem:[%s2516 + $0xb8] sm:$0xf]
      %v2564 = vld [vmem:[%s2516 + $0xbc] sm:$0xf]
      %v2613 = vunpack.c.l.b16 %v2517
      %v2614 = vunpack.c.l.b16 %v2518
      %v2615 = vunpack.c.l.b16 %v2519
      %v2616 = vunpack.c.l.b16 %v2520
      %v2617 = vunpack.c.l.b16 %v2521
      %v2618 = vunpack.c.l.b16 %v2522
      %v2619 = vunpack.c.l.b16 %v2523
      %v2620 = vunpack.c.l.b16 %v2524
      %v2621 = vunpack.c.l.b16 %v2525
      %v2622 = vunpack.c.l.b16 %v2526
      %v2623 = vunpack.c.l.b16 %v2527
      %v2624 = vunpack.c.l.b16 %v2528
      %v2625 = vunpack.c.l.b16 %v2529
      %v2626 = vunpack.c.l.b16 %v2530
      %v2627 = vunpack.c.l.b16 %v2531
      %v2628 = vunpack.c.l.b16 %v2532
      %v2629 = vunpack.c.l.b16 %v2533
      %v2630 = vunpack.c.l.b16 %v2534
      %v2631 = vunpack.c.l.b16 %v2535
      %v2632 = vunpack.c.l.b16 %v2536
      %v2633 = vunpack.c.l.b16 %v2537
      %v2634 = vunpack.c.l.b16 %v2538
      %v2635 = vunpack.c.l.b16 %v2539
      %v2636 = vunpack.c.l.b16 %v2540
      %v2637 = vunpack.c.l.b16 %v2541
      %v2638 = vunpack.c.l.b16 %v2542
      %v2639 = vunpack.c.l.b16 %v2543
      %v2640 = vunpack.c.l.b16 %v2544
      %v2641 = vunpack.c.l.b16 %v2545
      %v2642 = vunpack.c.l.b16 %v2546
      %v2643 = vunpack.c.l.b16 %v2547
      %v2644 = vunpack.c.l.b16 %v2548
      %v2645 = vunpack.c.l.b16 %v2549
      %v2646 = vunpack.c.l.b16 %v2550
      %v2647 = vunpack.c.l.b16 %v2551
      %v2648 = vunpack.c.l.b16 %v2552
      %v2649 = vunpack.c.l.b16 %v2553
      %v2650 = vunpack.c.l.b16 %v2554
      %v2651 = vunpack.c.l.b16 %v2555
      %v2652 = vunpack.c.l.b16 %v2556
      %v2653 = vunpack.c.l.b16 %v2557
      %v2654 = vunpack.c.l.b16 %v2558
      %v2655 = vunpack.c.l.b16 %v2559
      %v2656 = vunpack.c.l.b16 %v2560
      %v2657 = vunpack.c.l.b16 %v2561
      %v2658 = vunpack.c.l.b16 %v2562
      %v2659 = vunpack.c.l.b16 %v2563
      %v2660 = vunpack.c.l.b16 %v2564
      %v2661 = vpack.c.b16 %v2614, %v2613
      %v2662 = vpack.c.b16 %v2616, %v2615
      %v2663 = vpack.c.b16 %v2618, %v2617
      %v2664 = vpack.c.b16 %v2620, %v2619
      %v2665 = vpack.c.b16 %v2622, %v2621
      %v2666 = vpack.c.b16 %v2624, %v2623
      %v2667 = vpack.c.b16 %v2626, %v2625
      %v2668 = vpack.c.b16 %v2628, %v2627
      %v2669 = vpack.c.b16 %v2630, %v2629
      %v2670 = vpack.c.b16 %v2632, %v2631
      %v2671 = vpack.c.b16 %v2634, %v2633
      %v2672 = vpack.c.b16 %v2636, %v2635
      %v2673 = vpack.c.b16 %v2638, %v2637
      %v2674 = vpack.c.b16 %v2640, %v2639
      %v2675 = vpack.c.b16 %v2642, %v2641
      %v2676 = vpack.c.b16 %v2644, %v2643
      %v2677 = vpack.c.b16 %v2646, %v2645
      %v2678 = vpack.c.b16 %v2648, %v2647
      %v2679 = vpack.c.b16 %v2650, %v2649
      %v2680 = vpack.c.b16 %v2652, %v2651
      %v2681 = vpack.c.b16 %v2654, %v2653
      %v2682 = vpack.c.b16 %v2656, %v2655
      %v2683 = vpack.c.b16 %v2658, %v2657
      %v2684 = vpack.c.b16 %v2660, %v2659
      %2709 = vmatprep.subr.bf16.mxu0 0
      %2710 = vmatpush1.bf16.msra.mxu0 %v2668
      %2711 = vmatprep.subr.bf16.mxu0 0
      %2712 = vmatpush1.bf16.msra.mxu0 %v2667
      %2713 = vmatprep.subr.bf16.mxu0 0
      %2714 = vmatpush1.bf16.msra.mxu0 %v2666
      %2715 = vmatprep.subr.bf16.mxu0 0
      %2716 = vmatpush1.bf16.msra.mxu0 %v2665
      %2717 = vmatprep.subr.bf16.mxu0 0
      %2718 = vmatpush1.bf16.msra.mxu0 %v2664
      %2719 = vmatprep.subr.bf16.mxu0 0
      %2720 = vmatpush1.bf16.msra.mxu0 %v2663
      %2721 = vmatprep.subr.bf16.mxu0 0
      %2722 = vmatpush1.bf16.msra.mxu0 %v2662
      %2723 = vmatprep.subr.bf16.mxu0 0
      %2724 = vmatpush1.bf16.msra.mxu0 %v2661
      %2725 = vmatprep.subr.bf16.mxu0 0
      %2726 = vmatpush2.bf16.msra.mxu0 %v2676
      %2727 = vmatprep.subr.bf16.mxu0 0
      %2728 = vmatpush2.bf16.msra.mxu0 %v2675
      %2729 = vmatprep.subr.bf16.mxu0 0
      %2730 = vmatpush2.bf16.msra.mxu0 %v2674
      %2731 = vmatprep.subr.bf16.mxu0 0
      %2732 = vmatpush2.bf16.msra.mxu0 %v2673
      %2733 = vmatprep.subr.bf16.mxu0 0
      %2734 = vmatpush2.bf16.msra.mxu0 %v2672
      %2735 = vmatprep.subr.bf16.mxu0 0
      %2736 = vmatpush2.bf16.msra.mxu0 %v2671
      %2737 = vmatprep.subr.bf16.mxu0 0
      %2738 = vmatpush2.bf16.msra.mxu0 %v2670
      %2739 = vmatprep.subr.bf16.mxu0 0
      %2740 = vmatpush2.bf16.msra.mxu0 %v2669
      %2741 = vmatprep.mubr.bf16.mxu0 %v1179
      %2742 = vmatmul.mubr.bf16.gmra.mxu0 %v1111
      %v2743 = vpop.f32.mrf.mxu0
      %v2744 = vadd.f32 0.0, %v2743
      %v2745 = vpop.f32.mrf.mxu0
      %v2746 = vpop.f32.mrf.mxu0
      %v2747 = vadd.f32 0.0, %v2746
      %v2748 = vpop.f32.mrf.mxu0
      %2749 = vmatprep.mubr.bf16.mxu0 %v1191
      %2750 = vmatmul.mubr.bf16.gmra.mxu0 %v1113
      %v2751 = vpop.f32.mrf.mxu0
      %v2752 = vadd.f32 0.0, %v2751
      %v2753 = vpop.f32.mrf.mxu0
      %v2754 = vpop.f32.mrf.mxu0
      %v2755 = vadd.f32 0.0, %v2754
      %v2756 = vpop.f32.mrf.mxu0
      %2757 = vmatprep.mubr.bf16.mxu0 %v1203
      %2758 = vmatmul.mubr.bf16.gmra.mxu0 %v1115
      %v2759 = vpop.f32.mrf.mxu0
      %v2760 = vadd.f32 0.0, %v2759
      %v2761 = vpop.f32.mrf.mxu0
      %v2762 = vpop.f32.mrf.mxu0
      %v2763 = vadd.f32 0.0, %v2762
      %v2764 = vpop.f32.mrf.mxu0
      %2765 = vmatprep.mubr.bf16.mxu0 %v1215
      %2766 = vmatmul.mubr.bf16.gmra.mxu0 %v1117
      %v2767 = vpop.f32.mrf.mxu0
      %v2768 = vadd.f32 0.0, %v2767
      %v2769 = vpop.f32.mrf.mxu0
      %v2770 = vpop.f32.mrf.mxu0
      %v2771 = vadd.f32 0.0, %v2770
      %v2772 = vpop.f32.mrf.mxu0
      %2773 = vmatprep.mubr.bf16.mxu0 %v1227
      %2774 = vmatmul.mubr.bf16.gmra.mxu0 %v1119
      %v2775 = vpop.f32.mrf.mxu0
      %v2776 = vadd.f32 0.0, %v2775
      %v2777 = vpop.f32.mrf.mxu0
      %v2778 = vpop.f32.mrf.mxu0
      %v2779 = vadd.f32 0.0, %v2778
      %v2780 = vpop.f32.mrf.mxu0
      %2781 = vmatprep.mubr.bf16.mxu0 %v1239
      %2782 = vmatmul.mubr.bf16.gmra.mxu0 %v1121
      %v2783 = vpop.f32.mrf.mxu0
      %v2784 = vadd.f32 0.0, %v2783
      %v2785 = vpop.f32.mrf.mxu0
      %v2786 = vpop.f32.mrf.mxu0
      %v2787 = vadd.f32 0.0, %v2786
      %v2788 = vpop.f32.mrf.mxu0
      %2789 = vmatprep.mubr.bf16.mxu0 %v1251
      %2790 = vmatmul.mubr.bf16.gmra.mxu0 %v1123
      %v2791 = vpop.f32.mrf.mxu0
      %v2792 = vadd.f32 0.0, %v2791
      %v2793 = vpop.f32.mrf.mxu0
      %v2794 = vpop.f32.mrf.mxu0
      %v2795 = vadd.f32 0.0, %v2794
      %v2796 = vpop.f32.mrf.mxu0
      %2797 = vmatprep.mubr.bf16.mxu0 %v1263
      %2798 = vmatmul.mubr.bf16.gmra.mxu0 %v1125
      %v2799 = vpop.f32.mrf.mxu0
      %v2800 = vadd.f32 0.0, %v2799
      %v2801 = vpop.f32.mrf.mxu0
      %v2802 = vpop.f32.mrf.mxu0
      %v2803 = vadd.f32 0.0, %v2802
      %v2804 = vpop.f32.mrf.mxu0
      %2805 = vmatprep.mubr.bf16.mxu0 %v1275
      %2806 = vmatmul.mubr.bf16.gmra.mxu0 %v1127
      %v2807 = vpop.f32.mrf.mxu0
      %v2808 = vadd.f32 0.0, %v2807
      %v2809 = vpop.f32.mrf.mxu0
      %v2810 = vpop.f32.mrf.mxu0
      %v2811 = vadd.f32 0.0, %v2810
      %v2812 = vpop.f32.mrf.mxu0
      %2813 = vmatprep.mubr.bf16.mxu0 %v1287
      %2814 = vmatmul.mubr.bf16.gmra.mxu0 %v1129
      %v2815 = vpop.f32.mrf.mxu0
      %v2816 = vadd.f32 0.0, %v2815
      %v2817 = vpop.f32.mrf.mxu0
      %v2818 = vpop.f32.mrf.mxu0
      %v2819 = vadd.f32 0.0, %v2818
      %v2820 = vpop.f32.mrf.mxu0
      %2821 = vmatprep.mubr.bf16.mxu0 %v1299
      %2822 = vmatmul.mubr.bf16.gmra.mxu0 %v1131
      %v2823 = vpop.f32.mrf.mxu0
      %v2824 = vadd.f32 0.0, %v2823
      %v2825 = vpop.f32.mrf.mxu0
      %v2826 = vpop.f32.mrf.mxu0
      %v2827 = vadd.f32 0.0, %v2826
      %v2828 = vpop.f32.mrf.mxu0
      %2829 = vmatprep.mubr.bf16.mxu0 %v1311
      %2830 = vmatmul.mubr.bf16.gmra.mxu0 %v1133
      %v2831 = vpop.f32.mrf.mxu0
      %v2832 = vadd.f32 0.0, %v2831
      %v2833 = vpop.f32.mrf.mxu0
      %v2834 = vpop.f32.mrf.mxu0
      %v2835 = vadd.f32 0.0, %v2834
      %v2836 = vpop.f32.mrf.mxu0
      %2837 = vmatprep.mubr.bf16.mxu0 %v1323
      %2838 = vmatmul.mubr.bf16.gmra.mxu0 %v1135
      %v2839 = vpop.f32.mrf.mxu0
      %v2840 = vadd.f32 0.0, %v2839
      %v2841 = vpop.f32.mrf.mxu0
      %v2842 = vpop.f32.mrf.mxu0
      %v2843 = vadd.f32 0.0, %v2842
      %v2844 = vpop.f32.mrf.mxu0
      %2845 = vmatprep.mubr.bf16.mxu0 %v1335
      %2846 = vmatmul.mubr.bf16.gmra.mxu0 %v1137
      %v2847 = vpop.f32.mrf.mxu0
      %v2848 = vadd.f32 0.0, %v2847
      %v2849 = vpop.f32.mrf.mxu0
      %v2850 = vpop.f32.mrf.mxu0
      %v2851 = vadd.f32 0.0, %v2850
      %v2852 = vpop.f32.mrf.mxu0
      %2853 = vmatprep.mubr.bf16.mxu0 %v1508
      %2854 = vmatmul.mubr.bf16.gmra.mxu0 %v1139
      %v2855 = vpop.f32.mrf.mxu0
      %v2856 = vadd.f32 0.0, %v2855
      %v2857 = vpop.f32.mrf.mxu0
      %v2858 = vpop.f32.mrf.mxu0
      %v2859 = vadd.f32 0.0, %v2858
      %v2860 = vpop.f32.mrf.mxu0
      %2861 = vmatprep.mubr.bf16.mxu0 %v2508
      %2862 = vmatmul.mubr.bf16.gmra.mxu0 %v1141
      %v2863 = vpop.f32.mrf.mxu0
      %v2864 = vadd.f32 0.0, %v2863
      %v2865 = vpop.f32.mrf.mxu0
      %v2866 = vpop.f32.mrf.mxu0
      %v2867 = vadd.f32 0.0, %v2866
      %v2868 = vpop.f32.mrf.mxu0
      %2869 = vdwg.mxu0
      %2870 = vmatprep.subr.bf16.mxu0 0
      %2871 = vmatpush1.bf16.msra.mxu0 %v2684
      %2872 = vmatprep.subr.bf16.mxu0 0
      %2873 = vmatpush1.bf16.msra.mxu0 %v2683
      %2874 = vmatprep.subr.bf16.mxu0 0
      %2875 = vmatpush1.bf16.msra.mxu0 %v2682
      %2876 = vmatprep.subr.bf16.mxu0 0
      %2877 = vmatpush1.bf16.msra.mxu0 %v2681
      %2878 = vmatprep.subr.bf16.mxu0 0
      %2879 = vmatpush1.bf16.msra.mxu0 %v2680
      %2880 = vmatprep.subr.bf16.mxu0 0
      %2881 = vmatpush1.bf16.msra.mxu0 %v2679
      %2882 = vmatprep.subr.bf16.mxu0 0
      %2883 = vmatpush1.bf16.msra.mxu0 %v2678
      %2884 = vmatprep.subr.bf16.mxu0 0
      %2885 = vmatpush1.bf16.msra.mxu0 %v2677
      %2886 = vmatprep.subr.bf16.mxu0 0
      %2887 = vmatpush2.bf16.msra.mxu0 0
      %2888 = vmatprep.subr.bf16.mxu0 0
      %2889 = vmatpush2.bf16.msra.mxu0 0
      %2890 = vmatprep.subr.bf16.mxu0 0
      %2891 = vmatpush2.bf16.msra.mxu0 0
      %2892 = vmatprep.subr.bf16.mxu0 0
      %2893 = vmatpush2.bf16.msra.mxu0 0
      %2894 = vmatprep.subr.bf16.mxu0 0
      %2895 = vmatpush2.bf16.msra.mxu0 0
      %2896 = vmatprep.subr.bf16.mxu0 0
      %2897 = vmatpush2.bf16.msra.mxu0 0
      %2898 = vmatprep.subr.bf16.mxu0 0
      %2899 = vmatpush2.bf16.msra.mxu0 0
      %2900 = vmatprep.subr.bf16.mxu0 0
      %2901 = vmatpush2.bf16.msra.mxu0 0
      %2902 = vmatprep.mubr.bf16.mxu0 0
      %2903 = vmatmul.mubr.bf16.gmra.mxu0 %v1393
      %v2904 = vpop.f32.mrf.mxu0
      %v2905 = vadd.f32 %v2744, %v2904
      %v2906 = vpop.f32.mrf.mxu0
      %v2907 = vpop.f32.mrf.mxu0
      %v2908 = vadd.f32 %v2747, %v2907
      %v2909 = vpop.f32.mrf.mxu0
      %2910 = vmatprep.mubr.bf16.mxu0 0
      %2911 = vmatmul.mubr.bf16.gmra.mxu0 %v1396
      %v2912 = vpop.f32.mrf.mxu0
      %v2913 = vadd.f32 %v2752, %v2912
      %v2914 = vpop.f32.mrf.mxu0
      %v2915 = vpop.f32.mrf.mxu0
      %v2916 = vadd.f32 %v2755, %v2915
      %v2917 = vpop.f32.mrf.mxu0
      %2918 = vmatprep.mubr.bf16.mxu0 0
      %2919 = vmatmul.mubr.bf16.gmra.mxu0 %v1399
      %v2920 = vpop.f32.mrf.mxu0
      %v2921 = vadd.f32 %v2760, %v2920
      %v2922 = vpop.f32.mrf.mxu0
      %v2923 = vpop.f32.mrf.mxu0
      %v2924 = vadd.f32 %v2763, %v2923
      %v2925 = vpop.f32.mrf.mxu0
      %2926 = vmatprep.mubr.bf16.mxu0 0
      %2927 = vmatmul.mubr.bf16.gmra.mxu0 %v1402
      %v2928 = vpop.f32.mrf.mxu0
      %v2929 = vadd.f32 %v2768, %v2928
      %v2930 = vpop.f32.mrf.mxu0
      %v2931 = vpop.f32.mrf.mxu0
      %v2932 = vadd.f32 %v2771, %v2931
      %v2933 = vpop.f32.mrf.mxu0
      %2934 = vmatprep.mubr.bf16.mxu0 0
      %2935 = vmatmul.mubr.bf16.gmra.mxu0 %v1405
      %v2936 = vpop.f32.mrf.mxu0
      %v2937 = vadd.f32 %v2776, %v2936
      %v2938 = vpop.f32.mrf.mxu0
      %v2939 = vpop.f32.mrf.mxu0
      %v2940 = vadd.f32 %v2779, %v2939
      %v2941 = vpop.f32.mrf.mxu0
      %2942 = vmatprep.mubr.bf16.mxu0 0
      %2943 = vmatmul.mubr.bf16.gmra.mxu0 %v1408
      %v2944 = vpop.f32.mrf.mxu0
      %v2945 = vadd.f32 %v2784, %v2944
      %v2946 = vpop.f32.mrf.mxu0
      %v2947 = vpop.f32.mrf.mxu0
      %v2948 = vadd.f32 %v2787, %v2947
      %v2949 = vpop.f32.mrf.mxu0
      %2950 = vmatprep.mubr.bf16.mxu0 0
      %2951 = vmatmul.mubr.bf16.gmra.mxu0 %v1411
      %v2952 = vpop.f32.mrf.mxu0
      %v2953 = vadd.f32 %v2792, %v2952
      %v2954 = vpop.f32.mrf.mxu0
      %v2955 = vpop.f32.mrf.mxu0
      %v2956 = vadd.f32 %v2795, %v2955
      %v2957 = vpop.f32.mrf.mxu0
      %2958 = vmatprep.mubr.bf16.mxu0 0
      %2959 = vmatmul.mubr.bf16.gmra.mxu0 %v1414
      %v2960 = vpop.f32.mrf.mxu0
      %v2961 = vadd.f32 %v2800, %v2960
      %v2962 = vpop.f32.mrf.mxu0
      %v2963 = vpop.f32.mrf.mxu0
      %v2964 = vadd.f32 %v2803, %v2963
      %v2965 = vpop.f32.mrf.mxu0
      %2966 = vmatprep.mubr.bf16.mxu0 0
      %2967 = vmatmul.mubr.bf16.gmra.mxu0 %v1417
      %v2968 = vpop.f32.mrf.mxu0
      %v2969 = vadd.f32 %v2808, %v2968
      %v2970 = vpop.f32.mrf.mxu0
      %v2971 = vpop.f32.mrf.mxu0
      %v2972 = vadd.f32 %v2811, %v2971
      %v2973 = vpop.f32.mrf.mxu0
      %2974 = vmatprep.mubr.bf16.mxu0 0
      %2975 = vmatmul.mubr.bf16.gmra.mxu0 %v1420
      %v2976 = vpop.f32.mrf.mxu0
      %v2977 = vadd.f32 %v2816, %v2976
      %v2978 = vpop.f32.mrf.mxu0
      %v2979 = vpop.f32.mrf.mxu0
      %v2980 = vadd.f32 %v2819, %v2979
      %v2981 = vpop.f32.mrf.mxu0
      %2982 = vmatprep.mubr.bf16.mxu0 0
      %2983 = vmatmul.mubr.bf16.gmra.mxu0 %v1423
      %v2984 = vpop.f32.mrf.mxu0
      %v2985 = vadd.f32 %v2824, %v2984
      %v2986 = vpop.f32.mrf.mxu0
      %v2987 = vpop.f32.mrf.mxu0
      %v2988 = vadd.f32 %v2827, %v2987
      %v2989 = vpop.f32.mrf.mxu0
      %2990 = vmatprep.mubr.bf16.mxu0 0
      %2991 = vmatmul.mubr.bf16.gmra.mxu0 %v1426
      %v2992 = vpop.f32.mrf.mxu0
      %v2993 = vadd.f32 %v2832, %v2992
      %v2994 = vpop.f32.mrf.mxu0
      %v2995 = vpop.f32.mrf.mxu0
      %v2996 = vadd.f32 %v2835, %v2995
      %v2997 = vpop.f32.mrf.mxu0
      %2998 = vmatprep.mubr.bf16.mxu0 0
      %2999 = vmatmul.mubr.bf16.gmra.mxu0 %v1429
      %v3000 = vpop.f32.mrf.mxu0
      %v3001 = vadd.f32 %v2840, %v3000
      %v3002 = vpop.f32.mrf.mxu0
      %v3003 = vpop.f32.mrf.mxu0
      %v3004 = vadd.f32 %v2843, %v3003
      %v3005 = vpop.f32.mrf.mxu0
      %3006 = vmatprep.mubr.bf16.mxu0 0
      %3007 = vmatmul.mubr.bf16.gmra.mxu0 %v1432
      %v3008 = vpop.f32.mrf.mxu0
      %v3009 = vadd.f32 %v2848, %v3008
      %v3010 = vpop.f32.mrf.mxu0
      %v3011 = vpop.f32.mrf.mxu0
      %v3012 = vadd.f32 %v2851, %v3011
      %v3013 = vpop.f32.mrf.mxu0
      %3014 = vmatprep.mubr.bf16.mxu0 0
      %3015 = vmatmul.mubr.bf16.gmra.mxu0 %v1514
      %v3016 = vpop.f32.mrf.mxu0
      %v3017 = vadd.f32 %v2856, %v3016
      %v3018 = vpop.f32.mrf.mxu0
      %v3019 = vpop.f32.mrf.mxu0
      %v3020 = vadd.f32 %v2859, %v3019
      %v3021 = vpop.f32.mrf.mxu0
      %3022 = vmatprep.mubr.bf16.mxu0 0
      %3023 = vmatmul.mubr.bf16.gmra.mxu0 %v2514
      %v3024 = vpop.f32.mrf.mxu0
      %v3025 = vadd.f32 %v2864, %v3024
      %v3026 = vpop.f32.mrf.mxu0
      %v3027 = vpop.f32.mrf.mxu0
      %v3028 = vadd.f32 %v2867, %v3027
      %v3029 = vpop.f32.mrf.mxu0
      %3030 = vdwg.mxu0
      %v3031 = vadd.f32 %v2371, %v2905
      %v3032 = vadd.f32 %v2374, %v2908
      %v3033 = vadd.f32 %v2379, %v2913
      %v3034 = vadd.f32 %v2382, %v2916
      %v3035 = vadd.f32 %v2387, %v2921
      %v3036 = vadd.f32 %v2390, %v2924
      %v3037 = vadd.f32 %v2395, %v2929
      %v3038 = vadd.f32 %v2398, %v2932
      %v3039 = vadd.f32 %v2403, %v2937
      %v3040 = vadd.f32 %v2406, %v2940
      %v3041 = vadd.f32 %v2411, %v2945
      %v3042 = vadd.f32 %v2414, %v2948
      %v3043 = vadd.f32 %v2419, %v2953
      %v3044 = vadd.f32 %v2422, %v2956
      %v3045 = vadd.f32 %v2427, %v2961
      %v3046 = vadd.f32 %v2430, %v2964
      %v3047 = vadd.f32 %v2435, %v2969
      %v3048 = vadd.f32 %v2438, %v2972
      %v3049 = vadd.f32 %v2443, %v2977
      %v3050 = vadd.f32 %v2446, %v2980
      %v3051 = vadd.f32 %v2451, %v2985
      %v3052 = vadd.f32 %v2454, %v2988
      %v3053 = vadd.f32 %v2459, %v2993
      %v3054 = vadd.f32 %v2462, %v2996
      %v3055 = vadd.f32 %v2467, %v3001
      %v3056 = vadd.f32 %v2470, %v3004
      %v3057 = vadd.f32 %v2475, %v3009
      %v3058 = vadd.f32 %v2478, %v3012
      %v3059 = vadd.f32 %v2483, %v3017
      %v3060 = vadd.f32 %v2486, %v3020
      %v3061 = vadd.f32 %v2491, %v3025
      %v3062 = vadd.f32 %v2494, %v3028
      %3063 = vst [vmem:[%s240] sm:$0xff] %v3031
      %3064 = vst [vmem:[%s240 + $0x8] sm:$0xff] %v3032
      %3065 = vst [vmem:[%s240 + $0x10] sm:$0xff] %v3033
      %3066 = vst [vmem:[%s240 + $0x18] sm:$0xff] %v3034
      %3067 = vst [vmem:[%s240 + $0x20] sm:$0xff] %v3035
      %3068 = vst [vmem:[%s240 + $0x28] sm:$0xff] %v3036
      %3069 = vst [vmem:[%s240 + $0x30] sm:$0xff] %v3037
      %3070 = vst [vmem:[%s240 + $0x38] sm:$0xff] %v3038
      %3071 = vst [vmem:[%s240 + $0x40] sm:$0xff] %v3039
      %3072 = vst [vmem:[%s240 + $0x48] sm:$0xff] %v3040
      %3073 = vst [vmem:[%s240 + $0x50] sm:$0xff] %v3041
      %3074 = vst [vmem:[%s240 + $0x58] sm:$0xff] %v3042
      %3075 = vst [vmem:[%s240 + $0x60] sm:$0xff] %v3043
      %3076 = vst [vmem:[%s240 + $0x68] sm:$0xff] %v3044
      %3077 = vst [vmem:[%s240 + $0x70] sm:$0xff] %v3045
      %3078 = vst [vmem:[%s240 + $0x78] sm:$0xff] %v3046
      %3079 = vst [vmem:[%s240 + $0x80] sm:$0xff] %v3047
      %3080 = vst [vmem:[%s240 + $0x88] sm:$0xff] %v3048
      %3081 = vst [vmem:[%s240 + $0x90] sm:$0xff] %v3049
      %3082 = vst [vmem:[%s240 + $0x98] sm:$0xff] %v3050
      %3083 = vst [vmem:[%s240 + $0xa0] sm:$0xff] %v3051
      %3084 = vst [vmem:[%s240 + $0xa8] sm:$0xff] %v3052
      %3085 = vst [vmem:[%s240 + $0xb0] sm:$0xff] %v3053
      %3086 = vst [vmem:[%s240 + $0xb8] sm:$0xff] %v3054
      %3087 = vst [vmem:[%s240 + $0xc0] sm:$0xff] %v3055
      %3088 = vst [vmem:[%s240 + $0xc8] sm:$0xff] %v3056
      %3089 = vst [vmem:[%s240 + $0xd0] sm:$0xff] %v3057
      %3090 = vst [vmem:[%s240 + $0xd8] sm:$0xff] %v3058
      %3091 = vst [vmem:[%s240 + $0xe0] sm:$0xff] %v3059
      %3092 = vst [vmem:[%s240 + $0xe8] sm:$0xff] %v3060
      %3093 = vst [vmem:[%s240 + $0xf0] sm:$0xff] %v3061
      %3094 = vst [vmem:[%s240 + $0xf8] sm:$0xff] %v3062
      // Predicated region
      $region109: #{residual_forward.4} parent=31 // pred_check
        %p3095 = pneg %p261
      $region110: #{residual_forward.4} parent=31 // pred_check_branch
        %3097 = sbr.rel (%p3095) target = $region112
      $region111: #{residual_forward.4} parent=31 // pred_region
        %3098 = vst [vmem:[%s244] sm:$0x1] 0.0
        %3099 = vst [vmem:[%s247] sm:$0x1] 0.0
      $region112: #{residual_forward.4} parent=31 // pred_fallthru
        _
      %v3100 = vld [vmem:[%s244] sm:$0x1]
      %v3101 = vadd.f32 %v3031, %v3032
      %v3102 = vadd.f32 %v3101, %v3033
      %v3103 = vadd.f32 %v3102, %v3034
      %v3104 = vadd.f32 %v3103, %v3035
      %v3105 = vadd.f32 %v3104, %v3036
      %v3106 = vadd.f32 %v3105, %v3037
      %v3107 = vadd.f32 %v3106, %v3038
      %v3108 = vadd.f32 %v3107, %v3039
      %v3109 = vadd.f32 %v3108, %v3040
      %v3110 = vadd.f32 %v3109, %v3041
      %v3111 = vadd.f32 %v3110, %v3042
      %v3112 = vadd.f32 %v3111, %v3043
      %v3113 = vadd.f32 %v3112, %v3044
      %v3114 = vadd.f32 %v3113, %v3045
      %v3115 = vadd.f32 %v3114, %v3046
      %v3116 = vadd.f32 %v3115, %v3047
      %v3117 = vadd.f32 %v3116, %v3048
      %v3118 = vadd.f32 %v3117, %v3049
      %v3119 = vadd.f32 %v3118, %v3050
      %v3120 = vadd.f32 %v3119, %v3051
      %v3121 = vadd.f32 %v3120, %v3052
      %v3122 = vadd.f32 %v3121, %v3053
      %v3123 = vadd.f32 %v3122, %v3054
      %v3124 = vadd.f32 %v3123, %v3055
      %v3125 = vadd.f32 %v3124, %v3056
      %v3126 = vadd.f32 %v3125, %v3057
      %v3127 = vadd.f32 %v3126, %v3058
      %v3128 = vadd.f32 %v3127, %v3059
      %v3129 = vadd.f32 %v3128, %v3060
      %v3130 = vadd.f32 %v3129, %v3061
      %v3131 = vadd.f32 %v3130, %v3062
      %v3132 = vrot.slane %v3131, 4
      %v3133 = vadd.f32 %v3131, %v3132
      %v3134 = vrot.slane %v3133, 2
      %v3135 = vadd.f32 %v3133, %v3134
      %v3136 = vrot.slane %v3135, 1
      %v3137 = vadd.f32 %v3135, %v3136
      %v3138 = vadd.f32 %v3100, %v3137
      %3139 = vst [vmem:[%s244] sm:$0x1] %v3138
      %v3140 = vld [vmem:[%s247] sm:$0x1]
      %v3141 = vmul.f32 %v3031, %v3031
      %v3142 = vmul.f32 %v3032, %v3032
      %v3143 = vmul.f32 %v3033, %v3033
      %v3144 = vmul.f32 %v3034, %v3034
      %v3145 = vmul.f32 %v3035, %v3035
      %v3146 = vmul.f32 %v3036, %v3036
      %v3147 = vmul.f32 %v3037, %v3037
      %v3148 = vmul.f32 %v3038, %v3038
      %v3149 = vmul.f32 %v3039, %v3039
      %v3150 = vmul.f32 %v3040, %v3040
      %v3151 = vmul.f32 %v3041, %v3041
      %v3152 = vmul.f32 %v3042, %v3042
      %v3153 = vmul.f32 %v3043, %v3043
      %v3154 = vmul.f32 %v3044, %v3044
      %v3155 = vmul.f32 %v3045, %v3045
      %v3156 = vmul.f32 %v3046, %v3046
      %v3157 = vmul.f32 %v3047, %v3047
      %v3158 = vmul.f32 %v3048, %v3048
      %v3159 = vmul.f32 %v3049, %v3049
      %v3160 = vmul.f32 %v3050, %v3050
      %v3161 = vmul.f32 %v3051, %v3051
      %v3162 = vmul.f32 %v3052, %v3052
      %v3163 = vmul.f32 %v3053, %v3053
      %v3164 = vmul.f32 %v3054, %v3054
      %v3165 = vmul.f32 %v3055, %v3055
      %v3166 = vmul.f32 %v3056, %v3056
      %v3167 = vmul.f32 %v3057, %v3057
      %v3168 = vmul.f32 %v3058, %v3058
      %v3169 = vmul.f32 %v3059, %v3059
      %v3170 = vmul.f32 %v3060, %v3060
      %v3171 = vmul.f32 %v3061, %v3061
      %v3172 = vmul.f32 %v3062, %v3062
      %v3173 = vadd.f32 %v3141, %v3142
      %v3174 = vadd.f32 %v3173, %v3143
      %v3175 = vadd.f32 %v3174, %v3144
      %v3176 = vadd.f32 %v3175, %v3145
      %v3177 = vadd.f32 %v3176, %v3146
      %v3178 = vadd.f32 %v3177, %v3147
      %v3179 = vadd.f32 %v3178, %v3148
      %v3180 = vadd.f32 %v3179, %v3149
      %v3181 = vadd.f32 %v3180, %v3150
      %v3182 = vadd.f32 %v3181, %v3151
      %v3183 = vadd.f32 %v3182, %v3152
      %v3184 = vadd.f32 %v3183, %v3153
      %v3185 = vadd.f32 %v3184, %v3154
      %v3186 = vadd.f32 %v3185, %v3155
      %v3187 = vadd.f32 %v3186, %v3156
      %v3188 = vadd.f32 %v3187, %v3157
      %v3189 = vadd.f32 %v3188, %v3158
      %v3190 = vadd.f32 %v3189, %v3159
      %v3191 = vadd.f32 %v3190, %v3160
      %v3192 = vadd.f32 %v3191, %v3161
      %v3193 = vadd.f32 %v3192, %v3162
      %v3194 = vadd.f32 %v3193, %v3163
      %v3195 = vadd.f32 %v3194, %v3164
      %v3196 = vadd.f32 %v3195, %v3165
      %v3197 = vadd.f32 %v3196, %v3166
      %v3198 = vadd.f32 %v3197, %v3167
      %v3199 = vadd.f32 %v3198, %v3168
      %v3200 = vadd.f32 %v3199, %v3169
      %v3201 = vadd.f32 %v3200, %v3170
      %v3202 = vadd.f32 %v3201, %v3171
      %v3203 = vadd.f32 %v3202, %v3172
      %v3204 = vrot.slane %v3203, 4
      %v3205 = vadd.f32 %v3203, %v3204
      %v3206 = vrot.slane %v3205, 2
      %v3207 = vadd.f32 %v3205, %v3206
      %v3208 = vrot.slane %v3207, 1
      %v3209 = vadd.f32 %v3207, %v3208
      %v3210 = vadd.f32 %v3140, %v3209
      %3211 = vst [vmem:[%s247] sm:$0x1] %v3210
      %s3212 = smul.u32 16, %s23
      %p3213 = scmp.lt.s32.totalorder %s22, 1
      %s3214 = scalar_select %p3213, %s22, 1
      %p3215 = scmp.lt.s32.totalorder %s3212, 15
      %s3216 = scalar_select %p3215, %s3212, 15
      %s3217 = smul.addr %s3216, 2
      %s3218 = smul.addr %s3214, 32
      %s3219 = sadd.s32 %s3217, %s3218
      %s3220 = smul.addr %s3219, 8
      %s3221 = scalar_lea.vmem %s4, %s3220
      %p3222 = scmp.lt.s32.totalorder %s22, 1
      %s3223 = scalar_select %p3222, %s22, 1
      %s3224 = scalar_lea.vmem %s5, %s3223
      %p3225 = scmp.lt.s32.totalorder %s22, 1
      %s3226 = scalar_select %p3225, %s22, 1
      %s3227 = scalar_lea.vmem %s6, %s3226
      // Predicated region
      $region113: #{residual_forward.4} parent=31 // pred_check
        %p3228 = pneg %p113
      $region114: #{residual_forward.4} parent=31 // pred_check_branch
        %3230 = sbr.rel (%p3228) target = $region116
      $region115: #{residual_forward.4} parent=31 // pred_region
        %s3231 = smul.u32 16, %s23
      $region116: #{residual_forward.4} parent=31 // pred_fallthru
        _
      // Predicated region
      $region117: #{residual_forward.4} parent=31 // pred_check
        %p3232 = pneg %p139
      $region118: #{residual_forward.4} parent=31 // pred_check_branch
        %3234 = sbr.rel (%p3232) target = $region120
      $region119: #{residual_forward.4} parent=31 // pred_region
        _
      $region120: #{residual_forward.4} parent=31 // pred_fallthru
        _
      // Predicated region
      $region121: #{residual_forward.4} parent=31 // pred_check
        %p3235 = pneg %p165
      $region122: #{residual_forward.4} parent=31 // pred_check_branch
        %3237 = sbr.rel (%p3235) target = $region124
      $region123: #{residual_forward.4} parent=31 // pred_region
        _
      $region124: #{residual_forward.4} parent=31 // pred_fallthru
        _
    $region32: #{residual_forward.4} parent=5 // pred_fallthru
      _
    %p3238 = scmp.le.s32.totalorder 2, %s13
    // Predicated region
    $region125: #{residual_forward.4} parent=5 // pred_check
      %p3239 = pneg %p3238
    $region126: #{residual_forward.4} parent=5 // pred_check_branch
      %3241 = sbr.rel (%p3239) target = $region128
    $region127: #{residual_forward.4} parent=5 // pred_region
      %s3242 = ssub.s32 %s13, 2
      // Predicated region
      $region129: #{residual_forward.4} parent=127 // pred_check
        %p3243 = pneg %p119
      $region130: #{residual_forward.4} parent=127 // pred_check_branch
        %3245 = sbr.rel (%p3243) target = $region132
      $region131: #{residual_forward.4} parent=127 // pred_region
        %s3246 = smul.u32 16, %s25
        %p3247 = scmp.lt.s32.totalorder %s24, 1
        %s3248 = scalar_select %p3247, %s24, 1
        %p3249 = scmp.lt.s32.totalorder %s3246, 15
        %s3250 = scalar_select %p3249, %s3246, 15
        %s3251 = smul.addr %s3250, 2
        %s3252 = smul.addr %s3248, 32
        %s3253 = sadd.s32 %s3251, %s3252
        %s3254 = smul.addr %s3253, 8
        %s3255 = scalar_lea.vmem %s4, %s3254
      $region132: #{residual_forward.4} parent=127 // pred_fallthru
        _
      // Predicated region
      $region133: #{residual_forward.4} parent=127 // pred_check
        %p3256 = pneg %p145
      $region134: #{residual_forward.4} parent=127 // pred_check_branch
        %3258 = sbr.rel (%p3256) target = $region136
      $region135: #{residual_forward.4} parent=127 // pred_region
        %p3259 = scmp.lt.s32.totalorder %s24, 1
        %s3260 = scalar_select %p3259, %s24, 1
        %s3261 = scalar_lea.vmem %s5, %s3260
      $region136: #{residual_forward.4} parent=127 // pred_fallthru
        _
      // Predicated region
      $region137: #{residual_forward.4} parent=127 // pred_check
        %p3262 = pneg %p171
      $region138: #{residual_forward.4} parent=127 // pred_check_branch
        %3264 = sbr.rel (%p3262) target = $region140
      $region139: #{residual_forward.4} parent=127 // pred_region
        %p3265 = scmp.lt.s32.totalorder %s24, 1
        %s3266 = scalar_select %p3265, %s24, 1
        %s3267 = scalar_lea.vmem %s6, %s3266
      $region140: #{residual_forward.4} parent=127 // pred_fallthru
        _
    $region128: #{residual_forward.4} parent=5 // pred_fallthru
      _
  $region6: #{residual_forward.4} parent=0 // loop_footer
    %s17 = sadd.s32 1, %s13
  $region7: #{residual_forward.4} parent=0 // loop_footer_branch
    %12 = sbr.rel target = $region3
  $region8: #{residual_forward.4} parent=0 // loop_exit
    _
  %3268 = vsyncmov [#allocation3]
  %s3269 = vpop.sfrf %3268
  %p3270 = scmp.eq.s32.totalorder %s3269, 0
  %p3271 = pneg %p3270
  %3273 = shalt.err (%p3271)
  %s3274 = scalar_lea.sflag [#allocation3], 1
  %3275 = vsyncmov %s3274
  %s3276 = vpop.sfrf %3275
  %p3277 = scmp.eq.s32.totalorder %s3276, 0
  %p3278 = pneg %p3277
  %3280 = shalt.err (%p3278)

// kernel: residual_forward.3
$region0: #{residual_forward.3}
  #allocation0 [shape = 'u32[]', space=smem, size = 0x4, offset = 0x4, fixed_abs, tag = 'smem constant byte address 0x4 - core index']
  #allocation1 [shape = 'u32[144,128]{1,0:T(1,128)}', space=vmem, size = 0x12000, scoped, tag = 'internal scratch']
  #allocation2 [shape = 'bf16[2,18,24,128]{3,2,1,0:T(8,128)(2,1)}', space=vmem, size = 0x36000, scoped, tag = 'scratch operand']
  #allocation3 [shape = 's32[2]{0}', space=sflag, size = 0x8, scoped, tag = 'scratch operand']
  #allocation4 [shape = 's32[]', space=sflag, size = 0x4, offset = 0, fixed_abs, tag = 'sflag constant byte address 0x0 - dummy sync flag']
  #allocation5 [shape = 's32[]', space=sflag, size = 0x4, offset = 0, fixed_abs, tag = 'sflag constant byte address 0x0 - dummy sync flag']
  %s0 = inlined_call_operand.vmem [shape: bf16[2,18,24,128], index: 0, kind: input, shape index: {}]
  %s1 = inlined_call_operand.vmem [shape: bf16[3,384,128], index: 1, kind: input, shape index: {}]
  %s2 = inlined_call_operand.vmem [shape: bf16[2,16,24,128], index: 2, kind: output, shape index: {0}]
  %s3 = inlined_call_operand.vmem [shape: f32[2,1,1,128], index: 3, kind: output, shape index: {1}]
  %s4 = inlined_call_operand.vmem [shape: f32[2,1,1,128], index: 4, kind: output, shape index: {2}]
  %5 = xla_tuple %s2, %s3, %s4
  %s6 = sld [smem:[#allocation0]]
  $region133: #{residual_forward.3} parent=0
    _
  %s8 = ssub.s32 1, %s6
  %s9 = scalar_select 0, %s8, %s6
  loop: start=0, step=1, limit=4
  $region2: #{residual_forward.3} parent=0 // loop_pre_header
    _
  $region3: #{residual_forward.3} parent=0 // loop_header
    %s11 = sphi 0, %s15
    %p12 = scmp.ge.s32.totalorder %s11, 4
    %s18 = sphi 0, %s30
    %s19 = sphi 0, %s26
    %s20 = sphi 0, %s18
    %s21 = sphi 0, %s19
    %s22 = sphi 0, %s20
    %s23 = sphi 0, %s21
    %s31 = sphi 0, %s31
    %s33 = sphi 0, %s31
    %s34 = sphi 0, %s33
    %s48 = sphi 0, %s34
    %s56 = sphi 0, %s58
    %s59 = sphi 0, %s56
    %s60 = sphi 0, %s59
    %s76 = sphi 0, %s60
    %s82 = sphi 0, %s84
    %s85 = sphi 0, %s82
    %s86 = sphi 0, %s85
    %s102 = sphi 0, %s86
    %s108 = sphi 0, %s110
    %s111 = sphi 0, %s108
    %s112 = sphi 0, %s111
    %s128 = sphi 0, %s112
  $region4: #{residual_forward.3} parent=0 // loop_header_branch
    %14 = sbr.rel (%p12) target = $region8
  $region5: #{residual_forward.3} parent=0 // loop_body
    %s16 = ssub.s32 %s11, 1
    %s17 = ssub.s32 %s11, 2
    %s24 = sadd.s32 1, %s19
    %p25 = scmp.ge.s32.totalorder %s24, 1
    %s26 = scalar_select %p25, 0, %s24
    %s27 = sadd.s32 1, %s18
    %s28 = scalar_select %p25, %s27, %s18
    %p29 = scmp.ge.s32.totalorder %s28, 2
    %s30 = scalar_select %p29, 0, %s28
    %s32 = sadd.s32 %s31, 1
    %p35 = scmp.eq.s32.totalorder %s11, 1
    %p36 = scmp.ne.s32.totalorder %s31, %s33
    %p37 = scmp.eq.s32.totalorder %s11, 0
    %p38 = por %p36, %p37
    %p39 = scmp.ne.s32.totalorder %s31, %s33
    %p40 = scmp.eq.s32.totalorder %s16, 1
    %p41 = por %p39, %p40
    %p42 = scmp.ne.s32.totalorder %s33, %s34
    %p43 = scmp.eq.s32.totalorder %s16, 0
    %p44 = por %p42, %p43
    %p45 = scmp.ne.s32.totalorder %s33, %s34
    %p46 = scmp.eq.s32.totalorder %s17, 1
    %p47 = por %p45, %p46
    %p49 = scmp.ne.s32.totalorder %s34, %s48
    %p50 = scmp.eq.s32.totalorder %s17, 0
    %p51 = por %p49, %p50
    %s52 = ssub.s32 %s18, %s30
    %s53 = ssub.s32 %s19, %s26
    %s54 = sor.u32 %s52, %s53
    %p55 = scmp.eq.s32.totalorder %s54, 0
    %s57 = sadd.s32 %s56, 1
    %s58 = scalar_select %p55, %s56, %s57
    %p61 = pneg %p55
    %p62 = scmp.eq.s32.totalorder %s11, 1
    %p63 = por %p61, %p62
    %p64 = scmp.ne.s32.totalorder %s56, %s59
    %p65 = scmp.eq.s32.totalorder %s11, 0
    %p66 = por %p64, %p65
    %p67 = scmp.ne.s32.totalorder %s56, %s59
    %p68 = scmp.eq.s32.totalorder %s16, 1
    %p69 = por %p67, %p68
    %p70 = scmp.ne.s32.totalorder %s59, %s60
    %p71 = scmp.eq.s32.totalorder %s16, 0
    %p72 = por %p70, %p71
    %p73 = scmp.ne.s32.totalorder %s59, %s60
    %p74 = scmp.eq.s32.totalorder %s17, 1
    %p75 = por %p73, %p74
    %p77 = scmp.ne.s32.totalorder %s60, %s76
    %p78 = scmp.eq.s32.totalorder %s17, 0
    %p79 = por %p77, %p78
    %s80 = ssub.s32 %s18, %s30
    %p81 = scmp.eq.s32.totalorder %s80, 0
    %s83 = sadd.s32 %s82, 1
    %s84 = scalar_select %p81, %s82, %s83
    %p87 = pneg %p81
    %p88 = scmp.eq.s32.totalorder %s11, 1
    %p89 = por %p87, %p88
    %p90 = scmp.ne.s32.totalorder %s82, %s85
    %p91 = scmp.eq.s32.totalorder %s11, 0
    %p92 = por %p90, %p91
    %p93 = scmp.ne.s32.totalorder %s82, %s85
    %p94 = scmp.eq.s32.totalorder %s16, 1
    %p95 = por %p93, %p94
    %p96 = scmp.ne.s32.totalorder %s85, %s86
    %p97 = scmp.eq.s32.totalorder %s16, 0
    %p98 = por %p96, %p97
    %p99 = scmp.ne.s32.totalorder %s85, %s86
    %p100 = scmp.eq.s32.totalorder %s17, 1
    %p101 = por %p99, %p100
    %p103 = scmp.ne.s32.totalorder %s86, %s102
    %p104 = scmp.eq.s32.totalorder %s17, 0
    %p105 = por %p103, %p104
    %s106 = ssub.s32 %s18, %s30
    %p107 = scmp.eq.s32.totalorder %s106, 0
    %s109 = sadd.s32 %s108, 1
    %s110 = scalar_select %p107, %s108, %s109
    %p113 = pneg %p107
    %p114 = scmp.eq.s32.totalorder %s11, 1
    %p115 = por %p113, %p114
    %p116 = scmp.ne.s32.totalorder %s108, %s111
    %p117 = scmp.eq.s32.totalorder %s11, 0
    %p118 = por %p116, %p117
    %p119 = scmp.ne.s32.totalorder %s108, %s111
    %p120 = scmp.eq.s32.totalorder %s16, 1
    %p121 = por %p119, %p120
    %p122 = scmp.ne.s32.totalorder %s111, %s112
    %p123 = scmp.eq.s32.totalorder %s16, 0
    %p124 = por %p122, %p123
    %p125 = scmp.ne.s32.totalorder %s111, %s112
    %p126 = scmp.eq.s32.totalorder %s17, 1
    %p127 = por %p125, %p126
    %p129 = scmp.ne.s32.totalorder %s112, %s128
    %p130 = scmp.eq.s32.totalorder %s17, 0
    %p131 = por %p129, %p130
    %p132 = scmp.le.s32.totalorder 1, %s11
    %p133 = scmp.lt.s32.totalorder %s11, 3
    %p134 = pnand %p132, %p133
    %p135 = pneg %p134
    // Predicated region
    $region9: #{residual_forward.3} parent=5 // pred_check
      _
    $region10: #{residual_forward.3} parent=5 // pred_check_branch
      %137 = sbr.rel (%p134) target = $region12
    $region11: #{residual_forward.3} parent=5 // pred_region
      %s138 = ssub.s32 %s11, 1
      // Predicated region
      $region13: #{residual_forward.3} parent=11 // pred_check
        %p139 = pneg %p44
      $region14: #{residual_forward.3} parent=11 // pred_check_branch
        %141 = sbr.rel (%p139) target = $region16
      $region15: #{residual_forward.3} parent=11 // pred_region
        _
      $region16: #{residual_forward.3} parent=11 // pred_fallthru
        _
    $region12: #{residual_forward.3} parent=5 // pred_fallthru
      _
    %p142 = scmp.lt.s32.totalorder %s11, 2
    // Predicated region
    $region17: #{residual_forward.3} parent=5 // pred_check
      %p143 = pneg %p142
    $region18: #{residual_forward.3} parent=5 // pred_check_branch
      %145 = sbr.rel (%p143) target = $region20
    $region19: #{residual_forward.3} parent=5 // pred_region
      _
    $region20: #{residual_forward.3} parent=5 // pred_fallthru
      _
    %p146 = scmp.le.s32.totalorder 1, %s11
    %p147 = scmp.lt.s32.totalorder %s11, 3
    %p148 = pnand %p146, %p147
    %p149 = pneg %p148
    // Predicated region
    $region21: #{residual_forward.3} parent=5 // pred_check
      _
    $region22: #{residual_forward.3} parent=5 // pred_check_branch
      %151 = sbr.rel (%p148) target = $region24
    $region23: #{residual_forward.3} parent=5 // pred_region
      %s152 = ssub.s32 %s11, 1
      %p153 = pneg %p44
      %p154 = pneg %p41
      %p155 = pneg %p72
      %p156 = pneg %p69
      %s157 = smul.u32 16, %s21
      %p158 = scmp.lt.s32.totalorder %s20, 1
      %s159 = scalar_select %p158, %s20, 1
      %p160 = scmp.lt.s32.totalorder %s157, 15
      %s161 = scalar_select %p160, %s157, 15
      %s162 = smul.addr %s161, 3
      %s163 = smul.addr %s159, 48
      %s164 = sadd.s32 %s162, %s163
      %s165 = smul.addr %s164, 4
      %s166 = scalar_lea.vmem %s2, %s165
      %p167 = pneg %p98
      %p168 = pneg %p95
      %p169 = scmp.lt.s32.totalorder %s20, 1
      %s170 = scalar_select %p169, %s20, 1
      %s171 = scalar_lea.vmem %s3, %s170
      %p172 = pneg %p124
      %p173 = pneg %p121
      %p174 = scmp.lt.s32.totalorder %s20, 1
      %s175 = scalar_select %p174, %s20, 1
      %s176 = scalar_lea.vmem %s4, %s175
      %s177 = smul.u32 16, %s21
      %p178 = scmp.lt.s32.totalorder %s20, 1
      %s179 = scalar_select %p178, %s20, 1
      %p180 = scmp.lt.s32.totalorder %s177, 15
      %s181 = scalar_select %p180, %s177, 15
      %s182 = smul.addr %s181, 3
      %s183 = smul.addr %s179, 48
      %s184 = sadd.s32 %s182, %s183
      %s185 = smul.addr %s184, 4
      %s186 = scalar_lea.vmem %s2, %s185
      %s187 = smul.u32 16, %s21
      %p188 = scmp.lt.s32.totalorder %s20, 1
      %s189 = scalar_select %p188, %s20, 1
      %s190 = scalar_lea.vmem %s3, %s189
      %p191 = scmp.lt.s32.totalorder %s20, 1
      %s192 = scalar_select %p191, %s20, 1
      %s193 = scalar_lea.vmem %s4, %s192
      %p195 = scmp.lt.s32.totalorder %s21, 0
      %s196 = ssub.s32 0, %s21
      %s197 = scalar_select %p195, %s196, %s21
      %s198 = sand.u32 %s197, 1
      %s199 = ssub.s32 0, %s198
      %s200 = scalar_select %p195, %s199, %s198
      %p201 = scmp.ne.s32.totalorder %s200, 0
      %p202 = scmp.lt.s32.totalorder %s200, 0
      %p203 = pnand %p202, %p201
      %p204 = pneg %p203
      %s205 = sadd.s32 %s200, 2
      %s206 = scalar_select %p204, %s205, %s200
      %p207 = scmp.eq.s32.totalorder %s21, 0
      // Predicated region
      $region25: #{residual_forward.3} parent=23 // pred_check
        %p208 = pneg %p207
      $region26: #{residual_forward.3} parent=23 // pred_check_branch
        %210 = sbr.rel (%p208) target = $region28
      $region27: #{residual_forward.3} parent=23 // pred_region
        %s211 = smul.u32 %s20, 54
        %s212 = smul.addr %s211, 4
        %s213 = scalar_lea.vmem %s0, %s212
        %p215 = scmp.lt.u32.totalorder 216, 8
        %p216 = pneg %p215
        // Predicated region
        $region29: #{residual_forward.3} parent=27 // pred_check
          _
        $region30: #{residual_forward.3} parent=27 // pred_check_branch
          %218 = sbr.rel (%p215) target = $region32
        $region31: #{residual_forward.3} parent=27 // pred_region
          %s234 = sand.u32 216, 7
          %p235 = scmp.eq.s32.totalorder %s234, 0
          // Predicated region
          $region44: #{residual_forward.3} parent=31 // pred_check
            %p236 = pneg %p235
          $region45: #{residual_forward.3} parent=31 // pred_check_branch
            %238 = sbr.rel (%p236) target = $region47
          $region46: #{residual_forward.3} parent=31 // pred_region
            loop: start=0, step=1, limit=1
            $region48: #{residual_forward.3} parent=46 // loop_pre_header
              _
            $region49: #{residual_forward.3} parent=46 // loop_header
              %s240 = sphi 0, %s244
              %p241 = scmp.ge.s32.totalorder %s240, 1
              %s245 = sphi %s213, %s213
              %s246 = sphi [#allocation2], [#allocation2]
            $region50: #{residual_forward.3} parent=46 // loop_header_branch
              %243 = sbr.rel (%p241) target = $region54
            $region51: #{residual_forward.3} parent=46 // loop_body
              %v247 = vld [vmem:[%s245] sm:$0xff]
              %248 = vst [vmem:[%s246] sm:$0xff] %v247
              %v249 = vld [vmem:[%s245 + $0x8] sm:$0xff]
              %250 = vst [vmem:[%s246 + $0x8] sm:$0xff] %v249
              %v251 = vld [vmem:[%s245 + $0x10] sm:$0xff]
              %252 = vst [vmem:[%s246 + $0x10] sm:$0xff] %v251
              %v253 = vld [vmem:[%s245 + $0x18] sm:$0xff]
              %254 = vst [vmem:[%s246 + $0x18] sm:$0xff] %v253
              %v255 = vld [vmem:[%s245 + $0x20] sm:$0xff]
              %256 = vst [vmem:[%s246 + $0x20] sm:$0xff] %v255
              %v257 = vld [vmem:[%s245 + $0x28] sm:$0xff]
              %258 = vst [vmem:[%s246 + $0x28] sm:$0xff] %v257
              %v259 = vld [vmem:[%s245 + $0x30] sm:$0xff]
              %260 = vst [vmem:[%s246 + $0x30] sm:$0xff] %v259
              %v261 = vld [vmem:[%s245 + $0x38] sm:$0xff]
              %262 = vst [vmem:[%s246 + $0x38] sm:$0xff] %v261
              %v263 = vld [vmem:[%s245 + $0x40] sm:$0xff]
              %264 = vst [vmem:[%s246 + $0x40] sm:$0xff] %v263
              %v265 = vld [vmem:[%s245 + $0x48] sm:$0xff]
              %266 = vst [vmem:[%s246 + $0x48] sm:$0xff] %v265
              %v267 = vld [vmem:[%s245 + $0x50] sm:$0xff]
              %268 = vst [vmem:[%s246 + $0x50] sm:$0xff] %v267
              %v269 = vld [vmem:[%s245 + $0x58] sm:$0xff]
              %270 = vst [vmem:[%s246 + $0x58] sm:$0xff] %v269
              %v271 = vld [vmem:[%s245 + $0x60] sm:$0xff]
              %272 = vst [vmem:[%s246 + $0x60] sm:$0xff] %v271
              %v273 = vld [vmem:[%s245 + $0x68] sm:$0xff]
              %274 = vst [vmem:[%s246 + $0x68] sm:$0xff] %v273
              %v275 = vld [vmem:[%s245 + $0x70] sm:$0xff]
              %276 = vst [vmem:[%s246 + $0x70] sm:$0xff] %v275
              %v277 = vld [vmem:[%s245 + $0x78] sm:$0xff]
              %278 = vst [vmem:[%s246 + $0x78] sm:$0xff] %v277
              %v279 = vld [vmem:[%s245 + $0x80] sm:$0xff]
              %280 = vst [vmem:[%s246 + $0x80] sm:$0xff] %v279
              %v281 = vld [vmem:[%s245 + $0x88] sm:$0xff]
              %282 = vst [vmem:[%s246 + $0x88] sm:$0xff] %v281
              %v283 = vld [vmem:[%s245 + $0x90] sm:$0xff]
              %284 = vst [vmem:[%s246 + $0x90] sm:$0xff] %v283
              %v285 = vld [vmem:[%s245 + $0x98] sm:$0xff]
              %286 = vst [vmem:[%s246 + $0x98] sm:$0xff] %v285
              %v287 = vld [vmem:[%s245 + $0xa0] sm:$0xff]
              %288 = vst [vmem:[%s246 + $0xa0] sm:$0xff] %v287
              %v289 = vld [vmem:[%s245 + $0xa8] sm:$0xff]
              %290 = vst [vmem:[%s246 + $0xa8] sm:$0xff] %v289
              %v291 = vld [vmem:[%s245 + $0xb0] sm:$0xff]
              %292 = vst [vmem:[%s246 + $0xb0] sm:$0xff] %v291
              %v293 = vld [vmem:[%s245 + $0xb8] sm:$0xff]
              %294 = vst [vmem:[%s246 + $0xb8] sm:$0xff] %v293
              %v295 = vld [vmem:[%s245 + $0xc0] sm:$0xff]
              %296 = vst [vmem:[%s246 + $0xc0] sm:$0xff] %v295
              %v297 = vld [vmem:[%s245 + $0xc8] sm:$0xff]
              %298 = vst [vmem:[%s246 + $0xc8] sm:$0xff] %v297
              %v299 = vld [vmem:[%s245 + $0xd0] sm:$0xff]
              %300 = vst [vmem:[%s246 + $0xd0] sm:$0xff] %v299
            $region52: #{residual_forward.3} parent=46 // loop_footer
              %s244 = sadd.s32 1, %s240
            $region53: #{residual_forward.3} parent=46 // loop_footer_branch
              %239 = sbr.rel target = $region49
            $region54: #{residual_forward.3} parent=46 // loop_exit
              _
          $region47: #{residual_forward.3} parent=31 // pred_fallthru
            _
          %p301 = pneg %p235
          // Predicated region
          $region55: #{residual_forward.3} parent=31 // pred_check
            _
          $region56: #{residual_forward.3} parent=31 // pred_check_branch
            %303 = sbr.rel (%p235) target = $region58
          $region57: #{residual_forward.3} parent=31 // pred_region
            %s304 = sand.u32 216, 7
          $region58: #{residual_forward.3} parent=31 // pred_fallthru
            _
        $region32: #{residual_forward.3} parent=27 // pred_fallthru
          _
        // Predicated region
        $region33: #{residual_forward.3} parent=27 // pred_check
          %p219 = pneg %p215
        $region34: #{residual_forward.3} parent=27 // pred_check_branch
          %221 = sbr.rel (%p219) target = $region36
        $region35: #{residual_forward.3} parent=27 // pred_region
          %s222 = sshll.u32 1, 216
          %s223 = ssub.s32 %s222, 1
          loop: start=0, step=1, limit=1
          $region37: #{residual_forward.3} parent=35 // loop_pre_header
            _
          $region38: #{residual_forward.3} parent=35 // loop_header
            %s225 = sphi 0, %s229
            %p226 = scmp.ge.s32.totalorder %s225, 1
            %s230 = sphi %s213, %s213
            %s231 = sphi [#allocation2], [#allocation2]
          $region39: #{residual_forward.3} parent=35 // loop_header_branch
            %228 = sbr.rel (%p226) target = $region43
          $region40: #{residual_forward.3} parent=35 // loop_body
            %v232 = vld [vmem:[%s230] sm:%s223]
            %233 = vst [vmem:[%s231] sm:%s223] %v232
          $region41: #{residual_forward.3} parent=35 // loop_footer
            %s229 = sadd.s32 1, %s225
          $region42: #{residual_forward.3} parent=35 // loop_footer_branch
            %224 = sbr.rel target = $region38
          $region43: #{residual_forward.3} parent=35 // loop_exit
            _
        $region36: #{residual_forward.3} parent=27 // pred_fallthru
          _
        // Predicated region
        $region59: #{residual_forward.3} parent=27 // pred_check
          _
        $region60: #{residual_forward.3} parent=27 // pred_check_branch
          %307 = sbr.rel (0) target = $region62
        $region61: #{residual_forward.3} parent=27 // pred_region
          %308 = vsyncadd [#allocation3], 3456
        $region62: #{residual_forward.3} parent=27 // pred_fallthru
          _
      $region28: #{residual_forward.3} parent=23 // pred_fallthru
        _
      %s309 = sadd.s32 %s21, 1
      %p310 = scmp.lt.s32.totalorder %s309, 1
      // Predicated region
      $region63: #{residual_forward.3} parent=23 // pred_check
        %p311 = pneg %p310
      $region64: #{residual_forward.3} parent=23 // pred_check_branch
        %313 = sbr.rel (%p311) target = $region66
      $region65: #{residual_forward.3} parent=23 // pred_region
        %s314 = ssub.s32 1, %s206
        %s315 = smul.u32 %s309, 16
        %s316 = smul.u32 %s315, 3
        %s317 = smul.u32 %s20, 54
        %s318 = sadd.s32 %s316, %s317
        %s319 = smul.addr %s318, 4
        %s320 = scalar_lea.vmem %s0, %s319
        %s321 = smul.u32 %s314, 54
        %s322 = smul.addr %s321, 4
        %s323 = scalar_lea.vmem [#allocation2], %s322
        %s324 = scalar_lea.sflag [#allocation3], %s314
        %p326 = scmp.lt.u32.totalorder 216, 8
        %p327 = pneg %p326
        // Predicated region
        $region67: #{residual_forward.3} parent=65 // pred_check
          _
        $region68: #{residual_forward.3} parent=65 // pred_check_branch
          %329 = sbr.rel (%p326) target = $region70
        $region69: #{residual_forward.3} parent=65 // pred_region
          %s345 = sand.u32 216, 7
          %p346 = scmp.eq.s32.totalorder %s345, 0
          // Predicated region
          $region82: #{residual_forward.3} parent=69 // pred_check
            %p347 = pneg %p346
          $region83: #{residual_forward.3} parent=69 // pred_check_branch
            %349 = sbr.rel (%p347) target = $region85
          $region84: #{residual_forward.3} parent=69 // pred_region
            loop: start=0, step=1, limit=1
            $region86: #{residual_forward.3} parent=84 // loop_pre_header
              _
            $region87: #{residual_forward.3} parent=84 // loop_header
              %s351 = sphi 0, %s355
              %p352 = scmp.ge.s32.totalorder %s351, 1
              %s356 = sphi %s320, %s320
              %s357 = sphi %s323, %s323
            $region88: #{residual_forward.3} parent=84 // loop_header_branch
              %354 = sbr.rel (%p352) target = $region92
            $region89: #{residual_forward.3} parent=84 // loop_body
              %v358 = vld [vmem:[%s356] sm:$0xff]
              %359 = vst [vmem:[%s357] sm:$0xff] %v358
              %v360 = vld [vmem:[%s356 + $0x8] sm:$0xff]
              %361 = vst [vmem:[%s357 + $0x8] sm:$0xff] %v360
              %v362 = vld [vmem:[%s356 + $0x10] sm:$0xff]
              %363 = vst [vmem:[%s357 + $0x10] sm:$0xff] %v362
              %v364 = vld [vmem:[%s356 + $0x18] sm:$0xff]
              %365 = vst [vmem:[%s357 + $0x18] sm:$0xff] %v364
              %v366 = vld [vmem:[%s356 + $0x20] sm:$0xff]
              %367 = vst [vmem:[%s357 + $0x20] sm:$0xff] %v366
              %v368 = vld [vmem:[%s356 + $0x28] sm:$0xff]
              %369 = vst [vmem:[%s357 + $0x28] sm:$0xff] %v368
              %v370 = vld [vmem:[%s356 + $0x30] sm:$0xff]
              %371 = vst [vmem:[%s357 + $0x30] sm:$0xff] %v370
              %v372 = vld [vmem:[%s356 + $0x38] sm:$0xff]
              %373 = vst [vmem:[%s357 + $0x38] sm:$0xff] %v372
              %v374 = vld [vmem:[%s356 + $0x40] sm:$0xff]
              %375 = vst [vmem:[%s357 + $0x40] sm:$0xff] %v374
              %v376 = vld [vmem:[%s356 + $0x48] sm:$0xff]
              %377 = vst [vmem:[%s357 + $0x48] sm:$0xff] %v376
              %v378 = vld [vmem:[%s356 + $0x50] sm:$0xff]
              %379 = vst [vmem:[%s357 + $0x50] sm:$0xff] %v378
              %v380 = vld [vmem:[%s356 + $0x58] sm:$0xff]
              %381 = vst [vmem:[%s357 + $0x58] sm:$0xff] %v380
              %v382 = vld [vmem:[%s356 + $0x60] sm:$0xff]
              %383 = vst [vmem:[%s357 + $0x60] sm:$0xff] %v382
              %v384 = vld [vmem:[%s356 + $0x68] sm:$0xff]
              %385 = vst [vmem:[%s357 + $0x68] sm:$0xff] %v384
              %v386 = vld [vmem:[%s356 + $0x70] sm:$0xff]
              %387 = vst [vmem:[%s357 + $0x70] sm:$0xff] %v386
              %v388 = vld [vmem:[%s356 + $0x78] sm:$0xff]
              %389 = vst [vmem:[%s357 + $0x78] sm:$0xff] %v388
              %v390 = vld [vmem:[%s356 + $0x80] sm:$0xff]
              %391 = vst [vmem:[%s357 + $0x80] sm:$0xff] %v390
              %v392 = vld [vmem:[%s356 + $0x88] sm:$0xff]
              %393 = vst [vmem:[%s357 + $0x88] sm:$0xff] %v392
              %v394 = vld [vmem:[%s356 + $0x90] sm:$0xff]
              %395 = vst [vmem:[%s357 + $0x90] sm:$0xff] %v394
              %v396 = vld [vmem:[%s356 + $0x98] sm:$0xff]
              %397 = vst [vmem:[%s357 + $0x98] sm:$0xff] %v396
              %v398 = vld [vmem:[%s356 + $0xa0] sm:$0xff]
              %399 = vst [vmem:[%s357 + $0xa0] sm:$0xff] %v398
              %v400 = vld [vmem:[%s356 + $0xa8] sm:$0xff]
              %401 = vst [vmem:[%s357 + $0xa8] sm:$0xff] %v400
              %v402 = vld [vmem:[%s356 + $0xb0] sm:$0xff]
              %403 = vst [vmem:[%s357 + $0xb0] sm:$0xff] %v402
              %v404 = vld [vmem:[%s356 + $0xb8] sm:$0xff]
              %405 = vst [vmem:[%s357 + $0xb8] sm:$0xff] %v404
              %v406 = vld [vmem:[%s356 + $0xc0] sm:$0xff]
              %407 = vst [vmem:[%s357 + $0xc0] sm:$0xff] %v406
              %v408 = vld [vmem:[%s356 + $0xc8] sm:$0xff]
              %409 = vst [vmem:[%s357 + $0xc8] sm:$0xff] %v408
              %v410 = vld [vmem:[%s356 + $0xd0] sm:$0xff]
              %411 = vst [vmem:[%s357 + $0xd0] sm:$0xff] %v410
            $region90: #{residual_forward.3} parent=84 // loop_footer
              %s355 = sadd.s32 1, %s351
            $region91: #{residual_forward.3} parent=84 // loop_footer_branch
              %350 = sbr.rel target = $region87
            $region92: #{residual_forward.3} parent=84 // loop_exit
              _
          $region85: #{residual_forward.3} parent=69 // pred_fallthru
            _
          %p412 = pneg %p346
          // Predicated region
          $region93: #{residual_forward.3} parent=69 // pred_check
            _
          $region94: #{residual_forward.3} parent=69 // pred_check_branch
            %414 = sbr.rel (%p346) target = $region96
          $region95: #{residual_forward.3} parent=69 // pred_region
            %s415 = sand.u32 216, 7
          $region96: #{residual_forward.3} parent=69 // pred_fallthru
            _
        $region70: #{residual_forward.3} parent=65 // pred_fallthru
          _
        // Predicated region
        $region71: #{residual_forward.3} parent=65 // pred_check
          %p330 = pneg %p326
        $region72: #{residual_forward.3} parent=65 // pred_check_branch
          %332 = sbr.rel (%p330) target = $region74
        $region73: #{residual_forward.3} parent=65 // pred_region
          %s333 = sshll.u32 1, 216
          %s334 = ssub.s32 %s333, 1
          loop: start=0, step=1, limit=1
          $region75: #{residual_forward.3} parent=73 // loop_pre_header
            _
          $region76: #{residual_forward.3} parent=73 // loop_header
            %s336 = sphi 0, %s340
            %p337 = scmp.ge.s32.totalorder %s336, 1
            %s341 = sphi %s320, %s320
            %s342 = sphi %s323, %s323
          $region77: #{residual_forward.3} parent=73 // loop_header_branch
            %339 = sbr.rel (%p337) target = $region81
          $region78: #{residual_forward.3} parent=73 // loop_body
            %v343 = vld [vmem:[%s341] sm:%s334]
            %344 = vst [vmem:[%s342] sm:%s334] %v343
          $region79: #{residual_forward.3} parent=73 // loop_footer
            %s340 = sadd.s32 1, %s336
          $region80: #{residual_forward.3} parent=73 // loop_footer_branch
            %335 = sbr.rel target = $region76
          $region81: #{residual_forward.3} parent=73 // loop_exit
            _
        $region74: #{residual_forward.3} parent=65 // pred_fallthru
          _
        // Predicated region
        $region97: #{residual_forward.3} parent=65 // pred_check
          _
        $region98: #{residual_forward.3} parent=65 // pred_check_branch
          %418 = sbr.rel (0) target = $region100
        $region99: #{residual_forward.3} parent=65 // pred_region
          %419 = vsyncadd %s324, 3456
        $region100: #{residual_forward.3} parent=65 // pred_fallthru
          _
      $region66: #{residual_forward.3} parent=23 // pred_fallthru
        _
      %s420 = smul.u32 %s21, 16
      %s421 = smul.u32 %s206, 54
      %s422 = smul.addr %s421, 4
      %s423 = scalar_lea.vmem [#allocation2], %s422
      %s424 = scalar_lea.sflag [#allocation3], %s206
      %s425 = smul.u32 4, 18
      %s426 = smul.u32 %s425, 3
      %s427 = smul.u32 %s426, 1
      %s428 = sshll.u32 %s427, 4
      %429 = dma.done %s424, %s428
      %v430 = vld [vmem:[%s423] sm:$0xf]
      %v431 = vld [vmem:[%s423 + $0x4] sm:$0xf]
      %v432 = vld [vmem:[%s423 + $0x8] sm:$0xf]
      %v433 = vld [vmem:[%s423 + $0xc] sm:$0xf]
      %v434 = vld [vmem:[%s423 + $0x10] sm:$0xf]
      %v435 = vld [vmem:[%s423 + $0x14] sm:$0xf]
      %v436 = vld [vmem:[%s423 + $0x18] sm:$0xf]
      %v437 = vld [vmem:[%s423 + $0x1c] sm:$0xf]
      %v438 = vld [vmem:[%s423 + $0x20] sm:$0xf]
      %v439 = vld [vmem:[%s423 + $0x24] sm:$0xf]
      %v440 = vld [vmem:[%s423 + $0x28] sm:$0xf]
      %v441 = vld [vmem:[%s423 + $0x2c] sm:$0xf]
      %v442 = vld [vmem:[%s423 + $0x30] sm:$0xf]
      %v443 = vld [vmem:[%s423 + $0x34] sm:$0xf]
      %v444 = vld [vmem:[%s423 + $0x38] sm:$0xf]
      %v445 = vld [vmem:[%s423 + $0x3c] sm:$0xf]
      %v446 = vld [vmem:[%s423 + $0x40] sm:$0xf]
      %v447 = vld [vmem:[%s423 + $0x44] sm:$0xf]
      %v448 = vld [vmem:[%s423 + $0x48] sm:$0xf]
      %v449 = vld [vmem:[%s423 + $0x4c] sm:$0xf]
      %v450 = vld [vmem:[%s423 + $0x50] sm:$0xf]
      %v451 = vld [vmem:[%s423 + $0x54] sm:$0xf]
      %v452 = vld [vmem:[%s423 + $0x58] sm:$0xf]
      %v453 = vld [vmem:[%s423 + $0x5c] sm:$0xf]
      %v454 = vld [vmem:[%s423 + $0x60] sm:$0xf]
      %v455 = vld [vmem:[%s423 + $0x64] sm:$0xf]
      %v456 = vld [vmem:[%s423 + $0x68] sm:$0xf]
      %v457 = vld [vmem:[%s423 + $0x6c] sm:$0xf]
      %v458 = vld [vmem:[%s423 + $0x70] sm:$0xf]
      %v459 = vld [vmem:[%s423 + $0x74] sm:$0xf]
      %v460 = vld [vmem:[%s423 + $0x78] sm:$0xf]
      %v461 = vld [vmem:[%s423 + $0x7c] sm:$0xf]
      %v462 = vld [vmem:[%s423 + $0x80] sm:$0xf]
      %v463 = vld [vmem:[%s423 + $0x84] sm:$0xf]
      %v464 = vld [vmem:[%s423 + $0x88] sm:$0xf]
      %v465 = vld [vmem:[%s423 + $0x8c] sm:$0xf]
      %v466 = vld [vmem:[%s423 + $0x90] sm:$0xf]
      %v467 = vld [vmem:[%s423 + $0x94] sm:$0xf]
      %v468 = vld [vmem:[%s423 + $0x98] sm:$0xf]
      %v469 = vld [vmem:[%s423 + $0x9c] sm:$0xf]
      %v470 = vld [vmem:[%s423 + $0xa0] sm:$0xf]
      %v471 = vld [vmem:[%s423 + $0xa4] sm:$0xf]
      %v472 = vld [vmem:[%s423 + $0xa8] sm:$0xf]
      %v473 = vld [vmem:[%s423 + $0xac] sm:$0xf]
      %v474 = vld [vmem:[%s423 + $0xb0] sm:$0xf]
      %v475 = vld [vmem:[%s423 + $0xb4] sm:$0xf]
      %v476 = vld [vmem:[%s423 + $0xb8] sm:$0xf]
      %v477 = vld [vmem:[%s423 + $0xbc] sm:$0xf]
      %v478 = vld [vmem:[%s423 + $0xc0] sm:$0xf]
      %v479 = vld [vmem:[%s423 + $0xc4] sm:$0xf]
      %v480 = vld [vmem:[%s423 + $0xc8] sm:$0xf]
      %v481 = vld [vmem:[%s423 + $0xcc] sm:$0xf]
      %v482 = vld [vmem:[%s423 + $0xd0] sm:$0xf]
      %v483 = vld [vmem:[%s423 + $0xd4] sm:$0xf]
      %v516 = vunpack.c.l.b16 %v430
      %v517 = vunpack.c.l.b16 %v431
      %v518 = vunpack.c.l.b16 %v433
      %v519 = vunpack.c.l.b16 %v434
      %v520 = vunpack.c.l.b16 %v436
      %v521 = vunpack.c.l.b16 %v437
      %v522 = vunpack.c.l.b16 %v439
      %v523 = vunpack.c.l.b16 %v440
      %v524 = vunpack.c.l.b16 %v442
      %v525 = vunpack.c.l.b16 %v443
      %v526 = vunpack.c.l.b16 %v445
      %v527 = vunpack.c.l.b16 %v446
      %v528 = vunpack.c.l.b16 %v448
      %v529 = vunpack.c.l.b16 %v449
      %v530 = vunpack.c.l.b16 %v451
      %v531 = vunpack.c.l.b16 %v452
      %v532 = vunpack.c.l.b16 %v454
      %v533 = vunpack.c.l.b16 %v455
      %v534 = vunpack.c.l.b16 %v457
      %v535 = vunpack.c.l.b16 %v458
      %v536 = vunpack.c.l.b16 %v460
      %v537 = vunpack.c.l.b16 %v461
      %v538 = vunpack.c.l.b16 %v463
      %v539 = vunpack.c.l.b16 %v464
      %v540 = vunpack.c.l.b16 %v466
      %v541 = vunpack.c.l.b16 %v467
      %v542 = vunpack.c.l.b16 %v469
      %v543 = vunpack.c.l.b16 %v470
      %v544 = vunpack.c.l.b16 %v472
      %v545 = vunpack.c.l.b16 %v473
      %v546 = vunpack.c.l.b16 %v475
      %v547 = vunpack.c.l.b16 %v476
      %v548 = vpack.c.b16 %v517, %v516
      %v549 = vpack.c.b16 %v519, %v518
      %v550 = vpack.c.b16 %v521, %v520
      %v551 = vpack.c.b16 %v523, %v522
      %v552 = vpack.c.b16 %v525, %v524
      %v553 = vpack.c.b16 %v527, %v526
      %v554 = vpack.c.b16 %v529, %v528
      %v555 = vpack.c.b16 %v531, %v530
      %v556 = vpack.c.b16 %v533, %v532
      %v557 = vpack.c.b16 %v535, %v534
      %v558 = vpack.c.b16 %v537, %v536
      %v559 = vpack.c.b16 %v539, %v538
      %v560 = vpack.c.b16 %v541, %v540
      %v561 = vpack.c.b16 %v543, %v542
      %v562 = vpack.c.b16 %v545, %v544
      %v563 = vpack.c.b16 %v547, %v546
      %v596 = vunpack.c.l.b16 %v432
      %v597 = vunpack.c.l.b16 %v435
      %v598 = vunpack.c.l.b16 %v438
      %v599 = vunpack.c.l.b16 %v441
      %v600 = vunpack.c.l.b16 %v444
      %v601 = vunpack.c.l.b16 %v447
      %v602 = vunpack.c.l.b16 %v450
      %v603 = vunpack.c.l.b16 %v453
      %v604 = vunpack.c.l.b16 %v456
      %v605 = vunpack.c.l.b16 %v459
      %v606 = vunpack.c.l.b16 %v462
      %v607 = vunpack.c.l.b16 %v465
      %v608 = vunpack.c.l.b16 %v468
      %v609 = vunpack.c.l.b16 %v471
      %v610 = vunpack.c.l.b16 %v474
      %v611 = vunpack.c.l.b16 %v477
      %v612 = vpack.c.b16 %v596, %v596
      %v613 = vpack.c.b16 %v597, %v597
      %v614 = vpack.c.b16 %v598, %v598
      %v615 = vpack.c.b16 %v599, %v599
      %v616 = vpack.c.b16 %v600, %v600
      %v617 = vpack.c.b16 %v601, %v601
      %v618 = vpack.c.b16 %v602, %v602
      %v619 = vpack.c.b16 %v603, %v603
      %v620 = vpack.c.b16 %v604, %v604
      %v621 = vpack.c.b16 %v605, %v605
      %v622 = vpack.c.b16 %v606, %v606
      %v623 = vpack.c.b16 %v607, %v607
      %v624 = vpack.c.b16 %v608, %v608
      %v625 = vpack.c.b16 %v609, %v609
      %v626 = vpack.c.b16 %v610, %v610
      %v627 = vpack.c.b16 %v611, %v611
      %vm628 = vsmask.f32 7424
      %v630 = vshrl.u32 %v548, 16
      %v632 = vshll.u32 %v548, 16
      %v634 = vrot.slane %v632, 1
      %v635 = vor.u32 %v630, %v634
      %v637 = vshll.u32 %v612, 16
      %v639 = vrot.slane %v637, 1
      %v640 = vsel %vm628, %v635, %v639
      %v642 = vshrl.u32 %v549, 16
      %v644 = vshll.u32 %v549, 16
      %v646 = vrot.slane %v644, 1
      %v647 = vor.u32 %v642, %v646
      %v649 = vshll.u32 %v613, 16
      %v651 = vrot.slane %v649, 1
      %v652 = vsel %vm628, %v647, %v651
      %v654 = vshrl.u32 %v550, 16
      %v656 = vshll.u32 %v550, 16
      %v658 = vrot.slane %v656, 1
      %v659 = vor.u32 %v654, %v658
      %v661 = vshll.u32 %v614, 16
      %v663 = vrot.slane %v661, 1
      %v664 = vsel %vm628, %v659, %v663
      %v666 = vshrl.u32 %v551, 16
      %v668 = vshll.u32 %v551, 16
      %v670 = vrot.slane %v668, 1
      %v671 = vor.u32 %v666, %v670
      %v673 = vshll.u32 %v615, 16
      %v675 = vrot.slane %v673, 1
      %v676 = vsel %vm628, %v671, %v675
      %v678 = vshrl.u32 %v552, 16
      %v680 = vshll.u32 %v552, 16
      %v682 = vrot.slane %v680, 1
      %v683 = vor.u32 %v678, %v682
      %v685 = vshll.u32 %v616, 16
      %v687 = vrot.slane %v685, 1
      %v688 = vsel %vm628, %v683, %v687
      %v690 = vshrl.u32 %v553, 16
      %v692 = vshll.u32 %v553, 16
      %v694 = vrot.slane %v692, 1
      %v695 = vor.u32 %v690, %v694
      %v697 = vshll.u32 %v617, 16
      %v699 = vrot.slane %v697, 1
      %v700 = vsel %vm628, %v695, %v699
      %v702 = vshrl.u32 %v554, 16
      %v704 = vshll.u32 %v554, 16
      %v706 = vrot.slane %v704, 1
      %v707 = vor.u32 %v702, %v706
      %v709 = vshll.u32 %v618, 16
      %v711 = vrot.slane %v709, 1
      %v712 = vsel %vm628, %v707, %v711
      %v714 = vshrl.u32 %v555, 16
      %v716 = vshll.u32 %v555, 16
      %v718 = vrot.slane %v716, 1
      %v719 = vor.u32 %v714, %v718
      %v721 = vshll.u32 %v619, 16
      %v723 = vrot.slane %v721, 1
      %v724 = vsel %vm628, %v719, %v723
      %v726 = vshrl.u32 %v556, 16
      %v728 = vshll.u32 %v556, 16
      %v730 = vrot.slane %v728, 1
      %v731 = vor.u32 %v726, %v730
      %v733 = vshll.u32 %v620, 16
      %v735 = vrot.slane %v733, 1
      %v736 = vsel %vm628, %v731, %v735
      %v738 = vshrl.u32 %v557, 16
      %v740 = vshll.u32 %v557, 16
      %v742 = vrot.slane %v740, 1
      %v743 = vor.u32 %v738, %v742
      %v745 = vshll.u32 %v621, 16
      %v747 = vrot.slane %v745, 1
      %v748 = vsel %vm628, %v743, %v747
      %v750 = vshrl.u32 %v558, 16
      %v752 = vshll.u32 %v558, 16
      %v754 = vrot.slane %v752, 1
      %v755 = vor.u32 %v750, %v754
      %v757 = vshll.u32 %v622, 16
      %v759 = vrot.slane %v757, 1
      %v760 = vsel %vm628, %v755, %v759
      %v762 = vshrl.u32 %v559, 16
      %v764 = vshll.u32 %v559, 16
      %v766 = vrot.slane %v764, 1
      %v767 = vor.u32 %v762, %v766
      %v769 = vshll.u32 %v623, 16
      %v771 = vrot.slane %v769, 1
      %v772 = vsel %vm628, %v767, %v771
      %v774 = vshrl.u32 %v560, 16
      %v776 = vshll.u32 %v560, 16
      %v778 = vrot.slane %v776, 1
      %v779 = vor.u32 %v774, %v778
      %v781 = vshll.u32 %v624, 16
      %v783 = vrot.slane %v781, 1
      %v784 = vsel %vm628, %v779, %v783
      %v786 = vshrl.u32 %v561, 16
      %v788 = vshll.u32 %v561, 16
      %v790 = vrot.slane %v788, 1
      %v791 = vor.u32 %v786, %v790
      %v793 = vshll.u32 %v625, 16
      %v795 = vrot.slane %v793, 1
      %v796 = vsel %vm628, %v791, %v795
      %v798 = vshrl.u32 %v562, 16
      %v800 = vshll.u32 %v562, 16
      %v802 = vrot.slane %v800, 1
      %v803 = vor.u32 %v798, %v802
      %v805 = vshll.u32 %v626, 16
      %v807 = vrot.slane %v805, 1
      %v808 = vsel %vm628, %v803, %v807
      %v810 = vshrl.u32 %v563, 16
      %v812 = vshll.u32 %v563, 16
      %v814 = vrot.slane %v812, 1
      %v815 = vor.u32 %v810, %v814
      %v817 = vshll.u32 %v627, 16
      %v819 = vrot.slane %v817, 1
      %v820 = vsel %vm628, %v815, %v819
      %vm837 = vcmask 1046528
      %v838 = vrot.slane %v548, 1
      %v839 = vrot.slane %v612, 1
      %v840 = vsel %vm837, %v838, %v839
      %v841 = vrot.slane %v549, 1
      %v842 = vrot.slane %v613, 1
      %v843 = vsel %vm837, %v841, %v842
      %v844 = vrot.slane %v550, 1
      %v845 = vrot.slane %v614, 1
      %v846 = vsel %vm837, %v844, %v845
      %v847 = vrot.slane %v551, 1
      %v848 = vrot.slane %v615, 1
      %v849 = vsel %vm837, %v847, %v848
      %v850 = vrot.slane %v552, 1
      %v851 = vrot.slane %v616, 1
      %v852 = vsel %vm837, %v850, %v851
      %v853 = vrot.slane %v553, 1
      %v854 = vrot.slane %v617, 1
      %v855 = vsel %vm837, %v853, %v854
      %v856 = vrot.slane %v554, 1
      %v857 = vrot.slane %v618, 1
      %v858 = vsel %vm837, %v856, %v857
      %v859 = vrot.slane %v555, 1
      %v860 = vrot.slane %v619, 1
      %v861 = vsel %vm837, %v859, %v860
      %v862 = vrot.slane %v556, 1
      %v863 = vrot.slane %v620, 1
      %v864 = vsel %vm837, %v862, %v863
      %v865 = vrot.slane %v557, 1
      %v866 = vrot.slane %v621, 1
      %v867 = vsel %vm837, %v865, %v866
      %v868 = vrot.slane %v558, 1
      %v869 = vrot.slane %v622, 1
      %v870 = vsel %vm837, %v868, %v869
      %v871 = vrot.slane %v559, 1
      %v872 = vrot.slane %v623, 1
      %v873 = vsel %vm837, %v871, %v872
      %v874 = vrot.slane %v560, 1
      %v875 = vrot.slane %v624, 1
      %v876 = vsel %vm837, %v874, %v875
      %v877 = vrot.slane %v561, 1
      %v878 = vrot.slane %v625, 1
      %v879 = vsel %vm837, %v877, %v878
      %v880 = vrot.slane %v562, 1
      %v881 = vrot.slane %v626, 1
      %v882 = vsel %vm837, %v880, %v881
      %v883 = vrot.slane %v563, 1
      %v884 = vrot.slane %v627, 1
      %v885 = vsel %vm837, %v883, %v884
      %v902 = vld [vmem:[%s1] sm:$0xf]
      %v903 = vld [vmem:[%s1 + $0x4] sm:$0xf]
      %v904 = vld [vmem:[%s1 + $0x8] sm:$0xf]
      %v905 = vld [vmem:[%s1 + $0xc] sm:$0xf]
      %v906 = vld [vmem:[%s1 + $0x10] sm:$0xf]
      %v907 = vld [vmem:[%s1 + $0x14] sm:$0xf]
      %v908 = vld [vmem:[%s1 + $0x18] sm:$0xf]
      %v909 = vld [vmem:[%s1 + $0x1c] sm:$0xf]
      %v910 = vld [vmem:[%s1 + $0x20] sm:$0xf]
      %v911 = vld [vmem:[%s1 + $0x24] sm:$0xf]
      %v912 = vld [vmem:[%s1 + $0x28] sm:$0xf]
      %v913 = vld [vmem:[%s1 + $0x2c] sm:$0xf]
      %v914 = vld [vmem:[%s1 + $0x30] sm:$0xf]
      %v915 = vld [vmem:[%s1 + $0x34] sm:$0xf]
      %v916 = vld [vmem:[%s1 + $0x38] sm:$0xf]
      %v917 = vld [vmem:[%s1 + $0x3c] sm:$0xf]
      %v918 = vld [vmem:[%s1 + $0x40] sm:$0xf]
      %v919 = vld [vmem:[%s1 + $0x44] sm:$0xf]
      %v920 = vld [vmem:[%s1 + $0x48] sm:$0xf]
      %v921 = vld [vmem:[%s1 + $0x4c] sm:$0xf]
      %v922 = vld [vmem:[%s1 + $0x50] sm:$0xf]
      %v923 = vld [vmem:[%s1 + $0x54] sm:$0xf]
      %v924 = vld [vmem:[%s1 + $0x58] sm:$0xf]
      %v925 = vld [vmem:[%s1 + $0x5c] sm:$0xf]
      %v926 = vld [vmem:[%s1 + $0x60] sm:$0xf]
      %v927 = vld [vmem:[%s1 + $0x64] sm:$0xf]
      %v928 = vld [vmem:[%s1 + $0x68] sm:$0xf]
      %v929 = vld [vmem:[%s1 + $0x6c] sm:$0xf]
      %v930 = vld [vmem:[%s1 + $0x70] sm:$0xf]
      %v931 = vld [vmem:[%s1 + $0x74] sm:$0xf]
      %v932 = vld [vmem:[%s1 + $0x78] sm:$0xf]
      %v933 = vld [vmem:[%s1 + $0x7c] sm:$0xf]
      %v934 = vld [vmem:[%s1 + $0x80] sm:$0xf]
      %v935 = vld [vmem:[%s1 + $0x84] sm:$0xf]
      %v936 = vld [vmem:[%s1 + $0x88] sm:$0xf]
      %v937 = vld [vmem:[%s1 + $0x8c] sm:$0xf]
      %v938 = vld [vmem:[%s1 + $0x90] sm:$0xf]
      %v939 = vld [vmem:[%s1 + $0x94] sm:$0xf]
      %v940 = vld [vmem:[%s1 + $0x98] sm:$0xf]
      %v941 = vld [vmem:[%s1 + $0x9c] sm:$0xf]
      %v942 = vld [vmem:[%s1 + $0xa0] sm:$0xf]
      %v943 = vld [vmem:[%s1 + $0xa4] sm:$0xf]
      %v944 = vld [vmem:[%s1 + $0xa8] sm:$0xf]
      %v945 = vld [vmem:[%s1 + $0xac] sm:$0xf]
      %v946 = vld [vmem:[%s1 + $0xb0] sm:$0xf]
      %v947 = vld [vmem:[%s1 + $0xb4] sm:$0xf]
      %v948 = vld [vmem:[%s1 + $0xb8] sm:$0xf]
      %v949 = vld [vmem:[%s1 + $0xbc] sm:$0xf]
      %v952 = vunpack.c.l.b16 %v478
      %v953 = vunpack.c.l.b16 %v479
      %v954 = vpack.c.b16 %v953, %v952
      %v957 = vunpack.c.l.b16 %v480
      %v958 = vpack.c.b16 %v957, %v957
      %v960 = vshrl.u32 %v954, 16
      %v962 = vshll.u32 %v954, 16
      %v964 = vrot.slane %v962, 1
      %v965 = vor.u32 %v960, %v964
      %v967 = vshll.u32 %v958, 16
      %v969 = vrot.slane %v967, 1
      %v970 = vsel %vm628, %v965, %v969
      %v972 = vrot.slane %v954, 1
      %v973 = vrot.slane %v958, 1
      %v974 = vsel %vm837, %v972, %v973
      %s976 = scalar_lea.vmem %s1, 192
      %v977 = vld [vmem:[%s976] sm:$0xf]
      %v978 = vld [vmem:[%s976 + $0x4] sm:$0xf]
      %v979 = vld [vmem:[%s976 + $0x8] sm:$0xf]
      %v980 = vld [vmem:[%s976 + $0xc] sm:$0xf]
      %v981 = vld [vmem:[%s976 + $0x10] sm:$0xf]
      %v982 = vld [vmem:[%s976 + $0x14] sm:$0xf]
      %v983 = vld [vmem:[%s976 + $0x18] sm:$0xf]
      %v984 = vld [vmem:[%s976 + $0x1c] sm:$0xf]
      %v985 = vld [vmem:[%s976 + $0x20] sm:$0xf]
      %v986 = vld [vmem:[%s976 + $0x24] sm:$0xf]
      %v987 = vld [vmem:[%s976 + $0x28] sm:$0xf]
      %v988 = vld [vmem:[%s976 + $0x2c] sm:$0xf]
      %v989 = vld [vmem:[%s976 + $0x30] sm:$0xf]
      %v990 = vld [vmem:[%s976 + $0x34] sm:$0xf]
      %v991 = vld [vmem:[%s976 + $0x38] sm:$0xf]
      %v992 = vld [vmem:[%s976 + $0x3c] sm:$0xf]
      %v993 = vld [vmem:[%s976 + $0x40] sm:$0xf]
      %v994 = vld [vmem:[%s976 + $0x44] sm:$0xf]
      %v995 = vld [vmem:[%s976 + $0x48] sm:$0xf]
      %v996 = vld [vmem:[%s976 + $0x4c] sm:$0xf]
      %v997 = vld [vmem:[%s976 + $0x50] sm:$0xf]
      %v998 = vld [vmem:[%s976 + $0x54] sm:$0xf]
      %v999 = vld [vmem:[%s976 + $0x58] sm:$0xf]
      %v1000 = vld [vmem:[%s976 + $0x5c] sm:$0xf]
      %v1001 = vld [vmem:[%s976 + $0x60] sm:$0xf]
      %v1002 = vld [vmem:[%s976 + $0x64] sm:$0xf]
      %v1003 = vld [vmem:[%s976 + $0x68] sm:$0xf]
      %v1004 = vld [vmem:[%s976 + $0x6c] sm:$0xf]
      %v1005 = vld [vmem:[%s976 + $0x70] sm:$0xf]
      %v1006 = vld [vmem:[%s976 + $0x74] sm:$0xf]
      %v1007 = vld [vmem:[%s976 + $0x78] sm:$0xf]
      %v1008 = vld [vmem:[%s976 + $0x7c] sm:$0xf]
      %v1009 = vld [vmem:[%s976 + $0x80] sm:$0xf]
      %v1010 = vld [vmem:[%s976 + $0x84] sm:$0xf]
      %v1011 = vld [vmem:[%s976 + $0x88] sm:$0xf]
      %v1012 = vld [vmem:[%s976 + $0x8c] sm:$0xf]
      %v1013 = vld [vmem:[%s976 + $0x90] sm:$0xf]
      %v1014 = vld [vmem:[%s976 + $0x94] sm:$0xf]
      %v1015 = vld [vmem:[%s976 + $0x98] sm:$0xf]
      %v1016 = vld [vmem:[%s976 + $0x9c] sm:$0xf]
      %v1017 = vld [vmem:[%s976 + $0xa0] sm:$0xf]
      %v1018 = vld [vmem:[%s976 + $0xa4] sm:$0xf]
      %v1019 = vld [vmem:[%s976 + $0xa8] sm:$0xf]
      %v1020 = vld [vmem:[%s976 + $0xac] sm:$0xf]
      %v1021 = vld [vmem:[%s976 + $0xb0] sm:$0xf]
      %v1022 = vld [vmem:[%s976 + $0xb4] sm:$0xf]
      %v1023 = vld [vmem:[%s976 + $0xb8] sm:$0xf]
      %v1024 = vld [vmem:[%s976 + $0xbc] sm:$0xf]
      %v1073 = vunpack.c.l.b16 %v977
      %v1074 = vunpack.c.l.b16 %v978
      %v1075 = vunpack.c.l.b16 %v979
      %v1076 = vunpack.c.l.b16 %v980
      %v1077 = vunpack.c.l.b16 %v981
      %v1078 = vunpack.c.l.b16 %v982
      %v1079 = vunpack.c.l.b16 %v983
      %v1080 = vunpack.c.l.b16 %v984
      %v1081 = vunpack.c.l.b16 %v985
      %v1082 = vunpack.c.l.b16 %v986
      %v1083 = vunpack.c.l.b16 %v987
      %v1084 = vunpack.c.l.b16 %v988
      %v1085 = vunpack.c.l.b16 %v989
      %v1086 = vunpack.c.l.b16 %v990
      %v1087 = vunpack.c.l.b16 %v991
      %v1088 = vunpack.c.l.b16 %v992
      %v1089 = vunpack.c.l.b16 %v993
      %v1090 = vunpack.c.l.b16 %v994
      %v1091 = vunpack.c.l.b16 %v995
      %v1092 = vunpack.c.l.b16 %v996
      %v1093 = vunpack.c.l.b16 %v997
      %v1094 = vunpack.c.l.b16 %v998
      %v1095 = vunpack.c.l.b16 %v999
      %v1096 = vunpack.c.l.b16 %v1000
      %v1097 = vunpack.c.l.b16 %v1001
      %v1098 = vunpack.c.l.b16 %v1002
      %v1099 = vunpack.c.l.b16 %v1003
      %v1100 = vunpack.c.l.b16 %v1004
      %v1101 = vunpack.c.l.b16 %v1005
      %v1102 = vunpack.c.l.b16 %v1006
      %v1103 = vunpack.c.l.b16 %v1007
      %v1104 = vunpack.c.l.b16 %v1008
      %v1105 = vunpack.c.l.b16 %v1009
      %v1106 = vunpack.c.l.b16 %v1010
      %v1107 = vunpack.c.l.b16 %v1011
      %v1108 = vunpack.c.l.b16 %v1012
      %v1109 = vunpack.c.l.b16 %v1013
      %v1110 = vunpack.c.l.b16 %v1014
      %v1111 = vunpack.c.l.b16 %v1015
      %v1112 = vunpack.c.l.b16 %v1016
      %v1113 = vunpack.c.l.b16 %v1017
      %v1114 = vunpack.c.l.b16 %v1018
      %v1115 = vunpack.c.l.b16 %v1019
      %v1116 = vunpack.c.l.b16 %v1020
      %v1117 = vunpack.c.l.b16 %v1021
      %v1118 = vunpack.c.l.b16 %v1022
      %v1119 = vunpack.c.l.b16 %v1023
      %v1120 = vunpack.c.l.b16 %v1024
      %v1121 = vpack.c.b16 %v1074, %v1073
      %v1122 = vpack.c.b16 %v1076, %v1075
      %v1123 = vpack.c.b16 %v1078, %v1077
      %v1124 = vpack.c.b16 %v1080, %v1079
      %v1125 = vpack.c.b16 %v1082, %v1081
      %v1126 = vpack.c.b16 %v1084, %v1083
      %v1127 = vpack.c.b16 %v1086, %v1085
      %v1128 = vpack.c.b16 %v1088, %v1087
      %v1129 = vpack.c.b16 %v1090, %v1089
      %v1130 = vpack.c.b16 %v1092, %v1091
      %v1131 = vpack.c.b16 %v1094, %v1093
      %v1132 = vpack.c.b16 %v1096, %v1095
      %v1133 = vpack.c.b16 %v1098, %v1097
      %v1134 = vpack.c.b16 %v1100, %v1099
      %v1135 = vpack.c.b16 %v1102, %v1101
      %v1136 = vpack.c.b16 %v1104, %v1103
      %v1137 = vpack.c.b16 %v1106, %v1105
      %v1138 = vpack.c.b16 %v1108, %v1107
      %v1139 = vpack.c.b16 %v1110, %v1109
      %v1140 = vpack.c.b16 %v1112, %v1111
      %v1141 = vpack.c.b16 %v1114, %v1113
      %v1142 = vpack.c.b16 %v1116, %v1115
      %v1143 = vpack.c.b16 %v1118, %v1117
      %v1144 = vpack.c.b16 %v1120, %v1119
      %1169 = vmatprep.subr.bf16.mxu0 0
      %1170 = vmatpush1.bf16.msra.mxu0 %v1128
      %1171 = vmatprep.subr.bf16.mxu0 0
      %1172 = vmatpush1.bf16.msra.mxu0 %v1127
      %1173 = vmatprep.subr.bf16.mxu0 0
      %1174 = vmatpush1.bf16.msra.mxu0 %v1126
      %1175 = vmatprep.subr.bf16.mxu0 0
      %1176 = vmatpush1.bf16.msra.mxu0 %v1125
      %1177 = vmatprep.subr.bf16.mxu0 0
      %1178 = vmatpush1.bf16.msra.mxu0 %v1124
      %1179 = vmatprep.subr.bf16.mxu0 0
      %1180 = vmatpush1.bf16.msra.mxu0 %v1123
      %1181 = vmatprep.subr.bf16.mxu0 0
      %1182 = vmatpush1.bf16.msra.mxu0 %v1122
      %1183 = vmatprep.subr.bf16.mxu0 0
      %1184 = vmatpush1.bf16.msra.mxu0 %v1121
      %1185 = vmatprep.subr.bf16.mxu0 0
      %1186 = vmatpush2.bf16.msra.mxu0 %v1136
      %1187 = vmatprep.subr.bf16.mxu0 0
      %1188 = vmatpush2.bf16.msra.mxu0 %v1135
      %1189 = vmatprep.subr.bf16.mxu0 0
      %1190 = vmatpush2.bf16.msra.mxu0 %v1134
      %1191 = vmatprep.subr.bf16.mxu0 0
      %1192 = vmatpush2.bf16.msra.mxu0 %v1133
      %1193 = vmatprep.subr.bf16.mxu0 0
      %1194 = vmatpush2.bf16.msra.mxu0 %v1132
      %1195 = vmatprep.subr.bf16.mxu0 0
      %1196 = vmatpush2.bf16.msra.mxu0 %v1131
      %1197 = vmatprep.subr.bf16.mxu0 0
      %1198 = vmatpush2.bf16.msra.mxu0 %v1130
      %1199 = vmatprep.subr.bf16.mxu0 0
      %1200 = vmatpush2.bf16.msra.mxu0 %v1129
      %1201 = vmatprep.mubr.bf16.mxu0 %v652
      %1202 = vmatmul.mubr.bf16.gmra.mxu0 %v549
      %v1203 = vpop.f32.mrf.mxu0
      %v1204 = vadd.f32 0.0, %v1203
      %v1205 = vpop.f32.mrf.mxu0
      %v1206 = vpop.f32.mrf.mxu0
      %v1207 = vadd.f32 0.0, %v1206
      %v1208 = vpop.f32.mrf.mxu0
      %1209 = vmatprep.mubr.bf16.mxu0 %v664
      %1210 = vmatmul.mubr.bf16.gmra.mxu0 %v550
      %v1211 = vpop.f32.mrf.mxu0
      %v1212 = vadd.f32 0.0, %v1211
      %v1213 = vpop.f32.mrf.mxu0
      %v1214 = vpop.f32.mrf.mxu0
      %v1215 = vadd.f32 0.0, %v1214
      %v1216 = vpop.f32.mrf.mxu0
      %1217 = vmatprep.mubr.bf16.mxu0 %v676
      %1218 = vmatmul.mubr.bf16.gmra.mxu0 %v551
      %v1219 = vpop.f32.mrf.mxu0
      %v1220 = vadd.f32 0.0, %v1219
      %v1221 = vpop.f32.mrf.mxu0
      %v1222 = vpop.f32.mrf.mxu0
      %v1223 = vadd.f32 0.0, %v1222
      %v1224 = vpop.f32.mrf.mxu0
      %1225 = vmatprep.mubr.bf16.mxu0 %v688
      %1226 = vmatmul.mubr.bf16.gmra.mxu0 %v552
      %v1227 = vpop.f32.mrf.mxu0
      %v1228 = vadd.f32 0.0, %v1227
      %v1229 = vpop.f32.mrf.mxu0
      %v1230 = vpop.f32.mrf.mxu0
      %v1231 = vadd.f32 0.0, %v1230
      %v1232 = vpop.f32.mrf.mxu0
      %1233 = vmatprep.mubr.bf16.mxu0 %v700
      %1234 = vmatmul.mubr.bf16.gmra.mxu0 %v553
      %v1235 = vpop.f32.mrf.mxu0
      %v1236 = vadd.f32 0.0, %v1235
      %v1237 = vpop.f32.mrf.mxu0
      %v1238 = vpop.f32.mrf.mxu0
      %v1239 = vadd.f32 0.0, %v1238
      %v1240 = vpop.f32.mrf.mxu0
      %1241 = vmatprep.mubr.bf16.mxu0 %v712
      %1242 = vmatmul.mubr.bf16.gmra.mxu0 %v554
      %v1243 = vpop.f32.mrf.mxu0
      %v1244 = vadd.f32 0.0, %v1243
      %v1245 = vpop.f32.mrf.mxu0
      %v1246 = vpop.f32.mrf.mxu0
      %v1247 = vadd.f32 0.0, %v1246
      %v1248 = vpop.f32.mrf.mxu0
      %1249 = vmatprep.mubr.bf16.mxu0 %v724
      %1250 = vmatmul.mubr.bf16.gmra.mxu0 %v555
      %v1251 = vpop.f32.mrf.mxu0
      %v1252 = vadd.f32 0.0, %v1251
      %v1253 = vpop.f32.mrf.mxu0
      %v1254 = vpop.f32.mrf.mxu0
      %v1255 = vadd.f32 0.0, %v1254
      %v1256 = vpop.f32.mrf.mxu0
      %1257 = vmatprep.mubr.bf16.mxu0 %v736
      %1258 = vmatmul.mubr.bf16.gmra.mxu0 %v556
      %v1259 = vpop.f32.mrf.mxu0
      %v1260 = vadd.f32 0.0, %v1259
      %v1261 = vpop.f32.mrf.mxu0
      %v1262 = vpop.f32.mrf.mxu0
      %v1263 = vadd.f32 0.0, %v1262
      %v1264 = vpop.f32.mrf.mxu0
      %1265 = vmatprep.mubr.bf16.mxu0 %v748
      %1266 = vmatmul.mubr.bf16.gmra.mxu0 %v557
      %v1267 = vpop.f32.mrf.mxu0
      %v1268 = vadd.f32 0.0, %v1267
      %v1269 = vpop.f32.mrf.mxu0
      %v1270 = vpop.f32.mrf.mxu0
      %v1271 = vadd.f32 0.0, %v1270
      %v1272 = vpop.f32.mrf.mxu0
      %1273 = vmatprep.mubr.bf16.mxu0 %v760
      %1274 = vmatmul.mubr.bf16.gmra.mxu0 %v558
      %v1275 = vpop.f32.mrf.mxu0
      %v1276 = vadd.f32 0.0, %v1275
      %v1277 = vpop.f32.mrf.mxu0
      %v1278 = vpop.f32.mrf.mxu0
      %v1279 = vadd.f32 0.0, %v1278
      %v1280 = vpop.f32.mrf.mxu0
      %1281 = vmatprep.mubr.bf16.mxu0 %v772
      %1282 = vmatmul.mubr.bf16.gmra.mxu0 %v559
      %v1283 = vpop.f32.mrf.mxu0
      %v1284 = vadd.f32 0.0, %v1283
      %v1285 = vpop.f32.mrf.mxu0
      %v1286 = vpop.f32.mrf.mxu0
      %v1287 = vadd.f32 0.0, %v1286
      %v1288 = vpop.f32.mrf.mxu0
      %1289 = vmatprep.mubr.bf16.mxu0 %v784
      %1290 = vmatmul.mubr.bf16.gmra.mxu0 %v560
      %v1291 = vpop.f32.mrf.mxu0
      %v1292 = vadd.f32 0.0, %v1291
      %v1293 = vpop.f32.mrf.mxu0
      %v1294 = vpop.f32.mrf.mxu0
      %v1295 = vadd.f32 0.0, %v1294
      %v1296 = vpop.f32.mrf.mxu0
      %1297 = vmatprep.mubr.bf16.mxu0 %v796
      %1298 = vmatmul.mubr.bf16.gmra.mxu0 %v561
      %v1299 = vpop.f32.mrf.mxu0
      %v1300 = vadd.f32 0.0, %v1299
      %v1301 = vpop.f32.mrf.mxu0
      %v1302 = vpop.f32.mrf.mxu0
      %v1303 = vadd.f32 0.0, %v1302
      %v1304 = vpop.f32.mrf.mxu0
      %1305 = vmatprep.mubr.bf16.mxu0 %v808
      %1306 = vmatmul.mubr.bf16.gmra.mxu0 %v562
      %v1307 = vpop.f32.mrf.mxu0
      %v1308 = vadd.f32 0.0, %v1307
      %v1309 = vpop.f32.mrf.mxu0
      %v1310 = vpop.f32.mrf.mxu0
      %v1311 = vadd.f32 0.0, %v1310
      %v1312 = vpop.f32.mrf.mxu0
      %1313 = vmatprep.mubr.bf16.mxu0 %v820
      %1314 = vmatmul.mubr.bf16.gmra.mxu0 %v563
      %v1315 = vpop.f32.mrf.mxu0
      %v1316 = vadd.f32 0.0, %v1315
      %v1317 = vpop.f32.mrf.mxu0
      %v1318 = vpop.f32.mrf.mxu0
      %v1319 = vadd.f32 0.0, %v1318
      %v1320 = vpop.f32.mrf.mxu0
      %1321 = vmatprep.mubr.bf16.mxu0 %v970
      %1322 = vmatmul.mubr.bf16.gmra.mxu0 %v954
      %v1323 = vpop.f32.mrf.mxu0
      %v1324 = vadd.f32 0.0, %v1323
      %v1325 = vpop.f32.mrf.mxu0
      %v1326 = vpop.f32.mrf.mxu0
      %v1327 = vadd.f32 0.0, %v1326
      %v1328 = vpop.f32.mrf.mxu0
      %1329 = vdwg.mxu0
      %1330 = vmatprep.subr.bf16.mxu0 0
      %1331 = vmatpush1.bf16.msra.mxu0 %v1144
      %1332 = vmatprep.subr.bf16.mxu0 0
      %1333 = vmatpush1.bf16.msra.mxu0 %v1143
      %1334 = vmatprep.subr.bf16.mxu0 0
      %1335 = vmatpush1.bf16.msra.mxu0 %v1142
      %1336 = vmatprep.subr.bf16.mxu0 0
      %1337 = vmatpush1.bf16.msra.mxu0 %v1141
      %1338 = vmatprep.subr.bf16.mxu0 0
      %1339 = vmatpush1.bf16.msra.mxu0 %v1140
      %1340 = vmatprep.subr.bf16.mxu0 0
      %1341 = vmatpush1.bf16.msra.mxu0 %v1139
      %1342 = vmatprep.subr.bf16.mxu0 0
      %1343 = vmatpush1.bf16.msra.mxu0 %v1138
      %1344 = vmatprep.subr.bf16.mxu0 0
      %1345 = vmatpush1.bf16.msra.mxu0 %v1137
      %1346 = vmatprep.subr.bf16.mxu0 0
      %1347 = vmatpush2.bf16.msra.mxu0 0
      %1348 = vmatprep.subr.bf16.mxu0 0
      %1349 = vmatpush2.bf16.msra.mxu0 0
      %1350 = vmatprep.subr.bf16.mxu0 0
      %1351 = vmatpush2.bf16.msra.mxu0 0
      %1352 = vmatprep.subr.bf16.mxu0 0
      %1353 = vmatpush2.bf16.msra.mxu0 0
      %1354 = vmatprep.subr.bf16.mxu0 0
      %1355 = vmatpush2.bf16.msra.mxu0 0
      %1356 = vmatprep.subr.bf16.mxu0 0
      %1357 = vmatpush2.bf16.msra.mxu0 0
      %1358 = vmatprep.subr.bf16.mxu0 0
      %1359 = vmatpush2.bf16.msra.mxu0 0
      %1360 = vmatprep.subr.bf16.mxu0 0
      %1361 = vmatpush2.bf16.msra.mxu0 0
      %1362 = vmatprep.mubr.bf16.mxu0 0
      %1363 = vmatmul.mubr.bf16.gmra.mxu0 %v843
      %v1364 = vpop.f32.mrf.mxu0
      %v1365 = vadd.f32 %v1204, %v1364
      %v1366 = vpop.f32.mrf.mxu0
      %v1367 = vpop.f32.mrf.mxu0
      %v1368 = vadd.f32 %v1207, %v1367
      %v1369 = vpop.f32.mrf.mxu0
      %1370 = vmatprep.mubr.bf16.mxu0 0
      %1371 = vmatmul.mubr.bf16.gmra.mxu0 %v846
      %v1372 = vpop.f32.mrf.mxu0
      %v1373 = vadd.f32 %v1212, %v1372
      %v1374 = vpop.f32.mrf.mxu0
      %v1375 = vpop.f32.mrf.mxu0
      %v1376 = vadd.f32 %v1215, %v1375
      %v1377 = vpop.f32.mrf.mxu0
      %1378 = vmatprep.mubr.bf16.mxu0 0
      %1379 = vmatmul.mubr.bf16.gmra.mxu0 %v849
      %v1380 = vpop.f32.mrf.mxu0
      %v1381 = vadd.f32 %v1220, %v1380
      %v1382 = vpop.f32.mrf.mxu0
      %v1383 = vpop.f32.mrf.mxu0
      %v1384 = vadd.f32 %v1223, %v1383
      %v1385 = vpop.f32.mrf.mxu0
      %1386 = vmatprep.mubr.bf16.mxu0 0
      %1387 = vmatmul.mubr.bf16.gmra.mxu0 %v852
      %v1388 = vpop.f32.mrf.mxu0
      %v1389 = vadd.f32 %v1228, %v1388
      %v1390 = vpop.f32.mrf.mxu0
      %v1391 = vpop.f32.mrf.mxu0
      %v1392 = vadd.f32 %v1231, %v1391
      %v1393 = vpop.f32.mrf.mxu0
      %1394 = vmatprep.mubr.bf16.mxu0 0
      %1395 = vmatmul.mubr.bf16.gmra.mxu0 %v855
      %v1396 = vpop.f32.mrf.mxu0
      %v1397 = vadd.f32 %v1236, %v1396
      %v1398 = vpop.f32.mrf.mxu0
      %v1399 = vpop.f32.mrf.mxu0
      %v1400 = vadd.f32 %v1239, %v1399
      %v1401 = vpop.f32.mrf.mxu0
      %1402 = vmatprep.mubr.bf16.mxu0 0
      %1403 = vmatmul.mubr.bf16.gmra.mxu0 %v858
      %v1404 = vpop.f32.mrf.mxu0
      %v1405 = vadd.f32 %v1244, %v1404
      %v1406 = vpop.f32.mrf.mxu0
      %v1407 = vpop.f32.mrf.mxu0
      %v1408 = vadd.f32 %v1247, %v1407
      %v1409 = vpop.f32.mrf.mxu0
      %1410 = vmatprep.mubr.bf16.mxu0 0
      %1411 = vmatmul.mubr.bf16.gmra.mxu0 %v861
      %v1412 = vpop.f32.mrf.mxu0
      %v1413 = vadd.f32 %v1252, %v1412
      %v1414 = vpop.f32.mrf.mxu0
      %v1415 = vpop.f32.mrf.mxu0
      %v1416 = vadd.f32 %v1255, %v1415
      %v1417 = vpop.f32.mrf.mxu0
      %1418 = vmatprep.mubr.bf16.mxu0 0
      %1419 = vmatmul.mubr.bf16.gmra.mxu0 %v864
      %v1420 = vpop.f32.mrf.mxu0
      %v1421 = vadd.f32 %v1260, %v1420
      %v1422 = vpop.f32.mrf.mxu0
      %v1423 = vpop.f32.mrf.mxu0
      %v1424 = vadd.f32 %v1263, %v1423
      %v1425 = vpop.f32.mrf.mxu0
      %1426 = vmatprep.mubr.bf16.mxu0 0
      %1427 = vmatmul.mubr.bf16.gmra.mxu0 %v867
      %v1428 = vpop.f32.mrf.mxu0
      %v1429 = vadd.f32 %v1268, %v1428
      %v1430 = vpop.f32.mrf.mxu0
      %v1431 = vpop.f32.mrf.mxu0
      %v1432 = vadd.f32 %v1271, %v1431
      %v1433 = vpop.f32.mrf.mxu0
      %1434 = vmatprep.mubr.bf16.mxu0 0
      %1435 = vmatmul.mubr.bf16.gmra.mxu0 %v870
      %v1436 = vpop.f32.mrf.mxu0
      %v1437 = vadd.f32 %v1276, %v1436
      %v1438 = vpop.f32.mrf.mxu0
      %v1439 = vpop.f32.mrf.mxu0
      %v1440 = vadd.f32 %v1279, %v1439
      %v1441 = vpop.f32.mrf.mxu0
      %1442 = vmatprep.mubr.bf16.mxu0 0
      %1443 = vmatmul.mubr.bf16.gmra.mxu0 %v873
      %v1444 = vpop.f32.mrf.mxu0
      %v1445 = vadd.f32 %v1284, %v1444
      %v1446 = vpop.f32.mrf.mxu0
      %v1447 = vpop.f32.mrf.mxu0
      %v1448 = vadd.f32 %v1287, %v1447
      %v1449 = vpop.f32.mrf.mxu0
      %1450 = vmatprep.mubr.bf16.mxu0 0
      %1451 = vmatmul.mubr.bf16.gmra.mxu0 %v876
      %v1452 = vpop.f32.mrf.mxu0
      %v1453 = vadd.f32 %v1292, %v1452
      %v1454 = vpop.f32.mrf.mxu0
      %v1455 = vpop.f32.mrf.mxu0
      %v1456 = vadd.f32 %v1295, %v1455
      %v1457 = vpop.f32.mrf.mxu0
      %1458 = vmatprep.mubr.bf16.mxu0 0
      %1459 = vmatmul.mubr.bf16.gmra.mxu0 %v879
      %v1460 = vpop.f32.mrf.mxu0
      %v1461 = vadd.f32 %v1300, %v1460
      %v1462 = vpop.f32.mrf.mxu0
      %v1463 = vpop.f32.mrf.mxu0
      %v1464 = vadd.f32 %v1303, %v1463
      %v1465 = vpop.f32.mrf.mxu0
      %1466 = vmatprep.mubr.bf16.mxu0 0
      %1467 = vmatmul.mubr.bf16.gmra.mxu0 %v882
      %v1468 = vpop.f32.mrf.mxu0
      %v1469 = vadd.f32 %v1308, %v1468
      %v1470 = vpop.f32.mrf.mxu0
      %v1471 = vpop.f32.mrf.mxu0
      %v1472 = vadd.f32 %v1311, %v1471
      %v1473 = vpop.f32.mrf.mxu0
      %1474 = vmatprep.mubr.bf16.mxu0 0
      %1475 = vmatmul.mubr.bf16.gmra.mxu0 %v885
      %v1476 = vpop.f32.mrf.mxu0
      %v1477 = vadd.f32 %v1316, %v1476
      %v1478 = vpop.f32.mrf.mxu0
      %v1479 = vpop.f32.mrf.mxu0
      %v1480 = vadd.f32 %v1319, %v1479
      %v1481 = vpop.f32.mrf.mxu0
      %1482 = vmatprep.mubr.bf16.mxu0 0
      %1483 = vmatmul.mubr.bf16.gmra.mxu0 %v974
      %v1484 = vpop.f32.mrf.mxu0
      %v1485 = vadd.f32 %v1324, %v1484
      %v1486 = vpop.f32.mrf.mxu0
      %v1487 = vpop.f32.mrf.mxu0
      %v1488 = vadd.f32 %v1327, %v1487
      %v1489 = vpop.f32.mrf.mxu0
      %1490 = vdwg.mxu0
      %v1539 = vunpack.c.l.b16 %v902
      %v1540 = vunpack.c.l.b16 %v903
      %v1541 = vunpack.c.l.b16 %v904
      %v1542 = vunpack.c.l.b16 %v905
      %v1543 = vunpack.c.l.b16 %v906
      %v1544 = vunpack.c.l.b16 %v907
      %v1545 = vunpack.c.l.b16 %v908
      %v1546 = vunpack.c.l.b16 %v909
      %v1547 = vunpack.c.l.b16 %v910
      %v1548 = vunpack.c.l.b16 %v911
      %v1549 = vunpack.c.l.b16 %v912
      %v1550 = vunpack.c.l.b16 %v913
      %v1551 = vunpack.c.l.b16 %v914
      %v1552 = vunpack.c.l.b16 %v915
      %v1553 = vunpack.c.l.b16 %v916
      %v1554 = vunpack.c.l.b16 %v917
      %v1555 = vunpack.c.l.b16 %v918
      %v1556 = vunpack.c.l.b16 %v919
      %v1557 = vunpack.c.l.b16 %v920
      %v1558 = vunpack.c.l.b16 %v921
      %v1559 = vunpack.c.l.b16 %v922
      %v1560 = vunpack.c.l.b16 %v923
      %v1561 = vunpack.c.l.b16 %v924
      %v1562 = vunpack.c.l.b16 %v925
      %v1563 = vunpack.c.l.b16 %v926
      %v1564 = vunpack.c.l.b16 %v927
      %v1565 = vunpack.c.l.b16 %v928
      %v1566 = vunpack.c.l.b16 %v929
      %v1567 = vunpack.c.l.b16 %v930
      %v1568 = vunpack.c.l.b16 %v931
      %v1569 = vunpack.c.l.b16 %v932
      %v1570 = vunpack.c.l.b16 %v933
      %v1571 = vunpack.c.l.b16 %v934
      %v1572 = vunpack.c.l.b16 %v935
      %v1573 = vunpack.c.l.b16 %v936
      %v1574 = vunpack.c.l.b16 %v937
      %v1575 = vunpack.c.l.b16 %v938
      %v1576 = vunpack.c.l.b16 %v939
      %v1577 = vunpack.c.l.b16 %v940
      %v1578 = vunpack.c.l.b16 %v941
      %v1579 = vunpack.c.l.b16 %v942
      %v1580 = vunpack.c.l.b16 %v943
      %v1581 = vunpack.c.l.b16 %v944
      %v1582 = vunpack.c.l.b16 %v945
      %v1583 = vunpack.c.l.b16 %v946
      %v1584 = vunpack.c.l.b16 %v947
      %v1585 = vunpack.c.l.b16 %v948
      %v1586 = vunpack.c.l.b16 %v949
      %v1587 = vpack.c.b16 %v1540, %v1539
      %v1588 = vpack.c.b16 %v1542, %v1541
      %v1589 = vpack.c.b16 %v1544, %v1543
      %v1590 = vpack.c.b16 %v1546, %v1545
      %v1591 = vpack.c.b16 %v1548, %v1547
      %v1592 = vpack.c.b16 %v1550, %v1549
      %v1593 = vpack.c.b16 %v1552, %v1551
      %v1594 = vpack.c.b16 %v1554, %v1553
      %v1595 = vpack.c.b16 %v1556, %v1555
      %v1596 = vpack.c.b16 %v1558, %v1557
      %v1597 = vpack.c.b16 %v1560, %v1559
      %v1598 = vpack.c.b16 %v1562, %v1561
      %v1599 = vpack.c.b16 %v1564, %v1563
      %v1600 = vpack.c.b16 %v1566, %v1565
      %v1601 = vpack.c.b16 %v1568, %v1567
      %v1602 = vpack.c.b16 %v1570, %v1569
      %v1603 = vpack.c.b16 %v1572, %v1571
      %v1604 = vpack.c.b16 %v1574, %v1573
      %v1605 = vpack.c.b16 %v1576, %v1575
      %v1606 = vpack.c.b16 %v1578, %v1577
      %v1607 = vpack.c.b16 %v1580, %v1579
      %v1608 = vpack.c.b16 %v1582, %v1581
      %v1609 = vpack.c.b16 %v1584, %v1583
      %v1610 = vpack.c.b16 %v1586, %v1585
      %1635 = vmatprep.subr.bf16.mxu0 0
      %1636 = vmatpush1.bf16.msra.mxu0 %v1594
      %1637 = vmatprep.subr.bf16.mxu0 0
      %1638 = vmatpush1.bf16.msra.mxu0 %v1593
      %1639 = vmatprep.subr.bf16.mxu0 0
      %1640 = vmatpush1.bf16.msra.mxu0 %v1592
      %1641 = vmatprep.subr.bf16.mxu0 0
      %1642 = vmatpush1.bf16.msra.mxu0 %v1591
      %1643 = vmatprep.subr.bf16.mxu0 0
      %1644 = vmatpush1.bf16.msra.mxu0 %v1590
      %1645 = vmatprep.subr.bf16.mxu0 0
      %1646 = vmatpush1.bf16.msra.mxu0 %v1589
      %1647 = vmatprep.subr.bf16.mxu0 0
      %1648 = vmatpush1.bf16.msra.mxu0 %v1588
      %1649 = vmatprep.subr.bf16.mxu0 0
      %1650 = vmatpush1.bf16.msra.mxu0 %v1587
      %1651 = vmatprep.subr.bf16.mxu0 0
      %1652 = vmatpush2.bf16.msra.mxu0 %v1602
      %1653 = vmatprep.subr.bf16.mxu0 0
      %1654 = vmatpush2.bf16.msra.mxu0 %v1601
      %1655 = vmatprep.subr.bf16.mxu0 0
      %1656 = vmatpush2.bf16.msra.mxu0 %v1600
      %1657 = vmatprep.subr.bf16.mxu0 0
      %1658 = vmatpush2.bf16.msra.mxu0 %v1599
      %1659 = vmatprep.subr.bf16.mxu0 0
      %1660 = vmatpush2.bf16.msra.mxu0 %v1598
      %1661 = vmatprep.subr.bf16.mxu0 0
      %1662 = vmatpush2.bf16.msra.mxu0 %v1597
      %1663 = vmatprep.subr.bf16.mxu0 0
      %1664 = vmatpush2.bf16.msra.mxu0 %v1596
      %1665 = vmatprep.subr.bf16.mxu0 0
      %1666 = vmatpush2.bf16.msra.mxu0 %v1595
      %1667 = vmatprep.mubr.bf16.mxu0 %v640
      %1668 = vmatmul.mubr.bf16.gmra.mxu0 %v548
      %v1669 = vpop.f32.mrf.mxu0
      %v1670 = vadd.f32 %v1365, %v1669
      %v1671 = vpop.f32.mrf.mxu0
      %v1672 = vpop.f32.mrf.mxu0
      %v1673 = vadd.f32 %v1368, %v1672
      %v1674 = vpop.f32.mrf.mxu0
      %1675 = vmatprep.mubr.bf16.mxu0 %v652
      %1676 = vmatmul.mubr.bf16.gmra.mxu0 %v549
      %v1677 = vpop.f32.mrf.mxu0
      %v1678 = vadd.f32 %v1373, %v1677
      %v1679 = vpop.f32.mrf.mxu0
      %v1680 = vpop.f32.mrf.mxu0
      %v1681 = vadd.f32 %v1376, %v1680
      %v1682 = vpop.f32.mrf.mxu0
      %1683 = vmatprep.mubr.bf16.mxu0 %v664
      %1684 = vmatmul.mubr.bf16.gmra.mxu0 %v550
      %v1685 = vpop.f32.mrf.mxu0
      %v1686 = vadd.f32 %v1381, %v1685
      %v1687 = vpop.f32.mrf.mxu0
      %v1688 = vpop.f32.mrf.mxu0
      %v1689 = vadd.f32 %v1384, %v1688
      %v1690 = vpop.f32.mrf.mxu0
      %1691 = vmatprep.mubr.bf16.mxu0 %v676
      %1692 = vmatmul.mubr.bf16.gmra.mxu0 %v551
      %v1693 = vpop.f32.mrf.mxu0
      %v1694 = vadd.f32 %v1389, %v1693
      %v1695 = vpop.f32.mrf.mxu0
      %v1696 = vpop.f32.mrf.mxu0
      %v1697 = vadd.f32 %v1392, %v1696
      %v1698 = vpop.f32.mrf.mxu0
      %1699 = vmatprep.mubr.bf16.mxu0 %v688
      %1700 = vmatmul.mubr.bf16.gmra.mxu0 %v552
      %v1701 = vpop.f32.mrf.mxu0
      %v1702 = vadd.f32 %v1397, %v1701
      %v1703 = vpop.f32.mrf.mxu0
      %v1704 = vpop.f32.mrf.mxu0
      %v1705 = vadd.f32 %v1400, %v1704
      %v1706 = vpop.f32.mrf.mxu0
      %1707 = vmatprep.mubr.bf16.mxu0 %v700
      %1708 = vmatmul.mubr.bf16.gmra.mxu0 %v553
      %v1709 = vpop.f32.mrf.mxu0
      %v1710 = vadd.f32 %v1405, %v1709
      %v1711 = vpop.f32.mrf.mxu0
      %v1712 = vpop.f32.mrf.mxu0
      %v1713 = vadd.f32 %v1408, %v1712
      %v1714 = vpop.f32.mrf.mxu0
      %1715 = vmatprep.mubr.bf16.mxu0 %v712
      %1716 = vmatmul.mubr.bf16.gmra.mxu0 %v554
      %v1717 = vpop.f32.mrf.mxu0
      %v1718 = vadd.f32 %v1413, %v1717
      %v1719 = vpop.f32.mrf.mxu0
      %v1720 = vpop.f32.mrf.mxu0
      %v1721 = vadd.f32 %v1416, %v1720
      %v1722 = vpop.f32.mrf.mxu0
      %1723 = vmatprep.mubr.bf16.mxu0 %v724
      %1724 = vmatmul.mubr.bf16.gmra.mxu0 %v555
      %v1725 = vpop.f32.mrf.mxu0
      %v1726 = vadd.f32 %v1421, %v1725
      %v1727 = vpop.f32.mrf.mxu0
      %v1728 = vpop.f32.mrf.mxu0
      %v1729 = vadd.f32 %v1424, %v1728
      %v1730 = vpop.f32.mrf.mxu0
      %1731 = vmatprep.mubr.bf16.mxu0 %v736
      %1732 = vmatmul.mubr.bf16.gmra.mxu0 %v556
      %v1733 = vpop.f32.mrf.mxu0
      %v1734 = vadd.f32 %v1429, %v1733
      %v1735 = vpop.f32.mrf.mxu0
      %v1736 = vpop.f32.mrf.mxu0
      %v1737 = vadd.f32 %v1432, %v1736
      %v1738 = vpop.f32.mrf.mxu0
      %1739 = vmatprep.mubr.bf16.mxu0 %v748
      %1740 = vmatmul.mubr.bf16.gmra.mxu0 %v557
      %v1741 = vpop.f32.mrf.mxu0
      %v1742 = vadd.f32 %v1437, %v1741
      %v1743 = vpop.f32.mrf.mxu0
      %v1744 = vpop.f32.mrf.mxu0
      %v1745 = vadd.f32 %v1440, %v1744
      %v1746 = vpop.f32.mrf.mxu0
      %1747 = vmatprep.mubr.bf16.mxu0 %v760
      %1748 = vmatmul.mubr.bf16.gmra.mxu0 %v558
      %v1749 = vpop.f32.mrf.mxu0
      %v1750 = vadd.f32 %v1445, %v1749
      %v1751 = vpop.f32.mrf.mxu0
      %v1752 = vpop.f32.mrf.mxu0
      %v1753 = vadd.f32 %v1448, %v1752
      %v1754 = vpop.f32.mrf.mxu0
      %1755 = vmatprep.mubr.bf16.mxu0 %v772
      %1756 = vmatmul.mubr.bf16.gmra.mxu0 %v559
      %v1757 = vpop.f32.mrf.mxu0
      %v1758 = vadd.f32 %v1453, %v1757
      %v1759 = vpop.f32.mrf.mxu0
      %v1760 = vpop.f32.mrf.mxu0
      %v1761 = vadd.f32 %v1456, %v1760
      %v1762 = vpop.f32.mrf.mxu0
      %1763 = vmatprep.mubr.bf16.mxu0 %v784
      %1764 = vmatmul.mubr.bf16.gmra.mxu0 %v560
      %v1765 = vpop.f32.mrf.mxu0
      %v1766 = vadd.f32 %v1461, %v1765
      %v1767 = vpop.f32.mrf.mxu0
      %v1768 = vpop.f32.mrf.mxu0
      %v1769 = vadd.f32 %v1464, %v1768
      %v1770 = vpop.f32.mrf.mxu0
      %1771 = vmatprep.mubr.bf16.mxu0 %v796
      %1772 = vmatmul.mubr.bf16.gmra.mxu0 %v561
      %v1773 = vpop.f32.mrf.mxu0
      %v1774 = vadd.f32 %v1469, %v1773
      %v1775 = vpop.f32.mrf.mxu0
      %v1776 = vpop.f32.mrf.mxu0
      %v1777 = vadd.f32 %v1472, %v1776
      %v1778 = vpop.f32.mrf.mxu0
      %1779 = vmatprep.mubr.bf16.mxu0 %v808
      %1780 = vmatmul.mubr.bf16.gmra.mxu0 %v562
      %v1781 = vpop.f32.mrf.mxu0
      %v1782 = vadd.f32 %v1477, %v1781
      %v1783 = vpop.f32.mrf.mxu0
      %v1784 = vpop.f32.mrf.mxu0
      %v1785 = vadd.f32 %v1480, %v1784
      %v1786 = vpop.f32.mrf.mxu0
      %1787 = vmatprep.mubr.bf16.mxu0 %v820
      %1788 = vmatmul.mubr.bf16.gmra.mxu0 %v563
      %v1789 = vpop.f32.mrf.mxu0
      %v1790 = vadd.f32 %v1485, %v1789
      %v1791 = vpop.f32.mrf.mxu0
      %v1792 = vpop.f32.mrf.mxu0
      %v1793 = vadd.f32 %v1488, %v1792
      %v1794 = vpop.f32.mrf.mxu0
      %1795 = vdwg.mxu0
      %1796 = vmatprep.subr.bf16.mxu0 0
      %1797 = vmatpush1.bf16.msra.mxu0 %v1610
      %1798 = vmatprep.subr.bf16.mxu0 0
      %1799 = vmatpush1.bf16.msra.mxu0 %v1609
      %1800 = vmatprep.subr.bf16.mxu0 0
      %1801 = vmatpush1.bf16.msra.mxu0 %v1608
      %1802 = vmatprep.subr.bf16.mxu0 0
      %1803 = vmatpush1.bf16.msra.mxu0 %v1607
      %1804 = vmatprep.subr.bf16.mxu0 0
      %1805 = vmatpush1.bf16.msra.mxu0 %v1606
      %1806 = vmatprep.subr.bf16.mxu0 0
      %1807 = vmatpush1.bf16.msra.mxu0 %v1605
      %1808 = vmatprep.subr.bf16.mxu0 0
      %1809 = vmatpush1.bf16.msra.mxu0 %v1604
      %1810 = vmatprep.subr.bf16.mxu0 0
      %1811 = vmatpush1.bf16.msra.mxu0 %v1603
      %1812 = vmatprep.subr.bf16.mxu0 0
      %1813 = vmatpush2.bf16.msra.mxu0 0
      %1814 = vmatprep.subr.bf16.mxu0 0
      %1815 = vmatpush2.bf16.msra.mxu0 0
      %1816 = vmatprep.subr.bf16.mxu0 0
      %1817 = vmatpush2.bf16.msra.mxu0 0
      %1818 = vmatprep.subr.bf16.mxu0 0
      %1819 = vmatpush2.bf16.msra.mxu0 0
      %1820 = vmatprep.subr.bf16.mxu0 0
      %1821 = vmatpush2.bf16.msra.mxu0 0
      %1822 = vmatprep.subr.bf16.mxu0 0
      %1823 = vmatpush2.bf16.msra.mxu0 0
      %1824 = vmatprep.subr.bf16.mxu0 0
      %1825 = vmatpush2.bf16.msra.mxu0 0
      %1826 = vmatprep.subr.bf16.mxu0 0
      %1827 = vmatpush2.bf16.msra.mxu0 0
      %1828 = vmatprep.mubr.bf16.mxu0 0
      %1829 = vmatmul.mubr.bf16.gmra.mxu0 %v840
      %v1830 = vpop.f32.mrf.mxu0
      %v1831 = vadd.f32 %v1670, %v1830
      %v1832 = vpop.f32.mrf.mxu0
      %v1833 = vpop.f32.mrf.mxu0
      %v1834 = vadd.f32 %v1673, %v1833
      %v1835 = vpop.f32.mrf.mxu0
      %1836 = vmatprep.mubr.bf16.mxu0 0
      %1837 = vmatmul.mubr.bf16.gmra.mxu0 %v843
      %v1838 = vpop.f32.mrf.mxu0
      %v1839 = vadd.f32 %v1678, %v1838
      %v1840 = vpop.f32.mrf.mxu0
      %v1841 = vpop.f32.mrf.mxu0
      %v1842 = vadd.f32 %v1681, %v1841
      %v1843 = vpop.f32.mrf.mxu0
      %1844 = vmatprep.mubr.bf16.mxu0 0
      %1845 = vmatmul.mubr.bf16.gmra.mxu0 %v846
      %v1846 = vpop.f32.mrf.mxu0
      %v1847 = vadd.f32 %v1686, %v1846
      %v1848 = vpop.f32.mrf.mxu0
      %v1849 = vpop.f32.mrf.mxu0
      %v1850 = vadd.f32 %v1689, %v1849
      %v1851 = vpop.f32.mrf.mxu0
      %1852 = vmatprep.mubr.bf16.mxu0 0
      %1853 = vmatmul.mubr.bf16.gmra.mxu0 %v849
      %v1854 = vpop.f32.mrf.mxu0
      %v1855 = vadd.f32 %v1694, %v1854
      %v1856 = vpop.f32.mrf.mxu0
      %v1857 = vpop.f32.mrf.mxu0
      %v1858 = vadd.f32 %v1697, %v1857
      %v1859 = vpop.f32.mrf.mxu0
      %1860 = vmatprep.mubr.bf16.mxu0 0
      %1861 = vmatmul.mubr.bf16.gmra.mxu0 %v852
      %v1862 = vpop.f32.mrf.mxu0
      %v1863 = vadd.f32 %v1702, %v1862
      %v1864 = vpop.f32.mrf.mxu0
      %v1865 = vpop.f32.mrf.mxu0
      %v1866 = vadd.f32 %v1705, %v1865
      %v1867 = vpop.f32.mrf.mxu0
      %1868 = vmatprep.mubr.bf16.mxu0 0
      %1869 = vmatmul.mubr.bf16.gmra.mxu0 %v855
      %v1870 = vpop.f32.mrf.mxu0
      %v1871 = vadd.f32 %v1710, %v1870
      %v1872 = vpop.f32.mrf.mxu0
      %v1873 = vpop.f32.mrf.mxu0
      %v1874 = vadd.f32 %v1713, %v1873
      %v1875 = vpop.f32.mrf.mxu0
      %1876 = vmatprep.mubr.bf16.mxu0 0
      %1877 = vmatmul.mubr.bf16.gmra.mxu0 %v858
      %v1878 = vpop.f32.mrf.mxu0
      %v1879 = vadd.f32 %v1718, %v1878
      %v1880 = vpop.f32.mrf.mxu0
      %v1881 = vpop.f32.mrf.mxu0
      %v1882 = vadd.f32 %v1721, %v1881
      %v1883 = vpop.f32.mrf.mxu0
      %1884 = vmatprep.mubr.bf16.mxu0 0
      %1885 = vmatmul.mubr.bf16.gmra.mxu0 %v861
      %v1886 = vpop.f32.mrf.mxu0
      %v1887 = vadd.f32 %v1726, %v1886
      %v1888 = vpop.f32.mrf.mxu0
      %v1889 = vpop.f32.mrf.mxu0
      %v1890 = vadd.f32 %v1729, %v1889
      %v1891 = vpop.f32.mrf.mxu0
      %1892 = vmatprep.mubr.bf16.mxu0 0
      %1893 = vmatmul.mubr.bf16.gmra.mxu0 %v864
      %v1894 = vpop.f32.mrf.mxu0
      %v1895 = vadd.f32 %v1734, %v1894
      %v1896 = vpop.f32.mrf.mxu0
      %v1897 = vpop.f32.mrf.mxu0
      %v1898 = vadd.f32 %v1737, %v1897
      %v1899 = vpop.f32.mrf.mxu0
      %1900 = vmatprep.mubr.bf16.mxu0 0
      %1901 = vmatmul.mubr.bf16.gmra.mxu0 %v867
      %v1902 = vpop.f32.mrf.mxu0
      %v1903 = vadd.f32 %v1742, %v1902
      %v1904 = vpop.f32.mrf.mxu0
      %v1905 = vpop.f32.mrf.mxu0
      %v1906 = vadd.f32 %v1745, %v1905
      %v1907 = vpop.f32.mrf.mxu0
      %1908 = vmatprep.mubr.bf16.mxu0 0
      %1909 = vmatmul.mubr.bf16.gmra.mxu0 %v870
      %v1910 = vpop.f32.mrf.mxu0
      %v1911 = vadd.f32 %v1750, %v1910
      %v1912 = vpop.f32.mrf.mxu0
      %v1913 = vpop.f32.mrf.mxu0
      %v1914 = vadd.f32 %v1753, %v1913
      %v1915 = vpop.f32.mrf.mxu0
      %1916 = vmatprep.mubr.bf16.mxu0 0
      %1917 = vmatmul.mubr.bf16.gmra.mxu0 %v873
      %v1918 = vpop.f32.mrf.mxu0
      %v1919 = vadd.f32 %v1758, %v1918
      %v1920 = vpop.f32.mrf.mxu0
      %v1921 = vpop.f32.mrf.mxu0
      %v1922 = vadd.f32 %v1761, %v1921
      %v1923 = vpop.f32.mrf.mxu0
      %1924 = vmatprep.mubr.bf16.mxu0 0
      %1925 = vmatmul.mubr.bf16.gmra.mxu0 %v876
      %v1926 = vpop.f32.mrf.mxu0
      %v1927 = vadd.f32 %v1766, %v1926
      %v1928 = vpop.f32.mrf.mxu0
      %v1929 = vpop.f32.mrf.mxu0
      %v1930 = vadd.f32 %v1769, %v1929
      %v1931 = vpop.f32.mrf.mxu0
      %1932 = vmatprep.mubr.bf16.mxu0 0
      %1933 = vmatmul.mubr.bf16.gmra.mxu0 %v879
      %v1934 = vpop.f32.mrf.mxu0
      %v1935 = vadd.f32 %v1774, %v1934
      %v1936 = vpop.f32.mrf.mxu0
      %v1937 = vpop.f32.mrf.mxu0
      %v1938 = vadd.f32 %v1777, %v1937
      %v1939 = vpop.f32.mrf.mxu0
      %1940 = vmatprep.mubr.bf16.mxu0 0
      %1941 = vmatmul.mubr.bf16.gmra.mxu0 %v882
      %v1942 = vpop.f32.mrf.mxu0
      %v1943 = vadd.f32 %v1782, %v1942
      %v1944 = vpop.f32.mrf.mxu0
      %v1945 = vpop.f32.mrf.mxu0
      %v1946 = vadd.f32 %v1785, %v1945
      %v1947 = vpop.f32.mrf.mxu0
      %1948 = vmatprep.mubr.bf16.mxu0 0
      %1949 = vmatmul.mubr.bf16.gmra.mxu0 %v885
      %v1950 = vpop.f32.mrf.mxu0
      %v1951 = vadd.f32 %v1790, %v1950
      %v1952 = vpop.f32.mrf.mxu0
      %v1953 = vpop.f32.mrf.mxu0
      %v1954 = vadd.f32 %v1793, %v1953
      %v1955 = vpop.f32.mrf.mxu0
      %1956 = vdwg.mxu0
      %v1959 = vunpack.c.l.b16 %v481
      %v1960 = vunpack.c.l.b16 %v482
      %v1961 = vpack.c.b16 %v1960, %v1959
      %v1964 = vunpack.c.l.b16 %v483
      %v1965 = vpack.c.b16 %v1964, %v1964
      %v1967 = vshrl.u32 %v1961, 16
      %v1969 = vshll.u32 %v1961, 16
      %v1971 = vrot.slane %v1969, 1
      %v1972 = vor.u32 %v1967, %v1971
      %v1974 = vshll.u32 %v1965, 16
      %v1976 = vrot.slane %v1974, 1
      %v1977 = vsel %vm628, %v1972, %v1976
      %v1979 = vrot.slane %v1961, 1
      %v1980 = vrot.slane %v1965, 1
      %v1981 = vsel %vm837, %v1979, %v1980
      %s1983 = scalar_lea.vmem %s1, 384
      %v1984 = vld [vmem:[%s1983] sm:$0xf]
      %v1985 = vld [vmem:[%s1983 + $0x4] sm:$0xf]
      %v1986 = vld [vmem:[%s1983 + $0x8] sm:$0xf]
      %v1987 = vld [vmem:[%s1983 + $0xc] sm:$0xf]
      %v1988 = vld [vmem:[%s1983 + $0x10] sm:$0xf]
      %v1989 = vld [vmem:[%s1983 + $0x14] sm:$0xf]
      %v1990 = vld [vmem:[%s1983 + $0x18] sm:$0xf]
      %v1991 = vld [vmem:[%s1983 + $0x1c] sm:$0xf]
      %v1992 = vld [vmem:[%s1983 + $0x20] sm:$0xf]
      %v1993 = vld [vmem:[%s1983 + $0x24] sm:$0xf]
      %v1994 = vld [vmem:[%s1983 + $0x28] sm:$0xf]
      %v1995 = vld [vmem:[%s1983 + $0x2c] sm:$0xf]
      %v1996 = vld [vmem:[%s1983 + $0x30] sm:$0xf]
      %v1997 = vld [vmem:[%s1983 + $0x34] sm:$0xf]
      %v1998 = vld [vmem:[%s1983 + $0x38] sm:$0xf]
      %v1999 = vld [vmem:[%s1983 + $0x3c] sm:$0xf]
      %v2000 = vld [vmem:[%s1983 + $0x40] sm:$0xf]
      %v2001 = vld [vmem:[%s1983 + $0x44] sm:$0xf]
      %v2002 = vld [vmem:[%s1983 + $0x48] sm:$0xf]
      %v2003 = vld [vmem:[%s1983 + $0x4c] sm:$0xf]
      %v2004 = vld [vmem:[%s1983 + $0x50] sm:$0xf]
      %v2005 = vld [vmem:[%s1983 + $0x54] sm:$0xf]
      %v2006 = vld [vmem:[%s1983 + $0x58] sm:$0xf]
      %v2007 = vld [vmem:[%s1983 + $0x5c] sm:$0xf]
      %v2008 = vld [vmem:[%s1983 + $0x60] sm:$0xf]
      %v2009 = vld [vmem:[%s1983 + $0x64] sm:$0xf]
      %v2010 = vld [vmem:[%s1983 + $0x68] sm:$0xf]
      %v2011 = vld [vmem:[%s1983 + $0x6c] sm:$0xf]
      %v2012 = vld [vmem:[%s1983 + $0x70] sm:$0xf]
      %v2013 = vld [vmem:[%s1983 + $0x74] sm:$0xf]
      %v2014 = vld [vmem:[%s1983 + $0x78] sm:$0xf]
      %v2015 = vld [vmem:[%s1983 + $0x7c] sm:$0xf]
      %v2016 = vld [vmem:[%s1983 + $0x80] sm:$0xf]
      %v2017 = vld [vmem:[%s1983 + $0x84] sm:$0xf]
      %v2018 = vld [vmem:[%s1983 + $0x88] sm:$0xf]
      %v2019 = vld [vmem:[%s1983 + $0x8c] sm:$0xf]
      %v2020 = vld [vmem:[%s1983 + $0x90] sm:$0xf]
      %v2021 = vld [vmem:[%s1983 + $0x94] sm:$0xf]
      %v2022 = vld [vmem:[%s1983 + $0x98] sm:$0xf]
      %v2023 = vld [vmem:[%s1983 + $0x9c] sm:$0xf]
      %v2024 = vld [vmem:[%s1983 + $0xa0] sm:$0xf]
      %v2025 = vld [vmem:[%s1983 + $0xa4] sm:$0xf]
      %v2026 = vld [vmem:[%s1983 + $0xa8] sm:$0xf]
      %v2027 = vld [vmem:[%s1983 + $0xac] sm:$0xf]
      %v2028 = vld [vmem:[%s1983 + $0xb0] sm:$0xf]
      %v2029 = vld [vmem:[%s1983 + $0xb4] sm:$0xf]
      %v2030 = vld [vmem:[%s1983 + $0xb8] sm:$0xf]
      %v2031 = vld [vmem:[%s1983 + $0xbc] sm:$0xf]
      %v2080 = vunpack.c.l.b16 %v1984
      %v2081 = vunpack.c.l.b16 %v1985
      %v2082 = vunpack.c.l.b16 %v1986
      %v2083 = vunpack.c.l.b16 %v1987
      %v2084 = vunpack.c.l.b16 %v1988
      %v2085 = vunpack.c.l.b16 %v1989
      %v2086 = vunpack.c.l.b16 %v1990
      %v2087 = vunpack.c.l.b16 %v1991
      %v2088 = vunpack.c.l.b16 %v1992
      %v2089 = vunpack.c.l.b16 %v1993
      %v2090 = vunpack.c.l.b16 %v1994
      %v2091 = vunpack.c.l.b16 %v1995
      %v2092 = vunpack.c.l.b16 %v1996
      %v2093 = vunpack.c.l.b16 %v1997
      %v2094 = vunpack.c.l.b16 %v1998
      %v2095 = vunpack.c.l.b16 %v1999
      %v2096 = vunpack.c.l.b16 %v2000
      %v2097 = vunpack.c.l.b16 %v2001
      %v2098 = vunpack.c.l.b16 %v2002
      %v2099 = vunpack.c.l.b16 %v2003
      %v2100 = vunpack.c.l.b16 %v2004
      %v2101 = vunpack.c.l.b16 %v2005
      %v2102 = vunpack.c.l.b16 %v2006
      %v2103 = vunpack.c.l.b16 %v2007
      %v2104 = vunpack.c.l.b16 %v2008
      %v2105 = vunpack.c.l.b16 %v2009
      %v2106 = vunpack.c.l.b16 %v2010
      %v2107 = vunpack.c.l.b16 %v2011
      %v2108 = vunpack.c.l.b16 %v2012
      %v2109 = vunpack.c.l.b16 %v2013
      %v2110 = vunpack.c.l.b16 %v2014
      %v2111 = vunpack.c.l.b16 %v2015
      %v2112 = vunpack.c.l.b16 %v2016
      %v2113 = vunpack.c.l.b16 %v2017
      %v2114 = vunpack.c.l.b16 %v2018
      %v2115 = vunpack.c.l.b16 %v2019
      %v2116 = vunpack.c.l.b16 %v2020
      %v2117 = vunpack.c.l.b16 %v2021
      %v2118 = vunpack.c.l.b16 %v2022
      %v2119 = vunpack.c.l.b16 %v2023
      %v2120 = vunpack.c.l.b16 %v2024
      %v2121 = vunpack.c.l.b16 %v2025
      %v2122 = vunpack.c.l.b16 %v2026
      %v2123 = vunpack.c.l.b16 %v2027
      %v2124 = vunpack.c.l.b16 %v2028
      %v2125 = vunpack.c.l.b16 %v2029
      %v2126 = vunpack.c.l.b16 %v2030
      %v2127 = vunpack.c.l.b16 %v2031
      %v2128 = vpack.c.b16 %v2081, %v2080
      %v2129 = vpack.c.b16 %v2083, %v2082
      %v2130 = vpack.c.b16 %v2085, %v2084
      %v2131 = vpack.c.b16 %v2087, %v2086
      %v2132 = vpack.c.b16 %v2089, %v2088
      %v2133 = vpack.c.b16 %v2091, %v2090
      %v2134 = vpack.c.b16 %v2093, %v2092
      %v2135 = vpack.c.b16 %v2095, %v2094
      %v2136 = vpack.c.b16 %v2097, %v2096
      %v2137 = vpack.c.b16 %v2099, %v2098
      %v2138 = vpack.c.b16 %v2101, %v2100
      %v2139 = vpack.c.b16 %v2103, %v2102
      %v2140 = vpack.c.b16 %v2105, %v2104
      %v2141 = vpack.c.b16 %v2107, %v2106
      %v2142 = vpack.c.b16 %v2109, %v2108
      %v2143 = vpack.c.b16 %v2111, %v2110
      %v2144 = vpack.c.b16 %v2113, %v2112
      %v2145 = vpack.c.b16 %v2115, %v2114
      %v2146 = vpack.c.b16 %v2117, %v2116
      %v2147 = vpack.c.b16 %v2119, %v2118
      %v2148 = vpack.c.b16 %v2121, %v2120
      %v2149 = vpack.c.b16 %v2123, %v2122
      %v2150 = vpack.c.b16 %v2125, %v2124
      %v2151 = vpack.c.b16 %v2127, %v2126
      %2176 = vmatprep.subr.bf16.mxu0 0
      %2177 = vmatpush1.bf16.msra.mxu0 %v2135
      %2178 = vmatprep.subr.bf16.mxu0 0
      %2179 = vmatpush1.bf16.msra.mxu0 %v2134
      %2180 = vmatprep.subr.bf16.mxu0 0
      %2181 = vmatpush1.bf16.msra.mxu0 %v2133
      %2182 = vmatprep.subr.bf16.mxu0 0
      %2183 = vmatpush1.bf16.msra.mxu0 %v2132
      %2184 = vmatprep.subr.bf16.mxu0 0
      %2185 = vmatpush1.bf16.msra.mxu0 %v2131
      %2186 = vmatprep.subr.bf16.mxu0 0
      %2187 = vmatpush1.bf16.msra.mxu0 %v2130
      %2188 = vmatprep.subr.bf16.mxu0 0
      %2189 = vmatpush1.bf16.msra.mxu0 %v2129
      %2190 = vmatprep.subr.bf16.mxu0 0
      %2191 = vmatpush1.bf16.msra.mxu0 %v2128
      %2192 = vmatprep.subr.bf16.mxu0 0
      %2193 = vmatpush2.bf16.msra.mxu0 %v2143
      %2194 = vmatprep.subr.bf16.mxu0 0
      %2195 = vmatpush2.bf16.msra.mxu0 %v2142
      %2196 = vmatprep.subr.bf16.mxu0 0
      %2197 = vmatpush2.bf16.msra.mxu0 %v2141
      %2198 = vmatprep.subr.bf16.mxu0 0
      %2199 = vmatpush2.bf16.msra.mxu0 %v2140
      %2200 = vmatprep.subr.bf16.mxu0 0
      %2201 = vmatpush2.bf16.msra.mxu0 %v2139
      %2202 = vmatprep.subr.bf16.mxu0 0
      %2203 = vmatpush2.bf16.msra.mxu0 %v2138
      %2204 = vmatprep.subr.bf16.mxu0 0
      %2205 = vmatpush2.bf16.msra.mxu0 %v2137
      %2206 = vmatprep.subr.bf16.mxu0 0
      %2207 = vmatpush2.bf16.msra.mxu0 %v2136
      %2208 = vmatprep.mubr.bf16.mxu0 %v664
      %2209 = vmatmul.mubr.bf16.gmra.mxu0 %v550
      %v2210 = vpop.f32.mrf.mxu0
      %v2211 = vadd.f32 0.0, %v2210
      %v2212 = vpop.f32.mrf.mxu0
      %v2213 = vpop.f32.mrf.mxu0
      %v2214 = vadd.f32 0.0, %v2213
      %v2215 = vpop.f32.mrf.mxu0
      %2216 = vmatprep.mubr.bf16.mxu0 %v676
      %2217 = vmatmul.mubr.bf16.gmra.mxu0 %v551
      %v2218 = vpop.f32.mrf.mxu0
      %v2219 = vadd.f32 0.0, %v2218
      %v2220 = vpop.f32.mrf.mxu0
      %v2221 = vpop.f32.mrf.mxu0
      %v2222 = vadd.f32 0.0, %v2221
      %v2223 = vpop.f32.mrf.mxu0
      %2224 = vmatprep.mubr.bf16.mxu0 %v688
      %2225 = vmatmul.mubr.bf16.gmra.mxu0 %v552
      %v2226 = vpop.f32.mrf.mxu0
      %v2227 = vadd.f32 0.0, %v2226
      %v2228 = vpop.f32.mrf.mxu0
      %v2229 = vpop.f32.mrf.mxu0
      %v2230 = vadd.f32 0.0, %v2229
      %v2231 = vpop.f32.mrf.mxu0
      %2232 = vmatprep.mubr.bf16.mxu0 %v700
      %2233 = vmatmul.mubr.bf16.gmra.mxu0 %v553
      %v2234 = vpop.f32.mrf.mxu0
      %v2235 = vadd.f32 0.0, %v2234
      %v2236 = vpop.f32.mrf.mxu0
      %v2237 = vpop.f32.mrf.mxu0
      %v2238 = vadd.f32 0.0, %v2237
      %v2239 = vpop.f32.mrf.mxu0
      %2240 = vmatprep.mubr.bf16.mxu0 %v712
      %2241 = vmatmul.mubr.bf16.gmra.mxu0 %v554
      %v2242 = vpop.f32.mrf.mxu0
      %v2243 = vadd.f32 0.0, %v2242
      %v2244 = vpop.f32.mrf.mxu0
      %v2245 = vpop.f32.mrf.mxu0
      %v2246 = vadd.f32 0.0, %v2245
      %v2247 = vpop.f32.mrf.mxu0
      %2248 = vmatprep.mubr.bf16.mxu0 %v724
      %2249 = vmatmul.mubr.bf16.gmra.mxu0 %v555
      %v2250 = vpop.f32.mrf.mxu0
      %v2251 = vadd.f32 0.0, %v2250
      %v2252 = vpop.f32.mrf.mxu0
      %v2253 = vpop.f32.mrf.mxu0
      %v2254 = vadd.f32 0.0, %v2253
      %v2255 = vpop.f32.mrf.mxu0
      %2256 = vmatprep.mubr.bf16.mxu0 %v736
      %2257 = vmatmul.mubr.bf16.gmra.mxu0 %v556
      %v2258 = vpop.f32.mrf.mxu0
      %v2259 = vadd.f32 0.0, %v2258
      %v2260 = vpop.f32.mrf.mxu0
      %v2261 = vpop.f32.mrf.mxu0
      %v2262 = vadd.f32 0.0, %v2261
      %v2263 = vpop.f32.mrf.mxu0
      %2264 = vmatprep.mubr.bf16.mxu0 %v748
      %2265 = vmatmul.mubr.bf16.gmra.mxu0 %v557
      %v2266 = vpop.f32.mrf.mxu0
      %v2267 = vadd.f32 0.0, %v2266
      %v2268 = vpop.f32.mrf.mxu0
      %v2269 = vpop.f32.mrf.mxu0
      %v2270 = vadd.f32 0.0, %v2269
      %v2271 = vpop.f32.mrf.mxu0
      %2272 = vmatprep.mubr.bf16.mxu0 %v760
      %2273 = vmatmul.mubr.bf16.gmra.mxu0 %v558
      %v2274 = vpop.f32.mrf.mxu0
      %v2275 = vadd.f32 0.0, %v2274
      %v2276 = vpop.f32.mrf.mxu0
      %v2277 = vpop.f32.mrf.mxu0
      %v2278 = vadd.f32 0.0, %v2277
      %v2279 = vpop.f32.mrf.mxu0
      %2280 = vmatprep.mubr.bf16.mxu0 %v772
      %2281 = vmatmul.mubr.bf16.gmra.mxu0 %v559
      %v2282 = vpop.f32.mrf.mxu0
      %v2283 = vadd.f32 0.0, %v2282
      %v2284 = vpop.f32.mrf.mxu0
      %v2285 = vpop.f32.mrf.mxu0
      %v2286 = vadd.f32 0.0, %v2285
      %v2287 = vpop.f32.mrf.mxu0
      %2288 = vmatprep.mubr.bf16.mxu0 %v784
      %2289 = vmatmul.mubr.bf16.gmra.mxu0 %v560
      %v2290 = vpop.f32.mrf.mxu0
      %v2291 = vadd.f32 0.0, %v2290
      %v2292 = vpop.f32.mrf.mxu0
      %v2293 = vpop.f32.mrf.mxu0
      %v2294 = vadd.f32 0.0, %v2293
      %v2295 = vpop.f32.mrf.mxu0
      %2296 = vmatprep.mubr.bf16.mxu0 %v796
      %2297 = vmatmul.mubr.bf16.gmra.mxu0 %v561
      %v2298 = vpop.f32.mrf.mxu0
      %v2299 = vadd.f32 0.0, %v2298
      %v2300 = vpop.f32.mrf.mxu0
      %v2301 = vpop.f32.mrf.mxu0
      %v2302 = vadd.f32 0.0, %v2301
      %v2303 = vpop.f32.mrf.mxu0
      %2304 = vmatprep.mubr.bf16.mxu0 %v808
      %2305 = vmatmul.mubr.bf16.gmra.mxu0 %v562
      %v2306 = vpop.f32.mrf.mxu0
      %v2307 = vadd.f32 0.0, %v2306
      %v2308 = vpop.f32.mrf.mxu0
      %v2309 = vpop.f32.mrf.mxu0
      %v2310 = vadd.f32 0.0, %v2309
      %v2311 = vpop.f32.mrf.mxu0
      %2312 = vmatprep.mubr.bf16.mxu0 %v820
      %2313 = vmatmul.mubr.bf16.gmra.mxu0 %v563
      %v2314 = vpop.f32.mrf.mxu0
      %v2315 = vadd.f32 0.0, %v2314
      %v2316 = vpop.f32.mrf.mxu0
      %v2317 = vpop.f32.mrf.mxu0
      %v2318 = vadd.f32 0.0, %v2317
      %v2319 = vpop.f32.mrf.mxu0
      %2320 = vmatprep.mubr.bf16.mxu0 %v970
      %2321 = vmatmul.mubr.bf16.gmra.mxu0 %v954
      %v2322 = vpop.f32.mrf.mxu0
      %v2323 = vadd.f32 0.0, %v2322
      %v2324 = vpop.f32.mrf.mxu0
      %v2325 = vpop.f32.mrf.mxu0
      %v2326 = vadd.f32 0.0, %v2325
      %v2327 = vpop.f32.mrf.mxu0
      %2328 = vmatprep.mubr.bf16.mxu0 %v1977
      %2329 = vmatmul.mubr.bf16.gmra.mxu0 %v1961
      %v2330 = vpop.f32.mrf.mxu0
      %v2331 = vadd.f32 0.0, %v2330
      %v2332 = vpop.f32.mrf.mxu0
      %v2333 = vpop.f32.mrf.mxu0
      %v2334 = vadd.f32 0.0, %v2333
      %v2335 = vpop.f32.mrf.mxu0
      %2336 = vdwg.mxu0
      %2337 = vmatprep.subr.bf16.mxu0 0
      %2338 = vmatpush1.bf16.msra.mxu0 %v2151
      %2339 = vmatprep.subr.bf16.mxu0 0
      %2340 = vmatpush1.bf16.msra.mxu0 %v2150
      %2341 = vmatprep.subr.bf16.mxu0 0
      %2342 = vmatpush1.bf16.msra.mxu0 %v2149
      %2343 = vmatprep.subr.bf16.mxu0 0
      %2344 = vmatpush1.bf16.msra.mxu0 %v2148
      %2345 = vmatprep.subr.bf16.mxu0 0
      %2346 = vmatpush1.bf16.msra.mxu0 %v2147
      %2347 = vmatprep.subr.bf16.mxu0 0
      %2348 = vmatpush1.bf16.msra.mxu0 %v2146
      %2349 = vmatprep.subr.bf16.mxu0 0
      %2350 = vmatpush1.bf16.msra.mxu0 %v2145
      %2351 = vmatprep.subr.bf16.mxu0 0
      %2352 = vmatpush1.bf16.msra.mxu0 %v2144
      %2353 = vmatprep.subr.bf16.mxu0 0
      %2354 = vmatpush2.bf16.msra.mxu0 0
      %2355 = vmatprep.subr.bf16.mxu0 0
      %2356 = vmatpush2.bf16.msra.mxu0 0
      %2357 = vmatprep.subr.bf16.mxu0 0
      %2358 = vmatpush2.bf16.msra.mxu0 0
      %2359 = vmatprep.subr.bf16.mxu0 0
      %2360 = vmatpush2.bf16.msra.mxu0 0
      %2361 = vmatprep.subr.bf16.mxu0 0
      %2362 = vmatpush2.bf16.msra.mxu0 0
      %2363 = vmatprep.subr.bf16.mxu0 0
      %2364 = vmatpush2.bf16.msra.mxu0 0
      %2365 = vmatprep.subr.bf16.mxu0 0
      %2366 = vmatpush2.bf16.msra.mxu0 0
      %2367 = vmatprep.subr.bf16.mxu0 0
      %2368 = vmatpush2.bf16.msra.mxu0 0
      %2369 = vmatprep.mubr.bf16.mxu0 0
      %2370 = vmatmul.mubr.bf16.gmra.mxu0 %v846
      %v2371 = vpop.f32.mrf.mxu0
      %v2372 = vadd.f32 %v2211, %v2371
      %v2373 = vpop.f32.mrf.mxu0
      %v2374 = vpop.f32.mrf.mxu0
      %v2375 = vadd.f32 %v2214, %v2374
      %v2376 = vpop.f32.mrf.mxu0
      %2377 = vmatprep.mubr.bf16.mxu0 0
      %2378 = vmatmul.mubr.bf16.gmra.mxu0 %v849
      %v2379 = vpop.f32.mrf.mxu0
      %v2380 = vadd.f32 %v2219, %v2379
      %v2381 = vpop.f32.mrf.mxu0
      %v2382 = vpop.f32.mrf.mxu0
      %v2383 = vadd.f32 %v2222, %v2382
      %v2384 = vpop.f32.mrf.mxu0
      %2385 = vmatprep.mubr.bf16.mxu0 0
      %2386 = vmatmul.mubr.bf16.gmra.mxu0 %v852
      %v2387 = vpop.f32.mrf.mxu0
      %v2388 = vadd.f32 %v2227, %v2387
      %v2389 = vpop.f32.mrf.mxu0
      %v2390 = vpop.f32.mrf.mxu0
      %v2391 = vadd.f32 %v2230, %v2390
      %v2392 = vpop.f32.mrf.mxu0
      %2393 = vmatprep.mubr.bf16.mxu0 0
      %2394 = vmatmul.mubr.bf16.gmra.mxu0 %v855
      %v2395 = vpop.f32.mrf.mxu0
      %v2396 = vadd.f32 %v2235, %v2395
      %v2397 = vpop.f32.mrf.mxu0
      %v2398 = vpop.f32.mrf.mxu0
      %v2399 = vadd.f32 %v2238, %v2398
      %v2400 = vpop.f32.mrf.mxu0
      %2401 = vmatprep.mubr.bf16.mxu0 0
      %2402 = vmatmul.mubr.bf16.gmra.mxu0 %v858
      %v2403 = vpop.f32.mrf.mxu0
      %v2404 = vadd.f32 %v2243, %v2403
      %v2405 = vpop.f32.mrf.mxu0
      %v2406 = vpop.f32.mrf.mxu0
      %v2407 = vadd.f32 %v2246, %v2406
      %v2408 = vpop.f32.mrf.mxu0
      %2409 = vmatprep.mubr.bf16.mxu0 0
      %2410 = vmatmul.mubr.bf16.gmra.mxu0 %v861
      %v2411 = vpop.f32.mrf.mxu0
      %v2412 = vadd.f32 %v2251, %v2411
      %v2413 = vpop.f32.mrf.mxu0
      %v2414 = vpop.f32.mrf.mxu0
      %v2415 = vadd.f32 %v2254, %v2414
      %v2416 = vpop.f32.mrf.mxu0
      %2417 = vmatprep.mubr.bf16.mxu0 0
      %2418 = vmatmul.mubr.bf16.gmra.mxu0 %v864
      %v2419 = vpop.f32.mrf.mxu0
      %v2420 = vadd.f32 %v2259, %v2419
      %v2421 = vpop.f32.mrf.mxu0
      %v2422 = vpop.f32.mrf.mxu0
      %v2423 = vadd.f32 %v2262, %v2422
      %v2424 = vpop.f32.mrf.mxu0
      %2425 = vmatprep.mubr.bf16.mxu0 0
      %2426 = vmatmul.mubr.bf16.gmra.mxu0 %v867
      %v2427 = vpop.f32.mrf.mxu0
      %v2428 = vadd.f32 %v2267, %v2427
      %v2429 = vpop.f32.mrf.mxu0
      %v2430 = vpop.f32.mrf.mxu0
      %v2431 = vadd.f32 %v2270, %v2430
      %v2432 = vpop.f32.mrf.mxu0
      %2433 = vmatprep.mubr.bf16.mxu0 0
      %2434 = vmatmul.mubr.bf16.gmra.mxu0 %v870
      %v2435 = vpop.f32.mrf.mxu0
      %v2436 = vadd.f32 %v2275, %v2435
      %v2437 = vpop.f32.mrf.mxu0
      %v2438 = vpop.f32.mrf.mxu0
      %v2439 = vadd.f32 %v2278, %v2438
      %v2440 = vpop.f32.mrf.mxu0
      %2441 = vmatprep.mubr.bf16.mxu0 0
      %2442 = vmatmul.mubr.bf16.gmra.mxu0 %v873
      %v2443 = vpop.f32.mrf.mxu0
      %v2444 = vadd.f32 %v2283, %v2443
      %v2445 = vpop.f32.mrf.mxu0
      %v2446 = vpop.f32.mrf.mxu0
      %v2447 = vadd.f32 %v2286, %v2446
      %v2448 = vpop.f32.mrf.mxu0
      %2449 = vmatprep.mubr.bf16.mxu0 0
      %2450 = vmatmul.mubr.bf16.gmra.mxu0 %v876
      %v2451 = vpop.f32.mrf.mxu0
      %v2452 = vadd.f32 %v2291, %v2451
      %v2453 = vpop.f32.mrf.mxu0
      %v2454 = vpop.f32.mrf.mxu0
      %v2455 = vadd.f32 %v2294, %v2454
      %v2456 = vpop.f32.mrf.mxu0
      %2457 = vmatprep.mubr.bf16.mxu0 0
      %2458 = vmatmul.mubr.bf16.gmra.mxu0 %v879
      %v2459 = vpop.f32.mrf.mxu0
      %v2460 = vadd.f32 %v2299, %v2459
      %v2461 = vpop.f32.mrf.mxu0
      %v2462 = vpop.f32.mrf.mxu0
      %v2463 = vadd.f32 %v2302, %v2462
      %v2464 = vpop.f32.mrf.mxu0
      %2465 = vmatprep.mubr.bf16.mxu0 0
      %2466 = vmatmul.mubr.bf16.gmra.mxu0 %v882
      %v2467 = vpop.f32.mrf.mxu0
      %v2468 = vadd.f32 %v2307, %v2467
      %v2469 = vpop.f32.mrf.mxu0
      %v2470 = vpop.f32.mrf.mxu0
      %v2471 = vadd.f32 %v2310, %v2470
      %v2472 = vpop.f32.mrf.mxu0
      %2473 = vmatprep.mubr.bf16.mxu0 0
      %2474 = vmatmul.mubr.bf16.gmra.mxu0 %v885
      %v2475 = vpop.f32.mrf.mxu0
      %v2476 = vadd.f32 %v2315, %v2475
      %v2477 = vpop.f32.mrf.mxu0
      %v2478 = vpop.f32.mrf.mxu0
      %v2479 = vadd.f32 %v2318, %v2478
      %v2480 = vpop.f32.mrf.mxu0
      %2481 = vmatprep.mubr.bf16.mxu0 0
      %2482 = vmatmul.mubr.bf16.gmra.mxu0 %v974
      %v2483 = vpop.f32.mrf.mxu0
      %v2484 = vadd.f32 %v2323, %v2483
      %v2485 = vpop.f32.mrf.mxu0
      %v2486 = vpop.f32.mrf.mxu0
      %v2487 = vadd.f32 %v2326, %v2486
      %v2488 = vpop.f32.mrf.mxu0
      %2489 = vmatprep.mubr.bf16.mxu0 0
      %2490 = vmatmul.mubr.bf16.gmra.mxu0 %v1981
      %v2491 = vpop.f32.mrf.mxu0
      %v2492 = vadd.f32 %v2331, %v2491
      %v2493 = vpop.f32.mrf.mxu0
      %v2494 = vpop.f32.mrf.mxu0
      %v2495 = vadd.f32 %v2334, %v2494
      %v2496 = vpop.f32.mrf.mxu0
      %2497 = vdwg.mxu0
      %v2498 = vadd.f32 %v1831, %v2372
      %v2499 = vadd.f32 %v1834, %v2375
      %v2500 = vadd.f32 %v1839, %v2380
      %v2501 = vadd.f32 %v1842, %v2383
      %v2502 = vadd.f32 %v1847, %v2388
      %v2503 = vadd.f32 %v1850, %v2391
      %v2504 = vadd.f32 %v1855, %v2396
      %v2505 = vadd.f32 %v1858, %v2399
      %v2506 = vadd.f32 %v1863, %v2404
      %v2507 = vadd.f32 %v1866, %v2407
      %v2508 = vadd.f32 %v1871, %v2412
      %v2509 = vadd.f32 %v1874, %v2415
      %v2510 = vadd.f32 %v1879, %v2420
      %v2511 = vadd.f32 %v1882, %v2423
      %v2512 = vadd.f32 %v1887, %v2428
      %v2513 = vadd.f32 %v1890, %v2431
      %v2514 = vadd.f32 %v1895, %v2436
      %v2515 = vadd.f32 %v1898, %v2439
      %v2516 = vadd.f32 %v1903, %v2444
      %v2517 = vadd.f32 %v1906, %v2447
      %v2518 = vadd.f32 %v1911, %v2452
      %v2519 = vadd.f32 %v1914, %v2455
      %v2520 = vadd.f32 %v1919, %v2460
      %v2521 = vadd.f32 %v1922, %v2463
      %v2522 = vadd.f32 %v1927, %v2468
      %v2523 = vadd.f32 %v1930, %v2471
      %v2524 = vadd.f32 %v1935, %v2476
      %v2525 = vadd.f32 %v1938, %v2479
      %v2526 = vadd.f32 %v1943, %v2484
      %v2527 = vadd.f32 %v1946, %v2487
      %v2528 = vadd.f32 %v1951, %v2492
      %v2529 = vadd.f32 %v1954, %v2495
      %v2530 = vpack.c.bf16 %v2499, %v2498
      %v2531 = vpack.c.bf16 %v2501, %v2500
      %v2532 = vpack.c.bf16 %v2503, %v2502
      %v2533 = vpack.c.bf16 %v2505, %v2504
      %v2534 = vpack.c.bf16 %v2507, %v2506
      %v2535 = vpack.c.bf16 %v2509, %v2508
      %v2536 = vpack.c.bf16 %v2511, %v2510
      %v2537 = vpack.c.bf16 %v2513, %v2512
      %v2538 = vpack.c.bf16 %v2515, %v2514
      %v2539 = vpack.c.bf16 %v2517, %v2516
      %v2540 = vpack.c.bf16 %v2519, %v2518
      %v2541 = vpack.c.bf16 %v2521, %v2520
      %v2542 = vpack.c.bf16 %v2523, %v2522
      %v2543 = vpack.c.bf16 %v2525, %v2524
      %v2544 = vpack.c.bf16 %v2527, %v2526
      %v2545 = vpack.c.bf16 %v2529, %v2528
      %v2562 = vunpack.c.l.b16 %v2530
      %v2563 = vunpack.c.h.b16 %v2530
      %v2564 = vunpack.c.l.b16 %v2531
      %v2565 = vunpack.c.h.b16 %v2531
      %v2566 = vunpack.c.l.b16 %v2532
      %v2567 = vunpack.c.h.b16 %v2532
      %v2568 = vunpack.c.l.b16 %v2533
      %v2569 = vunpack.c.h.b16 %v2533
      %v2570 = vunpack.c.l.b16 %v2534
      %v2571 = vunpack.c.h.b16 %v2534
      %v2572 = vunpack.c.l.b16 %v2535
      %v2573 = vunpack.c.h.b16 %v2535
      %v2574 = vunpack.c.l.b16 %v2536
      %v2575 = vunpack.c.h.b16 %v2536
      %v2576 = vunpack.c.l.b16 %v2537
      %v2577 = vunpack.c.h.b16 %v2537
      %v2578 = vunpack.c.l.b16 %v2538
      %v2579 = vunpack.c.h.b16 %v2538
      %v2580 = vunpack.c.l.b16 %v2539
      %v2581 = vunpack.c.h.b16 %v2539
      %v2582 = vunpack.c.l.b16 %v2540
      %v2583 = vunpack.c.h.b16 %v2540
      %v2584 = vunpack.c.l.b16 %v2541
      %v2585 = vunpack.c.h.b16 %v2541
      %v2586 = vunpack.c.l.b16 %v2542
      %v2587 = vunpack.c.h.b16 %v2542
      %v2588 = vunpack.c.l.b16 %v2543
      %v2589 = vunpack.c.h.b16 %v2543
      %v2590 = vunpack.c.l.b16 %v2544
      %v2591 = vunpack.c.h.b16 %v2544
      %v2592 = vunpack.c.l.b16 %v2545
      %v2593 = vunpack.c.h.b16 %v2545
      %v2594 = vpack.c.b16 %v2562, %v2562
      %v2595 = vpack.c.b16 %v2563, %v2563
      %v2596 = vpack.c.b16 %v2564, %v2564
      %v2597 = vpack.c.b16 %v2565, %v2565
      %v2598 = vpack.c.b16 %v2566, %v2566
      %v2599 = vpack.c.b16 %v2567, %v2567
      %v2600 = vpack.c.b16 %v2568, %v2568
      %v2601 = vpack.c.b16 %v2569, %v2569
      %v2602 = vpack.c.b16 %v2570, %v2570
      %v2603 = vpack.c.b16 %v2571, %v2571
      %v2604 = vpack.c.b16 %v2572, %v2572
      %v2605 = vpack.c.b16 %v2573, %v2573
      %v2606 = vpack.c.b16 %v2574, %v2574
      %v2607 = vpack.c.b16 %v2575, %v2575
      %v2608 = vpack.c.b16 %v2576, %v2576
      %v2609 = vpack.c.b16 %v2577, %v2577
      %v2610 = vpack.c.b16 %v2578, %v2578
      %v2611 = vpack.c.b16 %v2579, %v2579
      %v2612 = vpack.c.b16 %v2580, %v2580
      %v2613 = vpack.c.b16 %v2581, %v2581
      %v2614 = vpack.c.b16 %v2582, %v2582
      %v2615 = vpack.c.b16 %v2583, %v2583
      %v2616 = vpack.c.b16 %v2584, %v2584
      %v2617 = vpack.c.b16 %v2585, %v2585
      %v2618 = vpack.c.b16 %v2586, %v2586
      %v2619 = vpack.c.b16 %v2587, %v2587
      %v2620 = vpack.c.b16 %v2588, %v2588
      %v2621 = vpack.c.b16 %v2589, %v2589
      %v2622 = vpack.c.b16 %v2590, %v2590
      %v2623 = vpack.c.b16 %v2591, %v2591
      %v2624 = vpack.c.b16 %v2592, %v2592
      %v2625 = vpack.c.b16 %v2593, %v2593
      %vm2626 = vsmask.f32 256
      %vm2627 = vsmask.f32 4368
      %vm2628 = vmor %vm2626, %vm2627
      %v2630 = vshrl.u32 %v2594, 16
      %v2632 = vrot.slane %v2630, 7
      %v2633 = vshll.u32 %v2594, 16
      %v2635 = vor.u32 %v2632, %v2633
      %v2636 = vrot.slane %v2632, 4
      %v2638 = vshrl.u32 %v2595, 16
      %v2640 = vrot.slane %v2638, 7
      %v2641 = vshll.u32 %v2595, 16
      %v2643 = vor.u32 %v2640, %v2641
      %v2644 = vsel %vm2628, %v2636, %v2643
      %v2645 = vrot.slane %v2640, 4
      %v2647 = vshrl.u32 %v2596, 16
      %v2649 = vrot.slane %v2647, 7
      %v2650 = vshll.u32 %v2596, 16
      %v2652 = vor.u32 %v2649, %v2650
      %v2653 = vrot.slane %v2649, 4
      %v2655 = vshrl.u32 %v2597, 16
      %v2657 = vrot.slane %v2655, 7
      %v2658 = vshll.u32 %v2597, 16
      %v2660 = vor.u32 %v2657, %v2658
      %v2661 = vsel %vm2628, %v2653, %v2660
      %v2662 = vrot.slane %v2657, 4
      %v2664 = vshrl.u32 %v2598, 16
      %v2666 = vrot.slane %v2664, 7
      %v2667 = vshll.u32 %v2598, 16
      %v2669 = vor.u32 %v2666, %v2667
      %v2670 = vrot.slane %v2666, 4
      %v2672 = vshrl.u32 %v2599, 16
      %v2674 = vrot.slane %v2672, 7
      %v2675 = vshll.u32 %v2599, 16
      %v2677 = vor.u32 %v2674, %v2675
      %v2678 = vsel %vm2628, %v2670, %v2677
      %v2679 = vrot.slane %v2674, 4
      %v2681 = vshrl.u32 %v2600, 16
      %v2683 = vrot.slane %v2681, 7
      %v2684 = vshll.u32 %v2600, 16
      %v2686 = vor.u32 %v2683, %v2684
      %v2687 = vrot.slane %v2683, 4
      %v2689 = vshrl.u32 %v2601, 16
      %v2691 = vrot.slane %v2689, 7
      %v2692 = vshll.u32 %v2601, 16
      %v2694 = vor.u32 %v2691, %v2692
      %v2695 = vsel %vm2628, %v2687, %v2694
      %v2696 = vrot.slane %v2691, 4
      %v2698 = vshrl.u32 %v2602, 16
      %v2700 = vrot.slane %v2698, 7
      %v2701 = vshll.u32 %v2602, 16
      %v2703 = vor.u32 %v2700, %v2701
      %v2704 = vrot.slane %v2700, 4
      %v2706 = vshrl.u32 %v2603, 16
      %v2708 = vrot.slane %v2706, 7
      %v2709 = vshll.u32 %v2603, 16
      %v2711 = vor.u32 %v2708, %v2709
      %v2712 = vsel %vm2628, %v2704, %v2711
      %v2713 = vrot.slane %v2708, 4
      %v2715 = vshrl.u32 %v2604, 16
      %v2717 = vrot.slane %v2715, 7
      %v2718 = vshll.u32 %v2604, 16
      %v2720 = vor.u32 %v2717, %v2718
      %v2721 = vrot.slane %v2717, 4
      %v2723 = vshrl.u32 %v2605, 16
      %v2725 = vrot.slane %v2723, 7
      %v2726 = vshll.u32 %v2605, 16
      %v2728 = vor.u32 %v2725, %v2726
      %v2729 = vsel %vm2628, %v2721, %v2728
      %v2730 = vrot.slane %v2725, 4
      %v2732 = vshrl.u32 %v2606, 16
      %v2734 = vrot.slane %v2732, 7
      %v2735 = vshll.u32 %v2606, 16
      %v2737 = vor.u32 %v2734, %v2735
      %v2738 = vrot.slane %v2734, 4
      %v2740 = vshrl.u32 %v2607, 16
      %v2742 = vrot.slane %v2740, 7
      %v2743 = vshll.u32 %v2607, 16
      %v2745 = vor.u32 %v2742, %v2743
      %v2746 = vsel %vm2628, %v2738, %v2745
      %v2747 = vrot.slane %v2742, 4
      %v2749 = vshrl.u32 %v2608, 16
      %v2751 = vrot.slane %v2749, 7
      %v2752 = vshll.u32 %v2608, 16
      %v2754 = vor.u32 %v2751, %v2752
      %v2755 = vrot.slane %v2751, 4
      %v2757 = vshrl.u32 %v2609, 16
      %v2759 = vrot.slane %v2757, 7
      %v2760 = vshll.u32 %v2609, 16
      %v2762 = vor.u32 %v2759, %v2760
      %v2763 = vsel %vm2628, %v2755, %v2762
      %v2764 = vrot.slane %v2759, 4
      %v2766 = vshrl.u32 %v2610, 16
      %v2768 = vrot.slane %v2766, 7
      %v2769 = vshll.u32 %v2610, 16
      %v2771 = vor.u32 %v2768, %v2769
      %v2772 = vrot.slane %v2768, 4
      %v2774 = vshrl.u32 %v2611, 16
      %v2776 = vrot.slane %v2774, 7
      %v2777 = vshll.u32 %v2611, 16
      %v2779 = vor.u32 %v2776, %v2777
      %v2780 = vsel %vm2628, %v2772, %v2779
      %v2781 = vrot.slane %v2776, 4
      %v2783 = vshrl.u32 %v2612, 16
      %v2785 = vrot.slane %v2783, 7
      %v2786 = vshll.u32 %v2612, 16
      %v2788 = vor.u32 %v2785, %v2786
      %v2789 = vrot.slane %v2785, 4
      %v2791 = vshrl.u32 %v2613, 16
      %v2793 = vrot.slane %v2791, 7
      %v2794 = vshll.u32 %v2613, 16
      %v2796 = vor.u32 %v2793, %v2794
      %v2797 = vsel %vm2628, %v2789, %v2796
      %v2798 = vrot.slane %v2793, 4
      %v2800 = vshrl.u32 %v2614, 16
      %v2802 = vrot.slane %v2800, 7
      %v2803 = vshll.u32 %v2614, 16
      %v2805 = vor.u32 %v2802, %v2803
      %v2806 = vrot.slane %v2802, 4
      %v2808 = vshrl.u32 %v2615, 16
      %v2810 = vrot.slane %v2808, 7
      %v2811 = vshll.u32 %v2615, 16
      %v2813 = vor.u32 %v2810, %v2811
      %v2814 = vsel %vm2628, %v2806, %v2813
      %v2815 = vrot.slane %v2810, 4
      %v2817 = vshrl.u32 %v2616, 16
      %v2819 = vrot.slane %v2817, 7
      %v2820 = vshll.u32 %v2616, 16
      %v2822 = vor.u32 %v2819, %v2820
      %v2823 = vrot.slane %v2819, 4
      %v2825 = vshrl.u32 %v2617, 16
      %v2827 = vrot.slane %v2825, 7
      %v2828 = vshll.u32 %v2617, 16
      %v2830 = vor.u32 %v2827, %v2828
      %v2831 = vsel %vm2628, %v2823, %v2830
      %v2832 = vrot.slane %v2827, 4
      %v2834 = vshrl.u32 %v2618, 16
      %v2836 = vrot.slane %v2834, 7
      %v2837 = vshll.u32 %v2618, 16
      %v2839 = vor.u32 %v2836, %v2837
      %v2840 = vrot.slane %v2836, 4
      %v2842 = vshrl.u32 %v2619, 16
      %v2844 = vrot.slane %v2842, 7
      %v2845 = vshll.u32 %v2619, 16
      %v2847 = vor.u32 %v2844, %v2845
      %v2848 = vsel %vm2628, %v2840, %v2847
      %v2849 = vrot.slane %v2844, 4
      %v2851 = vshrl.u32 %v2620, 16
      %v2853 = vrot.slane %v2851, 7
      %v2854 = vshll.u32 %v2620, 16
      %v2856 = vor.u32 %v2853, %v2854
      %v2857 = vrot.slane %v2853, 4
      %v2859 = vshrl.u32 %v2621, 16
      %v2861 = vrot.slane %v2859, 7
      %v2862 = vshll.u32 %v2621, 16
      %v2864 = vor.u32 %v2861, %v2862
      %v2865 = vsel %vm2628, %v2857, %v2864
      %v2866 = vrot.slane %v2861, 4
      %v2868 = vshrl.u32 %v2622, 16
      %v2870 = vrot.slane %v2868, 7
      %v2871 = vshll.u32 %v2622, 16
      %v2873 = vor.u32 %v2870, %v2871
      %v2874 = vrot.slane %v2870, 4
      %v2876 = vshrl.u32 %v2623, 16
      %v2878 = vrot.slane %v2876, 7
      %v2879 = vshll.u32 %v2623, 16
      %v2881 = vor.u32 %v2878, %v2879
      %v2882 = vsel %vm2628, %v2874, %v2881
      %v2883 = vrot.slane %v2878, 4
      %v2885 = vshrl.u32 %v2624, 16
      %v2887 = vrot.slane %v2885, 7
      %v2888 = vshll.u32 %v2624, 16
      %v2890 = vor.u32 %v2887, %v2888
      %v2891 = vrot.slane %v2887, 4
      %v2893 = vshrl.u32 %v2625, 16
      %v2895 = vrot.slane %v2893, 7
      %v2896 = vshll.u32 %v2625, 16
      %v2898 = vor.u32 %v2895, %v2896
      %v2899 = vsel %vm2628, %v2891, %v2898
      %v2900 = vrot.slane %v2895, 4
      %vm2949 = vcmask 1043456
      %vm2950 = vsmask.f32 7938
      %vm2951 = vmand %vm2949, %vm2950
      %v2952 = vld [vmem:[%s186] sm:$0xf]
      %v2953 = vsel %vm2951, %v2635, %v2952
      %2954 = vst [vmem:[%s186] sm:$0xf] %v2953
      %2955 = vst [vmem:[%s186 + $0x4] sm:$0xf] %v2644
      %vm2956 = vcmask 1040384
      %vm2957 = vmand %vm2956, %vm2626
      %v2958 = vld [vmem:[%s186 + $0x8] sm:$0x1]
      %v2959 = vsel %vm2957, %v2645, %v2958
      %2960 = vst [vmem:[%s186 + $0x8] sm:$0x1] %v2959
      %v2961 = vld [vmem:[%s186 + $0xc] sm:$0xf]
      %v2962 = vsel %vm2951, %v2652, %v2961
      %2963 = vst [vmem:[%s186 + $0xc] sm:$0xf] %v2962
      %2964 = vst [vmem:[%s186 + $0x10] sm:$0xf] %v2661
      %v2965 = vld [vmem:[%s186 + $0x14] sm:$0x1]
      %v2966 = vsel %vm2957, %v2662, %v2965
      %2967 = vst [vmem:[%s186 + $0x14] sm:$0x1] %v2966
      %v2968 = vld [vmem:[%s186 + $0x18] sm:$0xf]
      %v2969 = vsel %vm2951, %v2669, %v2968
      %2970 = vst [vmem:[%s186 + $0x18] sm:$0xf] %v2969
      %2971 = vst [vmem:[%s186 + $0x1c] sm:$0xf] %v2678
      %v2972 = vld [vmem:[%s186 + $0x20] sm:$0x1]
      %v2973 = vsel %vm2957, %v2679, %v2972
      %2974 = vst [vmem:[%s186 + $0x20] sm:$0x1] %v2973
      %v2975 = vld [vmem:[%s186 + $0x24] sm:$0xf]
      %v2976 = vsel %vm2951, %v2686, %v2975
      %2977 = vst [vmem:[%s186 + $0x24] sm:$0xf] %v2976
      %2978 = vst [vmem:[%s186 + $0x28] sm:$0xf] %v2695
      %v2979 = vld [vmem:[%s186 + $0x2c] sm:$0x1]
      %v2980 = vsel %vm2957, %v2696, %v2979
      %2981 = vst [vmem:[%s186 + $0x2c] sm:$0x1] %v2980
      %v2982 = vld [vmem:[%s186 + $0x30] sm:$0xf]
      %v2983 = vsel %vm2951, %v2703, %v2982
      %2984 = vst [vmem:[%s186 + $0x30] sm:$0xf] %v2983
      %2985 = vst [vmem:[%s186 + $0x34] sm:$0xf] %v2712
      %v2986 = vld [vmem:[%s186 + $0x38] sm:$0x1]
      %v2987 = vsel %vm2957, %v2713, %v2986
      %2988 = vst [vmem:[%s186 + $0x38] sm:$0x1] %v2987
      %v2989 = vld [vmem:[%s186 + $0x3c] sm:$0xf]
      %v2990 = vsel %vm2951, %v2720, %v2989
      %2991 = vst [vmem:[%s186 + $0x3c] sm:$0xf] %v2990
      %2992 = vst [vmem:[%s186 + $0x40] sm:$0xf] %v2729
      %v2993 = vld [vmem:[%s186 + $0x44] sm:$0x1]
      %v2994 = vsel %vm2957, %v2730, %v2993
      %2995 = vst [vmem:[%s186 + $0x44] sm:$0x1] %v2994
      %v2996 = vld [vmem:[%s186 + $0x48] sm:$0xf]
      %v2997 = vsel %vm2951, %v2737, %v2996
      %2998 = vst [vmem:[%s186 + $0x48] sm:$0xf] %v2997
      %2999 = vst [vmem:[%s186 + $0x4c] sm:$0xf] %v2746
      %v3000 = vld [vmem:[%s186 + $0x50] sm:$0x1]
      %v3001 = vsel %vm2957, %v2747, %v3000
      %3002 = vst [vmem:[%s186 + $0x50] sm:$0x1] %v3001
      %v3003 = vld [vmem:[%s186 + $0x54] sm:$0xf]
      %v3004 = vsel %vm2951, %v2754, %v3003
      %3005 = vst [vmem:[%s186 + $0x54] sm:$0xf] %v3004
      %3006 = vst [vmem:[%s186 + $0x58] sm:$0xf] %v2763
      %v3007 = vld [vmem:[%s186 + $0x5c] sm:$0x1]
      %v3008 = vsel %vm2957, %v2764, %v3007
      %3009 = vst [vmem:[%s186 + $0x5c] sm:$0x1] %v3008
      %v3010 = vld [vmem:[%s186 + $0x60] sm:$0xf]
      %v3011 = vsel %vm2951, %v2771, %v3010
      %3012 = vst [vmem:[%s186 + $0x60] sm:$0xf] %v3011
      %3013 = vst [vmem:[%s186 + $0x64] sm:$0xf] %v2780
      %v3014 = vld [vmem:[%s186 + $0x68] sm:$0x1]
      %v3015 = vsel %vm2957, %v2781, %v3014
      %3016 = vst [vmem:[%s186 + $0x68] sm:$0x1] %v3015
      %v3017 = vld [vmem:[%s186 + $0x6c] sm:$0xf]
      %v3018 = vsel %vm2951, %v2788, %v3017
      %3019 = vst [vmem:[%s186 + $0x6c] sm:$0xf] %v3018
      %3020 = vst [vmem:[%s186 + $0x70] sm:$0xf] %v2797
      %v3021 = vld [vmem:[%s186 + $0x74] sm:$0x1]
      %v3022 = vsel %vm2957, %v2798, %v3021
      %3023 = vst [vmem:[%s186 + $0x74] sm:$0x1] %v3022
      %v3024 = vld [vmem:[%s186 + $0x78] sm:$0xf]
      %v3025 = vsel %vm2951, %v2805, %v3024
      %3026 = vst [vmem:[%s186 + $0x78] sm:$0xf] %v3025
      %3027 = vst [vmem:[%s186 + $0x7c] sm:$0xf] %v2814
      %v3028 = vld [vmem:[%s186 + $0x80] sm:$0x1]
      %v3029 = vsel %vm2957, %v2815, %v3028
      %3030 = vst [vmem:[%s186 + $0x80] sm:$0x1] %v3029
      %v3031 = vld [vmem:[%s186 + $0x84] sm:$0xf]
      %v3032 = vsel %vm2951, %v2822, %v3031
      %3033 = vst [vmem:[%s186 + $0x84] sm:$0xf] %v3032
      %3034 = vst [vmem:[%s186 + $0x88] sm:$0xf] %v2831
      %v3035 = vld [vmem:[%s186 + $0x8c] sm:$0x1]
      %v3036 = vsel %vm2957, %v2832, %v3035
      %3037 = vst [vmem:[%s186 + $0x8c] sm:$0x1] %v3036
      %v3038 = vld [vmem:[%s186 + $0x90] sm:$0xf]
      %v3039 = vsel %vm2951, %v2839, %v3038
      %3040 = vst [vmem:[%s186 + $0x90] sm:$0xf] %v3039
      %3041 = vst [vmem:[%s186 + $0x94] sm:$0xf] %v2848
      %v3042 = vld [vmem:[%s186 + $0x98] sm:$0x1]
      %v3043 = vsel %vm2957, %v2849, %v3042
      %3044 = vst [vmem:[%s186 + $0x98] sm:$0x1] %v3043
      %v3045 = vld [vmem:[%s186 + $0x9c] sm:$0xf]
      %v3046 = vsel %vm2951, %v2856, %v3045
      %3047 = vst [vmem:[%s186 + $0x9c] sm:$0xf] %v3046
      %3048 = vst [vmem:[%s186 + $0xa0] sm:$0xf] %v2865
      %v3049 = vld [vmem:[%s186 + $0xa4] sm:$0x1]
      %v3050 = vsel %vm2957, %v2866, %v3049
      %3051 = vst [vmem:[%s186 + $0xa4] sm:$0x1] %v3050
      %v3052 = vld [vmem:[%s186 + $0xa8] sm:$0xf]
      %v3053 = vsel %vm2951, %v2873, %v3052
      %3054 = vst [vmem:[%s186 + $0xa8] sm:$0xf] %v3053
      %3055 = vst [vmem:[%s186 + $0xac] sm:$0xf] %v2882
      %v3056 = vld [vmem:[%s186 + $0xb0] sm:$0x1]
      %v3057 = vsel %vm2957, %v2883, %v3056
      %3058 = vst [vmem:[%s186 + $0xb0] sm:$0x1] %v3057
      %v3059 = vld [vmem:[%s186 + $0xb4] sm:$0xf]
      %v3060 = vsel %vm2951, %v2890, %v3059
      %3061 = vst [vmem:[%s186 + $0xb4] sm:$0xf] %v3060
      %3062 = vst [vmem:[%s186 + $0xb8] sm:$0xf] %v2899
      %v3063 = vld [vmem:[%s186 + $0xbc] sm:$0x1]
      %v3064 = vsel %vm2957, %v2900, %v3063
      %3065 = vst [vmem:[%s186 + $0xbc] sm:$0x1] %v3064
      %v3066 = vld [vmem:[%s186] sm:$0x1]
      %v3067 = vsel %vm2957, 0, %v3066
      %3068 = vst [vmem:[%s186] sm:$0x1] %v3067
      %v3069 = vld [vmem:[%s186 + $0xc] sm:$0x1]
      %v3070 = vsel %vm2957, 0, %v3069
      %3071 = vst [vmem:[%s186 + $0xc] sm:$0x1] %v3070
      %v3072 = vld [vmem:[%s186 + $0x18] sm:$0x1]
      %v3073 = vsel %vm2957, 0, %v3072
      %3074 = vst [vmem:[%s186 + $0x18] sm:$0x1] %v3073
      %v3075 = vld [vmem:[%s186 + $0x24] sm:$0x1]
      %v3076 = vsel %vm2957, 0, %v3075
      %3077 = vst [vmem:[%s186 + $0x24] sm:$0x1] %v3076
      %v3078 = vld [vmem:[%s186 + $0x30] sm:$0x1]
      %v3079 = vsel %vm2957, 0, %v3078
      %3080 = vst [vmem:[%s186 + $0x30] sm:$0x1] %v3079
      %v3081 = vld [vmem:[%s186 + $0x3c] sm:$0x1]
      %v3082 = vsel %vm2957, 0, %v3081
      %3083 = vst [vmem:[%s186 + $0x3c] sm:$0x1] %v3082
      %v3084 = vld [vmem:[%s186 + $0x48] sm:$0x1]
      %v3085 = vsel %vm2957, 0, %v3084
      %3086 = vst [vmem:[%s186 + $0x48] sm:$0x1] %v3085
      %v3087 = vld [vmem:[%s186 + $0x54] sm:$0x1]
      %v3088 = vsel %vm2957, 0, %v3087
      %3089 = vst [vmem:[%s186 + $0x54] sm:$0x1] %v3088
      %v3090 = vld [vmem:[%s186 + $0x60] sm:$0x1]
      %v3091 = vsel %vm2957, 0, %v3090
      %3092 = vst [vmem:[%s186 + $0x60] sm:$0x1] %v3091
      %v3093 = vld [vmem:[%s186 + $0x6c] sm:$0x1]
      %v3094 = vsel %vm2957, 0, %v3093
      %3095 = vst [vmem:[%s186 + $0x6c] sm:$0x1] %v3094
      %v3096 = vld [vmem:[%s186 + $0x78] sm:$0x1]
      %v3097 = vsel %vm2957, 0, %v3096
      %3098 = vst [vmem:[%s186 + $0x78] sm:$0x1] %v3097
      %v3099 = vld [vmem:[%s186 + $0x84] sm:$0x1]
      %v3100 = vsel %vm2957, 0, %v3099
      %3101 = vst [vmem:[%s186 + $0x84] sm:$0x1] %v3100
      %v3102 = vld [vmem:[%s186 + $0x90] sm:$0x1]
      %v3103 = vsel %vm2957, 0, %v3102
      %3104 = vst [vmem:[%s186 + $0x90] sm:$0x1] %v3103
      %v3105 = vld [vmem:[%s186 + $0x9c] sm:$0x1]
      %v3106 = vsel %vm2957, 0, %v3105
      %3107 = vst [vmem:[%s186 + $0x9c] sm:$0x1] %v3106
      %v3108 = vld [vmem:[%s186 + $0xa8] sm:$0x1]
      %v3109 = vsel %vm2957, 0, %v3108
      %3110 = vst [vmem:[%s186 + $0xa8] sm:$0x1] %v3109
      %v3111 = vld [vmem:[%s186 + $0xb4] sm:$0x1]
      %v3112 = vsel %vm2957, 0, %v3111
      %3113 = vst [vmem:[%s186 + $0xb4] sm:$0x1] %v3112
      %v3114 = vld [vmem:[%s186 + $0x8] sm:$0xf]
      %v3115 = vsel %vm2951, 0, %v3114
      %3116 = vst [vmem:[%s186 + $0x8] sm:$0xf] %v3115
      %v3117 = vld [vmem:[%s186 + $0x14] sm:$0xf]
      %v3118 = vsel %vm2951, 0, %v3117
      %3119 = vst [vmem:[%s186 + $0x14] sm:$0xf] %v3118
      %v3120 = vld [vmem:[%s186 + $0x20] sm:$0xf]
      %v3121 = vsel %vm2951, 0, %v3120
      %3122 = vst [vmem:[%s186 + $0x20] sm:$0xf] %v3121
      %v3123 = vld [vmem:[%s186 + $0x2c] sm:$0xf]
      %v3124 = vsel %vm2951, 0, %v3123
      %3125 = vst [vmem:[%s186 + $0x2c] sm:$0xf] %v3124
      %v3126 = vld [vmem:[%s186 + $0x38] sm:$0xf]
      %v3127 = vsel %vm2951, 0, %v3126
      %3128 = vst [vmem:[%s186 + $0x38] sm:$0xf] %v3127
      %v3129 = vld [vmem:[%s186 + $0x44] sm:$0xf]
      %v3130 = vsel %vm2951, 0, %v3129
      %3131 = vst [vmem:[%s186 + $0x44] sm:$0xf] %v3130
      %v3132 = vld [vmem:[%s186 + $0x50] sm:$0xf]
      %v3133 = vsel %vm2951, 0, %v3132
      %3134 = vst [vmem:[%s186 + $0x50] sm:$0xf] %v3133
      %v3135 = vld [vmem:[%s186 + $0x5c] sm:$0xf]
      %v3136 = vsel %vm2951, 0, %v3135
      %3137 = vst [vmem:[%s186 + $0x5c] sm:$0xf] %v3136
      %v3138 = vld [vmem:[%s186 + $0x68] sm:$0xf]
      %v3139 = vsel %vm2951, 0, %v3138
      %3140 = vst [vmem:[%s186 + $0x68] sm:$0xf] %v3139
      %v3141 = vld [vmem:[%s186 + $0x74] sm:$0xf]
      %v3142 = vsel %vm2951, 0, %v3141
      %3143 = vst [vmem:[%s186 + $0x74] sm:$0xf] %v3142
      %v3144 = vld [vmem:[%s186 + $0x80] sm:$0xf]
      %v3145 = vsel %vm2951, 0, %v3144
      %3146 = vst [vmem:[%s186 + $0x80] sm:$0xf] %v3145
      %v3147 = vld [vmem:[%s186 + $0x8c] sm:$0xf]
      %v3148 = vsel %vm2951, 0, %v3147
      %3149 = vst [vmem:[%s186 + $0x8c] sm:$0xf] %v3148
      %v3150 = vld [vmem:[%s186 + $0x98] sm:$0xf]
      %v3151 = vsel %vm2951, 0, %v3150
      %3152 = vst [vmem:[%s186 + $0x98] sm:$0xf] %v3151
      %v3153 = vld [vmem:[%s186 + $0xa4] sm:$0xf]
      %v3154 = vsel %vm2951, 0, %v3153
      %3155 = vst [vmem:[%s186 + $0xa4] sm:$0xf] %v3154
      %v3156 = vld [vmem:[%s186 + $0xb0] sm:$0xf]
      %v3157 = vsel %vm2951, 0, %v3156
      %3158 = vst [vmem:[%s186 + $0xb0] sm:$0xf] %v3157
      %v3159 = vld [vmem:[%s186 + $0xbc] sm:$0xf]
      %v3160 = vsel %vm2951, 0, %v3159
      %3161 = vst [vmem:[%s186 + $0xbc] sm:$0xf] %v3160
      // Predicated region
      $region101: #{residual_forward.3} parent=23 // pred_check
        %p3162 = pneg %p207
      $region102: #{residual_forward.3} parent=23 // pred_check_branch
        %3164 = sbr.rel (%p3162) target = $region104
      $region103: #{residual_forward.3} parent=23 // pred_region
        %3165 = vst [vmem:[%s190] sm:$0x1] 0.0
        %3166 = vst [vmem:[%s193] sm:$0x1] 0.0
      $region104: #{residual_forward.3} parent=23 // pred_fallthru
        _
      %v3167 = vld [vmem:[%s190] sm:$0x1]
      %v3168 = vadd.f32 %v2498, %v2499
      %v3169 = vadd.f32 %v3168, %v2500
      %v3170 = vadd.f32 %v3169, %v2501
      %v3171 = vadd.f32 %v3170, %v2502
      %v3172 = vadd.f32 %v3171, %v2503
      %v3173 = vadd.f32 %v3172, %v2504
      %v3174 = vadd.f32 %v3173, %v2505
      %v3175 = vadd.f32 %v3174, %v2506
      %v3176 = vadd.f32 %v3175, %v2507
      %v3177 = vadd.f32 %v3176, %v2508
      %v3178 = vadd.f32 %v3177, %v2509
      %v3179 = vadd.f32 %v3178, %v2510
      %v3180 = vadd.f32 %v3179, %v2511
      %v3181 = vadd.f32 %v3180, %v2512
      %v3182 = vadd.f32 %v3181, %v2513
      %v3183 = vadd.f32 %v3182, %v2514
      %v3184 = vadd.f32 %v3183, %v2515
      %v3185 = vadd.f32 %v3184, %v2516
      %v3186 = vadd.f32 %v3185, %v2517
      %v3187 = vadd.f32 %v3186, %v2518
      %v3188 = vadd.f32 %v3187, %v2519
      %v3189 = vadd.f32 %v3188, %v2520
      %v3190 = vadd.f32 %v3189, %v2521
      %v3191 = vadd.f32 %v3190, %v2522
      %v3192 = vadd.f32 %v3191, %v2523
      %v3193 = vadd.f32 %v3192, %v2524
      %v3194 = vadd.f32 %v3193, %v2525
      %v3195 = vadd.f32 %v3194, %v2526
      %v3196 = vadd.f32 %v3195, %v2527
      %v3197 = vadd.f32 %v3196, %v2528
      %v3198 = vadd.f32 %v3197, %v2529
      %v3199 = vrot.slane %v3198, 4
      %v3200 = vadd.f32 %v3198, %v3199
      %v3201 = vrot.slane %v3200, 2
      %v3202 = vadd.f32 %v3200, %v3201
      %v3203 = vrot.slane %v3202, 1
      %v3204 = vadd.f32 %v3202, %v3203
      %v3205 = vadd.f32 %v3167, %v3204
      %3206 = vst [vmem:[%s190] sm:$0x1] %v3205
      %v3207 = vld [vmem:[%s193] sm:$0x1]
      %v3208 = vmul.f32 %v2498, %v2498
      %v3209 = vmul.f32 %v2499, %v2499
      %v3210 = vmul.f32 %v2500, %v2500
      %v3211 = vmul.f32 %v2501, %v2501
      %v3212 = vmul.f32 %v2502, %v2502
      %v3213 = vmul.f32 %v2503, %v2503
      %v3214 = vmul.f32 %v2504, %v2504
      %v3215 = vmul.f32 %v2505, %v2505
      %v3216 = vmul.f32 %v2506, %v2506
      %v3217 = vmul.f32 %v2507, %v2507
      %v3218 = vmul.f32 %v2508, %v2508
      %v3219 = vmul.f32 %v2509, %v2509
      %v3220 = vmul.f32 %v2510, %v2510
      %v3221 = vmul.f32 %v2511, %v2511
      %v3222 = vmul.f32 %v2512, %v2512
      %v3223 = vmul.f32 %v2513, %v2513
      %v3224 = vmul.f32 %v2514, %v2514
      %v3225 = vmul.f32 %v2515, %v2515
      %v3226 = vmul.f32 %v2516, %v2516
      %v3227 = vmul.f32 %v2517, %v2517
      %v3228 = vmul.f32 %v2518, %v2518
      %v3229 = vmul.f32 %v2519, %v2519
      %v3230 = vmul.f32 %v2520, %v2520
      %v3231 = vmul.f32 %v2521, %v2521
      %v3232 = vmul.f32 %v2522, %v2522
      %v3233 = vmul.f32 %v2523, %v2523
      %v3234 = vmul.f32 %v2524, %v2524
      %v3235 = vmul.f32 %v2525, %v2525
      %v3236 = vmul.f32 %v2526, %v2526
      %v3237 = vmul.f32 %v2527, %v2527
      %v3238 = vmul.f32 %v2528, %v2528
      %v3239 = vmul.f32 %v2529, %v2529
      %v3240 = vadd.f32 %v3208, %v3209
      %v3241 = vadd.f32 %v3240, %v3210
      %v3242 = vadd.f32 %v3241, %v3211
      %v3243 = vadd.f32 %v3242, %v3212
      %v3244 = vadd.f32 %v3243, %v3213
      %v3245 = vadd.f32 %v3244, %v3214
      %v3246 = vadd.f32 %v3245, %v3215
      %v3247 = vadd.f32 %v3246, %v3216
      %v3248 = vadd.f32 %v3247, %v3217
      %v3249 = vadd.f32 %v3248, %v3218
      %v3250 = vadd.f32 %v3249, %v3219
      %v3251 = vadd.f32 %v3250, %v3220
      %v3252 = vadd.f32 %v3251, %v3221
      %v3253 = vadd.f32 %v3252, %v3222
      %v3254 = vadd.f32 %v3253, %v3223
      %v3255 = vadd.f32 %v3254, %v3224
      %v3256 = vadd.f32 %v3255, %v3225
      %v3257 = vadd.f32 %v3256, %v3226
      %v3258 = vadd.f32 %v3257, %v3227
      %v3259 = vadd.f32 %v3258, %v3228
      %v3260 = vadd.f32 %v3259, %v3229
      %v3261 = vadd.f32 %v3260, %v3230
      %v3262 = vadd.f32 %v3261, %v3231
      %v3263 = vadd.f32 %v3262, %v3232
      %v3264 = vadd.f32 %v3263, %v3233
      %v3265 = vadd.f32 %v3264, %v3234
      %v3266 = vadd.f32 %v3265, %v3235
      %v3267 = vadd.f32 %v3266, %v3236
      %v3268 = vadd.f32 %v3267, %v3237
      %v3269 = vadd.f32 %v3268, %v3238
      %v3270 = vadd.f32 %v3269, %v3239
      %v3271 = vrot.slane %v3270, 4
      %v3272 = vadd.f32 %v3270, %v3271
      %v3273 = vrot.slane %v3272, 2
      %v3274 = vadd.f32 %v3272, %v3273
      %v3275 = vrot.slane %v3274, 1
      %v3276 = vadd.f32 %v3274, %v3275
      %v3277 = vadd.f32 %v3207, %v3276
      %3278 = vst [vmem:[%s193] sm:$0x1] %v3277
      %s3279 = smul.u32 16, %s21
      %p3280 = scmp.lt.s32.totalorder %s20, 1
      %s3281 = scalar_select %p3280, %s20, 1
      %p3282 = scmp.lt.s32.totalorder %s3279, 15
      %s3283 = scalar_select %p3282, %s3279, 15
      %s3284 = smul.addr %s3283, 3
      %s3285 = smul.addr %s3281, 48
      %s3286 = sadd.s32 %s3284, %s3285
      %s3287 = smul.addr %s3286, 4
      %s3288 = scalar_lea.vmem %s2, %s3287
      %p3289 = scmp.lt.s32.totalorder %s20, 1
      %s3290 = scalar_select %p3289, %s20, 1
      %s3291 = scalar_lea.vmem %s3, %s3290
      %p3292 = scmp.lt.s32.totalorder %s20, 1
      %s3293 = scalar_select %p3292, %s20, 1
      %s3294 = scalar_lea.vmem %s4, %s3293
      // Predicated region
      $region105: #{residual_forward.3} parent=23 // pred_check
        %p3295 = pneg %p69
      $region106: #{residual_forward.3} parent=23 // pred_check_branch
        %3297 = sbr.rel (%p3295) target = $region108
      $region107: #{residual_forward.3} parent=23 // pred_region
        %s3298 = smul.u32 16, %s21
      $region108: #{residual_forward.3} parent=23 // pred_fallthru
        _
      // Predicated region
      $region109: #{residual_forward.3} parent=23 // pred_check
        %p3299 = pneg %p95
      $region110: #{residual_forward.3} parent=23 // pred_check_branch
        %3301 = sbr.rel (%p3299) target = $region112
      $region111: #{residual_forward.3} parent=23 // pred_region
        _
      $region112: #{residual_forward.3} parent=23 // pred_fallthru
        _
      // Predicated region
      $region113: #{residual_forward.3} parent=23 // pred_check
        %p3302 = pneg %p121
      $region114: #{residual_forward.3} parent=23 // pred_check_branch
        %3304 = sbr.rel (%p3302) target = $region116
      $region115: #{residual_forward.3} parent=23 // pred_region
        _
      $region116: #{residual_forward.3} parent=23 // pred_fallthru
        _
    $region24: #{residual_forward.3} parent=5 // pred_fallthru
      _
    %p3305 = scmp.le.s32.totalorder 2, %s11
    // Predicated region
    $region117: #{residual_forward.3} parent=5 // pred_check
      %p3306 = pneg %p3305
    $region118: #{residual_forward.3} parent=5 // pred_check_branch
      %3308 = sbr.rel (%p3306) target = $region120
    $region119: #{residual_forward.3} parent=5 // pred_region
      %s3309 = ssub.s32 %s11, 2
      // Predicated region
      $region121: #{residual_forward.3} parent=119 // pred_check
        %p3310 = pneg %p75
      $region122: #{residual_forward.3} parent=119 // pred_check_branch
        %3312 = sbr.rel (%p3310) target = $region124
      $region123: #{residual_forward.3} parent=119 // pred_region
        %s3313 = smul.u32 16, %s23
        %p3314 = scmp.lt.s32.totalorder %s22, 1
        %s3315 = scalar_select %p3314, %s22, 1
        %p3316 = scmp.lt.s32.totalorder %s3313, 15
        %s3317 = scalar_select %p3316, %s3313, 15
        %s3318 = smul.addr %s3317, 3
        %s3319 = smul.addr %s3315, 48
        %s3320 = sadd.s32 %s3318, %s3319
        %s3321 = smul.addr %s3320, 4
        %s3322 = scalar_lea.vmem %s2, %s3321
      $region124: #{residual_forward.3} parent=119 // pred_fallthru
        _
      // Predicated region
      $region125: #{residual_forward.3} parent=119 // pred_check
        %p3323 = pneg %p101
      $region126: #{residual_forward.3} parent=119 // pred_check_branch
        %3325 = sbr.rel (%p3323) target = $region128
      $region127: #{residual_forward.3} parent=119 // pred_region
        %p3326 = scmp.lt.s32.totalorder %s22, 1
        %s3327 = scalar_select %p3326, %s22, 1
        %s3328 = scalar_lea.vmem %s3, %s3327
      $region128: #{residual_forward.3} parent=119 // pred_fallthru
        _
      // Predicated region
      $region129: #{residual_forward.3} parent=119 // pred_check
        %p3329 = pneg %p127
      $region130: #{residual_forward.3} parent=119 // pred_check_branch
        %3331 = sbr.rel (%p3329) target = $region132
      $region131: #{residual_forward.3} parent=119 // pred_region
        %p3332 = scmp.lt.s32.totalorder %s22, 1
        %s3333 = scalar_select %p3332, %s22, 1
        %s3334 = scalar_lea.vmem %s4, %s3333
      $region132: #{residual_forward.3} parent=119 // pred_fallthru
        _
    $region120: #{residual_forward.3} parent=5 // pred_fallthru
      _
  $region6: #{residual_forward.3} parent=0 // loop_footer
    %s15 = sadd.s32 1, %s11
  $region7: #{residual_forward.3} parent=0 // loop_footer_branch
    %10 = sbr.rel target = $region3
  $region8: #{residual_forward.3} parent=0 // loop_exit
    _
  %3335 = vsyncmov [#allocation3]
  %s3336 = vpop.sfrf %3335
  %p3337 = scmp.eq.s32.totalorder %s3336, 0
  %p3338 = pneg %p3337
  %3340 = shalt.err (%p3338)
  %s3341 = scalar_lea.sflag [#allocation3], 1
  %3342 = vsyncmov %s3341
  %s3343 = vpop.sfrf %3342
  %p3344 = scmp.eq.s32.totalorder %s3343, 0
  %p3345 = pneg %p3344
  %3347 = shalt.err (%p3345)

</llo_original>
